<compile_context>
chip_gen: v7x
topology: tpu7x:2x2x1
jax: 0.10.0
libtpu: 0.0.40
codegen_flags: <defaults>
</compile_context>

<pallas_src>
import functools

import jax
import jax.numpy as jnp
from jax import lax
from jax.experimental import pallas as pl
from jax.experimental.pallas import tpu as pltpu


_LANE = 128


def _vmem_limit_bytes():
    # generation-aware scoped-VMEM budget (v7x: 64 MiB physical, v5e/v6e: 128 MiB)
    try:
        cap = int(pltpu.get_tpu_info().vmem_capacity_bytes)
    except Exception:
        cap = 64 * 1024 * 1024
    return int(min(cap * 3 // 4, 96 * 1024 * 1024))


_VMEM_LIMIT = _vmem_limit_bytes()


def _round_up(x, m):
    return -(-x // m) * m


# ----------------------------- in-kernel math helpers -----------------------------
def _leaky_relu(x):
    return jnp.where(x >= 0.0, x, 0.01 * x)


def _relu(x):
    return jnp.maximum(x, 0.0)


def _elu(x):
    # alpha = 1.0 ; clamp exp arg so the dead branch never overflows
    return jnp.where(x > 0.0, x, jnp.exp(jnp.minimum(x, 0.0)) - 1.0)


def _identity(x):
    return x


def _sigmoid(x):
    return 1.0 / (1.0 + jnp.exp(-x))


def _softmax_last(x):
    m = jnp.max(x, axis=-1, keepdims=True)
    e = jnp.exp(x - m)
    return e / jnp.sum(e, axis=-1, keepdims=True)


def _gru_core(x, h, wih_ref, whh_ref, bih_ref, bhh_ref):
    # PyTorch nn.GRUCell, gate order (r, z, n).  With Dp a multiple of 128 the gate slices of
    # the single [M,3Dp] matmul results are 128-lane aligned (no per-gate weight split needed).
    dp = x.shape[-1]
    gi = jnp.dot(x, wih_ref[...], preferred_element_type=jnp.float32) + bih_ref[...]
    gh = jnp.dot(h, whh_ref[...], preferred_element_type=jnp.float32) + bhh_ref[...]
    r = _sigmoid(gi[:, 0:dp] + gh[:, 0:dp])
    z = _sigmoid(gi[:, dp:2 * dp] + gh[:, dp:2 * dp])
    n = jnp.tanh(gi[:, 2 * dp:3 * dp] + r * gh[:, 2 * dp:3 * dp])
    return (1.0 - z) * n + z * h


# ----------------------------- tiled linear (atom_fc / neighbor_fc) -----------------------------
def _linear_kernel(x_ref, w_ref, b_ref, o_ref, *, act):
    o_ref[...] = act(jnp.dot(x_ref[...], w_ref[...], preferred_element_type=jnp.float32)
                     + b_ref[...])


def linear(x, w, b, act=_identity, max_tile=2048):
    M, K = x.shape
    N = w.shape[1]
    tm = min(max_tile, M)   # rows are independent; a partial last tile is fine
    return pl.pallas_call(
        functools.partial(_linear_kernel, act=act),
        grid=(pl.cdiv(M, tm),),
        in_specs=[pl.BlockSpec((tm, K), lambda i: (i, 0)),
                  pl.BlockSpec((K, N), lambda i: (0, 0)),
                  pl.BlockSpec((1, N), lambda i: (0, 0))],
        out_specs=pl.BlockSpec((tm, N), lambda i: (i, 0)),
        out_shape=jax.ShapeDtypeStruct((M, N), jnp.float32),
        compiler_params=pltpu.CompilerParams(
            dimension_semantics=("parallel",), vmem_limit_bytes=_VMEM_LIMIT),
    )(x, w, b.reshape(1, N))


# ----------------------------- fused neighbor attention + GRU (one radius round) -----------------------------
def _nbr_round_kernel(af_ref, h_ref, nf_ref, smask_ref, amask_ref,
                      wa_ref, wnb_ref, ba_ref, attw_ref, attb_ref,
                      wih_ref, whh_ref, bih_ref, bhh_ref,
                      h_out_ref, *, n_nbr, dp, relu_inputs):
    af = af_ref[...]                                    # [tm, Dp]
    nf = nf_ref[...]                                    # [tm, N*Dp]  lane-dense
    if relu_inputs:                                     # rounds d>0 use relu(h); relu commutes
        af = _relu(af)                                  # with the neighbor gather
        nf = _relu(nf)
    h = h_ref[...]                                      # [tm, Dp] GRU hidden (not relu'd)

    # align scores for all neighbors in one MXU matmul against a block-diagonal weight
    s_a = jnp.sum(af * wa_ref[...], axis=1, keepdims=True)                  # [tm, 1]
    s_n = jnp.dot(nf, wnb_ref[...], preferred_element_type=jnp.float32)     # [tm, N]
    scores = _leaky_relu(s_a + s_n + ba_ref[...]) + smask_ref[...]

    # masked softmax over the neighbor axis
    m = jnp.max(scores, axis=1, keepdims=True)
    e = jnp.exp(scores - m)
    w = (e / jnp.sum(e, axis=1, keepdims=True)) * amask_ref[...]            # [tm, N]

    # sum_n w_n (nf_n W + b) == (sum_n w_n nf_n) W + (sum_n w_n) b  -> one [tm,Dp]@[Dp,Dp]
    weighted = w[:, 0:1] * nf[:, 0:dp]
    for k in range(1, n_nbr):
        weighted = weighted + w[:, k:k + 1] * nf[:, k * dp:(k + 1) * dp]
    wsum = jnp.sum(w, axis=1, keepdims=True)
    ctx = _elu(jnp.dot(weighted, attw_ref[...], preferred_element_type=jnp.float32)
               + wsum * attb_ref[...])

    h_out_ref[...] = _gru_core(ctx, h, wih_ref, whh_ref, bih_ref, bhh_ref)


def nbr_round(af, h, nf_flat, smask, amask, wa, wn_block, ba, attw, attb,
              wih, whh, bih, bhh, *, relu_inputs, max_tile=256):
    # max_tile kept small (128-256): with Dp=128 the GRU working set per tile is already large;
    # a multi-step "parallel" row grid also lets v7x shard rows across its 2 TensorCores.
    M, Dp = af.shape
    NDp = nf_flat.shape[1]
    N = NDp // Dp
    tm = min(max_tile, M)
    row2 = lambda i: (i, 0)
    full2 = lambda i: (0, 0)
    return pl.pallas_call(
        functools.partial(_nbr_round_kernel, n_nbr=N, dp=Dp, relu_inputs=relu_inputs),
        grid=(pl.cdiv(M, tm),),
        in_specs=[
            pl.BlockSpec((tm, Dp), row2),                    # af  (expand features)
            pl.BlockSpec((tm, Dp), row2),                    # h   (GRU hidden)
            pl.BlockSpec((tm, NDp), row2),                   # neighbor features (flattened)
            pl.BlockSpec((tm, N), row2),                     # softmax mask
            pl.BlockSpec((tm, N), row2),                     # attend mask
            pl.BlockSpec((1, Dp), full2),                    # align w (atom half)
            pl.BlockSpec((NDp, N), full2),                   # align w (neighbor, block-diag)
            pl.BlockSpec((1, 1), full2),                     # align bias
            pl.BlockSpec((Dp, Dp), full2),                   # attend weight
            pl.BlockSpec((1, Dp), full2),                    # attend bias
            pl.BlockSpec((Dp, 3 * Dp), full2),               # GRU w_ih
            pl.BlockSpec((Dp, 3 * Dp), full2),               # GRU w_hh
            pl.BlockSpec((1, 3 * Dp), full2),                # GRU b_ih
            pl.BlockSpec((1, 3 * Dp), full2),                # GRU b_hh
        ],
        out_specs=pl.BlockSpec((tm, Dp), row2),
        out_shape=jax.ShapeDtypeStruct((M, Dp), jnp.float32),
        compiler_params=pltpu.CompilerParams(
            dimension_semantics=("parallel",), vmem_limit_bytes=_VMEM_LIMIT),
    )(af, h, nf_flat, smask, amask, wa, wn_block, ba, attw, attb, wih, whh, bih, bhh)


# ----------------------------- fused T molecule rounds (attention+GRU+LN residual) -----------------------------
def _mol_rounds_kernel(h3_ref, mask_ref,
                       wm_ref, wa_ref, ba_ref, attw_ref, attb_ref,
                       wih_ref, whh_ref, bih_ref, bhh_ref, lng_ref, lnb_ref,
                       o_ref, *, d_real):
    t = pl.program_id(0)
    act3 = _relu(h3_ref[...])                          # [B, L, Dp] activated atom features
    mask = mask_ref[...]                               # [B, L]
    mask3 = mask[:, :, None]

    @pl.when(t == 0)
    def _():
        # masked_sum of the activated features folded into the first iteration
        o_ref[...] = jnp.sum(act3 * mask3, axis=1)

    h = o_ref[...]                                     # mol_feature carry (VMEM resident)
    act_mol = _relu(h)

    s_m = jnp.sum(act_mol * wm_ref[...], axis=1, keepdims=True)             # [B, 1]
    s_a = jnp.sum(act3 * wa_ref[...][None], axis=2)                         # [B, L]
    smask = jnp.where(mask == 0.0, -9e8, 0.0)
    s = _leaky_relu(s_a + s_m + ba_ref[...]) + smask

    m = jnp.max(s, axis=1, keepdims=True)
    e = jnp.exp(s - m)
    w = (e / jnp.sum(e, axis=1, keepdims=True)) * mask                      # [B, L]

    weighted = jnp.sum(w[:, :, None] * act3, axis=1)                        # [B, Dp]
    wsum = jnp.sum(w, axis=1, keepdims=True)
    ctx = _elu(jnp.dot(weighted, attw_ref[...], preferred_element_type=jnp.float32)
               + wsum * attb_ref[...])

    h_new = _gru_core(ctx, h, wih_ref, whh_ref, bih_ref, bhh_ref)

    # LayerNorm over the real (unpadded) feature columns, + residual.  Padded columns of
    # h_new are exactly 0 and gamma/beta are zero-padded, so the result stays zero-padded.
    dp = h_new.shape[-1]
    col_mask = (lax.broadcasted_iota(jnp.int32, (1, dp), 1) < d_real).astype(jnp.float32)
    mu = jnp.sum(h_new, axis=-1, keepdims=True) / d_real
    diff = (h_new - mu) * col_mask
    var = jnp.sum(diff * diff, axis=-1, keepdims=True) / d_real
    xn = (h_new - mu) * lax.rsqrt(var + 1e-5)
    o_ref[...] = xn * lng_ref[...] + lnb_ref[...] + h_new


def mol_rounds(h3, atom_mask, wm, wa, ba, attw, attb, wih, whh, bih, bhh,
               lng, lnb, *, T, d_real):
    assert T >= 1
    B, L, Dp = h3.shape
    c2 = lambda t: (0, 0)
    c3 = lambda t: (0, 0, 0)
    return pl.pallas_call(
        functools.partial(_mol_rounds_kernel, d_real=d_real),
        grid=(T,),
        in_specs=[
            pl.BlockSpec((B, L, Dp), c3),                    # atom features (DMA'd once)
            pl.BlockSpec((B, L), c2),                        # atom mask
            pl.BlockSpec((1, Dp), c2),                       # mol_align w (mol half)
            pl.BlockSpec((1, Dp), c2),                       # mol_align w (atom half)
            pl.BlockSpec((1, 1), c2),                        # mol_align bias
            pl.BlockSpec((Dp, Dp), c2),                      # mol_attend weight
            pl.BlockSpec((1, Dp), c2),                       # mol_attend bias
            pl.BlockSpec((Dp, 3 * Dp), c2),                  # mol GRU w_ih
            pl.BlockSpec((Dp, 3 * Dp), c2),                  # mol GRU w_hh
            pl.BlockSpec((1, 3 * Dp), c2),                   # mol GRU b_ih
            pl.BlockSpec((1, 3 * Dp), c2),                   # mol GRU b_hh
            pl.BlockSpec((1, Dp), c2),                       # LayerNorm gamma (zero padded)
            pl.BlockSpec((1, Dp), c2),                       # LayerNorm beta  (zero padded)
        ],
        out_specs=pl.BlockSpec((B, Dp), c2),
        out_shape=jax.ShapeDtypeStruct((B, Dp), jnp.float32),
        compiler_params=pltpu.CompilerParams(
            dimension_semantics=("arbitrary",), vmem_limit_bytes=_VMEM_LIMIT),
    )(h3, atom_mask, wm, wa, ba, attw, attb, wih, whh, bih, bhh, lng, lnb)


# ----------------------------- fused PointNet branch: conv1->conv2->conv3->max -----------------------------
def _pointnet_kernel(x_ref, w1_ref, b1_ref, w2_ref, b2_ref, w3_ref, b3_ref, o_ref,
                     *, p_total, tp):
    p = pl.program_id(1)
    x = x_ref[0]                                                       # [tp, Cin]
    x = _leaky_relu(jnp.dot(x, w1_ref[...], preferred_element_type=jnp.float32) + b1_ref[...])
    x = _leaky_relu(jnp.dot(x, w2_ref[...], preferred_element_type=jnp.float32) + b2_ref[...])
    x = _leaky_relu(jnp.dot(x, w3_ref[...], preferred_element_type=jnp.float32) + b3_ref[...])
    # mask rows past the real number of points (partial last tile) before the max
    row = p * tp + lax.broadcasted_iota(jnp.int32, (tp, 1), 0)
    x = jnp.where(row < p_total, x, -jnp.inf)
    blk = jnp.max(x, axis=0, keepdims=True)[None]                      # [1, 1, C3]

    @pl.when(p == 0)
    def _():
        o_ref[...] = blk

    @pl.when(p > 0)
    def _():
        o_ref[...] = jnp.maximum(o_ref[...], blk)


def pointnet_pool(xyz, w1, b1, w2, b2, w3, b3):
    # TODO(synk): max-pool ignores any point-validity mask, matching the PyTorch reference
    # (torch.max over all P points).
    B, P, Cin = xyz.shape
    C1, C2, C3 = w1.shape[1], w2.shape[1], w3.shape[1]
    tp = P if P <= 512 else 512          # large point tile; partial tiles masked with -inf
    full2 = lambda b, p: (0, 0)
    out = pl.pallas_call(
        functools.partial(_pointnet_kernel, p_total=P, tp=tp),
        grid=(B, pl.cdiv(P, tp)),
        in_specs=[
            pl.BlockSpec((1, tp, Cin), lambda b, p: (b, p, 0)),
            pl.BlockSpec((Cin, C1), full2), pl.BlockSpec((1, C1), full2),
            pl.BlockSpec((C1, C2), full2), pl.BlockSpec((1, C2), full2),
            pl.BlockSpec((C2, C3), full2), pl.BlockSpec((1, C3), full2),
        ],
        out_specs=pl.BlockSpec((1, 1, C3), lambda b, p: (b, 0, 0)),
        out_shape=jax.ShapeDtypeStruct((B, 1, C3), jnp.float32),
        compiler_params=pltpu.CompilerParams(
            dimension_semantics=("parallel", "arbitrary"),
            vmem_limit_bytes=_VMEM_LIMIT),
    )(xyz, w1, b1.reshape(1, C1), w2, b2.reshape(1, C2), w3, b3.reshape(1, C3))
    return out.reshape(B, C3)


# ----------------------------- fused head: fc1 -> fc2 -> concat -> fc3 -> fc4 -> softmax -----------------------------
def _head_kernel(mol_ref, xyz_ref, w1_ref, b1_ref, w2_ref, b2_ref,
                 w3m_ref, w3x_ref, b3_ref, w4_ref, b4_ref, o_ref):
    x = _relu(jnp.dot(xyz_ref[...], w1_ref[...], preferred_element_type=jnp.float32) + b1_ref[...])
    x = _relu(jnp.dot(x, w2_ref[...], preferred_element_type=jnp.float32) + b2_ref[...])
    # concat([mol, x]) @ fc3_w  ==  mol @ fc3_w[:D] + x @ fc3_w[D:]
    f = _relu(jnp.dot(mol_ref[...], w3m_ref[...], preferred_element_type=jnp.float32)
              + jnp.dot(x, w3x_ref[...], preferred_element_type=jnp.float32)
              + b3_ref[...])
    logits = jnp.dot(f, w4_ref[...], preferred_element_type=jnp.float32) + b4_ref[...]
    o_ref[...] = _softmax_last(logits)


def head(mol_feature, xyz_pool, w3m, w3x, params):
    B = mol_feature.shape[0]
    C = params["fc4_w"].shape[1]
    return pl.pallas_call(
        _head_kernel,
        out_shape=jax.ShapeDtypeStruct((B, C), jnp.float32),
        compiler_params=pltpu.CompilerParams(vmem_limit_bytes=_VMEM_LIMIT),
    )(mol_feature, xyz_pool,
      params["fc1_w"], params["fc1_b"].reshape(1, -1),
      params["fc2_w"], params["fc2_b"].reshape(1, -1),
      w3m, w3x, params["fc3_b"].reshape(1, -1),
      params["fc4_w"], params["fc4_b"].reshape(1, -1))


# ----------------------------- parameters (natural PyTorch shapes) -----------------------------
def init_params(key, *, radius, Fa, Fb, D, C):
    keys = iter(jax.random.split(key, 128))

    def nrm(shape, scale=0.1):
        return scale * jax.random.normal(next(keys), shape, dtype=jnp.float32)

    p = {}
    p["atom_fc_w"] = nrm((Fa, D))
    p["atom_fc_b"] = nrm((D,))
    p["neighbor_fc_w"] = nrm((Fa + Fb, D))
    p["neighbor_fc_b"] = nrm((D,))
    # align Linear(2D -> 1) split into the two concatenated halves (row vectors [1,D]).
    p["align_wa"] = [nrm((1, D)) for _ in range(radius)]   # atom-expand half
    p["align_wn"] = [nrm((1, D)) for _ in range(radius)]   # neighbor half
    p["align_b"] = [nrm((1, 1)) for _ in range(radius)]
    p["attend_w"] = [nrm((D, D)) for _ in range(radius)]
    p["attend_b"] = [nrm((1, D)) for _ in range(radius)]
    p["gru_wih"] = [nrm((D, 3 * D)) for _ in range(radius)]
    p["gru_whh"] = [nrm((D, 3 * D)) for _ in range(radius)]
    p["gru_bih"] = [nrm((3 * D,)) for _ in range(radius)]
    p["gru_bhh"] = [nrm((3 * D,)) for _ in range(radius)]
    p["mol_align_wm"] = nrm((1, D))
    p["mol_align_wa"] = nrm((1, D))
    p["mol_align_b"] = nrm((1, 1))
    p["mol_attend_w"] = nrm((D, D))
    p["mol_attend_b"] = nrm((1, D))
    p["molgru_wih"] = nrm((D, 3 * D))
    p["molgru_whh"] = nrm((D, 3 * D))
    p["molgru_bih"] = nrm((3 * D,))
    p["molgru_bhh"] = nrm((3 * D,))
    p["ln_g"] = jnp.ones((1, D), jnp.float32)
    p["ln_b"] = jnp.zeros((1, D), jnp.float32)

    def conv_bn(cin, cout):
        # 1x1 conv weight stored as [cin, cout]; eval-mode BatchNorm1d folded in.
        w = nrm((cin, cout))
        b = nrm((cout,))
        gamma = 1.0 + 0.1 * jax.random.normal(next(keys), (cout,), jnp.float32)
        beta = nrm((cout,))
        mean = nrm((cout,))
        var = jnp.abs(1.0 + 0.1 * jax.random.normal(next(keys), (cout,), jnp.float32))
        scale = gamma / jnp.sqrt(var + 1e-5)
        return w * scale[None, :], (b - mean) * scale + beta

    p["conv1_w"], p["conv1_b"] = conv_bn(6, 64)
    p["conv2_w"], p["conv2_b"] = conv_bn(64, 128)
    p["conv3_w"], p["conv3_b"] = conv_bn(128, 1024)
    p["fc1_w"] = nrm((1024, 512))
    p["fc1_b"] = nrm((512,))
    p["fc2_w"] = nrm((512, D))
    p["fc2_b"] = nrm((D,))
    p["fc3_w"] = nrm((2 * D, D))
    p["fc3_b"] = nrm((D,))
    p["fc4_w"] = nrm((D, C))
    p["fc4_b"] = nrm((C,))
    return p


# ----------------------------- forward pass -----------------------------
def pointgat_forward(params, atom_list, bond_list, atom_degree_list, bond_degree_list,
                     atom_mask, xyz_feature, *, radius, T):
    B, L, Fa = atom_list.shape
    N = atom_degree_list.shape[2]
    Fb = bond_list.shape[-1]
    D = params["atom_fc_w"].shape[1]
    Dp = _round_up(max(D, _LANE), _LANE)        # zero-pad fingerprint dim to a lane multiple

    # ---- trace-time zero-padding of the fingerprint dimension D -> Dp ----
    def padl(x):            # pad last dim to Dp
        return jnp.pad(x, [(0, 0)] * (x.ndim - 1) + [(0, Dp - x.shape[-1])])

    def pad2(w):            # [D,D] -> [Dp,Dp]
        return jnp.pad(w, ((0, Dp - w.shape[0]), (0, Dp - w.shape[1])))

    def pad_gru(wih, whh, bih, bhh):
        # [D,3D]/[3D] -> [Dp,3Dp]/[1,3Dp], per-gate zero-padded blocks (gate order r,z,n)
        def pw(w):
            o = jnp.zeros((Dp, 3 * Dp), jnp.float32)
            for g in range(3):
                o = o.at[:D, g * Dp:g * Dp + D].set(w[:, g * D:(g + 1) * D])
            return o

        def pb(b):
            o = jnp.zeros((1, 3 * Dp), jnp.float32)
            for g in range(3):
                o = o.at[0, g * Dp:g * Dp + D].set(b[g * D:(g + 1) * D])
            return o

        return pw(wih), pw(whh), pb(bih), pb(bhh)

    # ---- atom / neighbor embeddings (row-tiled linear kernels, lane-dense Dp output) ----
    af = linear(atom_list.reshape(B * L, Fa),
                padl(params["atom_fc_w"]), padl(params["atom_fc_b"]),
                act=_leaky_relu)                                                 # [B*L, Dp]

    # TODO(synk): the degree-list neighbor gathers (data-dependent advanced indexing) are left
    # to XLA; an in-kernel gather from a VMEM-resident atom table (PrefetchScalarGridSpec)
    # would remove this per-round HBM round trip.
    bidx = jnp.arange(B)[:, None, None]
    bond_neighbor = bond_list[bidx, bond_degree_list]                            # [B,L,N,Fb]
    atom_neighbor = atom_list[bidx, atom_degree_list]                            # [B,L,N,Fa]
    neighbor_raw = jnp.concatenate([atom_neighbor, bond_neighbor], axis=-1)
    nf = linear(neighbor_raw.reshape(B * L * N, Fa + Fb),
                padl(params["neighbor_fc_w"]), padl(params["neighbor_fc_b"]),
                act=_leaky_relu).reshape(B * L, N * Dp)                          # lane-dense

    pad_idx = L - 1
    attend_mask = (atom_degree_list != pad_idx).astype(jnp.float32).reshape(B * L, N)
    softmax_mask = jnp.where(atom_degree_list == pad_idx, -9e8, 0.0
                             ).astype(jnp.float32).reshape(B * L, N)

    # ---- radius rounds: fused neighbor-attention + GRU (ReLU applied in the consumer) ----
    eyeN = jnp.eye(N, dtype=jnp.float32)
    h = af              # GRU hidden state (atom_feature_reshape)
    x_expand = af       # round-0 "expand" features (atom_fc output, already leaky-relu'd)
    for d in range(radius):
        wa = padl(params["align_wa"][d])                                          # [1, Dp]
        wn_block = jnp.kron(eyeN, padl(params["align_wn"][d]).reshape(Dp, 1))     # [N*Dp, N]
        gw = pad_gru(params["gru_wih"][d], params["gru_whh"][d],
                     params["gru_bih"][d], params["gru_bhh"][d])
        h = nbr_round(x_expand, h, nf, softmax_mask, attend_mask,
                      wa, wn_block, params["align_b"][d],
                      pad2(params["attend_w"][d]), padl(params["attend_b"][d]), *gw,
                      relu_inputs=(d > 0))
        if d + 1 < radius:
            nf = h.reshape(B, L, Dp)[bidx, atom_degree_list].reshape(B * L, N * Dp)
            x_expand = h        # relu(h) is applied inside the next round's kernel

    # ---- T molecule-level rounds fused into one kernel (masked_sum folded into t==0) ----
    mol_gw = pad_gru(params["molgru_wih"], params["molgru_whh"],
                     params["molgru_bih"], params["molgru_bhh"])
    mol_feature = mol_rounds(h.reshape(B, L, Dp), atom_mask,
                             padl(params["mol_align_wm"]), padl(params["mol_align_wa"]),
                             params["mol_align_b"],
                             pad2(params["mol_attend_w"]), padl(params["mol_attend_b"]),
                             *mol_gw, padl(params["ln_g"]), padl(params["ln_b"]),
                             T=T, d_real=D)                                      # [B, Dp]

    # ---- PointNet branch: conv1->conv2->conv3->max in one kernel ----
    pooled = pointnet_pool(xyz_feature,
                           params["conv1_w"], params["conv1_b"],
                           params["conv2_w"], params["conv2_b"],
                           params["conv3_w"], params["conv3_b"])                  # [B, 1024]

    # ---- head: fc1 -> fc2 -> concat -> fc3 -> fc4 -> softmax in one kernel ----
    fc3_w = params["fc3_w"]
    w3m = jnp.pad(fc3_w[:D], ((0, Dp - D), (0, 0)))     # mol half, zero rows for padded cols
    return head(mol_feature, pooled, w3m, fc3_w[D:], params)


# ----------------------------- demo -----------------------------
if __name__ == "__main__":
    # hyper-params (small, consistent with the module's __init__/forward)
    RADIUS, T = 2, 2
    B, L, N = 2, 8, 4            # batch, mol_length, max_neighbor_num
    Fa, Fb = 8, 4                # input_feature_dim, input_bond_dim
    D, C = 32, 3                 # fingerprint_dim, num_classes
    P = 16                       # number of 3D points, 6 xyz features per point

    key = jax.random.PRNGKey(0)
    k_par, k_atom, k_bond, k_adeg, k_bdeg, k_xyz = jax.random.split(key, 6)

    params = init_params(k_par, radius=RADIUS, Fa=Fa, Fb=Fb, D=D, C=C)

    atom_list = jax.random.normal(k_atom, (B, L, Fa), dtype=jnp.float32)
    bond_list = jax.random.normal(k_bond, (B, L, Fb), dtype=jnp.float32)
    atom_degree_list = jax.random.randint(k_adeg, (B, L, N), 0, L).astype(jnp.int32)
    bond_degree_list = jax.random.randint(k_bdeg, (B, L, N), 0, L).astype(jnp.int32)
    num_real = jnp.array([6, 5])
    atom_mask = (jnp.arange(L)[None, :] < num_real[:, None]).astype(jnp.float32)  # [B, L]
    xyz_feature = jax.random.normal(k_xyz, (B, P, 6), dtype=jnp.float32)

    fwd = jax.jit(functools.partial(pointgat_forward, radius=RADIUS, T=T))
    out = fwd(params, atom_list, bond_list, atom_degree_list, bond_degree_list,
              atom_mask, xyz_feature)
    out = jax.block_until_ready(out)

    assert out.shape == (B, C)
    assert bool(jnp.all(jnp.isfinite(out)))
    # rows of the final softmax should sum to ~1
    assert bool(jnp.allclose(jnp.sum(out, axis=1), 1.0, atol=1e-5))
    print("KERNEL_OK")
</pallas_src>

<mosaic_0001>
module attributes {stable_mosaic.version = 11 : i64} {
  func.func @_linear_kernel(%arg0: i32, %arg1: memref<16x8xf32, #tpu.memory_space<vmem>>, %arg2: memref<8x128xf32, #tpu.memory_space<vmem>>, %arg3: memref<1x128xf32, #tpu.memory_space<vmem>>, %arg4: memref<16x128xf32, #tpu.memory_space<vmem>>) attributes {dimension_semantics = [#tpu.dimension_semantics<parallel>], iteration_bounds = array<i64: 1>, scalar_prefetch = 0 : i64, scratch_operands = 0 : i64, tpu.core_type = #tpu.core_type<tc>, window_params = [{transform_indices = @transform_0, window_bounds = array<i64: 16, 8>}, {pipeline_mode = #tpu.pipeline_mode<synchronous>, transform_indices = @transform_1, window_bounds = array<i64: 8, 128>}, {pipeline_mode = #tpu.pipeline_mode<synchronous>, transform_indices = @transform_2, window_bounds = array<i64: 1, 128>}, {transform_indices = @transform_3, window_bounds = array<i64: 16, 128>}]} {
    %c0 = arith.constant 0 : index
    %c0_0 = arith.constant 0 : index
    %0 = vector.load %arg1[%c0, %c0_0] : memref<16x8xf32, #tpu.memory_space<vmem>>, vector<16x8xf32>
    %c0_1 = arith.constant 0 : index
    %c0_2 = arith.constant 0 : index
    %1 = vector.load %arg2[%c0_1, %c0_2] : memref<8x128xf32, #tpu.memory_space<vmem>>, vector<8x128xf32>
    %cst = arith.constant dense<0.000000e+00> : vector<16x128xf32>
    %2 = tpu.matmul %0, %1, %cst {dimension_numbers = #tpu.dot_dimension_numbers<[1], [0], [0], [1], [0, 0, 1, 1], [], []>} : vector<16x8xf32>, vector<8x128xf32>, vector<16x128xf32> -> vector<16x128xf32>
    %c0_3 = arith.constant 0 : index
    %c0_4 = arith.constant 0 : index
    %3 = vector.load %arg3[%c0_3, %c0_4] : memref<1x128xf32, #tpu.memory_space<vmem>>, vector<1x128xf32>
    %4 = vector.broadcast %3 : vector<1x128xf32> to vector<16x128xf32>
    %5 = arith.addf %2, %4 : vector<16x128xf32>
    %cst_5 = arith.constant 0.000000e+00 : f32
    %6 = vector.broadcast %cst_5 : f32 to vector<16x128xf32>
    %7 = arith.cmpf oge, %5, %6 : vector<16x128xf32>
    %cst_6 = arith.constant 0.00999999977 : f32
    %8 = vector.broadcast %cst_6 : f32 to vector<16x128xf32>
    %9 = arith.mulf %8, %5 : vector<16x128xf32>
    %10 = arith.select %7, %5, %9 : vector<16x128xi1>, vector<16x128xf32>
    %c0_7 = arith.constant 0 : index
    %c0_8 = arith.constant 0 : index
    %11 = vector.load %arg4[%c0_7, %c0_8] : memref<16x128xf32, #tpu.memory_space<vmem>>, vector<16x128xf32>
    tpu.vector_store %arg4[%c0_7, %c0_8], %10 {strides = array<i32>} : memref<16x128xf32, #tpu.memory_space<vmem>>, vector<16x128xf32>,
    return
  }
  func.func @transform_0(%arg0: i32) -> (i32, i32) {
    %c0_i32 = arith.constant 0 : i32
    %c0_i32_0 = arith.constant 0 : i32
    return %arg0, %c0_i32 : i32, i32
  }
  func.func @transform_1(%arg0: i32) -> (i32, i32) {
    %c0_i32 = arith.constant 0 : i32
    %c0_i32_0 = arith.constant 0 : i32
    %c0_i32_1 = arith.constant 0 : i32
    return %c0_i32, %c0_i32_0 : i32, i32
  }
  func.func @transform_2(%arg0: i32) -> (i32, i32) {
    %c0_i32 = arith.constant 0 : i32
    %c0_i32_0 = arith.constant 0 : i32
    %c0_i32_1 = arith.constant 0 : i32
    return %c0_i32, %c0_i32_0 : i32, i32
  }
  func.func @transform_3(%arg0: i32) -> (i32, i32) {
    %c0_i32 = arith.constant 0 : i32
    %c0_i32_0 = arith.constant 0 : i32
    return %arg0, %c0_i32 : i32, i32
  }
}

module attributes {stable_mosaic.version = 11 : i64} {
  func.func @_linear_kernel(%arg0: i32, %arg1: memref<64x12xf32, #tpu.memory_space<vmem>>, %arg2: memref<12x128xf32, #tpu.memory_space<vmem>>, %arg3: memref<1x128xf32, #tpu.memory_space<vmem>>, %arg4: memref<64x128xf32, #tpu.memory_space<vmem>>) attributes {dimension_semantics = [#tpu.dimension_semantics<parallel>], iteration_bounds = array<i64: 1>, scalar_prefetch = 0 : i64, scratch_operands = 0 : i64, tpu.core_type = #tpu.core_type<tc>, window_params = [{transform_indices = @transform_0, window_bounds = array<i64: 64, 12>}, {pipeline_mode = #tpu.pipeline_mode<synchronous>, transform_indices = @transform_1, window_bounds = array<i64: 12, 128>}, {pipeline_mode = #tpu.pipeline_mode<synchronous>, transform_indices = @transform_2, window_bounds = array<i64: 1, 128>}, {transform_indices = @transform_3, window_bounds = array<i64: 64, 128>}]} {
    %c0 = arith.constant 0 : index
    %c0_0 = arith.constant 0 : index
    %0 = vector.load %arg1[%c0, %c0_0] : memref<64x12xf32, #tpu.memory_space<vmem>>, vector<64x12xf32>
    %c0_1 = arith.constant 0 : index
    %c0_2 = arith.constant 0 : index
    %1 = vector.load %arg2[%c0_1, %c0_2] : memref<12x128xf32, #tpu.memory_space<vmem>>, vector<12x128xf32>
    %cst = arith.constant dense<0.000000e+00> : vector<64x128xf32>
    %2 = tpu.matmul %0, %1, %cst {dimension_numbers = #tpu.dot_dimension_numbers<[1], [0], [0], [1], [0, 0, 1, 1], [], []>} : vector<64x12xf32>, vector<12x128xf32>, vector<64x128xf32> -> vector<64x128xf32>
    %c0_3 = arith.constant 0 : index
    %c0_4 = arith.constant 0 : index
    %3 = vector.load %arg3[%c0_3, %c0_4] : memref<1x128xf32, #tpu.memory_space<vmem>>, vector<1x128xf32>
    %4 = vector.broadcast %3 : vector<1x128xf32> to vector<64x128xf32>
    %5 = arith.addf %2, %4 : vector<64x128xf32>
    %cst_5 = arith.constant 0.000000e+00 : f32
    %6 = vector.broadcast %cst_5 : f32 to vector<64x128xf32>
    %7 = arith.cmpf oge, %5, %6 : vector<64x128xf32>
    %cst_6 = arith.constant 0.00999999977 : f32
    %8 = vector.broadcast %cst_6 : f32 to vector<64x128xf32>
    %9 = arith.mulf %8, %5 : vector<64x128xf32>
    %10 = arith.select %7, %5, %9 : vector<64x128xi1>, vector<64x128xf32>
    %c0_7 = arith.constant 0 : index
    %c0_8 = arith.constant 0 : index
    %11 = vector.load %arg4[%c0_7, %c0_8] : memref<64x128xf32, #tpu.memory_space<vmem>>, vector<64x128xf32>
    tpu.vector_store %arg4[%c0_7, %c0_8], %10 {strides = array<i32>} : memref<64x128xf32, #tpu.memory_space<vmem>>, vector<64x128xf32>,
    return
  }
  func.func @transform_0(%arg0: i32) -> (i32, i32) {
    %c0_i32 = arith.constant 0 : i32
    %c0_i32_0 = arith.constant 0 : i32
    return %arg0, %c0_i32 : i32, i32
  }
  func.func @transform_1(%arg0: i32) -> (i32, i32) {
    %c0_i32 = arith.constant 0 : i32
    %c0_i32_0 = arith.constant 0 : i32
    %c0_i32_1 = arith.constant 0 : i32
    return %c0_i32, %c0_i32_0 : i32, i32
  }
  func.func @transform_2(%arg0: i32) -> (i32, i32) {
    %c0_i32 = arith.constant 0 : i32
    %c0_i32_0 = arith.constant 0 : i32
    %c0_i32_1 = arith.constant 0 : i32
    return %c0_i32, %c0_i32_0 : i32, i32
  }
  func.func @transform_3(%arg0: i32) -> (i32, i32) {
    %c0_i32 = arith.constant 0 : i32
    %c0_i32_0 = arith.constant 0 : i32
    return %arg0, %c0_i32 : i32, i32
  }
}

module attributes {stable_mosaic.version = 11 : i64} {
  func.func @_nbr_round_kernel(%arg0: i32, %arg1: memref<16x128xf32, #tpu.memory_space<vmem>>, %arg2: memref<16x128xf32, #tpu.memory_space<vmem>>, %arg3: memref<16x512xf32, #tpu.memory_space<vmem>>, %arg4: memref<16x4xf32, #tpu.memory_space<vmem>>, %arg5: memref<16x4xf32, #tpu.memory_space<vmem>>, %arg6: memref<1x128xf32, #tpu.memory_space<vmem>>, %arg7: memref<512x4xf32, #tpu.memory_space<vmem>>, %arg8: memref<1x1xf32, #tpu.memory_space<vmem>>, %arg9: memref<128x128xf32, #tpu.memory_space<vmem>>, %arg10: memref<1x128xf32, #tpu.memory_space<vmem>>, %arg11: memref<128x384xf32, #tpu.memory_space<vmem>>, %arg12: memref<128x384xf32, #tpu.memory_space<vmem>>, %arg13: memref<1x384xf32, #tpu.memory_space<vmem>>, %arg14: memref<1x384xf32, #tpu.memory_space<vmem>>, %arg15: memref<16x128xf32, #tpu.memory_space<vmem>>) attributes {dimension_semantics = [#tpu.dimension_semantics<parallel>], iteration_bounds = array<i64: 1>, scalar_prefetch = 0 : i64, scratch_operands = 0 : i64, tpu.core_type = #tpu.core_type<tc>, window_params = [{transform_indices = @transform_0, window_bounds = array<i64: 16, 128>}, {transform_indices = @transform_1, window_bounds = array<i64: 16, 128>}, {transform_indices = @transform_2, window_bounds = array<i64: 16, 512>}, {transform_indices = @transform_3, window_bounds = array<i64: 16, 4>}, {transform_indices = @transform_4, window_bounds = array<i64: 16, 4>}, {pipeline_mode = #tpu.pipeline_mode<synchronous>, transform_indices = @transform_5, window_bounds = array<i64: 1, 128>}, {pipeline_mode = #tpu.pipeline_mode<synchronous>, transform_indices = @transform_6, window_bounds = array<i64: 512, 4>}, {pipeline_mode = #tpu.pipeline_mode<synchronous>, transform_indices = @transform_7, window_bounds = array<i64: 1, 1>}, {pipeline_mode = #tpu.pipeline_mode<synchronous>, transform_indices = @transform_8, window_bounds = array<i64: 128, 128>}, {pipeline_mode = #tpu.pipeline_mode<synchronous>, transform_indices = @transform_9, window_bounds = array<i64: 1, 128>}, {pipeline_mode = #tpu.pipeline_mode<synchronous>, transform_indices = @transform_10, window_bounds = array<i64: 128, 384>}, {pipeline_mode = #tpu.pipeline_mode<synchronous>, transform_indices = @transform_11, window_bounds = array<i64: 128, 384>}, {pipeline_mode = #tpu.pipeline_mode<synchronous>, transform_indices = @transform_12, window_bounds = array<i64: 1, 384>}, {pipeline_mode = #tpu.pipeline_mode<synchronous>, transform_indices = @transform_13, window_bounds = array<i64: 1, 384>}, {transform_indices = @transform_14, window_bounds = array<i64: 16, 128>}]} {
    %c0 = arith.constant 0 : index
    %c0_0 = arith.constant 0 : index
    %0 = vector.load %arg1[%c0, %c0_0] : memref<16x128xf32, #tpu.memory_space<vmem>>, vector<16x128xf32>
    %c0_1 = arith.constant 0 : index
    %c0_2 = arith.constant 0 : index
    %1 = vector.load %arg3[%c0_1, %c0_2] : memref<16x512xf32, #tpu.memory_space<vmem>>, vector<16x512xf32>
    %c0_3 = arith.constant 0 : index
    %c0_4 = arith.constant 0 : index
    %2 = vector.load %arg2[%c0_3, %c0_4] : memref<16x128xf32, #tpu.memory_space<vmem>>, vector<16x128xf32>
    %c0_5 = arith.constant 0 : index
    %c0_6 = arith.constant 0 : index
    %3 = vector.load %arg6[%c0_5, %c0_6] : memref<1x128xf32, #tpu.memory_space<vmem>>, vector<1x128xf32>
    %4 = vector.broadcast %3 : vector<1x128xf32> to vector<16x128xf32>
    %5 = arith.mulf %0, %4 : vector<16x128xf32>
    %cst = arith.constant dense<0.000000e+00> : vector<16xf32>
    %6 = vector.multi_reduction <add>, %5, %cst [1] : vector<16x128xf32> to vector<16xf32>
    %7 = vector.shape_cast %6 : vector<16xf32> to vector<16x1xf32>
    %c0_7 = arith.constant 0 : index
    %c0_8 = arith.constant 0 : index
    %8 = vector.load %arg7[%c0_7, %c0_8] : memref<512x4xf32, #tpu.memory_space<vmem>>, vector<512x4xf32>
    %cst_9 = arith.constant dense<0.000000e+00> : vector<16x4xf32>
    %9 = tpu.matmul %1, %8, %cst_9 {dimension_numbers = #tpu.dot_dimension_numbers<[1], [0], [0], [1], [0, 0, 1, 1], [], []>} : vector<16x512xf32>, vector<512x4xf32>, vector<16x4xf32> -> vector<16x4xf32>
    %10 = vector.broadcast %7 : vector<16x1xf32> to vector<16x4xf32>
    %11 = arith.addf %10, %9 : vector<16x4xf32>
    %c0_10 = arith.constant 0 : index
    %c0_11 = arith.constant 0 : index
    %12 = vector.load %arg8[%c0_10, %c0_11] : memref<1x1xf32, #tpu.memory_space<vmem>>, vector<1x1xf32>
    %13 = vector.broadcast %12 : vector<1x1xf32> to vector<16x4xf32>
    %14 = arith.addf %11, %13 : vector<16x4xf32>
    %cst_12 = arith.constant 0.000000e+00 : f32
    %15 = vector.broadcast %cst_12 : f32 to vector<16x4xf32>
    %16 = arith.cmpf oge, %14, %15 : vector<16x4xf32>
    %cst_13 = arith.constant 0.00999999977 : f32
    %17 = vector.broadcast %cst_13 : f32 to vector<16x4xf32>
    %18 = arith.mulf %17, %14 : vector<16x4xf32>
    %19 = arith.select %16, %14, %18 : vector<16x4xi1>, vector<16x4xf32>
    %c0_14 = arith.constant 0 : index
    %c0_15 = arith.constant 0 : index
    %20 = vector.load %arg4[%c0_14, %c0_15] : memref<16x4xf32, #tpu.memory_space<vmem>>, vector<16x4xf32>
    %21 = arith.addf %19, %20 : vector<16x4xf32>
    %cst_16 = arith.constant dense<0xFF800000> : vector<16xf32>
    %22 = vector.multi_reduction <maximumf>, %21, %cst_16 [1] : vector<16x4xf32> to vector<16xf32>
    %23 = vector.shape_cast %22 : vector<16xf32> to vector<16x1xf32>
    %24 = vector.broadcast %23 : vector<16x1xf32> to vector<16x4xf32>
    %25 = arith.subf %21, %24 : vector<16x4xf32>
    %26 = math.exp %25 : vector<16x4xf32>
    %cst_17 = arith.constant dense<0.000000e+00> : vector<16xf32>
    %27 = vector.multi_reduction <add>, %26, %cst_17 [1] : vector<16x4xf32> to vector<16xf32>
    %28 = vector.shape_cast %27 : vector<16xf32> to vector<16x1xf32>
    %29 = vector.broadcast %28 : vector<16x1xf32> to vector<16x4xf32>
    %30 = arith.divf %26, %29 : vector<16x4xf32>
    %c0_18 = arith.constant 0 : index
    %c0_19 = arith.constant 0 : index
    %31 = vector.load %arg5[%c0_18, %c0_19] : memref<16x4xf32, #tpu.memory_space<vmem>>, vector<16x4xf32>
    %32 = arith.mulf %30, %31 : vector<16x4xf32>
    %33 = vector.extract_strided_slice %32 {offsets = [0, 0], sizes = [16, 1], strides = [1, 1]} : vector<16x4xf32> to vector<16x1xf32>
    %34 = vector.extract_strided_slice %1 {offsets = [0, 0], sizes = [16, 128], strides = [1, 1]} : vector<16x512xf32> to vector<16x128xf32>
    %35 = vector.broadcast %33 : vector<16x1xf32> to vector<16x128xf32>
    %36 = arith.mulf %35, %34 : vector<16x128xf32>
    %37 = vector.extract_strided_slice %32 {offsets = [0, 1], sizes = [16, 1], strides = [1, 1]} : vector<16x4xf32> to vector<16x1xf32>
    %38 = vector.extract_strided_slice %1 {offsets = [0, 128], sizes = [16, 128], strides = [1, 1]} : vector<16x512xf32> to vector<16x128xf32>
    %39 = vector.broadcast %37 : vector<16x1xf32> to vector<16x128xf32>
    %40 = arith.mulf %39, %38 : vector<16x128xf32>
    %41 = arith.addf %36, %40 : vector<16x128xf32>
    %42 = vector.extract_strided_slice %32 {offsets = [0, 2], sizes = [16, 1], strides = [1, 1]} : vector<16x4xf32> to vector<16x1xf32>
    %43 = vector.extract_strided_slice %1 {offsets = [0, 256], sizes = [16, 128], strides = [1, 1]} : vector<16x512xf32> to vector<16x128xf32>
    %44 = vector.broadcast %42 : vector<16x1xf32> to vector<16x128xf32>
    %45 = arith.mulf %44, %43 : vector<16x128xf32>
    %46 = arith.addf %41, %45 : vector<16x128xf32>
    %47 = vector.extract_strided_slice %32 {offsets = [0, 3], sizes = [16, 1], strides = [1, 1]} : vector<16x4xf32> to vector<16x1xf32>
    %48 = vector.extract_strided_slice %1 {offsets = [0, 384], sizes = [16, 128], strides = [1, 1]} : vector<16x512xf32> to vector<16x128xf32>
    %49 = vector.broadcast %47 : vector<16x1xf32> to vector<16x128xf32>
    %50 = arith.mulf %49, %48 : vector<16x128xf32>
    %51 = arith.addf %46, %50 : vector<16x128xf32>
    %cst_20 = arith.constant dense<0.000000e+00> : vector<16xf32>
    %52 = vector.multi_reduction <add>, %32, %cst_20 [1] : vector<16x4xf32> to vector<16xf32>
    %53 = vector.shape_cast %52 : vector<16xf32> to vector<16x1xf32>
    %c0_21 = arith.constant 0 : index
    %c0_22 = arith.constant 0 : index
    %54 = vector.load %arg9[%c0_21, %c0_22] : memref<128x128xf32, #tpu.memory_space<vmem>>, vector<128x128xf32>
    %cst_23 = arith.constant dense<0.000000e+00> : vector<16x128xf32>
    %55 = tpu.matmul %51, %54, %cst_23 {dimension_numbers = #tpu.dot_dimension_numbers<[1], [0], [0], [1], [0, 0, 1, 1], [], []>} : vector<16x128xf32>, vector<128x128xf32>, vector<16x128xf32> -> vector<16x128xf32>
    %c0_24 = arith.constant 0 : index
    %c0_25 = arith.constant 0 : index
    %56 = vector.load %arg10[%c0_24, %c0_25] : memref<1x128xf32, #tpu.memory_space<vmem>>, vector<1x128xf32>
    %57 = vector.broadcast %53 : vector<16x1xf32> to vector<16x128xf32>
    %58 = vector.broadcast %56 : vector<1x128xf32> to vector<16x128xf32>
    %59 = arith.mulf %57, %58 : vector<16x128xf32>
    %60 = arith.addf %55, %59 : vector<16x128xf32>
    %cst_26 = arith.constant 0.000000e+00 : f32
    %61 = vector.broadcast %cst_26 : f32 to vector<16x128xf32>
    %62 = arith.cmpf ogt, %60, %61 : vector<16x128xf32>
    %cst_27 = arith.constant 0.000000e+00 : f32
    %63 = vector.broadcast %cst_27 : f32 to vector<16x128xf32>
    %64 = arith.minimumf %60, %63 : vector<16x128xf32>
    %65 = math.exp %64 : vector<16x128xf32>
    %cst_28 = arith.constant 1.000000e+00 : f32
    %66 = vector.broadcast %cst_28 : f32 to vector<16x128xf32>
    %67 = arith.subf %65, %66 : vector<16x128xf32>
    %68 = arith.select %62, %60, %67 : vector<16x128xi1>, vector<16x128xf32>
    %c0_29 = arith.constant 0 : index
    %c0_30 = arith.constant 0 : index
    %69 = vector.load %arg11[%c0_29, %c0_30] : memref<128x384xf32, #tpu.memory_space<vmem>>, vector<128x384xf32>
    %cst_31 = arith.constant dense<0.000000e+00> : vector<16x384xf32>
    %70 = tpu.matmul %68, %69, %cst_31 {dimension_numbers = #tpu.dot_dimension_numbers<[1], [0], [0], [1], [0, 0, 1, 1], [], []>} : vector<16x128xf32>, vector<128x384xf32>, vector<16x384xf32> -> vector<16x384xf32>
    %c0_32 = arith.constant 0 : index
    %c0_33 = arith.constant 0 : index
    %71 = vector.load %arg13[%c0_32, %c0_33] : memref<1x384xf32, #tpu.memory_space<vmem>>, vector<1x384xf32>
    %72 = vector.broadcast %71 : vector<1x384xf32> to vector<16x384xf32>
    %73 = arith.addf %70, %72 : vector<16x384xf32>
    %c0_34 = arith.constant 0 : index
    %c0_35 = arith.constant 0 : index
    %74 = vector.load %arg12[%c0_34, %c0_35] : memref<128x384xf32, #tpu.memory_space<vmem>>, vector<128x384xf32>
    %cst_36 = arith.constant dense<0.000000e+00> : vector<16x384xf32>
    %75 = tpu.matmul %2, %74, %cst_36 {dimension_numbers = #tpu.dot_dimension_numbers<[1], [0], [0], [1], [0, 0, 1, 1], [], []>} : vector<16x128xf32>, vector<128x384xf32>, vector<16x384xf32> -> vector<16x384xf32>
    %c0_37 = arith.constant 0 : index
    %c0_38 = arith.constant 0 : index
    %76 = vector.load %arg14[%c0_37, %c0_38] : memref<1x384xf32, #tpu.memory_space<vmem>>, vector<1x384xf32>
    %77 = vector.broadcast %76 : vector<1x384xf32> to vector<16x384xf32>
    %78 = arith.addf %75, %77 : vector<16x384xf32>
    %79 = vector.extract_strided_slice %73 {offsets = [0, 0], sizes = [16, 128], strides = [1, 1]} : vector<16x384xf32> to vector<16x128xf32>
    %80 = vector.extract_strided_slice %78 {offsets = [0, 0], sizes = [16, 128], strides = [1, 1]} : vector<16x384xf32> to vector<16x128xf32>
    %81 = arith.addf %79, %80 : vector<16x128xf32>
    %cst_39 = arith.constant 0.000000e+00 : f32
    %82 = vector.broadcast %cst_39 : f32 to vector<16x128xf32>
    %83 = arith.subf %82, %81 : vector<16x128xf32>
    %84 = math.exp %83 : vector<16x128xf32>
    %cst_40 = arith.constant 1.000000e+00 : f32
    %85 = vector.broadcast %cst_40 : f32 to vector<16x128xf32>
    %86 = arith.addf %85, %84 : vector<16x128xf32>
    %cst_41 = arith.constant 1.000000e+00 : f32
    %87 = vector.broadcast %cst_41 : f32 to vector<16x128xf32>
    %88 = arith.divf %87, %86 : vector<16x128xf32>
    %89 = vector.extract_strided_slice %73 {offsets = [0, 128], sizes = [16, 128], strides = [1, 1]} : vector<16x384xf32> to vector<16x128xf32>
    %90 = vector.extract_strided_slice %78 {offsets = [0, 128], sizes = [16, 128], strides = [1, 1]} : vector<16x384xf32> to vector<16x128xf32>
    %91 = arith.addf %89, %90 : vector<16x128xf32>
    %cst_42 = arith.constant 0.000000e+00 : f32
    %92 = vector.broadcast %cst_42 : f32 to vector<16x128xf32>
    %93 = arith.subf %92, %91 : vector<16x128xf32>
    %94 = math.exp %93 : vector<16x128xf32>
    %cst_43 = arith.constant 1.000000e+00 : f32
    %95 = vector.broadcast %cst_43 : f32 to vector<16x128xf32>
    %96 = arith.addf %95, %94 : vector<16x128xf32>
    %cst_44 = arith.constant 1.000000e+00 : f32
    %97 = vector.broadcast %cst_44 : f32 to vector<16x128xf32>
    %98 = arith.divf %97, %96 : vector<16x128xf32>
    %99 = vector.extract_strided_slice %73 {offsets = [0, 256], sizes = [16, 128], strides = [1, 1]} : vector<16x384xf32> to vector<16x128xf32>
    %100 = vector.extract_strided_slice %78 {offsets = [0, 256], sizes = [16, 128], strides = [1, 1]} : vector<16x384xf32> to vector<16x128xf32>
    %101 = arith.mulf %88, %100 : vector<16x128xf32>
    %102 = arith.addf %99, %101 : vector<16x128xf32>
    %103 = math.tanh %102 : vector<16x128xf32>
    %cst_45 = arith.constant 1.000000e+00 : f32
    %104 = vector.broadcast %cst_45 : f32 to vector<16x128xf32>
    %105 = arith.subf %104, %98 : vector<16x128xf32>
    %106 = arith.mulf %105, %103 : vector<16x128xf32>
    %107 = arith.mulf %98, %2 : vector<16x128xf32>
    %108 = arith.addf %106, %107 : vector<16x128xf32>
    %c0_46 = arith.constant 0 : index
    %c0_47 = arith.constant 0 : index
    %109 = vector.load %arg15[%c0_46, %c0_47] : memref<16x128xf32, #tpu.memory_space<vmem>>, vector<16x128xf32>
    tpu.vector_store %arg15[%c0_46, %c0_47], %108 {strides = array<i32>} : memref<16x128xf32, #tpu.memory_space<vmem>>, vector<16x128xf32>,
    return
  }
  func.func @transform_0(%arg0: i32) -> (i32, i32) {
    %c0_i32 = arith.constant 0 : i32
    %c0_i32_0 = arith.constant 0 : i32
    return %arg0, %c0_i32 : i32, i32
  }
  func.func @transform_1(%arg0: i32) -> (i32, i32) {
    %c0_i32 = arith.constant 0 : i32
    %c0_i32_0 = arith.constant 0 : i32
    return %arg0, %c0_i32 : i32, i32
  }
  func.func @transform_2(%arg0: i32) -> (i32, i32) {
    %c0_i32 = arith.constant 0 : i32
    %c0_i32_0 = arith.constant 0 : i32
    return %arg0, %c0_i32 : i32, i32
  }
  func.func @transform_3(%arg0: i32) -> (i32, i32) {
    %c0_i32 = arith.constant 0 : i32
    %c0_i32_0 = arith.constant 0 : i32
    return %arg0, %c0_i32 : i32, i32
  }
  func.func @transform_4(%arg0: i32) -> (i32, i32) {
    %c0_i32 = arith.constant 0 : i32
    %c0_i32_0 = arith.constant 0 : i32
    return %arg0, %c0_i32 : i32, i32
  }
  func.func @transform_5(%arg0: i32) -> (i32, i32) {
    %c0_i32 = arith.constant 0 : i32
    %c0_i32_0 = arith.constant 0 : i32
    %c0_i32_1 = arith.constant 0 : i32
    return %c0_i32, %c0_i32_0 : i32, i32
  }
  func.func @transform_6(%arg0: i32) -> (i32, i32) {
    %c0_i32 = arith.constant 0 : i32
    %c0_i32_0 = arith.constant 0 : i32
    %c0_i32_1 = arith.constant 0 : i32
    return %c0_i32, %c0_i32_0 : i32, i32
  }
  func.func @transform_7(%arg0: i32) -> (i32, i32) {
    %c0_i32 = arith.constant 0 : i32
    %c0_i32_0 = arith.constant 0 : i32
    %c0_i32_1 = arith.constant 0 : i32
    return %c0_i32, %c0_i32_0 : i32, i32
  }
  func.func @transform_8(%arg0: i32) -> (i32, i32) {
    %c0_i32 = arith.constant 0 : i32
    %c0_i32_0 = arith.constant 0 : i32
    %c0_i32_1 = arith.constant 0 : i32
    return %c0_i32, %c0_i32_0 : i32, i32
  }
  func.func @transform_9(%arg0: i32) -> (i32, i32) {
    %c0_i32 = arith.constant 0 : i32
    %c0_i32_0 = arith.constant 0 : i32
    %c0_i32_1 = arith.constant 0 : i32
    return %c0_i32, %c0_i32_0 : i32, i32
  }
  func.func @transform_10(%arg0: i32) -> (i32, i32) {
    %c0_i32 = arith.constant 0 : i32
    %c0_i32_0 = arith.constant 0 : i32
    %c0_i32_1 = arith.constant 0 : i32
    return %c0_i32, %c0_i32_0 : i32, i32
  }
  func.func @transform_11(%arg0: i32) -> (i32, i32) {
    %c0_i32 = arith.constant 0 : i32
    %c0_i32_0 = arith.constant 0 : i32
    %c0_i32_1 = arith.constant 0 : i32
    return %c0_i32, %c0_i32_0 : i32, i32
  }
  func.func @transform_12(%arg0: i32) -> (i32, i32) {
    %c0_i32 = arith.constant 0 : i32
    %c0_i32_0 = arith.constant 0 : i32
    %c0_i32_1 = arith.constant 0 : i32
    return %c0_i32, %c0_i32_0 : i32, i32
  }
  func.func @transform_13(%arg0: i32) -> (i32, i32) {
    %c0_i32 = arith.constant 0 : i32
    %c0_i32_0 = arith.constant 0 : i32
    %c0_i32_1 = arith.constant 0 : i32
    return %c0_i32, %c0_i32_0 : i32, i32
  }
  func.func @transform_14(%arg0: i32) -> (i32, i32) {
    %c0_i32 = arith.constant 0 : i32
    %c0_i32_0 = arith.constant 0 : i32
    return %arg0, %c0_i32 : i32, i32
  }
}

module attributes {stable_mosaic.version = 11 : i64} {
  func.func @_nbr_round_kernel(%arg0: i32, %arg1: memref<16x128xf32, #tpu.memory_space<vmem>>, %arg2: memref<16x128xf32, #tpu.memory_space<vmem>>, %arg3: memref<16x512xf32, #tpu.memory_space<vmem>>, %arg4: memref<16x4xf32, #tpu.memory_space<vmem>>, %arg5: memref<16x4xf32, #tpu.memory_space<vmem>>, %arg6: memref<1x128xf32, #tpu.memory_space<vmem>>, %arg7: memref<512x4xf32, #tpu.memory_space<vmem>>, %arg8: memref<1x1xf32, #tpu.memory_space<vmem>>, %arg9: memref<128x128xf32, #tpu.memory_space<vmem>>, %arg10: memref<1x128xf32, #tpu.memory_space<vmem>>, %arg11: memref<128x384xf32, #tpu.memory_space<vmem>>, %arg12: memref<128x384xf32, #tpu.memory_space<vmem>>, %arg13: memref<1x384xf32, #tpu.memory_space<vmem>>, %arg14: memref<1x384xf32, #tpu.memory_space<vmem>>, %arg15: memref<16x128xf32, #tpu.memory_space<vmem>>) attributes {dimension_semantics = [#tpu.dimension_semantics<parallel>], iteration_bounds = array<i64: 1>, scalar_prefetch = 0 : i64, scratch_operands = 0 : i64, tpu.core_type = #tpu.core_type<tc>, window_params = [{transform_indices = @transform_0, window_bounds = array<i64: 16, 128>}, {transform_indices = @transform_1, window_bounds = array<i64: 16, 128>}, {transform_indices = @transform_2, window_bounds = array<i64: 16, 512>}, {transform_indices = @transform_3, window_bounds = array<i64: 16, 4>}, {transform_indices = @transform_4, window_bounds = array<i64: 16, 4>}, {pipeline_mode = #tpu.pipeline_mode<synchronous>, transform_indices = @transform_5, window_bounds = array<i64: 1, 128>}, {pipeline_mode = #tpu.pipeline_mode<synchronous>, transform_indices = @transform_6, window_bounds = array<i64: 512, 4>}, {pipeline_mode = #tpu.pipeline_mode<synchronous>, transform_indices = @transform_7, window_bounds = array<i64: 1, 1>}, {pipeline_mode = #tpu.pipeline_mode<synchronous>, transform_indices = @transform_8, window_bounds = array<i64: 128, 128>}, {pipeline_mode = #tpu.pipeline_mode<synchronous>, transform_indices = @transform_9, window_bounds = array<i64: 1, 128>}, {pipeline_mode = #tpu.pipeline_mode<synchronous>, transform_indices = @transform_10, window_bounds = array<i64: 128, 384>}, {pipeline_mode = #tpu.pipeline_mode<synchronous>, transform_indices = @transform_11, window_bounds = array<i64: 128, 384>}, {pipeline_mode = #tpu.pipeline_mode<synchronous>, transform_indices = @transform_12, window_bounds = array<i64: 1, 384>}, {pipeline_mode = #tpu.pipeline_mode<synchronous>, transform_indices = @transform_13, window_bounds = array<i64: 1, 384>}, {transform_indices = @transform_14, window_bounds = array<i64: 16, 128>}]} {
    %c0 = arith.constant 0 : index
    %c0_0 = arith.constant 0 : index
    %0 = vector.load %arg1[%c0, %c0_0] : memref<16x128xf32, #tpu.memory_space<vmem>>, vector<16x128xf32>
    %c0_1 = arith.constant 0 : index
    %c0_2 = arith.constant 0 : index
    %1 = vector.load %arg3[%c0_1, %c0_2] : memref<16x512xf32, #tpu.memory_space<vmem>>, vector<16x512xf32>
    %cst = arith.constant 0.000000e+00 : f32
    %2 = vector.broadcast %cst : f32 to vector<16x128xf32>
    %3 = arith.maximumf %0, %2 : vector<16x128xf32>
    %cst_3 = arith.constant 0.000000e+00 : f32
    %4 = vector.broadcast %cst_3 : f32 to vector<16x512xf32>
    %5 = arith.maximumf %1, %4 : vector<16x512xf32>
    %c0_4 = arith.constant 0 : index
    %c0_5 = arith.constant 0 : index
    %6 = vector.load %arg2[%c0_4, %c0_5] : memref<16x128xf32, #tpu.memory_space<vmem>>, vector<16x128xf32>
    %c0_6 = arith.constant 0 : index
    %c0_7 = arith.constant 0 : index
    %7 = vector.load %arg6[%c0_6, %c0_7] : memref<1x128xf32, #tpu.memory_space<vmem>>, vector<1x128xf32>
    %8 = vector.broadcast %7 : vector<1x128xf32> to vector<16x128xf32>
    %9 = arith.mulf %3, %8 : vector<16x128xf32>
    %cst_8 = arith.constant dense<0.000000e+00> : vector<16xf32>
    %10 = vector.multi_reduction <add>, %9, %cst_8 [1] : vector<16x128xf32> to vector<16xf32>
    %11 = vector.shape_cast %10 : vector<16xf32> to vector<16x1xf32>
    %c0_9 = arith.constant 0 : index
    %c0_10 = arith.constant 0 : index
    %12 = vector.load %arg7[%c0_9, %c0_10] : memref<512x4xf32, #tpu.memory_space<vmem>>, vector<512x4xf32>
    %cst_11 = arith.constant dense<0.000000e+00> : vector<16x4xf32>
    %13 = tpu.matmul %5, %12, %cst_11 {dimension_numbers = #tpu.dot_dimension_numbers<[1], [0], [0], [1], [0, 0, 1, 1], [], []>} : vector<16x512xf32>, vector<512x4xf32>, vector<16x4xf32> -> vector<16x4xf32>
    %14 = vector.broadcast %11 : vector<16x1xf32> to vector<16x4xf32>
    %15 = arith.addf %14, %13 : vector<16x4xf32>
    %c0_12 = arith.constant 0 : index
    %c0_13 = arith.constant 0 : index
    %16 = vector.load %arg8[%c0_12, %c0_13] : memref<1x1xf32, #tpu.memory_space<vmem>>, vector<1x1xf32>
    %17 = vector.broadcast %16 : vector<1x1xf32> to vector<16x4xf32>
    %18 = arith.addf %15, %17 : vector<16x4xf32>
    %cst_14 = arith.constant 0.000000e+00 : f32
    %19 = vector.broadcast %cst_14 : f32 to vector<16x4xf32>
    %20 = arith.cmpf oge, %18, %19 : vector<16x4xf32>
    %cst_15 = arith.constant 0.00999999977 : f32
    %21 = vector.broadcast %cst_15 : f32 to vector<16x4xf32>
    %22 = arith.mulf %21, %18 : vector<16x4xf32>
    %23 = arith.select %20, %18, %22 : vector<16x4xi1>, vector<16x4xf32>
    %c0_16 = arith.constant 0 : index
    %c0_17 = arith.constant 0 : index
    %24 = vector.load %arg4[%c0_16, %c0_17] : memref<16x4xf32, #tpu.memory_space<vmem>>, vector<16x4xf32>
    %25 = arith.addf %23, %24 : vector<16x4xf32>
    %cst_18 = arith.constant dense<0xFF800000> : vector<16xf32>
    %26 = vector.multi_reduction <maximumf>, %25, %cst_18 [1] : vector<16x4xf32> to vector<16xf32>
    %27 = vector.shape_cast %26 : vector<16xf32> to vector<16x1xf32>
    %28 = vector.broadcast %27 : vector<16x1xf32> to vector<16x4xf32>
    %29 = arith.subf %25, %28 : vector<16x4xf32>
    %30 = math.exp %29 : vector<16x4xf32>
    %cst_19 = arith.constant dense<0.000000e+00> : vector<16xf32>
    %31 = vector.multi_reduction <add>, %30, %cst_19 [1] : vector<16x4xf32> to vector<16xf32>
    %32 = vector.shape_cast %31 : vector<16xf32> to vector<16x1xf32>
    %33 = vector.broadcast %32 : vector<16x1xf32> to vector<16x4xf32>
    %34 = arith.divf %30, %33 : vector<16x4xf32>
    %c0_20 = arith.constant 0 : index
    %c0_21 = arith.constant 0 : index
    %35 = vector.load %arg5[%c0_20, %c0_21] : memref<16x4xf32, #tpu.memory_space<vmem>>, vector<16x4xf32>
    %36 = arith.mulf %34, %35 : vector<16x4xf32>
    %37 = vector.extract_strided_slice %36 {offsets = [0, 0], sizes = [16, 1], strides = [1, 1]} : vector<16x4xf32> to vector<16x1xf32>
    %38 = vector.extract_strided_slice %5 {offsets = [0, 0], sizes = [16, 128], strides = [1, 1]} : vector<16x512xf32> to vector<16x128xf32>
    %39 = vector.broadcast %37 : vector<16x1xf32> to vector<16x128xf32>
    %40 = arith.mulf %39, %38 : vector<16x128xf32>
    %41 = vector.extract_strided_slice %36 {offsets = [0, 1], sizes = [16, 1], strides = [1, 1]} : vector<16x4xf32> to vector<16x1xf32>
    %42 = vector.extract_strided_slice %5 {offsets = [0, 128], sizes = [16, 128], strides = [1, 1]} : vector<16x512xf32> to vector<16x128xf32>
    %43 = vector.broadcast %41 : vector<16x1xf32> to vector<16x128xf32>
    %44 = arith.mulf %43, %42 : vector<16x128xf32>
    %45 = arith.addf %40, %44 : vector<16x128xf32>
    %46 = vector.extract_strided_slice %36 {offsets = [0, 2], sizes = [16, 1], strides = [1, 1]} : vector<16x4xf32> to vector<16x1xf32>
    %47 = vector.extract_strided_slice %5 {offsets = [0, 256], sizes = [16, 128], strides = [1, 1]} : vector<16x512xf32> to vector<16x128xf32>
    %48 = vector.broadcast %46 : vector<16x1xf32> to vector<16x128xf32>
    %49 = arith.mulf %48, %47 : vector<16x128xf32>
    %50 = arith.addf %45, %49 : vector<16x128xf32>
    %51 = vector.extract_strided_slice %36 {offsets = [0, 3], sizes = [16, 1], strides = [1, 1]} : vector<16x4xf32> to vector<16x1xf32>
    %52 = vector.extract_strided_slice %5 {offsets = [0, 384], sizes = [16, 128], strides = [1, 1]} : vector<16x512xf32> to vector<16x128xf32>
    %53 = vector.broadcast %51 : vector<16x1xf32> to vector<16x128xf32>
    %54 = arith.mulf %53, %52 : vector<16x128xf32>
    %55 = arith.addf %50, %54 : vector<16x128xf32>
    %cst_22 = arith.constant dense<0.000000e+00> : vector<16xf32>
    %56 = vector.multi_reduction <add>, %36, %cst_22 [1] : vector<16x4xf32> to vector<16xf32>
    %57 = vector.shape_cast %56 : vector<16xf32> to vector<16x1xf32>
    %c0_23 = arith.constant 0 : index
    %c0_24 = arith.constant 0 : index
    %58 = vector.load %arg9[%c0_23, %c0_24] : memref<128x128xf32, #tpu.memory_space<vmem>>, vector<128x128xf32>
    %cst_25 = arith.constant dense<0.000000e+00> : vector<16x128xf32>
    %59 = tpu.matmul %55, %58, %cst_25 {dimension_numbers = #tpu.dot_dimension_numbers<[1], [0], [0], [1], [0, 0, 1, 1], [], []>} : vector<16x128xf32>, vector<128x128xf32>, vector<16x128xf32> -> vector<16x128xf32>
    %c0_26 = arith.constant 0 : index
    %c0_27 = arith.constant 0 : index
    %60 = vector.load %arg10[%c0_26, %c0_27] : memref<1x128xf32, #tpu.memory_space<vmem>>, vector<1x128xf32>
    %61 = vector.broadcast %57 : vector<16x1xf32> to vector<16x128xf32>
    %62 = vector.broadcast %60 : vector<1x128xf32> to vector<16x128xf32>
    %63 = arith.mulf %61, %62 : vector<16x128xf32>
    %64 = arith.addf %59, %63 : vector<16x128xf32>
    %cst_28 = arith.constant 0.000000e+00 : f32
    %65 = vector.broadcast %cst_28 : f32 to vector<16x128xf32>
    %66 = arith.cmpf ogt, %64, %65 : vector<16x128xf32>
    %cst_29 = arith.constant 0.000000e+00 : f32
    %67 = vector.broadcast %cst_29 : f32 to vector<16x128xf32>
    %68 = arith.minimumf %64, %67 : vector<16x128xf32>
    %69 = math.exp %68 : vector<16x128xf32>
    %cst_30 = arith.constant 1.000000e+00 : f32
    %70 = vector.broadcast %cst_30 : f32 to vector<16x128xf32>
    %71 = arith.subf %69, %70 : vector<16x128xf32>
    %72 = arith.select %66, %64, %71 : vector<16x128xi1>, vector<16x128xf32>
    %c0_31 = arith.constant 0 : index
    %c0_32 = arith.constant 0 : index
    %73 = vector.load %arg11[%c0_31, %c0_32] : memref<128x384xf32, #tpu.memory_space<vmem>>, vector<128x384xf32>
    %cst_33 = arith.constant dense<0.000000e+00> : vector<16x384xf32>
    %74 = tpu.matmul %72, %73, %cst_33 {dimension_numbers = #tpu.dot_dimension_numbers<[1], [0], [0], [1], [0, 0, 1, 1], [], []>} : vector<16x128xf32>, vector<128x384xf32>, vector<16x384xf32> -> vector<16x384xf32>
    %c0_34 = arith.constant 0 : index
    %c0_35 = arith.constant 0 : index
    %75 = vector.load %arg13[%c0_34, %c0_35] : memref<1x384xf32, #tpu.memory_space<vmem>>, vector<1x384xf32>
    %76 = vector.broadcast %75 : vector<1x384xf32> to vector<16x384xf32>
    %77 = arith.addf %74, %76 : vector<16x384xf32>
    %c0_36 = arith.constant 0 : index
    %c0_37 = arith.constant 0 : index
    %78 = vector.load %arg12[%c0_36, %c0_37] : memref<128x384xf32, #tpu.memory_space<vmem>>, vector<128x384xf32>
    %cst_38 = arith.constant dense<0.000000e+00> : vector<16x384xf32>
    %79 = tpu.matmul %6, %78, %cst_38 {dimension_numbers = #tpu.dot_dimension_numbers<[1], [0], [0], [1], [0, 0, 1, 1], [], []>} : vector<16x128xf32>, vector<128x384xf32>, vector<16x384xf32> -> vector<16x384xf32>
    %c0_39 = arith.constant 0 : index
    %c0_40 = arith.constant 0 : index
    %80 = vector.load %arg14[%c0_39, %c0_40] : memref<1x384xf32, #tpu.memory_space<vmem>>, vector<1x384xf32>
    %81 = vector.broadcast %80 : vector<1x384xf32> to vector<16x384xf32>
    %82 = arith.addf %79, %81 : vector<16x384xf32>
    %83 = vector.extract_strided_slice %77 {offsets = [0, 0], sizes = [16, 128], strides = [1, 1]} : vector<16x384xf32> to vector<16x128xf32>
    %84 = vector.extract_strided_slice %82 {offsets = [0, 0], sizes = [16, 128], strides = [1, 1]} : vector<16x384xf32> to vector<16x128xf32>
    %85 = arith.addf %83, %84 : vector<16x128xf32>
    %cst_41 = arith.constant 0.000000e+00 : f32
    %86 = vector.broadcast %cst_41 : f32 to vector<16x128xf32>
    %87 = arith.subf %86, %85 : vector<16x128xf32>
    %88 = math.exp %87 : vector<16x128xf32>
    %cst_42 = arith.constant 1.000000e+00 : f32
    %89 = vector.broadcast %cst_42 : f32 to vector<16x128xf32>
    %90 = arith.addf %89, %88 : vector<16x128xf32>
    %cst_43 = arith.constant 1.000000e+00 : f32
    %91 = vector.broadcast %cst_43 : f32 to vector<16x128xf32>
    %92 = arith.divf %91, %90 : vector<16x128xf32>
    %93 = vector.extract_strided_slice %77 {offsets = [0, 128], sizes = [16, 128], strides = [1, 1]} : vector<16x384xf32> to vector<16x128xf32>
    %94 = vector.extract_strided_slice %82 {offsets = [0, 128], sizes = [16, 128], strides = [1, 1]} : vector<16x384xf32> to vector<16x128xf32>
    %95 = arith.addf %93, %94 : vector<16x128xf32>
    %cst_44 = arith.constant 0.000000e+00 : f32
    %96 = vector.broadcast %cst_44 : f32 to vector<16x128xf32>
    %97 = arith.subf %96, %95 : vector<16x128xf32>
    %98 = math.exp %97 : vector<16x128xf32>
    %cst_45 = arith.constant 1.000000e+00 : f32
    %99 = vector.broadcast %cst_45 : f32 to vector<16x128xf32>
    %100 = arith.addf %99, %98 : vector<16x128xf32>
    %cst_46 = arith.constant 1.000000e+00 : f32
    %101 = vector.broadcast %cst_46 : f32 to vector<16x128xf32>
    %102 = arith.divf %101, %100 : vector<16x128xf32>
    %103 = vector.extract_strided_slice %77 {offsets = [0, 256], sizes = [16, 128], strides = [1, 1]} : vector<16x384xf32> to vector<16x128xf32>
    %104 = vector.extract_strided_slice %82 {offsets = [0, 256], sizes = [16, 128], strides = [1, 1]} : vector<16x384xf32> to vector<16x128xf32>
    %105 = arith.mulf %92, %104 : vector<16x128xf32>
    %106 = arith.addf %103, %105 : vector<16x128xf32>
    %107 = math.tanh %106 : vector<16x128xf32>
    %cst_47 = arith.constant 1.000000e+00 : f32
    %108 = vector.broadcast %cst_47 : f32 to vector<16x128xf32>
    %109 = arith.subf %108, %102 : vector<16x128xf32>
    %110 = arith.mulf %109, %107 : vector<16x128xf32>
    %111 = arith.mulf %102, %6 : vector<16x128xf32>
    %112 = arith.addf %110, %111 : vector<16x128xf32>
    %c0_48 = arith.constant 0 : index
    %c0_49 = arith.constant 0 : index
    %113 = vector.load %arg15[%c0_48, %c0_49] : memref<16x128xf32, #tpu.memory_space<vmem>>, vector<16x128xf32>
    tpu.vector_store %arg15[%c0_48, %c0_49], %112 {strides = array<i32>} : memref<16x128xf32, #tpu.memory_space<vmem>>, vector<16x128xf32>,
    return
  }
  func.func @transform_0(%arg0: i32) -> (i32, i32) {
    %c0_i32 = arith.constant 0 : i32
    %c0_i32_0 = arith.constant 0 : i32
    return %arg0, %c0_i32 : i32, i32
  }
  func.func @transform_1(%arg0: i32) -> (i32, i32) {
    %c0_i32 = arith.constant 0 : i32
    %c0_i32_0 = arith.constant 0 : i32
    return %arg0, %c0_i32 : i32, i32
  }
  func.func @transform_2(%arg0: i32) -> (i32, i32) {
    %c0_i32 = arith.constant 0 : i32
    %c0_i32_0 = arith.constant 0 : i32
    return %arg0, %c0_i32 : i32, i32
  }
  func.func @transform_3(%arg0: i32) -> (i32, i32) {
    %c0_i32 = arith.constant 0 : i32
    %c0_i32_0 = arith.constant 0 : i32
    return %arg0, %c0_i32 : i32, i32
  }
  func.func @transform_4(%arg0: i32) -> (i32, i32) {
    %c0_i32 = arith.constant 0 : i32
    %c0_i32_0 = arith.constant 0 : i32
    return %arg0, %c0_i32 : i32, i32
  }
  func.func @transform_5(%arg0: i32) -> (i32, i32) {
    %c0_i32 = arith.constant 0 : i32
    %c0_i32_0 = arith.constant 0 : i32
    %c0_i32_1 = arith.constant 0 : i32
    return %c0_i32, %c0_i32_0 : i32, i32
  }
  func.func @transform_6(%arg0: i32) -> (i32, i32) {
    %c0_i32 = arith.constant 0 : i32
    %c0_i32_0 = arith.constant 0 : i32
    %c0_i32_1 = arith.constant 0 : i32
    return %c0_i32, %c0_i32_0 : i32, i32
  }
  func.func @transform_7(%arg0: i32) -> (i32, i32) {
    %c0_i32 = arith.constant 0 : i32
    %c0_i32_0 = arith.constant 0 : i32
    %c0_i32_1 = arith.constant 0 : i32
    return %c0_i32, %c0_i32_0 : i32, i32
  }
  func.func @transform_8(%arg0: i32) -> (i32, i32) {
    %c0_i32 = arith.constant 0 : i32
    %c0_i32_0 = arith.constant 0 : i32
    %c0_i32_1 = arith.constant 0 : i32
    return %c0_i32, %c0_i32_0 : i32, i32
  }
  func.func @transform_9(%arg0: i32) -> (i32, i32) {
    %c0_i32 = arith.constant 0 : i32
    %c0_i32_0 = arith.constant 0 : i32
    %c0_i32_1 = arith.constant 0 : i32
    return %c0_i32, %c0_i32_0 : i32, i32
  }
  func.func @transform_10(%arg0: i32) -> (i32, i32) {
    %c0_i32 = arith.constant 0 : i32
    %c0_i32_0 = arith.constant 0 : i32
    %c0_i32_1 = arith.constant 0 : i32
    return %c0_i32, %c0_i32_0 : i32, i32
  }
  func.func @transform_11(%arg0: i32) -> (i32, i32) {
    %c0_i32 = arith.constant 0 : i32
    %c0_i32_0 = arith.constant 0 : i32
    %c0_i32_1 = arith.constant 0 : i32
    return %c0_i32, %c0_i32_0 : i32, i32
  }
  func.func @transform_12(%arg0: i32) -> (i32, i32) {
    %c0_i32 = arith.constant 0 : i32
    %c0_i32_0 = arith.constant 0 : i32
    %c0_i32_1 = arith.constant 0 : i32
    return %c0_i32, %c0_i32_0 : i32, i32
  }
  func.func @transform_13(%arg0: i32) -> (i32, i32) {
    %c0_i32 = arith.constant 0 : i32
    %c0_i32_0 = arith.constant 0 : i32
    %c0_i32_1 = arith.constant 0 : i32
    return %c0_i32, %c0_i32_0 : i32, i32
  }
  func.func @transform_14(%arg0: i32) -> (i32, i32) {
    %c0_i32 = arith.constant 0 : i32
    %c0_i32_0 = arith.constant 0 : i32
    return %arg0, %c0_i32 : i32, i32
  }
}

module attributes {stable_mosaic.version = 11 : i64} {
  func.func @_mol_rounds_kernel(%arg0: i32, %arg1: memref<2x8x128xf32, #tpu.memory_space<vmem>>, %arg2: memref<2x8xf32, #tpu.memory_space<vmem>>, %arg3: memref<1x128xf32, #tpu.memory_space<vmem>>, %arg4: memref<1x128xf32, #tpu.memory_space<vmem>>, %arg5: memref<1x1xf32, #tpu.memory_space<vmem>>, %arg6: memref<128x128xf32, #tpu.memory_space<vmem>>, %arg7: memref<1x128xf32, #tpu.memory_space<vmem>>, %arg8: memref<128x384xf32, #tpu.memory_space<vmem>>, %arg9: memref<128x384xf32, #tpu.memory_space<vmem>>, %arg10: memref<1x384xf32, #tpu.memory_space<vmem>>, %arg11: memref<1x384xf32, #tpu.memory_space<vmem>>, %arg12: memref<1x128xf32, #tpu.memory_space<vmem>>, %arg13: memref<1x128xf32, #tpu.memory_space<vmem>>, %arg14: memref<2x128xf32, #tpu.memory_space<vmem>>) attributes {dimension_semantics = [#tpu.dimension_semantics<arbitrary>], iteration_bounds = array<i64: 2>, scalar_prefetch = 0 : i64, scratch_operands = 0 : i64, tpu.core_type = #tpu.core_type<tc>, window_params = [{pipeline_mode = #tpu.pipeline_mode<synchronous>, transform_indices = @transform_0, window_bounds = array<i64: 2, 8, 128>}, {pipeline_mode = #tpu.pipeline_mode<synchronous>, transform_indices = @transform_1, window_bounds = array<i64: 2, 8>}, {pipeline_mode = #tpu.pipeline_mode<synchronous>, transform_indices = @transform_2, window_bounds = array<i64: 1, 128>}, {pipeline_mode = #tpu.pipeline_mode<synchronous>, transform_indices = @transform_3, window_bounds = array<i64: 1, 128>}, {pipeline_mode = #tpu.pipeline_mode<synchronous>, transform_indices = @transform_4, window_bounds = array<i64: 1, 1>}, {pipeline_mode = #tpu.pipeline_mode<synchronous>, transform_indices = @transform_5, window_bounds = array<i64: 128, 128>}, {pipeline_mode = #tpu.pipeline_mode<synchronous>, transform_indices = @transform_6, window_bounds = array<i64: 1, 128>}, {pipeline_mode = #tpu.pipeline_mode<synchronous>, transform_indices = @transform_7, window_bounds = array<i64: 128, 384>}, {pipeline_mode = #tpu.pipeline_mode<synchronous>, transform_indices = @transform_8, window_bounds = array<i64: 128, 384>}, {pipeline_mode = #tpu.pipeline_mode<synchronous>, transform_indices = @transform_9, window_bounds = array<i64: 1, 384>}, {pipeline_mode = #tpu.pipeline_mode<synchronous>, transform_indices = @transform_10, window_bounds = array<i64: 1, 384>}, {pipeline_mode = #tpu.pipeline_mode<synchronous>, transform_indices = @transform_11, window_bounds = array<i64: 1, 128>}, {pipeline_mode = #tpu.pipeline_mode<synchronous>, transform_indices = @transform_12, window_bounds = array<i64: 1, 128>}, {pipeline_mode = #tpu.pipeline_mode<synchronous>, transform_indices = @transform_13, window_bounds = array<i64: 2, 128>}]} {
    %c0 = arith.constant 0 : index
    %c0_0 = arith.constant 0 : index
    %c0_1 = arith.constant 0 : index
    %0 = vector.load %arg1[%c0, %c0_0, %c0_1] : memref<2x8x128xf32, #tpu.memory_space<vmem>>, vector<2x8x128xf32>
    %cst = arith.constant 0.000000e+00 : f32
    %1 = vector.broadcast %cst : f32 to vector<2x8x128xf32>
    %2 = arith.maximumf %0, %1 : vector<2x8x128xf32>
    %c0_2 = arith.constant 0 : index
    %c0_3 = arith.constant 0 : index
    %3 = vector.load %arg2[%c0_2, %c0_3] : memref<2x8xf32, #tpu.memory_space<vmem>>, vector<2x8xf32>
    %4 = vector.shape_cast %3 : vector<2x8xf32> to vector<2x8x1xf32>
    %c0_i32 = arith.constant 0 : i32
    %5 = arith.cmpi eq, %arg0, %c0_i32 : i32
    %6 = arith.extui %5 : i1 to i32
    %c0_i32_4 = arith.constant 0 : i32
    %7 = arith.cmpi ne, %6, %c0_i32_4 : i32
    scf.if %7 {
      %141 = vector.broadcast %4 : vector<2x8x1xf32> to vector<2x8x128xf32>
      %142 = arith.mulf %2, %141 : vector<2x8x128xf32>
      %cst_61 = arith.constant dense<0.000000e+00> : vector<2x128xf32>
      %143 = vector.multi_reduction <add>, %142, %cst_61 [1] : vector<2x8x128xf32> to vector<2x128xf32>
      %c0_62 = arith.constant 0 : index
      %c0_63 = arith.constant 0 : index
      %144 = vector.load %arg14[%c0_62, %c0_63] : memref<2x128xf32, #tpu.memory_space<vmem>>, vector<2x128xf32>
      tpu.vector_store %arg14[%c0_62, %c0_63], %143 {strides = array<i32>} : memref<2x128xf32, #tpu.memory_space<vmem>>, vector<2x128xf32>,
    } else {
    }
    %c0_5 = arith.constant 0 : index
    %c0_6 = arith.constant 0 : index
    %8 = vector.load %arg14[%c0_5, %c0_6] : memref<2x128xf32, #tpu.memory_space<vmem>>, vector<2x128xf32>
    %cst_7 = arith.constant 0.000000e+00 : f32
    %9 = vector.broadcast %cst_7 : f32 to vector<2x128xf32>
    %10 = arith.maximumf %8, %9 : vector<2x128xf32>
    %c0_8 = arith.constant 0 : index
    %c0_9 = arith.constant 0 : index
    %11 = vector.load %arg3[%c0_8, %c0_9] : memref<1x128xf32, #tpu.memory_space<vmem>>, vector<1x128xf32>
    %12 = vector.broadcast %11 : vector<1x128xf32> to vector<2x128xf32>
    %13 = arith.mulf %10, %12 : vector<2x128xf32>
    %cst_10 = arith.constant dense<0.000000e+00> : vector<2xf32>
    %14 = vector.multi_reduction <add>, %13, %cst_10 [1] : vector<2x128xf32> to vector<2xf32>
    %15 = vector.shape_cast %14 : vector<2xf32> to vector<2x1xf32>
    %c0_11 = arith.constant 0 : index
    %c0_12 = arith.constant 0 : index
    %16 = vector.load %arg4[%c0_11, %c0_12] : memref<1x128xf32, #tpu.memory_space<vmem>>, vector<1x128xf32>
    %17 = vector.shape_cast %16 : vector<1x128xf32> to vector<1x1x128xf32>
    %18 = vector.broadcast %17 : vector<1x1x128xf32> to vector<2x8x128xf32>
    %19 = arith.mulf %2, %18 : vector<2x8x128xf32>
    %cst_13 = arith.constant dense<0.000000e+00> : vector<2x8xf32>
    %20 = vector.multi_reduction <add>, %19, %cst_13 [2] : vector<2x8x128xf32> to vector<2x8xf32>
    %cst_14 = arith.constant 0.000000e+00 : f32
    %21 = vector.broadcast %cst_14 : f32 to vector<2x8xf32>
    %22 = arith.cmpf oeq, %3, %21 : vector<2x8xf32>
    %cst_15 = arith.constant -9.000000e+08 : f32
    %cst_16 = arith.constant 0.000000e+00 : f32
    %23 = vector.broadcast %cst_15 : f32 to vector<2x8xf32>
    %24 = vector.broadcast %cst_16 : f32 to vector<2x8xf32>
    %25 = arith.select %22, %23, %24 : vector<2x8xi1>, vector<2x8xf32>
    %26 = vector.broadcast %15 : vector<2x1xf32> to vector<2x8xf32>
    %27 = arith.addf %20, %26 : vector<2x8xf32>
    %c0_17 = arith.constant 0 : index
    %c0_18 = arith.constant 0 : index
    %28 = vector.load %arg5[%c0_17, %c0_18] : memref<1x1xf32, #tpu.memory_space<vmem>>, vector<1x1xf32>
    %29 = vector.broadcast %28 : vector<1x1xf32> to vector<2x8xf32>
    %30 = arith.addf %27, %29 : vector<2x8xf32>
    %cst_19 = arith.constant 0.000000e+00 : f32
    %31 = vector.broadcast %cst_19 : f32 to vector<2x8xf32>
    %32 = arith.cmpf oge, %30, %31 : vector<2x8xf32>
    %cst_20 = arith.constant 0.00999999977 : f32
    %33 = vector.broadcast %cst_20 : f32 to vector<2x8xf32>
    %34 = arith.mulf %33, %30 : vector<2x8xf32>
    %35 = arith.select %32, %30, %34 : vector<2x8xi1>, vector<2x8xf32>
    %36 = arith.addf %35, %25 : vector<2x8xf32>
    %cst_21 = arith.constant dense<0xFF800000> : vector<2xf32>
    %37 = vector.multi_reduction <maximumf>, %36, %cst_21 [1] : vector<2x8xf32> to vector<2xf32>
    %38 = vector.shape_cast %37 : vector<2xf32> to vector<2x1xf32>
    %39 = vector.broadcast %38 : vector<2x1xf32> to vector<2x8xf32>
    %40 = arith.subf %36, %39 : vector<2x8xf32>
    %41 = math.exp %40 : vector<2x8xf32>
    %cst_22 = arith.constant dense<0.000000e+00> : vector<2xf32>
    %42 = vector.multi_reduction <add>, %41, %cst_22 [1] : vector<2x8xf32> to vector<2xf32>
    %43 = vector.shape_cast %42 : vector<2xf32> to vector<2x1xf32>
    %44 = vector.broadcast %43 : vector<2x1xf32> to vector<2x8xf32>
    %45 = arith.divf %41, %44 : vector<2x8xf32>
    %46 = arith.mulf %45, %3 : vector<2x8xf32>
    %47 = vector.shape_cast %46 : vector<2x8xf32> to vector<2x8x1xf32>
    %48 = vector.broadcast %47 : vector<2x8x1xf32> to vector<2x8x128xf32>
    %49 = arith.mulf %48, %2 : vector<2x8x128xf32>
    %cst_23 = arith.constant dense<0.000000e+00> : vector<2x128xf32>
    %50 = vector.multi_reduction <add>, %49, %cst_23 [1] : vector<2x8x128xf32> to vector<2x128xf32>
    %cst_24 = arith.constant dense<0.000000e+00> : vector<2xf32>
    %51 = vector.multi_reduction <add>, %46, %cst_24 [1] : vector<2x8xf32> to vector<2xf32>
    %52 = vector.shape_cast %51 : vector<2xf32> to vector<2x1xf32>
    %c0_25 = arith.constant 0 : index
    %c0_26 = arith.constant 0 : index
    %53 = vector.load %arg6[%c0_25, %c0_26] : memref<128x128xf32, #tpu.memory_space<vmem>>, vector<128x128xf32>
    %cst_27 = arith.constant dense<0.000000e+00> : vector<2x128xf32>
    %54 = tpu.matmul %50, %53, %cst_27 {dimension_numbers = #tpu.dot_dimension_numbers<[1], [0], [0], [1], [0, 0, 1, 1], [], []>} : vector<2x128xf32>, vector<128x128xf32>, vector<2x128xf32> -> vector<2x128xf32>
    %c0_28 = arith.constant 0 : index
    %c0_29 = arith.constant 0 : index
    %55 = vector.load %arg7[%c0_28, %c0_29] : memref<1x128xf32, #tpu.memory_space<vmem>>, vector<1x128xf32>
    %56 = vector.broadcast %52 : vector<2x1xf32> to vector<2x128xf32>
    %57 = vector.broadcast %55 : vector<1x128xf32> to vector<2x128xf32>
    %58 = arith.mulf %56, %57 : vector<2x128xf32>
    %59 = arith.addf %54, %58 : vector<2x128xf32>
    %cst_30 = arith.constant 0.000000e+00 : f32
    %60 = vector.broadcast %cst_30 : f32 to vector<2x128xf32>
    %61 = arith.cmpf ogt, %59, %60 : vector<2x128xf32>
    %cst_31 = arith.constant 0.000000e+00 : f32
    %62 = vector.broadcast %cst_31 : f32 to vector<2x128xf32>
    %63 = arith.minimumf %59, %62 : vector<2x128xf32>
    %64 = math.exp %63 : vector<2x128xf32>
    %cst_32 = arith.constant 1.000000e+00 : f32
    %65 = vector.broadcast %cst_32 : f32 to vector<2x128xf32>
    %66 = arith.subf %64, %65 : vector<2x128xf32>
    %67 = arith.select %61, %59, %66 : vector<2x128xi1>, vector<2x128xf32>
    %c0_33 = arith.constant 0 : index
    %c0_34 = arith.constant 0 : index
    %68 = vector.load %arg8[%c0_33, %c0_34] : memref<128x384xf32, #tpu.memory_space<vmem>>, vector<128x384xf32>
    %cst_35 = arith.constant dense<0.000000e+00> : vector<2x384xf32>
    %69 = tpu.matmul %67, %68, %cst_35 {dimension_numbers = #tpu.dot_dimension_numbers<[1], [0], [0], [1], [0, 0, 1, 1], [], []>} : vector<2x128xf32>, vector<128x384xf32>, vector<2x384xf32> -> vector<2x384xf32>
    %c0_36 = arith.constant 0 : index
    %c0_37 = arith.constant 0 : index
    %70 = vector.load %arg10[%c0_36, %c0_37] : memref<1x384xf32, #tpu.memory_space<vmem>>, vector<1x384xf32>
    %71 = vector.broadcast %70 : vector<1x384xf32> to vector<2x384xf32>
    %72 = arith.addf %69, %71 : vector<2x384xf32>
    %c0_38 = arith.constant 0 : index
    %c0_39 = arith.constant 0 : index
    %73 = vector.load %arg9[%c0_38, %c0_39] : memref<128x384xf32, #tpu.memory_space<vmem>>, vector<128x384xf32>
    %cst_40 = arith.constant dense<0.000000e+00> : vector<2x384xf32>
    %74 = tpu.matmul %8, %73, %cst_40 {dimension_numbers = #tpu.dot_dimension_numbers<[1], [0], [0], [1], [0, 0, 1, 1], [], []>} : vector<2x128xf32>, vector<128x384xf32>, vector<2x384xf32> -> vector<2x384xf32>
    %c0_41 = arith.constant 0 : index
    %c0_42 = arith.constant 0 : index
    %75 = vector.load %arg11[%c0_41, %c0_42] : memref<1x384xf32, #tpu.memory_space<vmem>>, vector<1x384xf32>
    %76 = vector.broadcast %75 : vector<1x384xf32> to vector<2x384xf32>
    %77 = arith.addf %74, %76 : vector<2x384xf32>
    %78 = vector.extract_strided_slice %72 {offsets = [0, 0], sizes = [2, 128], strides = [1, 1]} : vector<2x384xf32> to vector<2x128xf32>
    %79 = vector.extract_strided_slice %77 {offsets = [0, 0], sizes = [2, 128], strides = [1, 1]} : vector<2x384xf32> to vector<2x128xf32>
    %80 = arith.addf %78, %79 : vector<2x128xf32>
    %cst_43 = arith.constant 0.000000e+00 : f32
    %81 = vector.broadcast %cst_43 : f32 to vector<2x128xf32>
    %82 = arith.subf %81, %80 : vector<2x128xf32>
    %83 = math.exp %82 : vector<2x128xf32>
    %cst_44 = arith.constant 1.000000e+00 : f32
    %84 = vector.broadcast %cst_44 : f32 to vector<2x128xf32>
    %85 = arith.addf %84, %83 : vector<2x128xf32>
    %cst_45 = arith.constant 1.000000e+00 : f32
    %86 = vector.broadcast %cst_45 : f32 to vector<2x128xf32>
    %87 = arith.divf %86, %85 : vector<2x128xf32>
    %88 = vector.extract_strided_slice %72 {offsets = [0, 128], sizes = [2, 128], strides = [1, 1]} : vector<2x384xf32> to vector<2x128xf32>
    %89 = vector.extract_strided_slice %77 {offsets = [0, 128], sizes = [2, 128], strides = [1, 1]} : vector<2x384xf32> to vector<2x128xf32>
    %90 = arith.addf %88, %89 : vector<2x128xf32>
    %cst_46 = arith.constant 0.000000e+00 : f32
    %91 = vector.broadcast %cst_46 : f32 to vector<2x128xf32>
    %92 = arith.subf %91, %90 : vector<2x128xf32>
    %93 = math.exp %92 : vector<2x128xf32>
    %cst_47 = arith.constant 1.000000e+00 : f32
    %94 = vector.broadcast %cst_47 : f32 to vector<2x128xf32>
    %95 = arith.addf %94, %93 : vector<2x128xf32>
    %cst_48 = arith.constant 1.000000e+00 : f32
    %96 = vector.broadcast %cst_48 : f32 to vector<2x128xf32>
    %97 = arith.divf %96, %95 : vector<2x128xf32>
    %98 = vector.extract_strided_slice %72 {offsets = [0, 256], sizes = [2, 128], strides = [1, 1]} : vector<2x384xf32> to vector<2x128xf32>
    %99 = vector.extract_strided_slice %77 {offsets = [0, 256], sizes = [2, 128], strides = [1, 1]} : vector<2x384xf32> to vector<2x128xf32>
    %100 = arith.mulf %87, %99 : vector<2x128xf32>
    %101 = arith.addf %98, %100 : vector<2x128xf32>
    %102 = math.tanh %101 : vector<2x128xf32>
    %cst_49 = arith.constant 1.000000e+00 : f32
    %103 = vector.broadcast %cst_49 : f32 to vector<2x128xf32>
    %104 = arith.subf %103, %97 : vector<2x128xf32>
    %105 = arith.mulf %104, %102 : vector<2x128xf32>
    %106 = arith.mulf %97, %8 : vector<2x128xf32>
    %107 = arith.addf %105, %106 : vector<2x128xf32>
    %108 = tpu.iota {dimensions = array<i32: 1>} : vector<1x128xi32>
    %c32_i32 = arith.constant 32 : i32
    %109 = vector.broadcast %c32_i32 : i32 to vector<1x128xi32>
    %110 = arith.cmpi slt, %108, %109 : vector<1x128xi32>
    %111 = arith.extui %110 : vector<1x128xi1> to vector<1x128xi32>
    %112 = arith.sitofp %111 : vector<1x128xi32> to vector<1x128xf32>
    %cst_50 = arith.constant dense<0.000000e+00> : vector<2xf32>
    %113 = vector.multi_reduction <add>, %107, %cst_50 [1] : vector<2x128xf32> to vector<2xf32>
    %114 = vector.shape_cast %113 : vector<2xf32> to vector<2x1xf32>
    %cst_51 = arith.constant 3.200000e+01 : f32
    %115 = vector.broadcast %cst_51 : f32 to vector<2x1xf32>
    %116 = arith.divf %114, %115 : vector<2x1xf32>
    %117 = vector.broadcast %116 : vector<2x1xf32> to vector<2x128xf32>
    %118 = arith.subf %107, %117 : vector<2x128xf32>
    %119 = vector.broadcast %112 : vector<1x128xf32> to vector<2x128xf32>
    %120 = arith.mulf %118, %119 : vector<2x128xf32>
    %121 = arith.mulf %120, %120 : vector<2x128xf32>
    %cst_52 = arith.constant dense<0.000000e+00> : vector<2xf32>
    %122 = vector.multi_reduction <add>, %121, %cst_52 [1] : vector<2x128xf32> to vector<2xf32>
    %123 = vector.shape_cast %122 : vector<2xf32> to vector<2x1xf32>
    %cst_53 = arith.constant 3.200000e+01 : f32
    %124 = vector.broadcast %cst_53 : f32 to vector<2x1xf32>
    %125 = arith.divf %123, %124 : vector<2x1xf32>
    %126 = vector.broadcast %116 : vector<2x1xf32> to vector<2x128xf32>
    %127 = arith.subf %107, %126 : vector<2x128xf32>
    %cst_54 = arith.constant 9.99999974E-6 : f32
    %128 = vector.broadcast %cst_54 : f32 to vector<2x1xf32>
    %129 = arith.addf %125, %128 : vector<2x1xf32>
    %130 = math.rsqrt %129 : vector<2x1xf32>
    %131 = vector.broadcast %130 : vector<2x1xf32> to vector<2x128xf32>
    %132 = arith.mulf %127, %131 : vector<2x128xf32>
    %c0_55 = arith.constant 0 : index
    %c0_56 = arith.constant 0 : index
    %133 = vector.load %arg12[%c0_55, %c0_56] : memref<1x128xf32, #tpu.memory_space<vmem>>, vector<1x128xf32>
    %134 = vector.broadcast %133 : vector<1x128xf32> to vector<2x128xf32>
    %135 = arith.mulf %132, %134 : vector<2x128xf32>
    %c0_57 = arith.constant 0 : index
    %c0_58 = arith.constant 0 : index
    %136 = vector.load %arg13[%c0_57, %c0_58] : memref<1x128xf32, #tpu.memory_space<vmem>>, vector<1x128xf32>
    %137 = vector.broadcast %136 : vector<1x128xf32> to vector<2x128xf32>
    %138 = arith.addf %135, %137 : vector<2x128xf32>
    %139 = arith.addf %138, %107 : vector<2x128xf32>
    %c0_59 = arith.constant 0 : index
    %c0_60 = arith.constant 0 : index
    %140 = vector.load %arg14[%c0_59, %c0_60] : memref<2x128xf32, #tpu.memory_space<vmem>>, vector<2x128xf32>
    tpu.vector_store %arg14[%c0_59, %c0_60], %139 {strides = array<i32>} : memref<2x128xf32, #tpu.memory_space<vmem>>, vector<2x128xf32>,
    return
  }
  func.func @transform_0(%arg0: i32) -> (i32, i32, i32) {
    %c0_i32 = arith.constant 0 : i32
    %c0_i32_0 = arith.constant 0 : i32
    %c0_i32_1 = arith.constant 0 : i32
    %c0_i32_2 = arith.constant 0 : i32
    return %c0_i32, %c0_i32_0, %c0_i32_1 : i32, i32, i32
  }
  func.func @transform_1(%arg0: i32) -> (i32, i32) {
    %c0_i32 = arith.constant 0 : i32
    %c0_i32_0 = arith.constant 0 : i32
    %c0_i32_1 = arith.constant 0 : i32
    return %c0_i32, %c0_i32_0 : i32, i32
  }
  func.func @transform_2(%arg0: i32) -> (i32, i32) {
    %c0_i32 = arith.constant 0 : i32
    %c0_i32_0 = arith.constant 0 : i32
    %c0_i32_1 = arith.constant 0 : i32
    return %c0_i32, %c0_i32_0 : i32, i32
  }
  func.func @transform_3(%arg0: i32) -> (i32, i32) {
    %c0_i32 = arith.constant 0 : i32
    %c0_i32_0 = arith.constant 0 : i32
    %c0_i32_1 = arith.constant 0 : i32
    return %c0_i32, %c0_i32_0 : i32, i32
  }
  func.func @transform_4(%arg0: i32) -> (i32, i32) {
    %c0_i32 = arith.constant 0 : i32
    %c0_i32_0 = arith.constant 0 : i32
    %c0_i32_1 = arith.constant 0 : i32
    return %c0_i32, %c0_i32_0 : i32, i32
  }
  func.func @transform_5(%arg0: i32) -> (i32, i32) {
    %c0_i32 = arith.constant 0 : i32
    %c0_i32_0 = arith.constant 0 : i32
    %c0_i32_1 = arith.constant 0 : i32
    return %c0_i32, %c0_i32_0 : i32, i32
  }
  func.func @transform_6(%arg0: i32) -> (i32, i32) {
    %c0_i32 = arith.constant 0 : i32
    %c0_i32_0 = arith.constant 0 : i32
    %c0_i32_1 = arith.constant 0 : i32
    return %c0_i32, %c0_i32_0 : i32, i32
  }
  func.func @transform_7(%arg0: i32) -> (i32, i32) {
    %c0_i32 = arith.constant 0 : i32
    %c0_i32_0 = arith.constant 0 : i32
    %c0_i32_1 = arith.constant 0 : i32
    return %c0_i32, %c0_i32_0 : i32, i32
  }
  func.func @transform_8(%arg0: i32) -> (i32, i32) {
    %c0_i32 = arith.constant 0 : i32
    %c0_i32_0 = arith.constant 0 : i32
    %c0_i32_1 = arith.constant 0 : i32
    return %c0_i32, %c0_i32_0 : i32, i32
  }
  func.func @transform_9(%arg0: i32) -> (i32, i32) {
    %c0_i32 = arith.constant 0 : i32
    %c0_i32_0 = arith.constant 0 : i32
    %c0_i32_1 = arith.constant 0 : i32
    return %c0_i32, %c0_i32_0 : i32, i32
  }
  func.func @transform_10(%arg0: i32) -> (i32, i32) {
    %c0_i32 = arith.constant 0 : i32
    %c0_i32_0 = arith.constant 0 : i32
    %c0_i32_1 = arith.constant 0 : i32
    return %c0_i32, %c0_i32_0 : i32, i32
  }
  func.func @transform_11(%arg0: i32) -> (i32, i32) {
    %c0_i32 = arith.constant 0 : i32
    %c0_i32_0 = arith.constant 0 : i32
    %c0_i32_1 = arith.constant 0 : i32
    return %c0_i32, %c0_i32_0 : i32, i32
  }
  func.func @transform_12(%arg0: i32) -> (i32, i32) {
    %c0_i32 = arith.constant 0 : i32
    %c0_i32_0 = arith.constant 0 : i32
    %c0_i32_1 = arith.constant 0 : i32
    return %c0_i32, %c0_i32_0 : i32, i32
  }
  func.func @transform_13(%arg0: i32) -> (i32, i32) {
    %c0_i32 = arith.constant 0 : i32
    %c0_i32_0 = arith.constant 0 : i32
    %c0_i32_1 = arith.constant 0 : i32
    return %c0_i32, %c0_i32_0 : i32, i32
  }
}

module attributes {stable_mosaic.version = 11 : i64} {
  func.func @_pointnet_kernel(%arg0: i32, %arg1: i32, %arg2: memref<1x16x6xf32, #tpu.memory_space<vmem>>, %arg3: memref<6x64xf32, #tpu.memory_space<vmem>>, %arg4: memref<1x64xf32, #tpu.memory_space<vmem>>, %arg5: memref<64x128xf32, #tpu.memory_space<vmem>>, %arg6: memref<1x128xf32, #tpu.memory_space<vmem>>, %arg7: memref<128x1024xf32, #tpu.memory_space<vmem>>, %arg8: memref<1x1024xf32, #tpu.memory_space<vmem>>, %arg9: memref<1x1x1024xf32, #tpu.memory_space<vmem>>) attributes {dimension_semantics = [#tpu.dimension_semantics<parallel>, #tpu.dimension_semantics<arbitrary>], iteration_bounds = array<i64: 2, 1>, scalar_prefetch = 0 : i64, scratch_operands = 0 : i64, tpu.core_type = #tpu.core_type<tc>, window_params = [{transform_indices = @transform_0, window_bounds = array<i64: 1, 16, 6>}, {pipeline_mode = #tpu.pipeline_mode<synchronous>, transform_indices = @transform_1, window_bounds = array<i64: 6, 64>}, {pipeline_mode = #tpu.pipeline_mode<synchronous>, transform_indices = @transform_2, window_bounds = array<i64: 1, 64>}, {pipeline_mode = #tpu.pipeline_mode<synchronous>, transform_indices = @transform_3, window_bounds = array<i64: 64, 128>}, {pipeline_mode = #tpu.pipeline_mode<synchronous>, transform_indices = @transform_4, window_bounds = array<i64: 1, 128>}, {pipeline_mode = #tpu.pipeline_mode<synchronous>, transform_indices = @transform_5, window_bounds = array<i64: 128, 1024>}, {pipeline_mode = #tpu.pipeline_mode<synchronous>, transform_indices = @transform_6, window_bounds = array<i64: 1, 1024>}, {transform_indices = @transform_7, window_bounds = array<i64: 1, 1, 1024>}]} {
    %c0 = arith.constant 0 : index
    %c0_0 = arith.constant 0 : index
    %c0_1 = arith.constant 0 : index
    %0 = vector.load %arg2[%c0, %c0_0, %c0_1] : memref<1x16x6xf32, #tpu.memory_space<vmem>>, vector<1x16x6xf32>
    %1 = vector.shape_cast %0 : vector<1x16x6xf32> to vector<16x6xf32>
    %c0_2 = arith.constant 0 : index
    %c0_3 = arith.constant 0 : index
    %2 = vector.load %arg3[%c0_2, %c0_3] : memref<6x64xf32, #tpu.memory_space<vmem>>, vector<6x64xf32>
    %cst = arith.constant dense<0.000000e+00> : vector<16x64xf32>
    %3 = tpu.matmul %1, %2, %cst {dimension_numbers = #tpu.dot_dimension_numbers<[1], [0], [0], [1], [0, 0, 1, 1], [], []>} : vector<16x6xf32>, vector<6x64xf32>, vector<16x64xf32> -> vector<16x64xf32>
    %c0_4 = arith.constant 0 : index
    %c0_5 = arith.constant 0 : index
    %4 = vector.load %arg4[%c0_4, %c0_5] : memref<1x64xf32, #tpu.memory_space<vmem>>, vector<1x64xf32>
    %5 = vector.broadcast %4 : vector<1x64xf32> to vector<16x64xf32>
    %6 = arith.addf %3, %5 : vector<16x64xf32>
    %cst_6 = arith.constant 0.000000e+00 : f32
    %7 = vector.broadcast %cst_6 : f32 to vector<16x64xf32>
    %8 = arith.cmpf oge, %6, %7 : vector<16x64xf32>
    %cst_7 = arith.constant 0.00999999977 : f32
    %9 = vector.broadcast %cst_7 : f32 to vector<16x64xf32>
    %10 = arith.mulf %9, %6 : vector<16x64xf32>
    %11 = arith.select %8, %6, %10 : vector<16x64xi1>, vector<16x64xf32>
    %c0_8 = arith.constant 0 : index
    %c0_9 = arith.constant 0 : index
    %12 = vector.load %arg5[%c0_8, %c0_9] : memref<64x128xf32, #tpu.memory_space<vmem>>, vector<64x128xf32>
    %cst_10 = arith.constant dense<0.000000e+00> : vector<16x128xf32>
    %13 = tpu.matmul %11, %12, %cst_10 {dimension_numbers = #tpu.dot_dimension_numbers<[1], [0], [0], [1], [0, 0, 1, 1], [], []>} : vector<16x64xf32>, vector<64x128xf32>, vector<16x128xf32> -> vector<16x128xf32>
    %c0_11 = arith.constant 0 : index
    %c0_12 = arith.constant 0 : index
    %14 = vector.load %arg6[%c0_11, %c0_12] : memref<1x128xf32, #tpu.memory_space<vmem>>, vector<1x128xf32>
    %15 = vector.broadcast %14 : vector<1x128xf32> to vector<16x128xf32>
    %16 = arith.addf %13, %15 : vector<16x128xf32>
    %cst_13 = arith.constant 0.000000e+00 : f32
    %17 = vector.broadcast %cst_13 : f32 to vector<16x128xf32>
    %18 = arith.cmpf oge, %16, %17 : vector<16x128xf32>
    %cst_14 = arith.constant 0.00999999977 : f32
    %19 = vector.broadcast %cst_14 : f32 to vector<16x128xf32>
    %20 = arith.mulf %19, %16 : vector<16x128xf32>
    %21 = arith.select %18, %16, %20 : vector<16x128xi1>, vector<16x128xf32>
    %c0_15 = arith.constant 0 : index
    %c0_16 = arith.constant 0 : index
    %22 = vector.load %arg7[%c0_15, %c0_16] : memref<128x1024xf32, #tpu.memory_space<vmem>>, vector<128x1024xf32>
    %cst_17 = arith.constant dense<0.000000e+00> : vector<16x1024xf32>
    %23 = tpu.matmul %21, %22, %cst_17 {dimension_numbers = #tpu.dot_dimension_numbers<[1], [0], [0], [1], [0, 0, 1, 1], [], []>} : vector<16x128xf32>, vector<128x1024xf32>, vector<16x1024xf32> -> vector<16x1024xf32>
    %c0_18 = arith.constant 0 : index
    %c0_19 = arith.constant 0 : index
    %24 = vector.load %arg8[%c0_18, %c0_19] : memref<1x1024xf32, #tpu.memory_space<vmem>>, vector<1x1024xf32>
    %25 = vector.broadcast %24 : vector<1x1024xf32> to vector<16x1024xf32>
    %26 = arith.addf %23, %25 : vector<16x1024xf32>
    %cst_20 = arith.constant 0.000000e+00 : f32
    %27 = vector.broadcast %cst_20 : f32 to vector<16x1024xf32>
    %28 = arith.cmpf oge, %26, %27 : vector<16x1024xf32>
    %cst_21 = arith.constant 0.00999999977 : f32
    %29 = vector.broadcast %cst_21 : f32 to vector<16x1024xf32>
    %30 = arith.mulf %29, %26 : vector<16x1024xf32>
    %31 = arith.select %28, %26, %30 : vector<16x1024xi1>, vector<16x1024xf32>
    %c16_i32 = arith.constant 16 : i32
    %32 = arith.muli %arg1, %c16_i32 : i32
    %33 = tpu.iota {dimensions = array<i32: 0>} : vector<16x1xi32>
    %34 = vector.broadcast %32 : i32 to vector<16x1xi32>
    %35 = arith.addi %34, %33 : vector<16x1xi32>
    %c16_i32_22 = arith.constant 16 : i32
    %36 = vector.broadcast %c16_i32_22 : i32 to vector<16x1xi32>
    %37 = arith.cmpi slt, %35, %36 : vector<16x1xi32>
    %cst_23 = arith.constant 0xFF800000 : f32
    %38 = vector.shape_cast %37 : vector<16x1xi1> to vector<16x1xi1>
    %39 = vector.broadcast %38 : vector<16x1xi1> to vector<16x1024xi1>
    %40 = vector.broadcast %cst_23 : f32 to vector<16x1024xf32>
    %41 = arith.select %39, %31, %40 : vector<16x1024xi1>, vector<16x1024xf32>
    %cst_24 = arith.constant dense<0xFF800000> : vector<1024xf32>
    %42 = vector.multi_reduction <maximumf>, %41, %cst_24 [0] : vector<16x1024xf32> to vector<1024xf32>
    %43 = vector.shape_cast %42 : vector<1024xf32> to vector<1x1024xf32>
    %44 = vector.shape_cast %43 : vector<1x1024xf32> to vector<1x1x1024xf32>
    %c0_i32 = arith.constant 0 : i32
    %45 = arith.cmpi eq, %arg1, %c0_i32 : i32
    %46 = arith.extui %45 : i1 to i32
    %c0_i32_25 = arith.constant 0 : i32
    %47 = arith.cmpi ne, %46, %c0_i32_25 : i32
    scf.if %47 {
      %c0_28 = arith.constant 0 : index
      %c0_29 = arith.constant 0 : index
      %c0_30 = arith.constant 0 : index
      %51 = vector.load %arg9[%c0_28, %c0_29, %c0_30] : memref<1x1x1024xf32, #tpu.memory_space<vmem>>, vector<1x1x1024xf32>
      tpu.vector_store %arg9[%c0_28, %c0_29, %c0_30], %44 {strides = array<i32>} : memref<1x1x1024xf32, #tpu.memory_space<vmem>>, vector<1x1x1024xf32>,
    } else {
    }
    %c0_i32_26 = arith.constant 0 : i32
    %48 = arith.cmpi sgt, %arg1, %c0_i32_26 : i32
    %49 = arith.extui %48 : i1 to i32
    %c0_i32_27 = arith.constant 0 : i32
    %50 = arith.cmpi ne, %49, %c0_i32_27 : i32
    scf.if %50 {
      %c0_28 = arith.constant 0 : index
      %c0_29 = arith.constant 0 : index
      %c0_30 = arith.constant 0 : index
      %51 = vector.load %arg9[%c0_28, %c0_29, %c0_30] : memref<1x1x1024xf32, #tpu.memory_space<vmem>>, vector<1x1x1024xf32>
      %52 = arith.maximumf %51, %44 : vector<1x1x1024xf32>
      %c0_31 = arith.constant 0 : index
      %c0_32 = arith.constant 0 : index
      %c0_33 = arith.constant 0 : index
      %53 = vector.load %arg9[%c0_31, %c0_32, %c0_33] : memref<1x1x1024xf32, #tpu.memory_space<vmem>>, vector<1x1x1024xf32>
      tpu.vector_store %arg9[%c0_31, %c0_32, %c0_33], %52 {strides = array<i32>} : memref<1x1x1024xf32, #tpu.memory_space<vmem>>, vector<1x1x1024xf32>,
    } else {
    }
    return
  }
  func.func @transform_0(%arg0: i32, %arg1: i32) -> (i32, i32, i32) {
    %c0_i32 = arith.constant 0 : i32
    %c0_i32_0 = arith.constant 0 : i32
    return %arg0, %arg1, %c0_i32 : i32, i32, i32
  }
  func.func @transform_1(%arg0: i32, %arg1: i32) -> (i32, i32) {
    %c0_i32 = arith.constant 0 : i32
    %c0_i32_0 = arith.constant 0 : i32
    %c0_i32_1 = arith.constant 0 : i32
    return %c0_i32, %c0_i32_0 : i32, i32
  }
  func.func @transform_2(%arg0: i32, %arg1: i32) -> (i32, i32) {
    %c0_i32 = arith.constant 0 : i32
    %c0_i32_0 = arith.constant 0 : i32
    %c0_i32_1 = arith.constant 0 : i32
    return %c0_i32, %c0_i32_0 : i32, i32
  }
  func.func @transform_3(%arg0: i32, %arg1: i32) -> (i32, i32) {
    %c0_i32 = arith.constant 0 : i32
    %c0_i32_0 = arith.constant 0 : i32
    %c0_i32_1 = arith.constant 0 : i32
    return %c0_i32, %c0_i32_0 : i32, i32
  }
  func.func @transform_4(%arg0: i32, %arg1: i32) -> (i32, i32) {
    %c0_i32 = arith.constant 0 : i32
    %c0_i32_0 = arith.constant 0 : i32
    %c0_i32_1 = arith.constant 0 : i32
    return %c0_i32, %c0_i32_0 : i32, i32
  }
  func.func @transform_5(%arg0: i32, %arg1: i32) -> (i32, i32) {
    %c0_i32 = arith.constant 0 : i32
    %c0_i32_0 = arith.constant 0 : i32
    %c0_i32_1 = arith.constant 0 : i32
    return %c0_i32, %c0_i32_0 : i32, i32
  }
  func.func @transform_6(%arg0: i32, %arg1: i32) -> (i32, i32) {
    %c0_i32 = arith.constant 0 : i32
    %c0_i32_0 = arith.constant 0 : i32
    %c0_i32_1 = arith.constant 0 : i32
    return %c0_i32, %c0_i32_0 : i32, i32
  }
  func.func @transform_7(%arg0: i32, %arg1: i32) -> (i32, i32, i32) {
    %c0_i32 = arith.constant 0 : i32
    %c0_i32_0 = arith.constant 0 : i32
    %c0_i32_1 = arith.constant 0 : i32
    return %arg0, %c0_i32, %c0_i32_0 : i32, i32, i32
  }
}

module attributes {stable_mosaic.version = 11 : i64} {
  func.func @_head_kernel(%arg0: memref<2x128xf32, #tpu.memory_space<vmem>>, %arg1: memref<2x1024xf32, #tpu.memory_space<vmem>>, %arg2: memref<1024x512xf32, #tpu.memory_space<vmem>>, %arg3: memref<1x512xf32, #tpu.memory_space<vmem>>, %arg4: memref<512x32xf32, #tpu.memory_space<vmem>>, %arg5: memref<1x32xf32, #tpu.memory_space<vmem>>, %arg6: memref<128x32xf32, #tpu.memory_space<vmem>>, %arg7: memref<32x32xf32, #tpu.memory_space<vmem>>, %arg8: memref<1x32xf32, #tpu.memory_space<vmem>>, %arg9: memref<32x3xf32, #tpu.memory_space<vmem>>, %arg10: memref<1x3xf32, #tpu.memory_space<vmem>>, %arg11: memref<2x3xf32, #tpu.memory_space<vmem>>) attributes {dimension_semantics = [], scalar_prefetch = 0 : i64, scratch_operands = 0 : i64, tpu.core_type = #tpu.core_type<tc>} {
    %c0 = arith.constant 0 : index
    %c0_0 = arith.constant 0 : index
    %0 = vector.load %arg1[%c0, %c0_0] : memref<2x1024xf32, #tpu.memory_space<vmem>>, vector<2x1024xf32>
    %c0_1 = arith.constant 0 : index
    %c0_2 = arith.constant 0 : index
    %1 = vector.load %arg2[%c0_1, %c0_2] : memref<1024x512xf32, #tpu.memory_space<vmem>>, vector<1024x512xf32>
    %cst = arith.constant dense<0.000000e+00> : vector<2x512xf32>
    %2 = tpu.matmul %0, %1, %cst {dimension_numbers = #tpu.dot_dimension_numbers<[1], [0], [0], [1], [0, 0, 1, 1], [], []>} : vector<2x1024xf32>, vector<1024x512xf32>, vector<2x512xf32> -> vector<2x512xf32>
    %c0_3 = arith.constant 0 : index
    %c0_4 = arith.constant 0 : index
    %3 = vector.load %arg3[%c0_3, %c0_4] : memref<1x512xf32, #tpu.memory_space<vmem>>, vector<1x512xf32>
    %4 = vector.broadcast %3 : vector<1x512xf32> to vector<2x512xf32>
    %5 = arith.addf %2, %4 : vector<2x512xf32>
    %cst_5 = arith.constant 0.000000e+00 : f32
    %6 = vector.broadcast %cst_5 : f32 to vector<2x512xf32>
    %7 = arith.maximumf %5, %6 : vector<2x512xf32>
    %c0_6 = arith.constant 0 : index
    %c0_7 = arith.constant 0 : index
    %8 = vector.load %arg4[%c0_6, %c0_7] : memref<512x32xf32, #tpu.memory_space<vmem>>, vector<512x32xf32>
    %cst_8 = arith.constant dense<0.000000e+00> : vector<2x32xf32>
    %9 = tpu.matmul %7, %8, %cst_8 {dimension_numbers = #tpu.dot_dimension_numbers<[1], [0], [0], [1], [0, 0, 1, 1], [], []>} : vector<2x512xf32>, vector<512x32xf32>, vector<2x32xf32> -> vector<2x32xf32>
    %c0_9 = arith.constant 0 : index
    %c0_10 = arith.constant 0 : index
    %10 = vector.load %arg5[%c0_9, %c0_10] : memref<1x32xf32, #tpu.memory_space<vmem>>, vector<1x32xf32>
    %11 = vector.broadcast %10 : vector<1x32xf32> to vector<2x32xf32>
    %12 = arith.addf %9, %11 : vector<2x32xf32>
    %cst_11 = arith.constant 0.000000e+00 : f32
    %13 = vector.broadcast %cst_11 : f32 to vector<2x32xf32>
    %14 = arith.maximumf %12, %13 : vector<2x32xf32>
    %c0_12 = arith.constant 0 : index
    %c0_13 = arith.constant 0 : index
    %15 = vector.load %arg0[%c0_12, %c0_13] : memref<2x128xf32, #tpu.memory_space<vmem>>, vector<2x128xf32>
    %c0_14 = arith.constant 0 : index
    %c0_15 = arith.constant 0 : index
    %16 = vector.load %arg6[%c0_14, %c0_15] : memref<128x32xf32, #tpu.memory_space<vmem>>, vector<128x32xf32>
    %cst_16 = arith.constant dense<0.000000e+00> : vector<2x32xf32>
    %17 = tpu.matmul %15, %16, %cst_16 {dimension_numbers = #tpu.dot_dimension_numbers<[1], [0], [0], [1], [0, 0, 1, 1], [], []>} : vector<2x128xf32>, vector<128x32xf32>, vector<2x32xf32> -> vector<2x32xf32>
    %c0_17 = arith.constant 0 : index
    %c0_18 = arith.constant 0 : index
    %18 = vector.load %arg7[%c0_17, %c0_18] : memref<32x32xf32, #tpu.memory_space<vmem>>, vector<32x32xf32>
    %cst_19 = arith.constant dense<0.000000e+00> : vector<2x32xf32>
    %19 = tpu.matmul %14, %18, %cst_19 {dimension_numbers = #tpu.dot_dimension_numbers<[1], [0], [0], [1], [0, 0, 1, 1], [], []>} : vector<2x32xf32>, vector<32x32xf32>, vector<2x32xf32> -> vector<2x32xf32>
    %20 = arith.addf %17, %19 : vector<2x32xf32>
    %c0_20 = arith.constant 0 : index
    %c0_21 = arith.constant 0 : index
    %21 = vector.load %arg8[%c0_20, %c0_21] : memref<1x32xf32, #tpu.memory_space<vmem>>, vector<1x32xf32>
    %22 = vector.broadcast %21 : vector<1x32xf32> to vector<2x32xf32>
    %23 = arith.addf %20, %22 : vector<2x32xf32>
    %cst_22 = arith.constant 0.000000e+00 : f32
    %24 = vector.broadcast %cst_22 : f32 to vector<2x32xf32>
    %25 = arith.maximumf %23, %24 : vector<2x32xf32>
    %c0_23 = arith.constant 0 : index
    %c0_24 = arith.constant 0 : index
    %26 = vector.load %arg9[%c0_23, %c0_24] : memref<32x3xf32, #tpu.memory_space<vmem>>, vector<32x3xf32>
    %cst_25 = arith.constant dense<0.000000e+00> : vector<2x3xf32>
    %27 = tpu.matmul %25, %26, %cst_25 {dimension_numbers = #tpu.dot_dimension_numbers<[1], [0], [0], [1], [0, 0, 1, 1], [], []>} : vector<2x32xf32>, vector<32x3xf32>, vector<2x3xf32> -> vector<2x3xf32>
    %c0_26 = arith.constant 0 : index
    %c0_27 = arith.constant 0 : index
    %28 = vector.load %arg10[%c0_26, %c0_27] : memref<1x3xf32, #tpu.memory_space<vmem>>, vector<1x3xf32>
    %29 = vector.broadcast %28 : vector<1x3xf32> to vector<2x3xf32>
    %30 = arith.addf %27, %29 : vector<2x3xf32>
    %cst_28 = arith.constant dense<0xFF800000> : vector<2xf32>
    %31 = vector.multi_reduction <maximumf>, %30, %cst_28 [1] : vector<2x3xf32> to vector<2xf32>
    %32 = vector.shape_cast %31 : vector<2xf32> to vector<2x1xf32>
    %33 = vector.broadcast %32 : vector<2x1xf32> to vector<2x3xf32>
    %34 = arith.subf %30, %33 : vector<2x3xf32>
    %35 = math.exp %34 : vector<2x3xf32>
    %cst_29 = arith.constant dense<0.000000e+00> : vector<2xf32>
    %36 = vector.multi_reduction <add>, %35, %cst_29 [1] : vector<2x3xf32> to vector<2xf32>
    %37 = vector.shape_cast %36 : vector<2xf32> to vector<2x1xf32>
    %38 = vector.broadcast %37 : vector<2x1xf32> to vector<2x3xf32>
    %39 = arith.divf %35, %38 : vector<2x3xf32>
    %c0_30 = arith.constant 0 : index
    %c0_31 = arith.constant 0 : index
    %40 = vector.load %arg11[%c0_30, %c0_31] : memref<2x3xf32, #tpu.memory_space<vmem>>, vector<2x3xf32>
    tpu.vector_store %arg11[%c0_30, %c0_31], %39 {strides = array<i32>} : memref<2x3xf32, #tpu.memory_space<vmem>>, vector<2x3xf32>,
    return
  }
}

</mosaic_0001>

<llo_original>
// kernel: pointgat_forward.7
$region0: #{pointgat_forward.7}
  #allocation0 [shape = 'u32[]', space=smem, size = 0x4, offset = 0x4, fixed_abs, tag = 'smem constant byte address 0x4 - core index']
  #allocation1 [shape = 'u32[144,128]{1,0:T(1,128)}', space=vmem, size = 0x12000, scoped, tag = 'internal scratch']
  %s0 = inlined_call_operand.vmem [shape: f32[16,8], index: 0, kind: input, shape index: {}]
  %s1 = inlined_call_operand.vmem [shape: f32[8,128], index: 1, kind: input, shape index: {}]
  %s2 = inlined_call_operand.vmem [shape: f32[1,128], index: 2, kind: input, shape index: {}]
  %s3 = inlined_call_operand.vmem [shape: f32[16,128], index: 3, kind: output, shape index: {}]
  %s4 = sld [smem:[#allocation0]]
  $region22: #{pointgat_forward.7} parent=0
    _
  %s6 = ssub.s32 1, %s4
  %s7 = scalar_select 0, %s6, %s4
  // Predicated region
  $region2: #{pointgat_forward.7} parent=0 // pred_check
    _
  $region3: #{pointgat_forward.7} parent=0 // pred_check_branch
    %9 = sbr.rel (0) target = $region5
  $region4: #{pointgat_forward.7} parent=0 // pred_region
    _
  $region5: #{pointgat_forward.7} parent=0 // pred_fallthru
    _
  // Predicated region
  $region6: #{pointgat_forward.7} parent=0 // pred_check
    _
  $region7: #{pointgat_forward.7} parent=0 // pred_check_branch
    %11 = sbr.rel (0) target = $region9
  $region8: #{pointgat_forward.7} parent=0 // pred_region
    _
  $region9: #{pointgat_forward.7} parent=0 // pred_fallthru
    _
  // Predicated region
  $region10: #{pointgat_forward.7} parent=0 // pred_check
    _
  $region11: #{pointgat_forward.7} parent=0 // pred_check_branch
    %13 = sbr.rel (0) target = $region13
  $region12: #{pointgat_forward.7} parent=0 // pred_region
    _
  $region13: #{pointgat_forward.7} parent=0 // pred_fallthru
    _
  %v14 = vld [vmem:[%s0] sm:$0xff]
  %v15 = vld [vmem:[%s0 + $0x8] sm:$0xff]
  %v16 = vld [vmem:[%s1] sm:$0xff]
  %v17 = vld [vmem:[%s2] sm:$0x1]
  %v19 = vlaneseq
  %v20 = vshrl.u32 %v19, 7
  %v21 = vsub.s32 0, %v20
  %v22 = vrot.slane %v17, %v21
  %vm24 = vcmask 64512
  %v26 = vsel %vm24, %v14, 0
  %v29 = vsel %vm24, %v15, 0
  %31 = vmatprep.subr.mxu0 0.0
  %32 = vmatpush1.msra.mxu0 %v16
  %33 = vmatprep.subr.mxu0 0.0
  %34 = vmatpush1.msra.mxu0 0.0
  %35 = vmatprep.subr.mxu0 0.0
  %36 = vmatpush1.msra.mxu0 0.0
  %37 = vmatprep.subr.mxu0 0.0
  %38 = vmatpush1.msra.mxu0 0.0
  %39 = vmatprep.subr.mxu0 0.0
  %40 = vmatpush1.msra.mxu0 0.0
  %41 = vmatprep.subr.mxu0 0.0
  %42 = vmatpush1.msra.mxu0 0.0
  %43 = vmatprep.subr.mxu0 0.0
  %44 = vmatpush1.msra.mxu0 0.0
  %45 = vmatprep.subr.mxu0 0.0
  %46 = vmatpush1.msra.mxu0 0.0
  %47 = vmatprep.subr.mxu0 0.0
  %48 = vmatpush1.msra.mxu0 0.0
  %49 = vmatprep.subr.mxu0 0.0
  %50 = vmatpush1.msra.mxu0 0.0
  %51 = vmatprep.subr.mxu0 0.0
  %52 = vmatpush1.msra.mxu0 0.0
  %53 = vmatprep.subr.mxu0 0.0
  %54 = vmatpush1.msra.mxu0 0.0
  %55 = vmatprep.subr.mxu0 0.0
  %56 = vmatpush1.msra.mxu0 0.0
  %57 = vmatprep.subr.mxu0 0.0
  %58 = vmatpush1.msra.mxu0 0.0
  %59 = vmatprep.subr.mxu0 0.0
  %60 = vmatpush1.msra.mxu0 0.0
  %61 = vmatprep.subr.mxu0 0.0
  %62 = vmatpush1.msra.mxu0 0.0
  %63 = vmatprep.subr.mxu0 0.0
  %64 = vmatpush1.msra.mxu0 0.0
  %65 = vmatprep.subr.mxu0 0.0
  %66 = vmatpush1.msra.mxu0 0.0
  %67 = vmatprep.subr.mxu0 0.0
  %68 = vmatpush1.msra.mxu0 0.0
  %69 = vmatprep.subr.mxu0 0.0
  %70 = vmatpush1.msra.mxu0 0.0
  %71 = vmatprep.subr.mxu0 0.0
  %72 = vmatpush1.msra.mxu0 0.0
  %73 = vmatprep.subr.mxu0 0.0
  %74 = vmatpush1.msra.mxu0 0.0
  %75 = vmatprep.subr.mxu0 0.0
  %76 = vmatpush1.msra.mxu0 0.0
  %77 = vmatprep.subr.mxu0 0.0
  %78 = vmatpush1.msra.mxu0 0.0
  %79 = vmatprep.subr.mxu0 0.0
  %80 = vmatpush1.msra.mxu0 0.0
  %81 = vmatprep.subr.mxu0 0.0
  %82 = vmatpush1.msra.mxu0 0.0
  %83 = vmatprep.subr.mxu0 0.0
  %84 = vmatpush1.msra.mxu0 0.0
  %85 = vmatprep.subr.mxu0 0.0
  %86 = vmatpush1.msra.mxu0 0.0
  %87 = vmatprep.subr.mxu0 0.0
  %88 = vmatpush1.msra.mxu0 0.0
  %89 = vmatprep.subr.mxu0 0.0
  %90 = vmatpush1.msra.mxu0 0.0
  %91 = vmatprep.subr.mxu0 0.0
  %92 = vmatpush1.msra.mxu0 0.0
  %93 = vmatprep.subr.mxu0 0.0
  %94 = vmatpush1.msra.mxu0 0.0
  %95 = vmatprep.mubr.f32.mxu0 0.0
  %96 = vmatmul.mubr.f32.gmra.mrb[0].mxu0 %v26
  %v97 = vpop.f32.mrb[0].mxu0
  %v98 = vadd.f32 %v22, %v97
  %v99 = vpop.f32.mrb[0].mxu0
  %100 = vmatprep.mubr.f32.mxu0 0.0
  %101 = vmatmul.mubr.f32.gmra.mrb[0].mxu0 %v29
  %v102 = vpop.f32.mrb[0].mxu0
  %v103 = vadd.f32 %v22, %v102
  %v104 = vpop.f32.mrb[0].mxu0
  %105 = vdwg.mxu0
  %vm106 = vcmp.ge.f32.partialorder %v98, 0.0
  %vm107 = vcmp.ge.f32.partialorder %v103, 0.0
  %v108 = vmul.f32 %v98, 0.01
  %v109 = vmul.f32 %v103, 0.01
  %v110 = vsel %vm106, %v98, %v108
  %v111 = vsel %vm107, %v103, %v109
  %112 = vst [vmem:[%s3] sm:$0xff] %v110
  %113 = vst [vmem:[%s3 + $0x8] sm:$0xff] %v111
  // Predicated region
  $region14: #{pointgat_forward.7} parent=0 // pred_check
    _
  $region15: #{pointgat_forward.7} parent=0 // pred_check_branch
    %115 = sbr.rel (0) target = $region17
  $region16: #{pointgat_forward.7} parent=0 // pred_region
    _
  $region17: #{pointgat_forward.7} parent=0 // pred_fallthru
    _
  // Predicated region
  $region18: #{pointgat_forward.7} parent=0 // pred_check
    _
  $region19: #{pointgat_forward.7} parent=0 // pred_check_branch
    %117 = sbr.rel (0) target = $region21
  $region20: #{pointgat_forward.7} parent=0 // pred_region
    _
  $region21: #{pointgat_forward.7} parent=0 // pred_fallthru
    _

// kernel: pointgat_forward.8
$region0: #{pointgat_forward.8}
  #allocation0 [shape = 'u32[]', space=smem, size = 0x4, offset = 0x4, fixed_abs, tag = 'smem constant byte address 0x4 - core index']
  #allocation1 [shape = 'u32[144,128]{1,0:T(1,128)}', space=vmem, size = 0x12000, scoped, tag = 'internal scratch']
  %s0 = inlined_call_operand.vmem [shape: f32[64,12], index: 0, kind: input, shape index: {}]
  %s1 = inlined_call_operand.vmem [shape: f32[12,128], index: 1, kind: input, shape index: {}]
  %s2 = inlined_call_operand.vmem [shape: f32[1,128], index: 2, kind: input, shape index: {}]
  %s3 = inlined_call_operand.vmem [shape: f32[64,128], index: 3, kind: output, shape index: {}]
  %s4 = sld [smem:[#allocation0]]
  $region22: #{pointgat_forward.8} parent=0
    _
  %s6 = ssub.s32 1, %s4
  %s7 = scalar_select 0, %s6, %s4
  // Predicated region
  $region2: #{pointgat_forward.8} parent=0 // pred_check
    _
  $region3: #{pointgat_forward.8} parent=0 // pred_check_branch
    %9 = sbr.rel (0) target = $region5
  $region4: #{pointgat_forward.8} parent=0 // pred_region
    _
  $region5: #{pointgat_forward.8} parent=0 // pred_fallthru
    _
  // Predicated region
  $region6: #{pointgat_forward.8} parent=0 // pred_check
    _
  $region7: #{pointgat_forward.8} parent=0 // pred_check_branch
    %11 = sbr.rel (0) target = $region9
  $region8: #{pointgat_forward.8} parent=0 // pred_region
    _
  $region9: #{pointgat_forward.8} parent=0 // pred_fallthru
    _
  // Predicated region
  $region10: #{pointgat_forward.8} parent=0 // pred_check
    _
  $region11: #{pointgat_forward.8} parent=0 // pred_check_branch
    %13 = sbr.rel (0) target = $region13
  $region12: #{pointgat_forward.8} parent=0 // pred_region
    _
  $region13: #{pointgat_forward.8} parent=0 // pred_fallthru
    _
  %v14 = vld [vmem:[%s0] sm:$0xff]
  %v15 = vld [vmem:[%s0 + $0x8] sm:$0xff]
  %v16 = vld [vmem:[%s0 + $0x10] sm:$0xff]
  %v17 = vld [vmem:[%s0 + $0x18] sm:$0xff]
  %v18 = vld [vmem:[%s0 + $0x20] sm:$0xff]
  %v19 = vld [vmem:[%s0 + $0x28] sm:$0xff]
  %v20 = vld [vmem:[%s0 + $0x30] sm:$0xff]
  %v21 = vld [vmem:[%s0 + $0x38] sm:$0xff]
  %v22 = vld [vmem:[%s1] sm:$0xff]
  %v23 = vld [vmem:[%s1 + $0x8] sm:$0xf]
  %v24 = vld [vmem:[%s2] sm:$0x1]
  %v26 = vlaneseq
  %v27 = vshrl.u32 %v26, 7
  %v28 = vsub.s32 0, %v27
  %v29 = vrot.slane %v24, %v28
  %vm31 = vcmask 97280
  %v33 = vsel %vm31, %v14, 0
  %v36 = vsel %vm31, %v15, 0
  %v39 = vsel %vm31, %v16, 0
  %v42 = vsel %vm31, %v17, 0
  %v45 = vsel %vm31, %v18, 0
  %v48 = vsel %vm31, %v19, 0
  %v51 = vsel %vm31, %v20, 0
  %v54 = vsel %vm31, %v21, 0
  %vm56 = vcmask 1043456
  %v58 = vsel %vm56, %v23, 0
  %60 = vmatprep.subr.mxu0 0.0
  %61 = vmatpush1.msra.mxu0 %v22
  %62 = vmatprep.subr.mxu0 0.0
  %63 = vmatpush1.msra.mxu0 %v58
  %64 = vmatprep.subr.mxu0 0.0
  %65 = vmatpush1.msra.mxu0 0.0
  %66 = vmatprep.subr.mxu0 0.0
  %67 = vmatpush1.msra.mxu0 0.0
  %68 = vmatprep.subr.mxu0 0.0
  %69 = vmatpush1.msra.mxu0 0.0
  %70 = vmatprep.subr.mxu0 0.0
  %71 = vmatpush1.msra.mxu0 0.0
  %72 = vmatprep.subr.mxu0 0.0
  %73 = vmatpush1.msra.mxu0 0.0
  %74 = vmatprep.subr.mxu0 0.0
  %75 = vmatpush1.msra.mxu0 0.0
  %76 = vmatprep.subr.mxu0 0.0
  %77 = vmatpush1.msra.mxu0 0.0
  %78 = vmatprep.subr.mxu0 0.0
  %79 = vmatpush1.msra.mxu0 0.0
  %80 = vmatprep.subr.mxu0 0.0
  %81 = vmatpush1.msra.mxu0 0.0
  %82 = vmatprep.subr.mxu0 0.0
  %83 = vmatpush1.msra.mxu0 0.0
  %84 = vmatprep.subr.mxu0 0.0
  %85 = vmatpush1.msra.mxu0 0.0
  %86 = vmatprep.subr.mxu0 0.0
  %87 = vmatpush1.msra.mxu0 0.0
  %88 = vmatprep.subr.mxu0 0.0
  %89 = vmatpush1.msra.mxu0 0.0
  %90 = vmatprep.subr.mxu0 0.0
  %91 = vmatpush1.msra.mxu0 0.0
  %92 = vmatprep.subr.mxu0 0.0
  %93 = vmatpush1.msra.mxu0 0.0
  %94 = vmatprep.subr.mxu0 0.0
  %95 = vmatpush1.msra.mxu0 0.0
  %96 = vmatprep.subr.mxu0 0.0
  %97 = vmatpush1.msra.mxu0 0.0
  %98 = vmatprep.subr.mxu0 0.0
  %99 = vmatpush1.msra.mxu0 0.0
  %100 = vmatprep.subr.mxu0 0.0
  %101 = vmatpush1.msra.mxu0 0.0
  %102 = vmatprep.subr.mxu0 0.0
  %103 = vmatpush1.msra.mxu0 0.0
  %104 = vmatprep.subr.mxu0 0.0
  %105 = vmatpush1.msra.mxu0 0.0
  %106 = vmatprep.subr.mxu0 0.0
  %107 = vmatpush1.msra.mxu0 0.0
  %108 = vmatprep.subr.mxu0 0.0
  %109 = vmatpush1.msra.mxu0 0.0
  %110 = vmatprep.subr.mxu0 0.0
  %111 = vmatpush1.msra.mxu0 0.0
  %112 = vmatprep.subr.mxu0 0.0
  %113 = vmatpush1.msra.mxu0 0.0
  %114 = vmatprep.subr.mxu0 0.0
  %115 = vmatpush1.msra.mxu0 0.0
  %116 = vmatprep.subr.mxu0 0.0
  %117 = vmatpush1.msra.mxu0 0.0
  %118 = vmatprep.subr.mxu0 0.0
  %119 = vmatpush1.msra.mxu0 0.0
  %120 = vmatprep.subr.mxu0 0.0
  %121 = vmatpush1.msra.mxu0 0.0
  %122 = vmatprep.subr.mxu0 0.0
  %123 = vmatpush1.msra.mxu0 0.0
  %124 = vmatprep.mubr.f32.mxu0 0.0
  %125 = vmatmul.mubr.f32.gmra.mrb[0].mxu0 %v33
  %v126 = vpop.f32.mrb[0].mxu0
  %v127 = vadd.f32 %v29, %v126
  %v128 = vpop.f32.mrb[0].mxu0
  %129 = vmatprep.mubr.f32.mxu0 0.0
  %130 = vmatmul.mubr.f32.gmra.mrb[0].mxu0 %v36
  %v131 = vpop.f32.mrb[0].mxu0
  %v132 = vadd.f32 %v29, %v131
  %v133 = vpop.f32.mrb[0].mxu0
  %134 = vmatprep.mubr.f32.mxu0 0.0
  %135 = vmatmul.mubr.f32.gmra.mrb[0].mxu0 %v39
  %v136 = vpop.f32.mrb[0].mxu0
  %v137 = vadd.f32 %v29, %v136
  %v138 = vpop.f32.mrb[0].mxu0
  %139 = vmatprep.mubr.f32.mxu0 0.0
  %140 = vmatmul.mubr.f32.gmra.mrb[0].mxu0 %v42
  %v141 = vpop.f32.mrb[0].mxu0
  %v142 = vadd.f32 %v29, %v141
  %v143 = vpop.f32.mrb[0].mxu0
  %144 = vmatprep.mubr.f32.mxu0 0.0
  %145 = vmatmul.mubr.f32.gmra.mrb[0].mxu0 %v45
  %v146 = vpop.f32.mrb[0].mxu0
  %v147 = vadd.f32 %v29, %v146
  %v148 = vpop.f32.mrb[0].mxu0
  %149 = vmatprep.mubr.f32.mxu0 0.0
  %150 = vmatmul.mubr.f32.gmra.mrb[0].mxu0 %v48
  %v151 = vpop.f32.mrb[0].mxu0
  %v152 = vadd.f32 %v29, %v151
  %v153 = vpop.f32.mrb[0].mxu0
  %154 = vmatprep.mubr.f32.mxu0 0.0
  %155 = vmatmul.mubr.f32.gmra.mrb[0].mxu0 %v51
  %v156 = vpop.f32.mrb[0].mxu0
  %v157 = vadd.f32 %v29, %v156
  %v158 = vpop.f32.mrb[0].mxu0
  %159 = vmatprep.mubr.f32.mxu0 0.0
  %160 = vmatmul.mubr.f32.gmra.mrb[0].mxu0 %v54
  %v161 = vpop.f32.mrb[0].mxu0
  %v162 = vadd.f32 %v29, %v161
  %v163 = vpop.f32.mrb[0].mxu0
  %164 = vdwg.mxu0
  %vm165 = vcmp.ge.f32.partialorder %v127, 0.0
  %vm166 = vcmp.ge.f32.partialorder %v132, 0.0
  %vm167 = vcmp.ge.f32.partialorder %v137, 0.0
  %vm168 = vcmp.ge.f32.partialorder %v142, 0.0
  %vm169 = vcmp.ge.f32.partialorder %v147, 0.0
  %vm170 = vcmp.ge.f32.partialorder %v152, 0.0
  %vm171 = vcmp.ge.f32.partialorder %v157, 0.0
  %vm172 = vcmp.ge.f32.partialorder %v162, 0.0
  %v173 = vmul.f32 %v127, 0.01
  %v174 = vmul.f32 %v132, 0.01
  %v175 = vmul.f32 %v137, 0.01
  %v176 = vmul.f32 %v142, 0.01
  %v177 = vmul.f32 %v147, 0.01
  %v178 = vmul.f32 %v152, 0.01
  %v179 = vmul.f32 %v157, 0.01
  %v180 = vmul.f32 %v162, 0.01
  %v181 = vsel %vm165, %v127, %v173
  %v182 = vsel %vm166, %v132, %v174
  %v183 = vsel %vm167, %v137, %v175
  %v184 = vsel %vm168, %v142, %v176
  %v185 = vsel %vm169, %v147, %v177
  %v186 = vsel %vm170, %v152, %v178
  %v187 = vsel %vm171, %v157, %v179
  %v188 = vsel %vm172, %v162, %v180
  %189 = vst [vmem:[%s3] sm:$0xff] %v181
  %190 = vst [vmem:[%s3 + $0x8] sm:$0xff] %v182
  %191 = vst [vmem:[%s3 + $0x10] sm:$0xff] %v183
  %192 = vst [vmem:[%s3 + $0x18] sm:$0xff] %v184
  %193 = vst [vmem:[%s3 + $0x20] sm:$0xff] %v185
  %194 = vst [vmem:[%s3 + $0x28] sm:$0xff] %v186
  %195 = vst [vmem:[%s3 + $0x30] sm:$0xff] %v187
  %196 = vst [vmem:[%s3 + $0x38] sm:$0xff] %v188
  // Predicated region
  $region14: #{pointgat_forward.8} parent=0 // pred_check
    _
  $region15: #{pointgat_forward.8} parent=0 // pred_check_branch
    %198 = sbr.rel (0) target = $region17
  $region16: #{pointgat_forward.8} parent=0 // pred_region
    _
  $region17: #{pointgat_forward.8} parent=0 // pred_fallthru
    _
  // Predicated region
  $region18: #{pointgat_forward.8} parent=0 // pred_check
    _
  $region19: #{pointgat_forward.8} parent=0 // pred_check_branch
    %200 = sbr.rel (0) target = $region21
  $region20: #{pointgat_forward.8} parent=0 // pred_region
    _
  $region21: #{pointgat_forward.8} parent=0 // pred_fallthru
    _

// kernel: pointgat_forward.9
$region0: #{pointgat_forward.9}
  #allocation0 [shape = 'u32[]', space=smem, size = 0x4, offset = 0x4, fixed_abs, tag = 'smem constant byte address 0x4 - core index']
  #allocation1 [shape = 'u32[144,128]{1,0:T(1,128)}', space=vmem, size = 0x12000, scoped, tag = 'internal scratch']
  #allocation2 [shape = 'f32[1,1]{1,0:T(1,128)S(1)}', space=vmem, size = 0x200, scoped, tag = 'scoped memory for pointgat_forward.9']
  %s0 = inlined_call_operand.vmem [shape: f32[16,128], index: 0, kind: input, shape index: {}, may-alias: {0,1}]
  %s1 = inlined_call_operand.vmem [shape: f32[16,128], index: 1, kind: input, shape index: {}, may-alias: {0,1}]
  %s2 = inlined_call_operand.vmem [shape: f32[16,512], index: 2, kind: input, shape index: {}]
  %s3 = inlined_call_operand.vmem [shape: f32[16,4], index: 3, kind: input, shape index: {}]
  %s4 = inlined_call_operand.vmem [shape: f32[16,4], index: 4, kind: input, shape index: {}]
  %s5 = inlined_call_operand.vmem [shape: f32[1,128], index: 5, kind: input, shape index: {}]
  %s6 = inlined_call_operand.vmem [shape: f32[512,4], index: 6, kind: input, shape index: {}]
  %s7 = inlined_call_operand.<no memory space> [shape: f32[1,1], index: 7, kind: input, shape index: {}]
  %s8 = inlined_call_operand.vmem [shape: f32[128,128], index: 8, kind: input, shape index: {}]
  %s9 = inlined_call_operand.vmem [shape: f32[1,128], index: 9, kind: input, shape index: {}]
  %s10 = inlined_call_operand.vmem [shape: f32[128,384], index: 10, kind: input, shape index: {}]
  %s11 = inlined_call_operand.vmem [shape: f32[128,384], index: 11, kind: input, shape index: {}]
  %s12 = inlined_call_operand.vmem [shape: f32[1,384], index: 12, kind: input, shape index: {}]
  %s13 = inlined_call_operand.vmem [shape: f32[1,384], index: 13, kind: input, shape index: {}]
  %s14 = inlined_call_operand.vmem [shape: f32[16,128], index: 14, kind: output, shape index: {}]
  %s15 = sld [smem:[#allocation0]]
  $region66: #{pointgat_forward.9} parent=0
    _
  %s17 = ssub.s32 1, %s15
  %s18 = scalar_select 0, %s17, %s15
  %v19 = vstv %s7
  %20 = vst [vmem:[#allocation2] sm:$0x1] %v19
  // Predicated region
  $region2: #{pointgat_forward.9} parent=0 // pred_check
    _
  $region3: #{pointgat_forward.9} parent=0 // pred_check_branch
    %22 = sbr.rel (0) target = $region5
  $region4: #{pointgat_forward.9} parent=0 // pred_region
    _
  $region5: #{pointgat_forward.9} parent=0 // pred_fallthru
    _
  // Predicated region
  $region6: #{pointgat_forward.9} parent=0 // pred_check
    _
  $region7: #{pointgat_forward.9} parent=0 // pred_check_branch
    %24 = sbr.rel (0) target = $region9
  $region8: #{pointgat_forward.9} parent=0 // pred_region
    _
  $region9: #{pointgat_forward.9} parent=0 // pred_fallthru
    _
  // Predicated region
  $region10: #{pointgat_forward.9} parent=0 // pred_check
    _
  $region11: #{pointgat_forward.9} parent=0 // pred_check_branch
    %26 = sbr.rel (0) target = $region13
  $region12: #{pointgat_forward.9} parent=0 // pred_region
    _
  $region13: #{pointgat_forward.9} parent=0 // pred_fallthru
    _
  // Predicated region
  $region14: #{pointgat_forward.9} parent=0 // pred_check
    _
  $region15: #{pointgat_forward.9} parent=0 // pred_check_branch
    %28 = sbr.rel (0) target = $region17
  $region16: #{pointgat_forward.9} parent=0 // pred_region
    _
  $region17: #{pointgat_forward.9} parent=0 // pred_fallthru
    _
  // Predicated region
  $region18: #{pointgat_forward.9} parent=0 // pred_check
    _
  $region19: #{pointgat_forward.9} parent=0 // pred_check_branch
    %30 = sbr.rel (0) target = $region21
  $region20: #{pointgat_forward.9} parent=0 // pred_region
    _
  $region21: #{pointgat_forward.9} parent=0 // pred_fallthru
    _
  // Predicated region
  $region22: #{pointgat_forward.9} parent=0 // pred_check
    _
  $region23: #{pointgat_forward.9} parent=0 // pred_check_branch
    %32 = sbr.rel (0) target = $region25
  $region24: #{pointgat_forward.9} parent=0 // pred_region
    _
  $region25: #{pointgat_forward.9} parent=0 // pred_fallthru
    _
  // Predicated region
  $region26: #{pointgat_forward.9} parent=0 // pred_check
    _
  $region27: #{pointgat_forward.9} parent=0 // pred_check_branch
    %34 = sbr.rel (0) target = $region29
  $region28: #{pointgat_forward.9} parent=0 // pred_region
    _
  $region29: #{pointgat_forward.9} parent=0 // pred_fallthru
    _
  // Predicated region
  $region30: #{pointgat_forward.9} parent=0 // pred_check
    _
  $region31: #{pointgat_forward.9} parent=0 // pred_check_branch
    %36 = sbr.rel (0) target = $region33
  $region32: #{pointgat_forward.9} parent=0 // pred_region
    _
  $region33: #{pointgat_forward.9} parent=0 // pred_fallthru
    _
  // Predicated region
  $region34: #{pointgat_forward.9} parent=0 // pred_check
    _
  $region35: #{pointgat_forward.9} parent=0 // pred_check_branch
    %38 = sbr.rel (0) target = $region37
  $region36: #{pointgat_forward.9} parent=0 // pred_region
    _
  $region37: #{pointgat_forward.9} parent=0 // pred_fallthru
    _
  // Predicated region
  $region38: #{pointgat_forward.9} parent=0 // pred_check
    _
  $region39: #{pointgat_forward.9} parent=0 // pred_check_branch
    %40 = sbr.rel (0) target = $region41
  $region40: #{pointgat_forward.9} parent=0 // pred_region
    _
  $region41: #{pointgat_forward.9} parent=0 // pred_fallthru
    _
  // Predicated region
  $region42: #{pointgat_forward.9} parent=0 // pred_check
    _
  $region43: #{pointgat_forward.9} parent=0 // pred_check_branch
    %42 = sbr.rel (0) target = $region45
  $region44: #{pointgat_forward.9} parent=0 // pred_region
    _
  $region45: #{pointgat_forward.9} parent=0 // pred_fallthru
    _
  // Predicated region
  $region46: #{pointgat_forward.9} parent=0 // pred_check
    _
  $region47: #{pointgat_forward.9} parent=0 // pred_check_branch
    %44 = sbr.rel (0) target = $region49
  $region48: #{pointgat_forward.9} parent=0 // pred_region
    _
  $region49: #{pointgat_forward.9} parent=0 // pred_fallthru
    _
  // Predicated region
  $region50: #{pointgat_forward.9} parent=0 // pred_check
    _
  $region51: #{pointgat_forward.9} parent=0 // pred_check_branch
    %46 = sbr.rel (0) target = $region53
  $region52: #{pointgat_forward.9} parent=0 // pred_region
    _
  $region53: #{pointgat_forward.9} parent=0 // pred_fallthru
    _
  // Predicated region
  $region54: #{pointgat_forward.9} parent=0 // pred_check
    _
  $region55: #{pointgat_forward.9} parent=0 // pred_check_branch
    %48 = sbr.rel (0) target = $region57
  $region56: #{pointgat_forward.9} parent=0 // pred_region
    _
  $region57: #{pointgat_forward.9} parent=0 // pred_fallthru
    _
  %v49 = vld [vmem:[%s0] sm:$0xff]
  %v50 = vld [vmem:[%s0 + $0x8] sm:$0xff]
  %v51 = vld [vmem:[%s2] sm:$0xff]
  %v52 = vld [vmem:[%s2 + $0x8] sm:$0xff]
  %v53 = vld [vmem:[%s2 + $0x10] sm:$0xff]
  %v54 = vld [vmem:[%s2 + $0x18] sm:$0xff]
  %v55 = vld [vmem:[%s2 + $0x20] sm:$0xff]
  %v56 = vld [vmem:[%s2 + $0x28] sm:$0xff]
  %v57 = vld [vmem:[%s2 + $0x30] sm:$0xff]
  %v58 = vld [vmem:[%s2 + $0x38] sm:$0xff]
  %v59 = vld [vmem:[%s1] sm:$0xff]
  %v60 = vld [vmem:[%s1 + $0x8] sm:$0xff]
  %v61 = vld [vmem:[%s5] sm:$0x1]
  %v63 = vlaneseq
  %v64 = vshrl.u32 %v63, 7
  %v65 = vsub.s32 0, %v64
  %v66 = vrot.slane %v61, %v65
  %v68 = vmul.f32 %v49, %v66
  %v69 = vmul.f32 %v50, %v66
  %70 = vadd.xlane.f32.xlu0 %v68
  %v71 = vpop.xlane.xlu0 %70
  %72 = vadd.xlane.f32.xlu0 %v69
  %v73 = vpop.xlane.xlu0 %72
  %v74 = vld [vmem:[%s6] sm:$0xff]
  %v75 = vld [vmem:[%s6 + $0x8] sm:$0xff]
  %v76 = vld [vmem:[%s6 + $0x10] sm:$0xff]
  %v77 = vld [vmem:[%s6 + $0x18] sm:$0xff]
  %v78 = vld [vmem:[%s6 + $0x20] sm:$0xff]
  %v79 = vld [vmem:[%s6 + $0x28] sm:$0xff]
  %v80 = vld [vmem:[%s6 + $0x30] sm:$0xff]
  %v81 = vld [vmem:[%s6 + $0x38] sm:$0xff]
  %v82 = vld [vmem:[%s6 + $0x40] sm:$0xff]
  %v83 = vld [vmem:[%s6 + $0x48] sm:$0xff]
  %v84 = vld [vmem:[%s6 + $0x50] sm:$0xff]
  %v85 = vld [vmem:[%s6 + $0x58] sm:$0xff]
  %v86 = vld [vmem:[%s6 + $0x60] sm:$0xff]
  %v87 = vld [vmem:[%s6 + $0x68] sm:$0xff]
  %v88 = vld [vmem:[%s6 + $0x70] sm:$0xff]
  %v89 = vld [vmem:[%s6 + $0x78] sm:$0xff]
  %v90 = vld [vmem:[%s6 + $0x80] sm:$0xff]
  %v91 = vld [vmem:[%s6 + $0x88] sm:$0xff]
  %v92 = vld [vmem:[%s6 + $0x90] sm:$0xff]
  %v93 = vld [vmem:[%s6 + $0x98] sm:$0xff]
  %v94 = vld [vmem:[%s6 + $0xa0] sm:$0xff]
  %v95 = vld [vmem:[%s6 + $0xa8] sm:$0xff]
  %v96 = vld [vmem:[%s6 + $0xb0] sm:$0xff]
  %v97 = vld [vmem:[%s6 + $0xb8] sm:$0xff]
  %v98 = vld [vmem:[%s6 + $0xc0] sm:$0xff]
  %v99 = vld [vmem:[%s6 + $0xc8] sm:$0xff]
  %v100 = vld [vmem:[%s6 + $0xd0] sm:$0xff]
  %v101 = vld [vmem:[%s6 + $0xd8] sm:$0xff]
  %v102 = vld [vmem:[%s6 + $0xe0] sm:$0xff]
  %v103 = vld [vmem:[%s6 + $0xe8] sm:$0xff]
  %v104 = vld [vmem:[%s6 + $0xf0] sm:$0xff]
  %v105 = vld [vmem:[%s6 + $0xf8] sm:$0xff]
  %v106 = vld [vmem:[%s6 + $0x100] sm:$0xff]
  %v107 = vld [vmem:[%s6 + $0x108] sm:$0xff]
  %v108 = vld [vmem:[%s6 + $0x110] sm:$0xff]
  %v109 = vld [vmem:[%s6 + $0x118] sm:$0xff]
  %v110 = vld [vmem:[%s6 + $0x120] sm:$0xff]
  %v111 = vld [vmem:[%s6 + $0x128] sm:$0xff]
  %v112 = vld [vmem:[%s6 + $0x130] sm:$0xff]
  %v113 = vld [vmem:[%s6 + $0x138] sm:$0xff]
  %v114 = vld [vmem:[%s6 + $0x140] sm:$0xff]
  %v115 = vld [vmem:[%s6 + $0x148] sm:$0xff]
  %v116 = vld [vmem:[%s6 + $0x150] sm:$0xff]
  %v117 = vld [vmem:[%s6 + $0x158] sm:$0xff]
  %v118 = vld [vmem:[%s6 + $0x160] sm:$0xff]
  %v119 = vld [vmem:[%s6 + $0x168] sm:$0xff]
  %v120 = vld [vmem:[%s6 + $0x170] sm:$0xff]
  %v121 = vld [vmem:[%s6 + $0x178] sm:$0xff]
  %v122 = vld [vmem:[%s6 + $0x180] sm:$0xff]
  %v123 = vld [vmem:[%s6 + $0x188] sm:$0xff]
  %v124 = vld [vmem:[%s6 + $0x190] sm:$0xff]
  %v125 = vld [vmem:[%s6 + $0x198] sm:$0xff]
  %v126 = vld [vmem:[%s6 + $0x1a0] sm:$0xff]
  %v127 = vld [vmem:[%s6 + $0x1a8] sm:$0xff]
  %v128 = vld [vmem:[%s6 + $0x1b0] sm:$0xff]
  %v129 = vld [vmem:[%s6 + $0x1b8] sm:$0xff]
  %v130 = vld [vmem:[%s6 + $0x1c0] sm:$0xff]
  %v131 = vld [vmem:[%s6 + $0x1c8] sm:$0xff]
  %v132 = vld [vmem:[%s6 + $0x1d0] sm:$0xff]
  %v133 = vld [vmem:[%s6 + $0x1d8] sm:$0xff]
  %v134 = vld [vmem:[%s6 + $0x1e0] sm:$0xff]
  %v135 = vld [vmem:[%s6 + $0x1e8] sm:$0xff]
  %v136 = vld [vmem:[%s6 + $0x1f0] sm:$0xff]
  %v137 = vld [vmem:[%s6 + $0x1f8] sm:$0xff]
  %138 = vmatprep.subr.mxu0 0.0
  %139 = vmatpush1.msra.mxu0 %v74
  %140 = vmatprep.subr.mxu0 0.0
  %141 = vmatpush1.msra.mxu0 %v75
  %142 = vmatprep.subr.mxu0 0.0
  %143 = vmatpush1.msra.mxu0 %v76
  %144 = vmatprep.subr.mxu0 0.0
  %145 = vmatpush1.msra.mxu0 %v77
  %146 = vmatprep.subr.mxu0 0.0
  %147 = vmatpush1.msra.mxu0 %v78
  %148 = vmatprep.subr.mxu0 0.0
  %149 = vmatpush1.msra.mxu0 %v79
  %150 = vmatprep.subr.mxu0 0.0
  %151 = vmatpush1.msra.mxu0 %v80
  %152 = vmatprep.subr.mxu0 0.0
  %153 = vmatpush1.msra.mxu0 %v81
  %154 = vmatprep.subr.mxu0 0.0
  %155 = vmatpush1.msra.mxu0 %v82
  %156 = vmatprep.subr.mxu0 0.0
  %157 = vmatpush1.msra.mxu0 %v83
  %158 = vmatprep.subr.mxu0 0.0
  %159 = vmatpush1.msra.mxu0 %v84
  %160 = vmatprep.subr.mxu0 0.0
  %161 = vmatpush1.msra.mxu0 %v85
  %162 = vmatprep.subr.mxu0 0.0
  %163 = vmatpush1.msra.mxu0 %v86
  %164 = vmatprep.subr.mxu0 0.0
  %165 = vmatpush1.msra.mxu0 %v87
  %166 = vmatprep.subr.mxu0 0.0
  %167 = vmatpush1.msra.mxu0 %v88
  %168 = vmatprep.subr.mxu0 0.0
  %169 = vmatpush1.msra.mxu0 %v89
  %170 = vmatprep.subr.mxu0 0.0
  %171 = vmatpush1.msra.mxu0 %v90
  %172 = vmatprep.subr.mxu0 0.0
  %173 = vmatpush1.msra.mxu0 %v91
  %174 = vmatprep.subr.mxu0 0.0
  %175 = vmatpush1.msra.mxu0 %v92
  %176 = vmatprep.subr.mxu0 0.0
  %177 = vmatpush1.msra.mxu0 %v93
  %178 = vmatprep.subr.mxu0 0.0
  %179 = vmatpush1.msra.mxu0 %v94
  %180 = vmatprep.subr.mxu0 0.0
  %181 = vmatpush1.msra.mxu0 %v95
  %182 = vmatprep.subr.mxu0 0.0
  %183 = vmatpush1.msra.mxu0 %v96
  %184 = vmatprep.subr.mxu0 0.0
  %185 = vmatpush1.msra.mxu0 %v97
  %186 = vmatprep.subr.mxu0 0.0
  %187 = vmatpush1.msra.mxu0 %v98
  %188 = vmatprep.subr.mxu0 0.0
  %189 = vmatpush1.msra.mxu0 %v99
  %190 = vmatprep.subr.mxu0 0.0
  %191 = vmatpush1.msra.mxu0 %v100
  %192 = vmatprep.subr.mxu0 0.0
  %193 = vmatpush1.msra.mxu0 %v101
  %194 = vmatprep.subr.mxu0 0.0
  %195 = vmatpush1.msra.mxu0 %v102
  %196 = vmatprep.subr.mxu0 0.0
  %197 = vmatpush1.msra.mxu0 %v103
  %198 = vmatprep.subr.mxu0 0.0
  %199 = vmatpush1.msra.mxu0 %v104
  %200 = vmatprep.subr.mxu0 0.0
  %201 = vmatpush1.msra.mxu0 %v105
  %202 = vmatprep.mubr.f32.mxu0 %v52
  %203 = vmatmul.mubr.f32.gmra.mrb[0].mxu0 %v51
  %v204 = vpop.f32.mrb[0].mxu0
  %v205 = vadd.f32 0.0, %v204
  %v206 = vpop.f32.mrb[0].mxu0
  %207 = vmatprep.mubr.f32.mxu0 %v56
  %208 = vmatmul.mubr.f32.gmra.mrb[0].mxu0 %v55
  %v209 = vpop.f32.mrb[0].mxu0
  %v210 = vadd.f32 0.0, %v209
  %v211 = vpop.f32.mrb[0].mxu0
  %212 = vdwg.mxu0
  %213 = vmatprep.subr.mxu0 0.0
  %214 = vmatpush1.msra.mxu0 %v106
  %215 = vmatprep.subr.mxu0 0.0
  %216 = vmatpush1.msra.mxu0 %v107
  %217 = vmatprep.subr.mxu0 0.0
  %218 = vmatpush1.msra.mxu0 %v108
  %219 = vmatprep.subr.mxu0 0.0
  %220 = vmatpush1.msra.mxu0 %v109
  %221 = vmatprep.subr.mxu0 0.0
  %222 = vmatpush1.msra.mxu0 %v110
  %223 = vmatprep.subr.mxu0 0.0
  %224 = vmatpush1.msra.mxu0 %v111
  %225 = vmatprep.subr.mxu0 0.0
  %226 = vmatpush1.msra.mxu0 %v112
  %227 = vmatprep.subr.mxu0 0.0
  %228 = vmatpush1.msra.mxu0 %v113
  %229 = vmatprep.subr.mxu0 0.0
  %230 = vmatpush1.msra.mxu0 %v114
  %231 = vmatprep.subr.mxu0 0.0
  %232 = vmatpush1.msra.mxu0 %v115
  %233 = vmatprep.subr.mxu0 0.0
  %234 = vmatpush1.msra.mxu0 %v116
  %235 = vmatprep.subr.mxu0 0.0
  %236 = vmatpush1.msra.mxu0 %v117
  %237 = vmatprep.subr.mxu0 0.0
  %238 = vmatpush1.msra.mxu0 %v118
  %239 = vmatprep.subr.mxu0 0.0
  %240 = vmatpush1.msra.mxu0 %v119
  %241 = vmatprep.subr.mxu0 0.0
  %242 = vmatpush1.msra.mxu0 %v120
  %243 = vmatprep.subr.mxu0 0.0
  %244 = vmatpush1.msra.mxu0 %v121
  %245 = vmatprep.subr.mxu0 0.0
  %246 = vmatpush1.msra.mxu0 %v122
  %247 = vmatprep.subr.mxu0 0.0
  %248 = vmatpush1.msra.mxu0 %v123
  %249 = vmatprep.subr.mxu0 0.0
  %250 = vmatpush1.msra.mxu0 %v124
  %251 = vmatprep.subr.mxu0 0.0
  %252 = vmatpush1.msra.mxu0 %v125
  %253 = vmatprep.subr.mxu0 0.0
  %254 = vmatpush1.msra.mxu0 %v126
  %255 = vmatprep.subr.mxu0 0.0
  %256 = vmatpush1.msra.mxu0 %v127
  %257 = vmatprep.subr.mxu0 0.0
  %258 = vmatpush1.msra.mxu0 %v128
  %259 = vmatprep.subr.mxu0 0.0
  %260 = vmatpush1.msra.mxu0 %v129
  %261 = vmatprep.subr.mxu0 0.0
  %262 = vmatpush1.msra.mxu0 %v130
  %263 = vmatprep.subr.mxu0 0.0
  %264 = vmatpush1.msra.mxu0 %v131
  %265 = vmatprep.subr.mxu0 0.0
  %266 = vmatpush1.msra.mxu0 %v132
  %267 = vmatprep.subr.mxu0 0.0
  %268 = vmatpush1.msra.mxu0 %v133
  %269 = vmatprep.subr.mxu0 0.0
  %270 = vmatpush1.msra.mxu0 %v134
  %271 = vmatprep.subr.mxu0 0.0
  %272 = vmatpush1.msra.mxu0 %v135
  %273 = vmatprep.subr.mxu0 0.0
  %274 = vmatpush1.msra.mxu0 %v136
  %275 = vmatprep.subr.mxu0 0.0
  %276 = vmatpush1.msra.mxu0 %v137
  %277 = vmatprep.mubr.f32.mxu0 %v54
  %278 = vmatmul.mubr.f32.gmra.mrb[0].mxu0 %v53
  %v279 = vpop.f32.mrb[0].mxu0
  %v280 = vadd.f32 %v205, %v279
  %v281 = vpop.f32.mrb[0].mxu0
  %282 = vmatprep.mubr.f32.mxu0 %v58
  %283 = vmatmul.mubr.f32.gmra.mrb[0].mxu0 %v57
  %v284 = vpop.f32.mrb[0].mxu0
  %v285 = vadd.f32 %v210, %v284
  %v286 = vpop.f32.mrb[0].mxu0
  %287 = vdwg.mxu0
  %v288 = vadd.f32 %v71, %v280
  %v289 = vadd.f32 %v73, %v285
  %v290 = vld [vmem:[#allocation2] sm:$0x1]
  %v292 = vlaneseq
  %v293 = vshrl.u32 %v292, 7
  %v294 = vsub.s32 0, %v293
  %v295 = vrot.slane %v290, %v294
  %296 = vset.pattern.permute.xlu0 0
  %297 = vperm.xlu0 %296, %v295
  %v298 = vpop.permute.xlu0 %297
  %v300 = vadd.f32 %v288, %v298
  %v301 = vadd.f32 %v289, %v298
  %vm302 = vcmp.ge.f32.partialorder %v300, 0.0
  %vm303 = vcmp.ge.f32.partialorder %v301, 0.0
  %v304 = vmul.f32 %v300, 0.01
  %v305 = vmul.f32 %v301, 0.01
  %v306 = vsel %vm302, %v300, %v304
  %v307 = vsel %vm303, %v301, %v305
  %v308 = vld [vmem:[%s3] sm:$0xff]
  %v309 = vld [vmem:[%s3 + $0x8] sm:$0xff]
  %v310 = vadd.f32 %v306, %v308
  %v311 = vadd.f32 %v307, %v309
  %vm312 = vcmask 31744
  %v313 = vsel %vm312, %v310, -inf
  %314 = vmax.xlane.f32.xlu0 %v313
  %v315 = vpop.xlane.xlu0 %314
  %v316 = vsel %vm312, %v311, -inf
  %317 = vmax.xlane.f32.xlu0 %v316
  %v318 = vpop.xlane.xlu0 %317
  %v319 = vsub.f32 %v310, %v315
  %v320 = vsub.f32 %v311, %v318
  %v321 = vmul.f32 %v319, 1.442695
  %v322 = vpow.pop %v321
  %v323 = vmul.f32 %v320, 1.442695
  %v324 = vpow.pop %v323
  %v325 = vsel %vm312, %v322, 0.0
  %326 = vadd.xlane.f32.xlu0 %v325
  %v327 = vpop.xlane.xlu0 %326
  %v328 = vsel %vm312, %v324, 0.0
  %329 = vadd.xlane.f32.xlu0 %v328
  %v330 = vpop.xlane.xlu0 %329
  %v331 = vrcp.pop %v327
  %v332 = vmul.f32 %v322, %v331
  %v333 = vrcp.pop %v330
  %v334 = vmul.f32 %v324, %v333
  %v335 = vld [vmem:[%s4] sm:$0xff]
  %v336 = vld [vmem:[%s4 + $0x8] sm:$0xff]
  %v337 = vmul.f32 %v332, %v335
  %v338 = vmul.f32 %v334, %v336
  %340 = vset.pattern.permute.xlu0 0
  %341 = vperm.xlu0 %340, %v337
  %v342 = vpop.permute.xlu0 %341
  %345 = vset.pattern.permute.xlu0 0
  %346 = vperm.xlu0 %345, %v338
  %v347 = vpop.permute.xlu0 %346
  %v349 = vmul.f32 %v342, %v51
  %v350 = vmul.f32 %v347, %v55
  %351 = vset.pattern.permute.xlu0 1
  %352 = vperm.xlu0 %351, %v337
  %v353 = vpop.permute.xlu0 %352
  %355 = vset.pattern.permute.xlu0 1
  %356 = vperm.xlu0 %355, %v338
  %v357 = vpop.permute.xlu0 %356
  %v359 = vmul.f32 %v353, %v52
  %v360 = vmul.f32 %v357, %v56
  %v361 = vadd.f32 %v349, %v359
  %v362 = vadd.f32 %v350, %v360
  %363 = vset.pattern.permute.xlu0 2
  %364 = vperm.xlu0 %363, %v337
  %v365 = vpop.permute.xlu0 %364
  %367 = vset.pattern.permute.xlu0 2
  %368 = vperm.xlu0 %367, %v338
  %v369 = vpop.permute.xlu0 %368
  %v371 = vmul.f32 %v365, %v53
  %v372 = vmul.f32 %v369, %v57
  %v373 = vadd.f32 %v361, %v371
  %v374 = vadd.f32 %v362, %v372
  %375 = vset.pattern.permute.xlu0 3
  %376 = vperm.xlu0 %375, %v337
  %v377 = vpop.permute.xlu0 %376
  %379 = vset.pattern.permute.xlu0 3
  %380 = vperm.xlu0 %379, %v338
  %v381 = vpop.permute.xlu0 %380
  %v383 = vmul.f32 %v377, %v54
  %v384 = vmul.f32 %v381, %v58
  %v385 = vadd.f32 %v373, %v383
  %v386 = vadd.f32 %v374, %v384
  %v387 = vsel %vm312, %v337, 0.0
  %388 = vadd.xlane.f32.xlu0 %v387
  %v389 = vpop.xlane.xlu0 %388
  %v390 = vsel %vm312, %v338, 0.0
  %391 = vadd.xlane.f32.xlu0 %v390
  %v392 = vpop.xlane.xlu0 %391
  %v393 = vld [vmem:[%s8] sm:$0xff]
  %v394 = vld [vmem:[%s8 + $0x8] sm:$0xff]
  %v395 = vld [vmem:[%s8 + $0x10] sm:$0xff]
  %v396 = vld [vmem:[%s8 + $0x18] sm:$0xff]
  %v397 = vld [vmem:[%s8 + $0x20] sm:$0xff]
  %v398 = vld [vmem:[%s8 + $0x28] sm:$0xff]
  %v399 = vld [vmem:[%s8 + $0x30] sm:$0xff]
  %v400 = vld [vmem:[%s8 + $0x38] sm:$0xff]
  %v401 = vld [vmem:[%s8 + $0x40] sm:$0xff]
  %v402 = vld [vmem:[%s8 + $0x48] sm:$0xff]
  %v403 = vld [vmem:[%s8 + $0x50] sm:$0xff]
  %v404 = vld [vmem:[%s8 + $0x58] sm:$0xff]
  %v405 = vld [vmem:[%s8 + $0x60] sm:$0xff]
  %v406 = vld [vmem:[%s8 + $0x68] sm:$0xff]
  %v407 = vld [vmem:[%s8 + $0x70] sm:$0xff]
  %v408 = vld [vmem:[%s8 + $0x78] sm:$0xff]
  %v409 = vld [vmem:[%s9] sm:$0x1]
  %v411 = vlaneseq
  %v412 = vshrl.u32 %v411, 7
  %v413 = vsub.s32 0, %v412
  %v414 = vrot.slane %v409, %v413
  %v416 = vmul.f32 %v389, %v414
  %v417 = vmul.f32 %v392, %v414
  %418 = vmatprep.subr.mxu0 0.0
  %419 = vmatpush1.msra.mxu0 %v393
  %420 = vmatprep.subr.mxu0 0.0
  %421 = vmatpush1.msra.mxu0 %v394
  %422 = vmatprep.subr.mxu0 0.0
  %423 = vmatpush1.msra.mxu0 %v395
  %424 = vmatprep.subr.mxu0 0.0
  %425 = vmatpush1.msra.mxu0 %v396
  %426 = vmatprep.subr.mxu0 0.0
  %427 = vmatpush1.msra.mxu0 %v397
  %428 = vmatprep.subr.mxu0 0.0
  %429 = vmatpush1.msra.mxu0 %v398
  %430 = vmatprep.subr.mxu0 0.0
  %431 = vmatpush1.msra.mxu0 %v399
  %432 = vmatprep.subr.mxu0 0.0
  %433 = vmatpush1.msra.mxu0 %v400
  %434 = vmatprep.subr.mxu0 0.0
  %435 = vmatpush1.msra.mxu0 %v401
  %436 = vmatprep.subr.mxu0 0.0
  %437 = vmatpush1.msra.mxu0 %v402
  %438 = vmatprep.subr.mxu0 0.0
  %439 = vmatpush1.msra.mxu0 %v403
  %440 = vmatprep.subr.mxu0 0.0
  %441 = vmatpush1.msra.mxu0 %v404
  %442 = vmatprep.subr.mxu0 0.0
  %443 = vmatpush1.msra.mxu0 %v405
  %444 = vmatprep.subr.mxu0 0.0
  %445 = vmatpush1.msra.mxu0 %v406
  %446 = vmatprep.subr.mxu0 0.0
  %447 = vmatpush1.msra.mxu0 %v407
  %448 = vmatprep.subr.mxu0 0.0
  %449 = vmatpush1.msra.mxu0 %v408
  %450 = vmatprep.subr.mxu0 0.0
  %451 = vmatpush1.msra.mxu0 0.0
  %452 = vmatprep.subr.mxu0 0.0
  %453 = vmatpush1.msra.mxu0 0.0
  %454 = vmatprep.subr.mxu0 0.0
  %455 = vmatpush1.msra.mxu0 0.0
  %456 = vmatprep.subr.mxu0 0.0
  %457 = vmatpush1.msra.mxu0 0.0
  %458 = vmatprep.subr.mxu0 0.0
  %459 = vmatpush1.msra.mxu0 0.0
  %460 = vmatprep.subr.mxu0 0.0
  %461 = vmatpush1.msra.mxu0 0.0
  %462 = vmatprep.subr.mxu0 0.0
  %463 = vmatpush1.msra.mxu0 0.0
  %464 = vmatprep.subr.mxu0 0.0
  %465 = vmatpush1.msra.mxu0 0.0
  %466 = vmatprep.subr.mxu0 0.0
  %467 = vmatpush1.msra.mxu0 0.0
  %468 = vmatprep.subr.mxu0 0.0
  %469 = vmatpush1.msra.mxu0 0.0
  %470 = vmatprep.subr.mxu0 0.0
  %471 = vmatpush1.msra.mxu0 0.0
  %472 = vmatprep.subr.mxu0 0.0
  %473 = vmatpush1.msra.mxu0 0.0
  %474 = vmatprep.subr.mxu0 0.0
  %475 = vmatpush1.msra.mxu0 0.0
  %476 = vmatprep.subr.mxu0 0.0
  %477 = vmatpush1.msra.mxu0 0.0
  %478 = vmatprep.subr.mxu0 0.0
  %479 = vmatpush1.msra.mxu0 0.0
  %480 = vmatprep.subr.mxu0 0.0
  %481 = vmatpush1.msra.mxu0 0.0
  %482 = vmatprep.mubr.f32.mxu0 0.0
  %483 = vmatmul.mubr.f32.gmra.mrb[0].mxu0 %v385
  %v484 = vpop.f32.mrb[0].mxu0
  %v485 = vadd.f32 %v416, %v484
  %v486 = vpop.f32.mrb[0].mxu0
  %487 = vmatprep.mubr.f32.mxu0 0.0
  %488 = vmatmul.mubr.f32.gmra.mrb[0].mxu0 %v386
  %v489 = vpop.f32.mrb[0].mxu0
  %v490 = vadd.f32 %v417, %v489
  %v491 = vpop.f32.mrb[0].mxu0
  %492 = vdwg.mxu0
  %vm493 = vcmp.gt.f32.partialorder %v485, 0.0
  %vm494 = vcmp.gt.f32.partialorder %v490, 0.0
  %v495 = vmin.f32 %v485, 0.0
  %v496 = vmin.f32 %v490, 0.0
  %v497 = vmul.f32 %v495, 1.442695
  %v498 = vpow.pop %v497
  %v499 = vmul.f32 %v496, 1.442695
  %v500 = vpow.pop %v499
  %v501 = vsub.f32 %v498, 1.0
  %v502 = vsub.f32 %v500, 1.0
  %v503 = vsel %vm493, %v485, %v501
  %v504 = vsel %vm494, %v490, %v502
  %v505 = vld [vmem:[%s10] sm:$0xff]
  %v506 = vld [vmem:[%s10 + $0x8] sm:$0xff]
  %v507 = vld [vmem:[%s10 + $0x10] sm:$0xff]
  %v508 = vld [vmem:[%s10 + $0x18] sm:$0xff]
  %v509 = vld [vmem:[%s10 + $0x20] sm:$0xff]
  %v510 = vld [vmem:[%s10 + $0x28] sm:$0xff]
  %v511 = vld [vmem:[%s10 + $0x30] sm:$0xff]
  %v512 = vld [vmem:[%s10 + $0x38] sm:$0xff]
  %v513 = vld [vmem:[%s10 + $0x40] sm:$0xff]
  %v514 = vld [vmem:[%s10 + $0x48] sm:$0xff]
  %v515 = vld [vmem:[%s10 + $0x50] sm:$0xff]
  %v516 = vld [vmem:[%s10 + $0x58] sm:$0xff]
  %v517 = vld [vmem:[%s10 + $0x60] sm:$0xff]
  %v518 = vld [vmem:[%s10 + $0x68] sm:$0xff]
  %v519 = vld [vmem:[%s10 + $0x70] sm:$0xff]
  %v520 = vld [vmem:[%s10 + $0x78] sm:$0xff]
  %v521 = vld [vmem:[%s10 + $0x80] sm:$0xff]
  %v522 = vld [vmem:[%s10 + $0x88] sm:$0xff]
  %v523 = vld [vmem:[%s10 + $0x90] sm:$0xff]
  %v524 = vld [vmem:[%s10 + $0x98] sm:$0xff]
  %v525 = vld [vmem:[%s10 + $0xa0] sm:$0xff]
  %v526 = vld [vmem:[%s10 + $0xa8] sm:$0xff]
  %v527 = vld [vmem:[%s10 + $0xb0] sm:$0xff]
  %v528 = vld [vmem:[%s10 + $0xb8] sm:$0xff]
  %v529 = vld [vmem:[%s10 + $0xc0] sm:$0xff]
  %v530 = vld [vmem:[%s10 + $0xc8] sm:$0xff]
  %v531 = vld [vmem:[%s10 + $0xd0] sm:$0xff]
  %v532 = vld [vmem:[%s10 + $0xd8] sm:$0xff]
  %v533 = vld [vmem:[%s10 + $0xe0] sm:$0xff]
  %v534 = vld [vmem:[%s10 + $0xe8] sm:$0xff]
  %v535 = vld [vmem:[%s10 + $0xf0] sm:$0xff]
  %v536 = vld [vmem:[%s10 + $0xf8] sm:$0xff]
  %v537 = vld [vmem:[%s10 + $0x100] sm:$0xff]
  %v538 = vld [vmem:[%s10 + $0x108] sm:$0xff]
  %v539 = vld [vmem:[%s10 + $0x110] sm:$0xff]
  %v540 = vld [vmem:[%s10 + $0x118] sm:$0xff]
  %v541 = vld [vmem:[%s10 + $0x120] sm:$0xff]
  %v542 = vld [vmem:[%s10 + $0x128] sm:$0xff]
  %v543 = vld [vmem:[%s10 + $0x130] sm:$0xff]
  %v544 = vld [vmem:[%s10 + $0x138] sm:$0xff]
  %v545 = vld [vmem:[%s10 + $0x140] sm:$0xff]
  %v546 = vld [vmem:[%s10 + $0x148] sm:$0xff]
  %v547 = vld [vmem:[%s10 + $0x150] sm:$0xff]
  %v548 = vld [vmem:[%s10 + $0x158] sm:$0xff]
  %v549 = vld [vmem:[%s10 + $0x160] sm:$0xff]
  %v550 = vld [vmem:[%s10 + $0x168] sm:$0xff]
  %v551 = vld [vmem:[%s10 + $0x170] sm:$0xff]
  %v552 = vld [vmem:[%s10 + $0x178] sm:$0xff]
  %v553 = vld [vmem:[%s12] sm:$0x7]
  %v555 = vlaneseq
  %v556 = vshrl.u32 %v555, 7
  %v557 = vsub.s32 0, %v556
  %v558 = vrot.slane %v553, %v557
  %v559 = vlaneseq
  %v560 = vshrl.u32 %v559, 7
  %v561 = vsub.s32 1, %v560
  %v562 = vrot.slane %v553, %v561
  %v563 = vlaneseq
  %v564 = vshrl.u32 %v563, 7
  %v565 = vsub.s32 2, %v564
  %v566 = vrot.slane %v553, %v565
  %570 = vmatprep.subr.mxu0 %v506
  %571 = vmatpush1.msra.mxu0 %v505
  %572 = vmatprep.subr.mxu0 %v509
  %573 = vmatpush1.msra.mxu0 %v508
  %574 = vmatprep.subr.mxu0 %v512
  %575 = vmatpush1.msra.mxu0 %v511
  %576 = vmatprep.subr.mxu0 %v515
  %577 = vmatpush1.msra.mxu0 %v514
  %578 = vmatprep.subr.mxu0 %v518
  %579 = vmatpush1.msra.mxu0 %v517
  %580 = vmatprep.subr.mxu0 %v521
  %581 = vmatpush1.msra.mxu0 %v520
  %582 = vmatprep.subr.mxu0 %v524
  %583 = vmatpush1.msra.mxu0 %v523
  %584 = vmatprep.subr.mxu0 %v527
  %585 = vmatpush1.msra.mxu0 %v526
  %586 = vmatprep.subr.mxu0 %v530
  %587 = vmatpush1.msra.mxu0 %v529
  %588 = vmatprep.subr.mxu0 %v533
  %589 = vmatpush1.msra.mxu0 %v532
  %590 = vmatprep.subr.mxu0 %v536
  %591 = vmatpush1.msra.mxu0 %v535
  %592 = vmatprep.subr.mxu0 %v539
  %593 = vmatpush1.msra.mxu0 %v538
  %594 = vmatprep.subr.mxu0 %v542
  %595 = vmatpush1.msra.mxu0 %v541
  %596 = vmatprep.subr.mxu0 %v545
  %597 = vmatpush1.msra.mxu0 %v544
  %598 = vmatprep.subr.mxu0 %v548
  %599 = vmatpush1.msra.mxu0 %v547
  %600 = vmatprep.subr.mxu0 %v551
  %601 = vmatpush1.msra.mxu0 %v550
  %602 = vmatprep.subr.mxu0 0.0
  %603 = vmatpush1.msra.mxu0 0.0
  %604 = vmatprep.subr.mxu0 0.0
  %605 = vmatpush1.msra.mxu0 0.0
  %606 = vmatprep.subr.mxu0 0.0
  %607 = vmatpush1.msra.mxu0 0.0
  %608 = vmatprep.subr.mxu0 0.0
  %609 = vmatpush1.msra.mxu0 0.0
  %610 = vmatprep.subr.mxu0 0.0
  %611 = vmatpush1.msra.mxu0 0.0
  %612 = vmatprep.subr.mxu0 0.0
  %613 = vmatpush1.msra.mxu0 0.0
  %614 = vmatprep.subr.mxu0 0.0
  %615 = vmatpush1.msra.mxu0 0.0
  %616 = vmatprep.subr.mxu0 0.0
  %617 = vmatpush1.msra.mxu0 0.0
  %618 = vmatprep.subr.mxu0 0.0
  %619 = vmatpush1.msra.mxu0 0.0
  %620 = vmatprep.subr.mxu0 0.0
  %621 = vmatpush1.msra.mxu0 0.0
  %622 = vmatprep.subr.mxu0 0.0
  %623 = vmatpush1.msra.mxu0 0.0
  %624 = vmatprep.subr.mxu0 0.0
  %625 = vmatpush1.msra.mxu0 0.0
  %626 = vmatprep.subr.mxu0 0.0
  %627 = vmatpush1.msra.mxu0 0.0
  %628 = vmatprep.subr.mxu0 0.0
  %629 = vmatpush1.msra.mxu0 0.0
  %630 = vmatprep.subr.mxu0 0.0
  %631 = vmatpush1.msra.mxu0 0.0
  %632 = vmatprep.subr.mxu0 0.0
  %633 = vmatpush1.msra.mxu0 0.0
  %634 = vmatprep.mubr.f32.mxu0 0.0
  %635 = vmatmul.mubr.f32.gmra.mrb[0].mxu0 %v503
  %v636 = vpop.f32.mrb[0].mxu0
  %v637 = vadd.f32 %v558, %v636
  %v638 = vpop.f32.mrb[0].mxu0
  %v639 = vadd.f32 %v562, %v638
  %640 = vmatprep.mubr.f32.mxu0 0.0
  %641 = vmatmul.mubr.f32.gmra.mrb[0].mxu0 %v504
  %v642 = vpop.f32.mrb[0].mxu0
  %v643 = vadd.f32 %v558, %v642
  %v644 = vpop.f32.mrb[0].mxu0
  %v645 = vadd.f32 %v562, %v644
  %646 = vdwg.mxu0
  %647 = vmatprep.subr.mxu0 0.0
  %648 = vmatpush1.msra.mxu0 %v507
  %649 = vmatprep.subr.mxu0 0.0
  %650 = vmatpush1.msra.mxu0 %v510
  %651 = vmatprep.subr.mxu0 0.0
  %652 = vmatpush1.msra.mxu0 %v513
  %653 = vmatprep.subr.mxu0 0.0
  %654 = vmatpush1.msra.mxu0 %v516
  %655 = vmatprep.subr.mxu0 0.0
  %656 = vmatpush1.msra.mxu0 %v519
  %657 = vmatprep.subr.mxu0 0.0
  %658 = vmatpush1.msra.mxu0 %v522
  %659 = vmatprep.subr.mxu0 0.0
  %660 = vmatpush1.msra.mxu0 %v525
  %661 = vmatprep.subr.mxu0 0.0
  %662 = vmatpush1.msra.mxu0 %v528
  %663 = vmatprep.subr.mxu0 0.0
  %664 = vmatpush1.msra.mxu0 %v531
  %665 = vmatprep.subr.mxu0 0.0
  %666 = vmatpush1.msra.mxu0 %v534
  %667 = vmatprep.subr.mxu0 0.0
  %668 = vmatpush1.msra.mxu0 %v537
  %669 = vmatprep.subr.mxu0 0.0
  %670 = vmatpush1.msra.mxu0 %v540
  %671 = vmatprep.subr.mxu0 0.0
  %672 = vmatpush1.msra.mxu0 %v543
  %673 = vmatprep.subr.mxu0 0.0
  %674 = vmatpush1.msra.mxu0 %v546
  %675 = vmatprep.subr.mxu0 0.0
  %676 = vmatpush1.msra.mxu0 %v549
  %677 = vmatprep.subr.mxu0 0.0
  %678 = vmatpush1.msra.mxu0 %v552
  %679 = vmatprep.subr.mxu0 0.0
  %680 = vmatpush1.msra.mxu0 0.0
  %681 = vmatprep.subr.mxu0 0.0
  %682 = vmatpush1.msra.mxu0 0.0
  %683 = vmatprep.subr.mxu0 0.0
  %684 = vmatpush1.msra.mxu0 0.0
  %685 = vmatprep.subr.mxu0 0.0
  %686 = vmatpush1.msra.mxu0 0.0
  %687 = vmatprep.subr.mxu0 0.0
  %688 = vmatpush1.msra.mxu0 0.0
  %689 = vmatprep.subr.mxu0 0.0
  %690 = vmatpush1.msra.mxu0 0.0
  %691 = vmatprep.subr.mxu0 0.0
  %692 = vmatpush1.msra.mxu0 0.0
  %693 = vmatprep.subr.mxu0 0.0
  %694 = vmatpush1.msra.mxu0 0.0
  %695 = vmatprep.subr.mxu0 0.0
  %696 = vmatpush1.msra.mxu0 0.0
  %697 = vmatprep.subr.mxu0 0.0
  %698 = vmatpush1.msra.mxu0 0.0
  %699 = vmatprep.subr.mxu0 0.0
  %700 = vmatpush1.msra.mxu0 0.0
  %701 = vmatprep.subr.mxu0 0.0
  %702 = vmatpush1.msra.mxu0 0.0
  %703 = vmatprep.subr.mxu0 0.0
  %704 = vmatpush1.msra.mxu0 0.0
  %705 = vmatprep.subr.mxu0 0.0
  %706 = vmatpush1.msra.mxu0 0.0
  %707 = vmatprep.subr.mxu0 0.0
  %708 = vmatpush1.msra.mxu0 0.0
  %709 = vmatprep.subr.mxu0 0.0
  %710 = vmatpush1.msra.mxu0 0.0
  %711 = vmatprep.mubr.f32.mxu0 0.0
  %712 = vmatmul.mubr.f32.gmra.mrb[0].mxu0 %v503
  %v713 = vpop.f32.mrb[0].mxu0
  %v714 = vadd.f32 %v566, %v713
  %v715 = vpop.f32.mrb[0].mxu0
  %716 = vmatprep.mubr.f32.mxu0 0.0
  %717 = vmatmul.mubr.f32.gmra.mrb[0].mxu0 %v504
  %v718 = vpop.f32.mrb[0].mxu0
  %v719 = vadd.f32 %v566, %v718
  %v720 = vpop.f32.mrb[0].mxu0
  %721 = vdwg.mxu0
  %v722 = vld [vmem:[%s11] sm:$0xff]
  %v723 = vld [vmem:[%s11 + $0x8] sm:$0xff]
  %v724 = vld [vmem:[%s11 + $0x10] sm:$0xff]
  %v725 = vld [vmem:[%s11 + $0x18] sm:$0xff]
  %v726 = vld [vmem:[%s11 + $0x20] sm:$0xff]
  %v727 = vld [vmem:[%s11 + $0x28] sm:$0xff]
  %v728 = vld [vmem:[%s11 + $0x30] sm:$0xff]
  %v729 = vld [vmem:[%s11 + $0x38] sm:$0xff]
  %v730 = vld [vmem:[%s11 + $0x40] sm:$0xff]
  %v731 = vld [vmem:[%s11 + $0x48] sm:$0xff]
  %v732 = vld [vmem:[%s11 + $0x50] sm:$0xff]
  %v733 = vld [vmem:[%s11 + $0x58] sm:$0xff]
  %v734 = vld [vmem:[%s11 + $0x60] sm:$0xff]
  %v735 = vld [vmem:[%s11 + $0x68] sm:$0xff]
  %v736 = vld [vmem:[%s11 + $0x70] sm:$0xff]
  %v737 = vld [vmem:[%s11 + $0x78] sm:$0xff]
  %v738 = vld [vmem:[%s11 + $0x80] sm:$0xff]
  %v739 = vld [vmem:[%s11 + $0x88] sm:$0xff]
  %v740 = vld [vmem:[%s11 + $0x90] sm:$0xff]
  %v741 = vld [vmem:[%s11 + $0x98] sm:$0xff]
  %v742 = vld [vmem:[%s11 + $0xa0] sm:$0xff]
  %v743 = vld [vmem:[%s11 + $0xa8] sm:$0xff]
  %v744 = vld [vmem:[%s11 + $0xb0] sm:$0xff]
  %v745 = vld [vmem:[%s11 + $0xb8] sm:$0xff]
  %v746 = vld [vmem:[%s11 + $0xc0] sm:$0xff]
  %v747 = vld [vmem:[%s11 + $0xc8] sm:$0xff]
  %v748 = vld [vmem:[%s11 + $0xd0] sm:$0xff]
  %v749 = vld [vmem:[%s11 + $0xd8] sm:$0xff]
  %v750 = vld [vmem:[%s11 + $0xe0] sm:$0xff]
  %v751 = vld [vmem:[%s11 + $0xe8] sm:$0xff]
  %v752 = vld [vmem:[%s11 + $0xf0] sm:$0xff]
  %v753 = vld [vmem:[%s11 + $0xf8] sm:$0xff]
  %v754 = vld [vmem:[%s11 + $0x100] sm:$0xff]
  %v755 = vld [vmem:[%s11 + $0x108] sm:$0xff]
  %v756 = vld [vmem:[%s11 + $0x110] sm:$0xff]
  %v757 = vld [vmem:[%s11 + $0x118] sm:$0xff]
  %v758 = vld [vmem:[%s11 + $0x120] sm:$0xff]
  %v759 = vld [vmem:[%s11 + $0x128] sm:$0xff]
  %v760 = vld [vmem:[%s11 + $0x130] sm:$0xff]
  %v761 = vld [vmem:[%s11 + $0x138] sm:$0xff]
  %v762 = vld [vmem:[%s11 + $0x140] sm:$0xff]
  %v763 = vld [vmem:[%s11 + $0x148] sm:$0xff]
  %v764 = vld [vmem:[%s11 + $0x150] sm:$0xff]
  %v765 = vld [vmem:[%s11 + $0x158] sm:$0xff]
  %v766 = vld [vmem:[%s11 + $0x160] sm:$0xff]
  %v767 = vld [vmem:[%s11 + $0x168] sm:$0xff]
  %v768 = vld [vmem:[%s11 + $0x170] sm:$0xff]
  %v769 = vld [vmem:[%s11 + $0x178] sm:$0xff]
  %v770 = vld [vmem:[%s13] sm:$0x7]
  %v772 = vlaneseq
  %v773 = vshrl.u32 %v772, 7
  %v774 = vsub.s32 0, %v773
  %v775 = vrot.slane %v770, %v774
  %v776 = vlaneseq
  %v777 = vshrl.u32 %v776, 7
  %v778 = vsub.s32 1, %v777
  %v779 = vrot.slane %v770, %v778
  %v780 = vlaneseq
  %v781 = vshrl.u32 %v780, 7
  %v782 = vsub.s32 2, %v781
  %v783 = vrot.slane %v770, %v782
  %787 = vmatprep.subr.mxu0 %v723
  %788 = vmatpush1.msra.mxu0 %v722
  %789 = vmatprep.subr.mxu0 %v726
  %790 = vmatpush1.msra.mxu0 %v725
  %791 = vmatprep.subr.mxu0 %v729
  %792 = vmatpush1.msra.mxu0 %v728
  %793 = vmatprep.subr.mxu0 %v732
  %794 = vmatpush1.msra.mxu0 %v731
  %795 = vmatprep.subr.mxu0 %v735
  %796 = vmatpush1.msra.mxu0 %v734
  %797 = vmatprep.subr.mxu0 %v738
  %798 = vmatpush1.msra.mxu0 %v737
  %799 = vmatprep.subr.mxu0 %v741
  %800 = vmatpush1.msra.mxu0 %v740
  %801 = vmatprep.subr.mxu0 %v744
  %802 = vmatpush1.msra.mxu0 %v743
  %803 = vmatprep.subr.mxu0 %v747
  %804 = vmatpush1.msra.mxu0 %v746
  %805 = vmatprep.subr.mxu0 %v750
  %806 = vmatpush1.msra.mxu0 %v749
  %807 = vmatprep.subr.mxu0 %v753
  %808 = vmatpush1.msra.mxu0 %v752
  %809 = vmatprep.subr.mxu0 %v756
  %810 = vmatpush1.msra.mxu0 %v755
  %811 = vmatprep.subr.mxu0 %v759
  %812 = vmatpush1.msra.mxu0 %v758
  %813 = vmatprep.subr.mxu0 %v762
  %814 = vmatpush1.msra.mxu0 %v761
  %815 = vmatprep.subr.mxu0 %v765
  %816 = vmatpush1.msra.mxu0 %v764
  %817 = vmatprep.subr.mxu0 %v768
  %818 = vmatpush1.msra.mxu0 %v767
  %819 = vmatprep.subr.mxu0 0.0
  %820 = vmatpush1.msra.mxu0 0.0
  %821 = vmatprep.subr.mxu0 0.0
  %822 = vmatpush1.msra.mxu0 0.0
  %823 = vmatprep.subr.mxu0 0.0
  %824 = vmatpush1.msra.mxu0 0.0
  %825 = vmatprep.subr.mxu0 0.0
  %826 = vmatpush1.msra.mxu0 0.0
  %827 = vmatprep.subr.mxu0 0.0
  %828 = vmatpush1.msra.mxu0 0.0
  %829 = vmatprep.subr.mxu0 0.0
  %830 = vmatpush1.msra.mxu0 0.0
  %831 = vmatprep.subr.mxu0 0.0
  %832 = vmatpush1.msra.mxu0 0.0
  %833 = vmatprep.subr.mxu0 0.0
  %834 = vmatpush1.msra.mxu0 0.0
  %835 = vmatprep.subr.mxu0 0.0
  %836 = vmatpush1.msra.mxu0 0.0
  %837 = vmatprep.subr.mxu0 0.0
  %838 = vmatpush1.msra.mxu0 0.0
  %839 = vmatprep.subr.mxu0 0.0
  %840 = vmatpush1.msra.mxu0 0.0
  %841 = vmatprep.subr.mxu0 0.0
  %842 = vmatpush1.msra.mxu0 0.0
  %843 = vmatprep.subr.mxu0 0.0
  %844 = vmatpush1.msra.mxu0 0.0
  %845 = vmatprep.subr.mxu0 0.0
  %846 = vmatpush1.msra.mxu0 0.0
  %847 = vmatprep.subr.mxu0 0.0
  %848 = vmatpush1.msra.mxu0 0.0
  %849 = vmatprep.subr.mxu0 0.0
  %850 = vmatpush1.msra.mxu0 0.0
  %851 = vmatprep.mubr.f32.mxu0 0.0
  %852 = vmatmul.mubr.f32.gmra.mrb[0].mxu0 %v59
  %v853 = vpop.f32.mrb[0].mxu0
  %v854 = vadd.f32 %v775, %v853
  %v855 = vpop.f32.mrb[0].mxu0
  %v856 = vadd.f32 %v779, %v855
  %857 = vmatprep.mubr.f32.mxu0 0.0
  %858 = vmatmul.mubr.f32.gmra.mrb[0].mxu0 %v60
  %v859 = vpop.f32.mrb[0].mxu0
  %v860 = vadd.f32 %v775, %v859
  %v861 = vpop.f32.mrb[0].mxu0
  %v862 = vadd.f32 %v779, %v861
  %863 = vdwg.mxu0
  %864 = vmatprep.subr.mxu0 0.0
  %865 = vmatpush1.msra.mxu0 %v724
  %866 = vmatprep.subr.mxu0 0.0
  %867 = vmatpush1.msra.mxu0 %v727
  %868 = vmatprep.subr.mxu0 0.0
  %869 = vmatpush1.msra.mxu0 %v730
  %870 = vmatprep.subr.mxu0 0.0
  %871 = vmatpush1.msra.mxu0 %v733
  %872 = vmatprep.subr.mxu0 0.0
  %873 = vmatpush1.msra.mxu0 %v736
  %874 = vmatprep.subr.mxu0 0.0
  %875 = vmatpush1.msra.mxu0 %v739
  %876 = vmatprep.subr.mxu0 0.0
  %877 = vmatpush1.msra.mxu0 %v742
  %878 = vmatprep.subr.mxu0 0.0
  %879 = vmatpush1.msra.mxu0 %v745
  %880 = vmatprep.subr.mxu0 0.0
  %881 = vmatpush1.msra.mxu0 %v748
  %882 = vmatprep.subr.mxu0 0.0
  %883 = vmatpush1.msra.mxu0 %v751
  %884 = vmatprep.subr.mxu0 0.0
  %885 = vmatpush1.msra.mxu0 %v754
  %886 = vmatprep.subr.mxu0 0.0
  %887 = vmatpush1.msra.mxu0 %v757
  %888 = vmatprep.subr.mxu0 0.0
  %889 = vmatpush1.msra.mxu0 %v760
  %890 = vmatprep.subr.mxu0 0.0
  %891 = vmatpush1.msra.mxu0 %v763
  %892 = vmatprep.subr.mxu0 0.0
  %893 = vmatpush1.msra.mxu0 %v766
  %894 = vmatprep.subr.mxu0 0.0
  %895 = vmatpush1.msra.mxu0 %v769
  %896 = vmatprep.subr.mxu0 0.0
  %897 = vmatpush1.msra.mxu0 0.0
  %898 = vmatprep.subr.mxu0 0.0
  %899 = vmatpush1.msra.mxu0 0.0
  %900 = vmatprep.subr.mxu0 0.0
  %901 = vmatpush1.msra.mxu0 0.0
  %902 = vmatprep.subr.mxu0 0.0
  %903 = vmatpush1.msra.mxu0 0.0
  %904 = vmatprep.subr.mxu0 0.0
  %905 = vmatpush1.msra.mxu0 0.0
  %906 = vmatprep.subr.mxu0 0.0
  %907 = vmatpush1.msra.mxu0 0.0
  %908 = vmatprep.subr.mxu0 0.0
  %909 = vmatpush1.msra.mxu0 0.0
  %910 = vmatprep.subr.mxu0 0.0
  %911 = vmatpush1.msra.mxu0 0.0
  %912 = vmatprep.subr.mxu0 0.0
  %913 = vmatpush1.msra.mxu0 0.0
  %914 = vmatprep.subr.mxu0 0.0
  %915 = vmatpush1.msra.mxu0 0.0
  %916 = vmatprep.subr.mxu0 0.0
  %917 = vmatpush1.msra.mxu0 0.0
  %918 = vmatprep.subr.mxu0 0.0
  %919 = vmatpush1.msra.mxu0 0.0
  %920 = vmatprep.subr.mxu0 0.0
  %921 = vmatpush1.msra.mxu0 0.0
  %922 = vmatprep.subr.mxu0 0.0
  %923 = vmatpush1.msra.mxu0 0.0
  %924 = vmatprep.subr.mxu0 0.0
  %925 = vmatpush1.msra.mxu0 0.0
  %926 = vmatprep.subr.mxu0 0.0
  %927 = vmatpush1.msra.mxu0 0.0
  %928 = vmatprep.mubr.f32.mxu0 0.0
  %929 = vmatmul.mubr.f32.gmra.mrb[0].mxu0 %v59
  %v930 = vpop.f32.mrb[0].mxu0
  %v931 = vadd.f32 %v783, %v930
  %v932 = vpop.f32.mrb[0].mxu0
  %933 = vmatprep.mubr.f32.mxu0 0.0
  %934 = vmatmul.mubr.f32.gmra.mrb[0].mxu0 %v60
  %v935 = vpop.f32.mrb[0].mxu0
  %v936 = vadd.f32 %v783, %v935
  %v937 = vpop.f32.mrb[0].mxu0
  %938 = vdwg.mxu0
  %v939 = vadd.f32 %v637, %v854
  %v940 = vadd.f32 %v643, %v860
  %v941 = vsub.f32 0.0, %v939
  %v942 = vsub.f32 0.0, %v940
  %v943 = vmul.f32 %v941, 1.442695
  %v944 = vpow.pop %v943
  %v945 = vmul.f32 %v942, 1.442695
  %v946 = vpow.pop %v945
  %v947 = vadd.f32 %v944, 1.0
  %v948 = vadd.f32 %v946, 1.0
  %v949 = vrcp.pop %v947
  %v950 = vmul.f32 1.0, %v949
  %v951 = vrcp.pop %v948
  %v952 = vmul.f32 1.0, %v951
  %v953 = vadd.f32 %v639, %v856
  %v954 = vadd.f32 %v645, %v862
  %v955 = vsub.f32 0.0, %v953
  %v956 = vsub.f32 0.0, %v954
  %v957 = vmul.f32 %v955, 1.442695
  %v958 = vpow.pop %v957
  %v959 = vmul.f32 %v956, 1.442695
  %v960 = vpow.pop %v959
  %v961 = vadd.f32 %v958, 1.0
  %v962 = vadd.f32 %v960, 1.0
  %v963 = vrcp.pop %v961
  %v964 = vmul.f32 1.0, %v963
  %v965 = vrcp.pop %v962
  %v966 = vmul.f32 1.0, %v965
  %v967 = vmul.f32 %v950, %v931
  %v968 = vmul.f32 %v952, %v936
  %v969 = vadd.f32 %v714, %v967
  %v970 = vadd.f32 %v719, %v968
  %v971 = vtanh.pop %v969
  %v972 = vtanh.pop %v970
  %v973 = vsub.f32 1.0, %v964
  %v974 = vsub.f32 1.0, %v966
  %v975 = vmul.f32 %v973, %v971
  %v976 = vmul.f32 %v974, %v972
  %v977 = vmul.f32 %v964, %v59
  %v978 = vmul.f32 %v966, %v60
  %v979 = vadd.f32 %v975, %v977
  %v980 = vadd.f32 %v976, %v978
  %981 = vst [vmem:[%s14] sm:$0xff] %v979
  %982 = vst [vmem:[%s14 + $0x8] sm:$0xff] %v980
  // Predicated region
  $region58: #{pointgat_forward.9} parent=0 // pred_check
    _
  $region59: #{pointgat_forward.9} parent=0 // pred_check_branch
    %984 = sbr.rel (0) target = $region61
  $region60: #{pointgat_forward.9} parent=0 // pred_region
    _
  $region61: #{pointgat_forward.9} parent=0 // pred_fallthru
    _
  // Predicated region
  $region62: #{pointgat_forward.9} parent=0 // pred_check
    _
  $region63: #{pointgat_forward.9} parent=0 // pred_check_branch
    %986 = sbr.rel (0) target = $region65
  $region64: #{pointgat_forward.9} parent=0 // pred_region
    _
  $region65: #{pointgat_forward.9} parent=0 // pred_fallthru
    _

// kernel: pointgat_forward.10
$region0: #{pointgat_forward.10}
  #allocation0 [shape = 'u32[]', space=smem, size = 0x4, offset = 0x4, fixed_abs, tag = 'smem constant byte address 0x4 - core index']
  #allocation1 [shape = 'u32[144,128]{1,0:T(1,128)}', space=vmem, size = 0x12000, scoped, tag = 'internal scratch']
  #allocation2 [shape = 'f32[1,1]{1,0:T(1,128)S(1)}', space=vmem, size = 0x200, scoped, tag = 'scoped memory for pointgat_forward.10']
  %s0 = inlined_call_operand.vmem [shape: f32[16,128], index: 0, kind: input, shape index: {}, may-alias: {0,1}]
  %s1 = inlined_call_operand.vmem [shape: f32[16,128], index: 1, kind: input, shape index: {}, may-alias: {0,1}]
  %s2 = inlined_call_operand.vmem [shape: f32[16,512], index: 2, kind: input, shape index: {}]
  %s3 = inlined_call_operand.vmem [shape: f32[16,4], index: 3, kind: input, shape index: {}]
  %s4 = inlined_call_operand.vmem [shape: f32[16,4], index: 4, kind: input, shape index: {}]
  %s5 = inlined_call_operand.vmem [shape: f32[1,128], index: 5, kind: input, shape index: {}]
  %s6 = inlined_call_operand.vmem [shape: f32[512,4], index: 6, kind: input, shape index: {}]
  %s7 = inlined_call_operand.<no memory space> [shape: f32[1,1], index: 7, kind: input, shape index: {}]
  %s8 = inlined_call_operand.vmem [shape: f32[128,128], index: 8, kind: input, shape index: {}]
  %s9 = inlined_call_operand.vmem [shape: f32[1,128], index: 9, kind: input, shape index: {}]
  %s10 = inlined_call_operand.vmem [shape: f32[128,384], index: 10, kind: input, shape index: {}]
  %s11 = inlined_call_operand.vmem [shape: f32[128,384], index: 11, kind: input, shape index: {}]
  %s12 = inlined_call_operand.vmem [shape: f32[1,384], index: 12, kind: input, shape index: {}]
  %s13 = inlined_call_operand.vmem [shape: f32[1,384], index: 13, kind: input, shape index: {}]
  %s14 = inlined_call_operand.vmem [shape: f32[16,128], index: 14, kind: output, shape index: {}]
  %s15 = sld [smem:[#allocation0]]
  $region66: #{pointgat_forward.10} parent=0
    _
  %s17 = ssub.s32 1, %s15
  %s18 = scalar_select 0, %s17, %s15
  %v19 = vstv %s7
  %20 = vst [vmem:[#allocation2] sm:$0x1] %v19
  // Predicated region
  $region2: #{pointgat_forward.10} parent=0 // pred_check
    _
  $region3: #{pointgat_forward.10} parent=0 // pred_check_branch
    %22 = sbr.rel (0) target = $region5
  $region4: #{pointgat_forward.10} parent=0 // pred_region
    _
  $region5: #{pointgat_forward.10} parent=0 // pred_fallthru
    _
  // Predicated region
  $region6: #{pointgat_forward.10} parent=0 // pred_check
    _
  $region7: #{pointgat_forward.10} parent=0 // pred_check_branch
    %24 = sbr.rel (0) target = $region9
  $region8: #{pointgat_forward.10} parent=0 // pred_region
    _
  $region9: #{pointgat_forward.10} parent=0 // pred_fallthru
    _
  // Predicated region
  $region10: #{pointgat_forward.10} parent=0 // pred_check
    _
  $region11: #{pointgat_forward.10} parent=0 // pred_check_branch
    %26 = sbr.rel (0) target = $region13
  $region12: #{pointgat_forward.10} parent=0 // pred_region
    _
  $region13: #{pointgat_forward.10} parent=0 // pred_fallthru
    _
  // Predicated region
  $region14: #{pointgat_forward.10} parent=0 // pred_check
    _
  $region15: #{pointgat_forward.10} parent=0 // pred_check_branch
    %28 = sbr.rel (0) target = $region17
  $region16: #{pointgat_forward.10} parent=0 // pred_region
    _
  $region17: #{pointgat_forward.10} parent=0 // pred_fallthru
    _
  // Predicated region
  $region18: #{pointgat_forward.10} parent=0 // pred_check
    _
  $region19: #{pointgat_forward.10} parent=0 // pred_check_branch
    %30 = sbr.rel (0) target = $region21
  $region20: #{pointgat_forward.10} parent=0 // pred_region
    _
  $region21: #{pointgat_forward.10} parent=0 // pred_fallthru
    _
  // Predicated region
  $region22: #{pointgat_forward.10} parent=0 // pred_check
    _
  $region23: #{pointgat_forward.10} parent=0 // pred_check_branch
    %32 = sbr.rel (0) target = $region25
  $region24: #{pointgat_forward.10} parent=0 // pred_region
    _
  $region25: #{pointgat_forward.10} parent=0 // pred_fallthru
    _
  // Predicated region
  $region26: #{pointgat_forward.10} parent=0 // pred_check
    _
  $region27: #{pointgat_forward.10} parent=0 // pred_check_branch
    %34 = sbr.rel (0) target = $region29
  $region28: #{pointgat_forward.10} parent=0 // pred_region
    _
  $region29: #{pointgat_forward.10} parent=0 // pred_fallthru
    _
  // Predicated region
  $region30: #{pointgat_forward.10} parent=0 // pred_check
    _
  $region31: #{pointgat_forward.10} parent=0 // pred_check_branch
    %36 = sbr.rel (0) target = $region33
  $region32: #{pointgat_forward.10} parent=0 // pred_region
    _
  $region33: #{pointgat_forward.10} parent=0 // pred_fallthru
    _
  // Predicated region
  $region34: #{pointgat_forward.10} parent=0 // pred_check
    _
  $region35: #{pointgat_forward.10} parent=0 // pred_check_branch
    %38 = sbr.rel (0) target = $region37
  $region36: #{pointgat_forward.10} parent=0 // pred_region
    _
  $region37: #{pointgat_forward.10} parent=0 // pred_fallthru
    _
  // Predicated region
  $region38: #{pointgat_forward.10} parent=0 // pred_check
    _
  $region39: #{pointgat_forward.10} parent=0 // pred_check_branch
    %40 = sbr.rel (0) target = $region41
  $region40: #{pointgat_forward.10} parent=0 // pred_region
    _
  $region41: #{pointgat_forward.10} parent=0 // pred_fallthru
    _
  // Predicated region
  $region42: #{pointgat_forward.10} parent=0 // pred_check
    _
  $region43: #{pointgat_forward.10} parent=0 // pred_check_branch
    %42 = sbr.rel (0) target = $region45
  $region44: #{pointgat_forward.10} parent=0 // pred_region
    _
  $region45: #{pointgat_forward.10} parent=0 // pred_fallthru
    _
  // Predicated region
  $region46: #{pointgat_forward.10} parent=0 // pred_check
    _
  $region47: #{pointgat_forward.10} parent=0 // pred_check_branch
    %44 = sbr.rel (0) target = $region49
  $region48: #{pointgat_forward.10} parent=0 // pred_region
    _
  $region49: #{pointgat_forward.10} parent=0 // pred_fallthru
    _
  // Predicated region
  $region50: #{pointgat_forward.10} parent=0 // pred_check
    _
  $region51: #{pointgat_forward.10} parent=0 // pred_check_branch
    %46 = sbr.rel (0) target = $region53
  $region52: #{pointgat_forward.10} parent=0 // pred_region
    _
  $region53: #{pointgat_forward.10} parent=0 // pred_fallthru
    _
  // Predicated region
  $region54: #{pointgat_forward.10} parent=0 // pred_check
    _
  $region55: #{pointgat_forward.10} parent=0 // pred_check_branch
    %48 = sbr.rel (0) target = $region57
  $region56: #{pointgat_forward.10} parent=0 // pred_region
    _
  $region57: #{pointgat_forward.10} parent=0 // pred_fallthru
    _
  %v49 = vld [vmem:[%s0] sm:$0xff]
  %v50 = vld [vmem:[%s0 + $0x8] sm:$0xff]
  %v51 = vld [vmem:[%s2] sm:$0xff]
  %v52 = vld [vmem:[%s2 + $0x8] sm:$0xff]
  %v53 = vld [vmem:[%s2 + $0x10] sm:$0xff]
  %v54 = vld [vmem:[%s2 + $0x18] sm:$0xff]
  %v55 = vld [vmem:[%s2 + $0x20] sm:$0xff]
  %v56 = vld [vmem:[%s2 + $0x28] sm:$0xff]
  %v57 = vld [vmem:[%s2 + $0x30] sm:$0xff]
  %v58 = vld [vmem:[%s2 + $0x38] sm:$0xff]
  %v59 = vmax.f32 %v49, 0.0
  %v60 = vmax.f32 %v50, 0.0
  %v61 = vmax.f32 %v51, 0.0
  %v62 = vmax.f32 %v52, 0.0
  %v63 = vmax.f32 %v53, 0.0
  %v64 = vmax.f32 %v54, 0.0
  %v65 = vmax.f32 %v55, 0.0
  %v66 = vmax.f32 %v56, 0.0
  %v67 = vmax.f32 %v57, 0.0
  %v68 = vmax.f32 %v58, 0.0
  %v69 = vld [vmem:[%s1] sm:$0xff]
  %v70 = vld [vmem:[%s1 + $0x8] sm:$0xff]
  %v71 = vld [vmem:[%s5] sm:$0x1]
  %v73 = vlaneseq
  %v74 = vshrl.u32 %v73, 7
  %v75 = vsub.s32 0, %v74
  %v76 = vrot.slane %v71, %v75
  %v78 = vmul.f32 %v59, %v76
  %v79 = vmul.f32 %v60, %v76
  %80 = vadd.xlane.f32.xlu0 %v78
  %v81 = vpop.xlane.xlu0 %80
  %82 = vadd.xlane.f32.xlu0 %v79
  %v83 = vpop.xlane.xlu0 %82
  %v84 = vld [vmem:[%s6] sm:$0xff]
  %v85 = vld [vmem:[%s6 + $0x8] sm:$0xff]
  %v86 = vld [vmem:[%s6 + $0x10] sm:$0xff]
  %v87 = vld [vmem:[%s6 + $0x18] sm:$0xff]
  %v88 = vld [vmem:[%s6 + $0x20] sm:$0xff]
  %v89 = vld [vmem:[%s6 + $0x28] sm:$0xff]
  %v90 = vld [vmem:[%s6 + $0x30] sm:$0xff]
  %v91 = vld [vmem:[%s6 + $0x38] sm:$0xff]
  %v92 = vld [vmem:[%s6 + $0x40] sm:$0xff]
  %v93 = vld [vmem:[%s6 + $0x48] sm:$0xff]
  %v94 = vld [vmem:[%s6 + $0x50] sm:$0xff]
  %v95 = vld [vmem:[%s6 + $0x58] sm:$0xff]
  %v96 = vld [vmem:[%s6 + $0x60] sm:$0xff]
  %v97 = vld [vmem:[%s6 + $0x68] sm:$0xff]
  %v98 = vld [vmem:[%s6 + $0x70] sm:$0xff]
  %v99 = vld [vmem:[%s6 + $0x78] sm:$0xff]
  %v100 = vld [vmem:[%s6 + $0x80] sm:$0xff]
  %v101 = vld [vmem:[%s6 + $0x88] sm:$0xff]
  %v102 = vld [vmem:[%s6 + $0x90] sm:$0xff]
  %v103 = vld [vmem:[%s6 + $0x98] sm:$0xff]
  %v104 = vld [vmem:[%s6 + $0xa0] sm:$0xff]
  %v105 = vld [vmem:[%s6 + $0xa8] sm:$0xff]
  %v106 = vld [vmem:[%s6 + $0xb0] sm:$0xff]
  %v107 = vld [vmem:[%s6 + $0xb8] sm:$0xff]
  %v108 = vld [vmem:[%s6 + $0xc0] sm:$0xff]
  %v109 = vld [vmem:[%s6 + $0xc8] sm:$0xff]
  %v110 = vld [vmem:[%s6 + $0xd0] sm:$0xff]
  %v111 = vld [vmem:[%s6 + $0xd8] sm:$0xff]
  %v112 = vld [vmem:[%s6 + $0xe0] sm:$0xff]
  %v113 = vld [vmem:[%s6 + $0xe8] sm:$0xff]
  %v114 = vld [vmem:[%s6 + $0xf0] sm:$0xff]
  %v115 = vld [vmem:[%s6 + $0xf8] sm:$0xff]
  %v116 = vld [vmem:[%s6 + $0x100] sm:$0xff]
  %v117 = vld [vmem:[%s6 + $0x108] sm:$0xff]
  %v118 = vld [vmem:[%s6 + $0x110] sm:$0xff]
  %v119 = vld [vmem:[%s6 + $0x118] sm:$0xff]
  %v120 = vld [vmem:[%s6 + $0x120] sm:$0xff]
  %v121 = vld [vmem:[%s6 + $0x128] sm:$0xff]
  %v122 = vld [vmem:[%s6 + $0x130] sm:$0xff]
  %v123 = vld [vmem:[%s6 + $0x138] sm:$0xff]
  %v124 = vld [vmem:[%s6 + $0x140] sm:$0xff]
  %v125 = vld [vmem:[%s6 + $0x148] sm:$0xff]
  %v126 = vld [vmem:[%s6 + $0x150] sm:$0xff]
  %v127 = vld [vmem:[%s6 + $0x158] sm:$0xff]
  %v128 = vld [vmem:[%s6 + $0x160] sm:$0xff]
  %v129 = vld [vmem:[%s6 + $0x168] sm:$0xff]
  %v130 = vld [vmem:[%s6 + $0x170] sm:$0xff]
  %v131 = vld [vmem:[%s6 + $0x178] sm:$0xff]
  %v132 = vld [vmem:[%s6 + $0x180] sm:$0xff]
  %v133 = vld [vmem:[%s6 + $0x188] sm:$0xff]
  %v134 = vld [vmem:[%s6 + $0x190] sm:$0xff]
  %v135 = vld [vmem:[%s6 + $0x198] sm:$0xff]
  %v136 = vld [vmem:[%s6 + $0x1a0] sm:$0xff]
  %v137 = vld [vmem:[%s6 + $0x1a8] sm:$0xff]
  %v138 = vld [vmem:[%s6 + $0x1b0] sm:$0xff]
  %v139 = vld [vmem:[%s6 + $0x1b8] sm:$0xff]
  %v140 = vld [vmem:[%s6 + $0x1c0] sm:$0xff]
  %v141 = vld [vmem:[%s6 + $0x1c8] sm:$0xff]
  %v142 = vld [vmem:[%s6 + $0x1d0] sm:$0xff]
  %v143 = vld [vmem:[%s6 + $0x1d8] sm:$0xff]
  %v144 = vld [vmem:[%s6 + $0x1e0] sm:$0xff]
  %v145 = vld [vmem:[%s6 + $0x1e8] sm:$0xff]
  %v146 = vld [vmem:[%s6 + $0x1f0] sm:$0xff]
  %v147 = vld [vmem:[%s6 + $0x1f8] sm:$0xff]
  %148 = vmatprep.subr.mxu0 0.0
  %149 = vmatpush1.msra.mxu0 %v84
  %150 = vmatprep.subr.mxu0 0.0
  %151 = vmatpush1.msra.mxu0 %v85
  %152 = vmatprep.subr.mxu0 0.0
  %153 = vmatpush1.msra.mxu0 %v86
  %154 = vmatprep.subr.mxu0 0.0
  %155 = vmatpush1.msra.mxu0 %v87
  %156 = vmatprep.subr.mxu0 0.0
  %157 = vmatpush1.msra.mxu0 %v88
  %158 = vmatprep.subr.mxu0 0.0
  %159 = vmatpush1.msra.mxu0 %v89
  %160 = vmatprep.subr.mxu0 0.0
  %161 = vmatpush1.msra.mxu0 %v90
  %162 = vmatprep.subr.mxu0 0.0
  %163 = vmatpush1.msra.mxu0 %v91
  %164 = vmatprep.subr.mxu0 0.0
  %165 = vmatpush1.msra.mxu0 %v92
  %166 = vmatprep.subr.mxu0 0.0
  %167 = vmatpush1.msra.mxu0 %v93
  %168 = vmatprep.subr.mxu0 0.0
  %169 = vmatpush1.msra.mxu0 %v94
  %170 = vmatprep.subr.mxu0 0.0
  %171 = vmatpush1.msra.mxu0 %v95
  %172 = vmatprep.subr.mxu0 0.0
  %173 = vmatpush1.msra.mxu0 %v96
  %174 = vmatprep.subr.mxu0 0.0
  %175 = vmatpush1.msra.mxu0 %v97
  %176 = vmatprep.subr.mxu0 0.0
  %177 = vmatpush1.msra.mxu0 %v98
  %178 = vmatprep.subr.mxu0 0.0
  %179 = vmatpush1.msra.mxu0 %v99
  %180 = vmatprep.subr.mxu0 0.0
  %181 = vmatpush1.msra.mxu0 %v100
  %182 = vmatprep.subr.mxu0 0.0
  %183 = vmatpush1.msra.mxu0 %v101
  %184 = vmatprep.subr.mxu0 0.0
  %185 = vmatpush1.msra.mxu0 %v102
  %186 = vmatprep.subr.mxu0 0.0
  %187 = vmatpush1.msra.mxu0 %v103
  %188 = vmatprep.subr.mxu0 0.0
  %189 = vmatpush1.msra.mxu0 %v104
  %190 = vmatprep.subr.mxu0 0.0
  %191 = vmatpush1.msra.mxu0 %v105
  %192 = vmatprep.subr.mxu0 0.0
  %193 = vmatpush1.msra.mxu0 %v106
  %194 = vmatprep.subr.mxu0 0.0
  %195 = vmatpush1.msra.mxu0 %v107
  %196 = vmatprep.subr.mxu0 0.0
  %197 = vmatpush1.msra.mxu0 %v108
  %198 = vmatprep.subr.mxu0 0.0
  %199 = vmatpush1.msra.mxu0 %v109
  %200 = vmatprep.subr.mxu0 0.0
  %201 = vmatpush1.msra.mxu0 %v110
  %202 = vmatprep.subr.mxu0 0.0
  %203 = vmatpush1.msra.mxu0 %v111
  %204 = vmatprep.subr.mxu0 0.0
  %205 = vmatpush1.msra.mxu0 %v112
  %206 = vmatprep.subr.mxu0 0.0
  %207 = vmatpush1.msra.mxu0 %v113
  %208 = vmatprep.subr.mxu0 0.0
  %209 = vmatpush1.msra.mxu0 %v114
  %210 = vmatprep.subr.mxu0 0.0
  %211 = vmatpush1.msra.mxu0 %v115
  %212 = vmatprep.mubr.f32.mxu0 %v62
  %213 = vmatmul.mubr.f32.gmra.mrb[0].mxu0 %v61
  %v214 = vpop.f32.mrb[0].mxu0
  %v215 = vadd.f32 0.0, %v214
  %v216 = vpop.f32.mrb[0].mxu0
  %217 = vmatprep.mubr.f32.mxu0 %v66
  %218 = vmatmul.mubr.f32.gmra.mrb[0].mxu0 %v65
  %v219 = vpop.f32.mrb[0].mxu0
  %v220 = vadd.f32 0.0, %v219
  %v221 = vpop.f32.mrb[0].mxu0
  %222 = vdwg.mxu0
  %223 = vmatprep.subr.mxu0 0.0
  %224 = vmatpush1.msra.mxu0 %v116
  %225 = vmatprep.subr.mxu0 0.0
  %226 = vmatpush1.msra.mxu0 %v117
  %227 = vmatprep.subr.mxu0 0.0
  %228 = vmatpush1.msra.mxu0 %v118
  %229 = vmatprep.subr.mxu0 0.0
  %230 = vmatpush1.msra.mxu0 %v119
  %231 = vmatprep.subr.mxu0 0.0
  %232 = vmatpush1.msra.mxu0 %v120
  %233 = vmatprep.subr.mxu0 0.0
  %234 = vmatpush1.msra.mxu0 %v121
  %235 = vmatprep.subr.mxu0 0.0
  %236 = vmatpush1.msra.mxu0 %v122
  %237 = vmatprep.subr.mxu0 0.0
  %238 = vmatpush1.msra.mxu0 %v123
  %239 = vmatprep.subr.mxu0 0.0
  %240 = vmatpush1.msra.mxu0 %v124
  %241 = vmatprep.subr.mxu0 0.0
  %242 = vmatpush1.msra.mxu0 %v125
  %243 = vmatprep.subr.mxu0 0.0
  %244 = vmatpush1.msra.mxu0 %v126
  %245 = vmatprep.subr.mxu0 0.0
  %246 = vmatpush1.msra.mxu0 %v127
  %247 = vmatprep.subr.mxu0 0.0
  %248 = vmatpush1.msra.mxu0 %v128
  %249 = vmatprep.subr.mxu0 0.0
  %250 = vmatpush1.msra.mxu0 %v129
  %251 = vmatprep.subr.mxu0 0.0
  %252 = vmatpush1.msra.mxu0 %v130
  %253 = vmatprep.subr.mxu0 0.0
  %254 = vmatpush1.msra.mxu0 %v131
  %255 = vmatprep.subr.mxu0 0.0
  %256 = vmatpush1.msra.mxu0 %v132
  %257 = vmatprep.subr.mxu0 0.0
  %258 = vmatpush1.msra.mxu0 %v133
  %259 = vmatprep.subr.mxu0 0.0
  %260 = vmatpush1.msra.mxu0 %v134
  %261 = vmatprep.subr.mxu0 0.0
  %262 = vmatpush1.msra.mxu0 %v135
  %263 = vmatprep.subr.mxu0 0.0
  %264 = vmatpush1.msra.mxu0 %v136
  %265 = vmatprep.subr.mxu0 0.0
  %266 = vmatpush1.msra.mxu0 %v137
  %267 = vmatprep.subr.mxu0 0.0
  %268 = vmatpush1.msra.mxu0 %v138
  %269 = vmatprep.subr.mxu0 0.0
  %270 = vmatpush1.msra.mxu0 %v139
  %271 = vmatprep.subr.mxu0 0.0
  %272 = vmatpush1.msra.mxu0 %v140
  %273 = vmatprep.subr.mxu0 0.0
  %274 = vmatpush1.msra.mxu0 %v141
  %275 = vmatprep.subr.mxu0 0.0
  %276 = vmatpush1.msra.mxu0 %v142
  %277 = vmatprep.subr.mxu0 0.0
  %278 = vmatpush1.msra.mxu0 %v143
  %279 = vmatprep.subr.mxu0 0.0
  %280 = vmatpush1.msra.mxu0 %v144
  %281 = vmatprep.subr.mxu0 0.0
  %282 = vmatpush1.msra.mxu0 %v145
  %283 = vmatprep.subr.mxu0 0.0
  %284 = vmatpush1.msra.mxu0 %v146
  %285 = vmatprep.subr.mxu0 0.0
  %286 = vmatpush1.msra.mxu0 %v147
  %287 = vmatprep.mubr.f32.mxu0 %v64
  %288 = vmatmul.mubr.f32.gmra.mrb[0].mxu0 %v63
  %v289 = vpop.f32.mrb[0].mxu0
  %v290 = vadd.f32 %v215, %v289
  %v291 = vpop.f32.mrb[0].mxu0
  %292 = vmatprep.mubr.f32.mxu0 %v68
  %293 = vmatmul.mubr.f32.gmra.mrb[0].mxu0 %v67
  %v294 = vpop.f32.mrb[0].mxu0
  %v295 = vadd.f32 %v220, %v294
  %v296 = vpop.f32.mrb[0].mxu0
  %297 = vdwg.mxu0
  %v298 = vadd.f32 %v81, %v290
  %v299 = vadd.f32 %v83, %v295
  %v300 = vld [vmem:[#allocation2] sm:$0x1]
  %v302 = vlaneseq
  %v303 = vshrl.u32 %v302, 7
  %v304 = vsub.s32 0, %v303
  %v305 = vrot.slane %v300, %v304
  %306 = vset.pattern.permute.xlu0 0
  %307 = vperm.xlu0 %306, %v305
  %v308 = vpop.permute.xlu0 %307
  %v310 = vadd.f32 %v298, %v308
  %v311 = vadd.f32 %v299, %v308
  %vm312 = vcmp.ge.f32.partialorder %v310, 0.0
  %vm313 = vcmp.ge.f32.partialorder %v311, 0.0
  %v314 = vmul.f32 %v310, 0.01
  %v315 = vmul.f32 %v311, 0.01
  %v316 = vsel %vm312, %v310, %v314
  %v317 = vsel %vm313, %v311, %v315
  %v318 = vld [vmem:[%s3] sm:$0xff]
  %v319 = vld [vmem:[%s3 + $0x8] sm:$0xff]
  %v320 = vadd.f32 %v316, %v318
  %v321 = vadd.f32 %v317, %v319
  %vm322 = vcmask 31744
  %v323 = vsel %vm322, %v320, -inf
  %324 = vmax.xlane.f32.xlu0 %v323
  %v325 = vpop.xlane.xlu0 %324
  %v326 = vsel %vm322, %v321, -inf
  %327 = vmax.xlane.f32.xlu0 %v326
  %v328 = vpop.xlane.xlu0 %327
  %v329 = vsub.f32 %v320, %v325
  %v330 = vsub.f32 %v321, %v328
  %v331 = vmul.f32 %v329, 1.442695
  %v332 = vpow.pop %v331
  %v333 = vmul.f32 %v330, 1.442695
  %v334 = vpow.pop %v333
  %v335 = vsel %vm322, %v332, 0.0
  %336 = vadd.xlane.f32.xlu0 %v335
  %v337 = vpop.xlane.xlu0 %336
  %v338 = vsel %vm322, %v334, 0.0
  %339 = vadd.xlane.f32.xlu0 %v338
  %v340 = vpop.xlane.xlu0 %339
  %v341 = vrcp.pop %v337
  %v342 = vmul.f32 %v332, %v341
  %v343 = vrcp.pop %v340
  %v344 = vmul.f32 %v334, %v343
  %v345 = vld [vmem:[%s4] sm:$0xff]
  %v346 = vld [vmem:[%s4 + $0x8] sm:$0xff]
  %v347 = vmul.f32 %v342, %v345
  %v348 = vmul.f32 %v344, %v346
  %350 = vset.pattern.permute.xlu0 0
  %351 = vperm.xlu0 %350, %v347
  %v352 = vpop.permute.xlu0 %351
  %355 = vset.pattern.permute.xlu0 0
  %356 = vperm.xlu0 %355, %v348
  %v357 = vpop.permute.xlu0 %356
  %v359 = vmul.f32 %v352, %v61
  %v360 = vmul.f32 %v357, %v65
  %361 = vset.pattern.permute.xlu0 1
  %362 = vperm.xlu0 %361, %v347
  %v363 = vpop.permute.xlu0 %362
  %365 = vset.pattern.permute.xlu0 1
  %366 = vperm.xlu0 %365, %v348
  %v367 = vpop.permute.xlu0 %366
  %v369 = vmul.f32 %v363, %v62
  %v370 = vmul.f32 %v367, %v66
  %v371 = vadd.f32 %v359, %v369
  %v372 = vadd.f32 %v360, %v370
  %373 = vset.pattern.permute.xlu0 2
  %374 = vperm.xlu0 %373, %v347
  %v375 = vpop.permute.xlu0 %374
  %377 = vset.pattern.permute.xlu0 2
  %378 = vperm.xlu0 %377, %v348
  %v379 = vpop.permute.xlu0 %378
  %v381 = vmul.f32 %v375, %v63
  %v382 = vmul.f32 %v379, %v67
  %v383 = vadd.f32 %v371, %v381
  %v384 = vadd.f32 %v372, %v382
  %385 = vset.pattern.permute.xlu0 3
  %386 = vperm.xlu0 %385, %v347
  %v387 = vpop.permute.xlu0 %386
  %389 = vset.pattern.permute.xlu0 3
  %390 = vperm.xlu0 %389, %v348
  %v391 = vpop.permute.xlu0 %390
  %v393 = vmul.f32 %v387, %v64
  %v394 = vmul.f32 %v391, %v68
  %v395 = vadd.f32 %v383, %v393
  %v396 = vadd.f32 %v384, %v394
  %v397 = vsel %vm322, %v347, 0.0
  %398 = vadd.xlane.f32.xlu0 %v397
  %v399 = vpop.xlane.xlu0 %398
  %v400 = vsel %vm322, %v348, 0.0
  %401 = vadd.xlane.f32.xlu0 %v400
  %v402 = vpop.xlane.xlu0 %401
  %v403 = vld [vmem:[%s8] sm:$0xff]
  %v404 = vld [vmem:[%s8 + $0x8] sm:$0xff]
  %v405 = vld [vmem:[%s8 + $0x10] sm:$0xff]
  %v406 = vld [vmem:[%s8 + $0x18] sm:$0xff]
  %v407 = vld [vmem:[%s8 + $0x20] sm:$0xff]
  %v408 = vld [vmem:[%s8 + $0x28] sm:$0xff]
  %v409 = vld [vmem:[%s8 + $0x30] sm:$0xff]
  %v410 = vld [vmem:[%s8 + $0x38] sm:$0xff]
  %v411 = vld [vmem:[%s8 + $0x40] sm:$0xff]
  %v412 = vld [vmem:[%s8 + $0x48] sm:$0xff]
  %v413 = vld [vmem:[%s8 + $0x50] sm:$0xff]
  %v414 = vld [vmem:[%s8 + $0x58] sm:$0xff]
  %v415 = vld [vmem:[%s8 + $0x60] sm:$0xff]
  %v416 = vld [vmem:[%s8 + $0x68] sm:$0xff]
  %v417 = vld [vmem:[%s8 + $0x70] sm:$0xff]
  %v418 = vld [vmem:[%s8 + $0x78] sm:$0xff]
  %v419 = vld [vmem:[%s9] sm:$0x1]
  %v421 = vlaneseq
  %v422 = vshrl.u32 %v421, 7
  %v423 = vsub.s32 0, %v422
  %v424 = vrot.slane %v419, %v423
  %v426 = vmul.f32 %v399, %v424
  %v427 = vmul.f32 %v402, %v424
  %428 = vmatprep.subr.mxu0 0.0
  %429 = vmatpush1.msra.mxu0 %v403
  %430 = vmatprep.subr.mxu0 0.0
  %431 = vmatpush1.msra.mxu0 %v404
  %432 = vmatprep.subr.mxu0 0.0
  %433 = vmatpush1.msra.mxu0 %v405
  %434 = vmatprep.subr.mxu0 0.0
  %435 = vmatpush1.msra.mxu0 %v406
  %436 = vmatprep.subr.mxu0 0.0
  %437 = vmatpush1.msra.mxu0 %v407
  %438 = vmatprep.subr.mxu0 0.0
  %439 = vmatpush1.msra.mxu0 %v408
  %440 = vmatprep.subr.mxu0 0.0
  %441 = vmatpush1.msra.mxu0 %v409
  %442 = vmatprep.subr.mxu0 0.0
  %443 = vmatpush1.msra.mxu0 %v410
  %444 = vmatprep.subr.mxu0 0.0
  %445 = vmatpush1.msra.mxu0 %v411
  %446 = vmatprep.subr.mxu0 0.0
  %447 = vmatpush1.msra.mxu0 %v412
  %448 = vmatprep.subr.mxu0 0.0
  %449 = vmatpush1.msra.mxu0 %v413
  %450 = vmatprep.subr.mxu0 0.0
  %451 = vmatpush1.msra.mxu0 %v414
  %452 = vmatprep.subr.mxu0 0.0
  %453 = vmatpush1.msra.mxu0 %v415
  %454 = vmatprep.subr.mxu0 0.0
  %455 = vmatpush1.msra.mxu0 %v416
  %456 = vmatprep.subr.mxu0 0.0
  %457 = vmatpush1.msra.mxu0 %v417
  %458 = vmatprep.subr.mxu0 0.0
  %459 = vmatpush1.msra.mxu0 %v418
  %460 = vmatprep.subr.mxu0 0.0
  %461 = vmatpush1.msra.mxu0 0.0
  %462 = vmatprep.subr.mxu0 0.0
  %463 = vmatpush1.msra.mxu0 0.0
  %464 = vmatprep.subr.mxu0 0.0
  %465 = vmatpush1.msra.mxu0 0.0
  %466 = vmatprep.subr.mxu0 0.0
  %467 = vmatpush1.msra.mxu0 0.0
  %468 = vmatprep.subr.mxu0 0.0
  %469 = vmatpush1.msra.mxu0 0.0
  %470 = vmatprep.subr.mxu0 0.0
  %471 = vmatpush1.msra.mxu0 0.0
  %472 = vmatprep.subr.mxu0 0.0
  %473 = vmatpush1.msra.mxu0 0.0
  %474 = vmatprep.subr.mxu0 0.0
  %475 = vmatpush1.msra.mxu0 0.0
  %476 = vmatprep.subr.mxu0 0.0
  %477 = vmatpush1.msra.mxu0 0.0
  %478 = vmatprep.subr.mxu0 0.0
  %479 = vmatpush1.msra.mxu0 0.0
  %480 = vmatprep.subr.mxu0 0.0
  %481 = vmatpush1.msra.mxu0 0.0
  %482 = vmatprep.subr.mxu0 0.0
  %483 = vmatpush1.msra.mxu0 0.0
  %484 = vmatprep.subr.mxu0 0.0
  %485 = vmatpush1.msra.mxu0 0.0
  %486 = vmatprep.subr.mxu0 0.0
  %487 = vmatpush1.msra.mxu0 0.0
  %488 = vmatprep.subr.mxu0 0.0
  %489 = vmatpush1.msra.mxu0 0.0
  %490 = vmatprep.subr.mxu0 0.0
  %491 = vmatpush1.msra.mxu0 0.0
  %492 = vmatprep.mubr.f32.mxu0 0.0
  %493 = vmatmul.mubr.f32.gmra.mrb[0].mxu0 %v395
  %v494 = vpop.f32.mrb[0].mxu0
  %v495 = vadd.f32 %v426, %v494
  %v496 = vpop.f32.mrb[0].mxu0
  %497 = vmatprep.mubr.f32.mxu0 0.0
  %498 = vmatmul.mubr.f32.gmra.mrb[0].mxu0 %v396
  %v499 = vpop.f32.mrb[0].mxu0
  %v500 = vadd.f32 %v427, %v499
  %v501 = vpop.f32.mrb[0].mxu0
  %502 = vdwg.mxu0
  %vm503 = vcmp.gt.f32.partialorder %v495, 0.0
  %vm504 = vcmp.gt.f32.partialorder %v500, 0.0
  %v505 = vmin.f32 %v495, 0.0
  %v506 = vmin.f32 %v500, 0.0
  %v507 = vmul.f32 %v505, 1.442695
  %v508 = vpow.pop %v507
  %v509 = vmul.f32 %v506, 1.442695
  %v510 = vpow.pop %v509
  %v511 = vsub.f32 %v508, 1.0
  %v512 = vsub.f32 %v510, 1.0
  %v513 = vsel %vm503, %v495, %v511
  %v514 = vsel %vm504, %v500, %v512
  %v515 = vld [vmem:[%s10] sm:$0xff]
  %v516 = vld [vmem:[%s10 + $0x8] sm:$0xff]
  %v517 = vld [vmem:[%s10 + $0x10] sm:$0xff]
  %v518 = vld [vmem:[%s10 + $0x18] sm:$0xff]
  %v519 = vld [vmem:[%s10 + $0x20] sm:$0xff]
  %v520 = vld [vmem:[%s10 + $0x28] sm:$0xff]
  %v521 = vld [vmem:[%s10 + $0x30] sm:$0xff]
  %v522 = vld [vmem:[%s10 + $0x38] sm:$0xff]
  %v523 = vld [vmem:[%s10 + $0x40] sm:$0xff]
  %v524 = vld [vmem:[%s10 + $0x48] sm:$0xff]
  %v525 = vld [vmem:[%s10 + $0x50] sm:$0xff]
  %v526 = vld [vmem:[%s10 + $0x58] sm:$0xff]
  %v527 = vld [vmem:[%s10 + $0x60] sm:$0xff]
  %v528 = vld [vmem:[%s10 + $0x68] sm:$0xff]
  %v529 = vld [vmem:[%s10 + $0x70] sm:$0xff]
  %v530 = vld [vmem:[%s10 + $0x78] sm:$0xff]
  %v531 = vld [vmem:[%s10 + $0x80] sm:$0xff]
  %v532 = vld [vmem:[%s10 + $0x88] sm:$0xff]
  %v533 = vld [vmem:[%s10 + $0x90] sm:$0xff]
  %v534 = vld [vmem:[%s10 + $0x98] sm:$0xff]
  %v535 = vld [vmem:[%s10 + $0xa0] sm:$0xff]
  %v536 = vld [vmem:[%s10 + $0xa8] sm:$0xff]
  %v537 = vld [vmem:[%s10 + $0xb0] sm:$0xff]
  %v538 = vld [vmem:[%s10 + $0xb8] sm:$0xff]
  %v539 = vld [vmem:[%s10 + $0xc0] sm:$0xff]
  %v540 = vld [vmem:[%s10 + $0xc8] sm:$0xff]
  %v541 = vld [vmem:[%s10 + $0xd0] sm:$0xff]
  %v542 = vld [vmem:[%s10 + $0xd8] sm:$0xff]
  %v543 = vld [vmem:[%s10 + $0xe0] sm:$0xff]
  %v544 = vld [vmem:[%s10 + $0xe8] sm:$0xff]
  %v545 = vld [vmem:[%s10 + $0xf0] sm:$0xff]
  %v546 = vld [vmem:[%s10 + $0xf8] sm:$0xff]
  %v547 = vld [vmem:[%s10 + $0x100] sm:$0xff]
  %v548 = vld [vmem:[%s10 + $0x108] sm:$0xff]
  %v549 = vld [vmem:[%s10 + $0x110] sm:$0xff]
  %v550 = vld [vmem:[%s10 + $0x118] sm:$0xff]
  %v551 = vld [vmem:[%s10 + $0x120] sm:$0xff]
  %v552 = vld [vmem:[%s10 + $0x128] sm:$0xff]
  %v553 = vld [vmem:[%s10 + $0x130] sm:$0xff]
  %v554 = vld [vmem:[%s10 + $0x138] sm:$0xff]
  %v555 = vld [vmem:[%s10 + $0x140] sm:$0xff]
  %v556 = vld [vmem:[%s10 + $0x148] sm:$0xff]
  %v557 = vld [vmem:[%s10 + $0x150] sm:$0xff]
  %v558 = vld [vmem:[%s10 + $0x158] sm:$0xff]
  %v559 = vld [vmem:[%s10 + $0x160] sm:$0xff]
  %v560 = vld [vmem:[%s10 + $0x168] sm:$0xff]
  %v561 = vld [vmem:[%s10 + $0x170] sm:$0xff]
  %v562 = vld [vmem:[%s10 + $0x178] sm:$0xff]
  %v563 = vld [vmem:[%s12] sm:$0x7]
  %v565 = vlaneseq
  %v566 = vshrl.u32 %v565, 7
  %v567 = vsub.s32 0, %v566
  %v568 = vrot.slane %v563, %v567
  %v569 = vlaneseq
  %v570 = vshrl.u32 %v569, 7
  %v571 = vsub.s32 1, %v570
  %v572 = vrot.slane %v563, %v571
  %v573 = vlaneseq
  %v574 = vshrl.u32 %v573, 7
  %v575 = vsub.s32 2, %v574
  %v576 = vrot.slane %v563, %v575
  %580 = vmatprep.subr.mxu0 %v516
  %581 = vmatpush1.msra.mxu0 %v515
  %582 = vmatprep.subr.mxu0 %v519
  %583 = vmatpush1.msra.mxu0 %v518
  %584 = vmatprep.subr.mxu0 %v522
  %585 = vmatpush1.msra.mxu0 %v521
  %586 = vmatprep.subr.mxu0 %v525
  %587 = vmatpush1.msra.mxu0 %v524
  %588 = vmatprep.subr.mxu0 %v528
  %589 = vmatpush1.msra.mxu0 %v527
  %590 = vmatprep.subr.mxu0 %v531
  %591 = vmatpush1.msra.mxu0 %v530
  %592 = vmatprep.subr.mxu0 %v534
  %593 = vmatpush1.msra.mxu0 %v533
  %594 = vmatprep.subr.mxu0 %v537
  %595 = vmatpush1.msra.mxu0 %v536
  %596 = vmatprep.subr.mxu0 %v540
  %597 = vmatpush1.msra.mxu0 %v539
  %598 = vmatprep.subr.mxu0 %v543
  %599 = vmatpush1.msra.mxu0 %v542
  %600 = vmatprep.subr.mxu0 %v546
  %601 = vmatpush1.msra.mxu0 %v545
  %602 = vmatprep.subr.mxu0 %v549
  %603 = vmatpush1.msra.mxu0 %v548
  %604 = vmatprep.subr.mxu0 %v552
  %605 = vmatpush1.msra.mxu0 %v551
  %606 = vmatprep.subr.mxu0 %v555
  %607 = vmatpush1.msra.mxu0 %v554
  %608 = vmatprep.subr.mxu0 %v558
  %609 = vmatpush1.msra.mxu0 %v557
  %610 = vmatprep.subr.mxu0 %v561
  %611 = vmatpush1.msra.mxu0 %v560
  %612 = vmatprep.subr.mxu0 0.0
  %613 = vmatpush1.msra.mxu0 0.0
  %614 = vmatprep.subr.mxu0 0.0
  %615 = vmatpush1.msra.mxu0 0.0
  %616 = vmatprep.subr.mxu0 0.0
  %617 = vmatpush1.msra.mxu0 0.0
  %618 = vmatprep.subr.mxu0 0.0
  %619 = vmatpush1.msra.mxu0 0.0
  %620 = vmatprep.subr.mxu0 0.0
  %621 = vmatpush1.msra.mxu0 0.0
  %622 = vmatprep.subr.mxu0 0.0
  %623 = vmatpush1.msra.mxu0 0.0
  %624 = vmatprep.subr.mxu0 0.0
  %625 = vmatpush1.msra.mxu0 0.0
  %626 = vmatprep.subr.mxu0 0.0
  %627 = vmatpush1.msra.mxu0 0.0
  %628 = vmatprep.subr.mxu0 0.0
  %629 = vmatpush1.msra.mxu0 0.0
  %630 = vmatprep.subr.mxu0 0.0
  %631 = vmatpush1.msra.mxu0 0.0
  %632 = vmatprep.subr.mxu0 0.0
  %633 = vmatpush1.msra.mxu0 0.0
  %634 = vmatprep.subr.mxu0 0.0
  %635 = vmatpush1.msra.mxu0 0.0
  %636 = vmatprep.subr.mxu0 0.0
  %637 = vmatpush1.msra.mxu0 0.0
  %638 = vmatprep.subr.mxu0 0.0
  %639 = vmatpush1.msra.mxu0 0.0
  %640 = vmatprep.subr.mxu0 0.0
  %641 = vmatpush1.msra.mxu0 0.0
  %642 = vmatprep.subr.mxu0 0.0
  %643 = vmatpush1.msra.mxu0 0.0
  %644 = vmatprep.mubr.f32.mxu0 0.0
  %645 = vmatmul.mubr.f32.gmra.mrb[0].mxu0 %v513
  %v646 = vpop.f32.mrb[0].mxu0
  %v647 = vadd.f32 %v568, %v646
  %v648 = vpop.f32.mrb[0].mxu0
  %v649 = vadd.f32 %v572, %v648
  %650 = vmatprep.mubr.f32.mxu0 0.0
  %651 = vmatmul.mubr.f32.gmra.mrb[0].mxu0 %v514
  %v652 = vpop.f32.mrb[0].mxu0
  %v653 = vadd.f32 %v568, %v652
  %v654 = vpop.f32.mrb[0].mxu0
  %v655 = vadd.f32 %v572, %v654
  %656 = vdwg.mxu0
  %657 = vmatprep.subr.mxu0 0.0
  %658 = vmatpush1.msra.mxu0 %v517
  %659 = vmatprep.subr.mxu0 0.0
  %660 = vmatpush1.msra.mxu0 %v520
  %661 = vmatprep.subr.mxu0 0.0
  %662 = vmatpush1.msra.mxu0 %v523
  %663 = vmatprep.subr.mxu0 0.0
  %664 = vmatpush1.msra.mxu0 %v526
  %665 = vmatprep.subr.mxu0 0.0
  %666 = vmatpush1.msra.mxu0 %v529
  %667 = vmatprep.subr.mxu0 0.0
  %668 = vmatpush1.msra.mxu0 %v532
  %669 = vmatprep.subr.mxu0 0.0
  %670 = vmatpush1.msra.mxu0 %v535
  %671 = vmatprep.subr.mxu0 0.0
  %672 = vmatpush1.msra.mxu0 %v538
  %673 = vmatprep.subr.mxu0 0.0
  %674 = vmatpush1.msra.mxu0 %v541
  %675 = vmatprep.subr.mxu0 0.0
  %676 = vmatpush1.msra.mxu0 %v544
  %677 = vmatprep.subr.mxu0 0.0
  %678 = vmatpush1.msra.mxu0 %v547
  %679 = vmatprep.subr.mxu0 0.0
  %680 = vmatpush1.msra.mxu0 %v550
  %681 = vmatprep.subr.mxu0 0.0
  %682 = vmatpush1.msra.mxu0 %v553
  %683 = vmatprep.subr.mxu0 0.0
  %684 = vmatpush1.msra.mxu0 %v556
  %685 = vmatprep.subr.mxu0 0.0
  %686 = vmatpush1.msra.mxu0 %v559
  %687 = vmatprep.subr.mxu0 0.0
  %688 = vmatpush1.msra.mxu0 %v562
  %689 = vmatprep.subr.mxu0 0.0
  %690 = vmatpush1.msra.mxu0 0.0
  %691 = vmatprep.subr.mxu0 0.0
  %692 = vmatpush1.msra.mxu0 0.0
  %693 = vmatprep.subr.mxu0 0.0
  %694 = vmatpush1.msra.mxu0 0.0
  %695 = vmatprep.subr.mxu0 0.0
  %696 = vmatpush1.msra.mxu0 0.0
  %697 = vmatprep.subr.mxu0 0.0
  %698 = vmatpush1.msra.mxu0 0.0
  %699 = vmatprep.subr.mxu0 0.0
  %700 = vmatpush1.msra.mxu0 0.0
  %701 = vmatprep.subr.mxu0 0.0
  %702 = vmatpush1.msra.mxu0 0.0
  %703 = vmatprep.subr.mxu0 0.0
  %704 = vmatpush1.msra.mxu0 0.0
  %705 = vmatprep.subr.mxu0 0.0
  %706 = vmatpush1.msra.mxu0 0.0
  %707 = vmatprep.subr.mxu0 0.0
  %708 = vmatpush1.msra.mxu0 0.0
  %709 = vmatprep.subr.mxu0 0.0
  %710 = vmatpush1.msra.mxu0 0.0
  %711 = vmatprep.subr.mxu0 0.0
  %712 = vmatpush1.msra.mxu0 0.0
  %713 = vmatprep.subr.mxu0 0.0
  %714 = vmatpush1.msra.mxu0 0.0
  %715 = vmatprep.subr.mxu0 0.0
  %716 = vmatpush1.msra.mxu0 0.0
  %717 = vmatprep.subr.mxu0 0.0
  %718 = vmatpush1.msra.mxu0 0.0
  %719 = vmatprep.subr.mxu0 0.0
  %720 = vmatpush1.msra.mxu0 0.0
  %721 = vmatprep.mubr.f32.mxu0 0.0
  %722 = vmatmul.mubr.f32.gmra.mrb[0].mxu0 %v513
  %v723 = vpop.f32.mrb[0].mxu0
  %v724 = vadd.f32 %v576, %v723
  %v725 = vpop.f32.mrb[0].mxu0
  %726 = vmatprep.mubr.f32.mxu0 0.0
  %727 = vmatmul.mubr.f32.gmra.mrb[0].mxu0 %v514
  %v728 = vpop.f32.mrb[0].mxu0
  %v729 = vadd.f32 %v576, %v728
  %v730 = vpop.f32.mrb[0].mxu0
  %731 = vdwg.mxu0
  %v732 = vld [vmem:[%s11] sm:$0xff]
  %v733 = vld [vmem:[%s11 + $0x8] sm:$0xff]
  %v734 = vld [vmem:[%s11 + $0x10] sm:$0xff]
  %v735 = vld [vmem:[%s11 + $0x18] sm:$0xff]
  %v736 = vld [vmem:[%s11 + $0x20] sm:$0xff]
  %v737 = vld [vmem:[%s11 + $0x28] sm:$0xff]
  %v738 = vld [vmem:[%s11 + $0x30] sm:$0xff]
  %v739 = vld [vmem:[%s11 + $0x38] sm:$0xff]
  %v740 = vld [vmem:[%s11 + $0x40] sm:$0xff]
  %v741 = vld [vmem:[%s11 + $0x48] sm:$0xff]
  %v742 = vld [vmem:[%s11 + $0x50] sm:$0xff]
  %v743 = vld [vmem:[%s11 + $0x58] sm:$0xff]
  %v744 = vld [vmem:[%s11 + $0x60] sm:$0xff]
  %v745 = vld [vmem:[%s11 + $0x68] sm:$0xff]
  %v746 = vld [vmem:[%s11 + $0x70] sm:$0xff]
  %v747 = vld [vmem:[%s11 + $0x78] sm:$0xff]
  %v748 = vld [vmem:[%s11 + $0x80] sm:$0xff]
  %v749 = vld [vmem:[%s11 + $0x88] sm:$0xff]
  %v750 = vld [vmem:[%s11 + $0x90] sm:$0xff]
  %v751 = vld [vmem:[%s11 + $0x98] sm:$0xff]
  %v752 = vld [vmem:[%s11 + $0xa0] sm:$0xff]
  %v753 = vld [vmem:[%s11 + $0xa8] sm:$0xff]
  %v754 = vld [vmem:[%s11 + $0xb0] sm:$0xff]
  %v755 = vld [vmem:[%s11 + $0xb8] sm:$0xff]
  %v756 = vld [vmem:[%s11 + $0xc0] sm:$0xff]
  %v757 = vld [vmem:[%s11 + $0xc8] sm:$0xff]
  %v758 = vld [vmem:[%s11 + $0xd0] sm:$0xff]
  %v759 = vld [vmem:[%s11 + $0xd8] sm:$0xff]
  %v760 = vld [vmem:[%s11 + $0xe0] sm:$0xff]
  %v761 = vld [vmem:[%s11 + $0xe8] sm:$0xff]
  %v762 = vld [vmem:[%s11 + $0xf0] sm:$0xff]
  %v763 = vld [vmem:[%s11 + $0xf8] sm:$0xff]
  %v764 = vld [vmem:[%s11 + $0x100] sm:$0xff]
  %v765 = vld [vmem:[%s11 + $0x108] sm:$0xff]
  %v766 = vld [vmem:[%s11 + $0x110] sm:$0xff]
  %v767 = vld [vmem:[%s11 + $0x118] sm:$0xff]
  %v768 = vld [vmem:[%s11 + $0x120] sm:$0xff]
  %v769 = vld [vmem:[%s11 + $0x128] sm:$0xff]
  %v770 = vld [vmem:[%s11 + $0x130] sm:$0xff]
  %v771 = vld [vmem:[%s11 + $0x138] sm:$0xff]
  %v772 = vld [vmem:[%s11 + $0x140] sm:$0xff]
  %v773 = vld [vmem:[%s11 + $0x148] sm:$0xff]
  %v774 = vld [vmem:[%s11 + $0x150] sm:$0xff]
  %v775 = vld [vmem:[%s11 + $0x158] sm:$0xff]
  %v776 = vld [vmem:[%s11 + $0x160] sm:$0xff]
  %v777 = vld [vmem:[%s11 + $0x168] sm:$0xff]
  %v778 = vld [vmem:[%s11 + $0x170] sm:$0xff]
  %v779 = vld [vmem:[%s11 + $0x178] sm:$0xff]
  %v780 = vld [vmem:[%s13] sm:$0x7]
  %v782 = vlaneseq
  %v783 = vshrl.u32 %v782, 7
  %v784 = vsub.s32 0, %v783
  %v785 = vrot.slane %v780, %v784
  %v786 = vlaneseq
  %v787 = vshrl.u32 %v786, 7
  %v788 = vsub.s32 1, %v787
  %v789 = vrot.slane %v780, %v788
  %v790 = vlaneseq
  %v791 = vshrl.u32 %v790, 7
  %v792 = vsub.s32 2, %v791
  %v793 = vrot.slane %v780, %v792
  %797 = vmatprep.subr.mxu0 %v733
  %798 = vmatpush1.msra.mxu0 %v732
  %799 = vmatprep.subr.mxu0 %v736
  %800 = vmatpush1.msra.mxu0 %v735
  %801 = vmatprep.subr.mxu0 %v739
  %802 = vmatpush1.msra.mxu0 %v738
  %803 = vmatprep.subr.mxu0 %v742
  %804 = vmatpush1.msra.mxu0 %v741
  %805 = vmatprep.subr.mxu0 %v745
  %806 = vmatpush1.msra.mxu0 %v744
  %807 = vmatprep.subr.mxu0 %v748
  %808 = vmatpush1.msra.mxu0 %v747
  %809 = vmatprep.subr.mxu0 %v751
  %810 = vmatpush1.msra.mxu0 %v750
  %811 = vmatprep.subr.mxu0 %v754
  %812 = vmatpush1.msra.mxu0 %v753
  %813 = vmatprep.subr.mxu0 %v757
  %814 = vmatpush1.msra.mxu0 %v756
  %815 = vmatprep.subr.mxu0 %v760
  %816 = vmatpush1.msra.mxu0 %v759
  %817 = vmatprep.subr.mxu0 %v763
  %818 = vmatpush1.msra.mxu0 %v762
  %819 = vmatprep.subr.mxu0 %v766
  %820 = vmatpush1.msra.mxu0 %v765
  %821 = vmatprep.subr.mxu0 %v769
  %822 = vmatpush1.msra.mxu0 %v768
  %823 = vmatprep.subr.mxu0 %v772
  %824 = vmatpush1.msra.mxu0 %v771
  %825 = vmatprep.subr.mxu0 %v775
  %826 = vmatpush1.msra.mxu0 %v774
  %827 = vmatprep.subr.mxu0 %v778
  %828 = vmatpush1.msra.mxu0 %v777
  %829 = vmatprep.subr.mxu0 0.0
  %830 = vmatpush1.msra.mxu0 0.0
  %831 = vmatprep.subr.mxu0 0.0
  %832 = vmatpush1.msra.mxu0 0.0
  %833 = vmatprep.subr.mxu0 0.0
  %834 = vmatpush1.msra.mxu0 0.0
  %835 = vmatprep.subr.mxu0 0.0
  %836 = vmatpush1.msra.mxu0 0.0
  %837 = vmatprep.subr.mxu0 0.0
  %838 = vmatpush1.msra.mxu0 0.0
  %839 = vmatprep.subr.mxu0 0.0
  %840 = vmatpush1.msra.mxu0 0.0
  %841 = vmatprep.subr.mxu0 0.0
  %842 = vmatpush1.msra.mxu0 0.0
  %843 = vmatprep.subr.mxu0 0.0
  %844 = vmatpush1.msra.mxu0 0.0
  %845 = vmatprep.subr.mxu0 0.0
  %846 = vmatpush1.msra.mxu0 0.0
  %847 = vmatprep.subr.mxu0 0.0
  %848 = vmatpush1.msra.mxu0 0.0
  %849 = vmatprep.subr.mxu0 0.0
  %850 = vmatpush1.msra.mxu0 0.0
  %851 = vmatprep.subr.mxu0 0.0
  %852 = vmatpush1.msra.mxu0 0.0
  %853 = vmatprep.subr.mxu0 0.0
  %854 = vmatpush1.msra.mxu0 0.0
  %855 = vmatprep.subr.mxu0 0.0
  %856 = vmatpush1.msra.mxu0 0.0
  %857 = vmatprep.subr.mxu0 0.0
  %858 = vmatpush1.msra.mxu0 0.0
  %859 = vmatprep.subr.mxu0 0.0
  %860 = vmatpush1.msra.mxu0 0.0
  %861 = vmatprep.mubr.f32.mxu0 0.0
  %862 = vmatmul.mubr.f32.gmra.mrb[0].mxu0 %v69
  %v863 = vpop.f32.mrb[0].mxu0
  %v864 = vadd.f32 %v785, %v863
  %v865 = vpop.f32.mrb[0].mxu0
  %v866 = vadd.f32 %v789, %v865
  %867 = vmatprep.mubr.f32.mxu0 0.0
  %868 = vmatmul.mubr.f32.gmra.mrb[0].mxu0 %v70
  %v869 = vpop.f32.mrb[0].mxu0
  %v870 = vadd.f32 %v785, %v869
  %v871 = vpop.f32.mrb[0].mxu0
  %v872 = vadd.f32 %v789, %v871
  %873 = vdwg.mxu0
  %874 = vmatprep.subr.mxu0 0.0
  %875 = vmatpush1.msra.mxu0 %v734
  %876 = vmatprep.subr.mxu0 0.0
  %877 = vmatpush1.msra.mxu0 %v737
  %878 = vmatprep.subr.mxu0 0.0
  %879 = vmatpush1.msra.mxu0 %v740
  %880 = vmatprep.subr.mxu0 0.0
  %881 = vmatpush1.msra.mxu0 %v743
  %882 = vmatprep.subr.mxu0 0.0
  %883 = vmatpush1.msra.mxu0 %v746
  %884 = vmatprep.subr.mxu0 0.0
  %885 = vmatpush1.msra.mxu0 %v749
  %886 = vmatprep.subr.mxu0 0.0
  %887 = vmatpush1.msra.mxu0 %v752
  %888 = vmatprep.subr.mxu0 0.0
  %889 = vmatpush1.msra.mxu0 %v755
  %890 = vmatprep.subr.mxu0 0.0
  %891 = vmatpush1.msra.mxu0 %v758
  %892 = vmatprep.subr.mxu0 0.0
  %893 = vmatpush1.msra.mxu0 %v761
  %894 = vmatprep.subr.mxu0 0.0
  %895 = vmatpush1.msra.mxu0 %v764
  %896 = vmatprep.subr.mxu0 0.0
  %897 = vmatpush1.msra.mxu0 %v767
  %898 = vmatprep.subr.mxu0 0.0
  %899 = vmatpush1.msra.mxu0 %v770
  %900 = vmatprep.subr.mxu0 0.0
  %901 = vmatpush1.msra.mxu0 %v773
  %902 = vmatprep.subr.mxu0 0.0
  %903 = vmatpush1.msra.mxu0 %v776
  %904 = vmatprep.subr.mxu0 0.0
  %905 = vmatpush1.msra.mxu0 %v779
  %906 = vmatprep.subr.mxu0 0.0
  %907 = vmatpush1.msra.mxu0 0.0
  %908 = vmatprep.subr.mxu0 0.0
  %909 = vmatpush1.msra.mxu0 0.0
  %910 = vmatprep.subr.mxu0 0.0
  %911 = vmatpush1.msra.mxu0 0.0
  %912 = vmatprep.subr.mxu0 0.0
  %913 = vmatpush1.msra.mxu0 0.0
  %914 = vmatprep.subr.mxu0 0.0
  %915 = vmatpush1.msra.mxu0 0.0
  %916 = vmatprep.subr.mxu0 0.0
  %917 = vmatpush1.msra.mxu0 0.0
  %918 = vmatprep.subr.mxu0 0.0
  %919 = vmatpush1.msra.mxu0 0.0
  %920 = vmatprep.subr.mxu0 0.0
  %921 = vmatpush1.msra.mxu0 0.0
  %922 = vmatprep.subr.mxu0 0.0
  %923 = vmatpush1.msra.mxu0 0.0
  %924 = vmatprep.subr.mxu0 0.0
  %925 = vmatpush1.msra.mxu0 0.0
  %926 = vmatprep.subr.mxu0 0.0
  %927 = vmatpush1.msra.mxu0 0.0
  %928 = vmatprep.subr.mxu0 0.0
  %929 = vmatpush1.msra.mxu0 0.0
  %930 = vmatprep.subr.mxu0 0.0
  %931 = vmatpush1.msra.mxu0 0.0
  %932 = vmatprep.subr.mxu0 0.0
  %933 = vmatpush1.msra.mxu0 0.0
  %934 = vmatprep.subr.mxu0 0.0
  %935 = vmatpush1.msra.mxu0 0.0
  %936 = vmatprep.subr.mxu0 0.0
  %937 = vmatpush1.msra.mxu0 0.0
  %938 = vmatprep.mubr.f32.mxu0 0.0
  %939 = vmatmul.mubr.f32.gmra.mrb[0].mxu0 %v69
  %v940 = vpop.f32.mrb[0].mxu0
  %v941 = vadd.f32 %v793, %v940
  %v942 = vpop.f32.mrb[0].mxu0
  %943 = vmatprep.mubr.f32.mxu0 0.0
  %944 = vmatmul.mubr.f32.gmra.mrb[0].mxu0 %v70
  %v945 = vpop.f32.mrb[0].mxu0
  %v946 = vadd.f32 %v793, %v945
  %v947 = vpop.f32.mrb[0].mxu0
  %948 = vdwg.mxu0
  %v949 = vadd.f32 %v647, %v864
  %v950 = vadd.f32 %v653, %v870
  %v951 = vsub.f32 0.0, %v949
  %v952 = vsub.f32 0.0, %v950
  %v953 = vmul.f32 %v951, 1.442695
  %v954 = vpow.pop %v953
  %v955 = vmul.f32 %v952, 1.442695
  %v956 = vpow.pop %v955
  %v957 = vadd.f32 %v954, 1.0
  %v958 = vadd.f32 %v956, 1.0
  %v959 = vrcp.pop %v957
  %v960 = vmul.f32 1.0, %v959
  %v961 = vrcp.pop %v958
  %v962 = vmul.f32 1.0, %v961
  %v963 = vadd.f32 %v649, %v866
  %v964 = vadd.f32 %v655, %v872
  %v965 = vsub.f32 0.0, %v963
  %v966 = vsub.f32 0.0, %v964
  %v967 = vmul.f32 %v965, 1.442695
  %v968 = vpow.pop %v967
  %v969 = vmul.f32 %v966, 1.442695
  %v970 = vpow.pop %v969
  %v971 = vadd.f32 %v968, 1.0
  %v972 = vadd.f32 %v970, 1.0
  %v973 = vrcp.pop %v971
  %v974 = vmul.f32 1.0, %v973
  %v975 = vrcp.pop %v972
  %v976 = vmul.f32 1.0, %v975
  %v977 = vmul.f32 %v960, %v941
  %v978 = vmul.f32 %v962, %v946
  %v979 = vadd.f32 %v724, %v977
  %v980 = vadd.f32 %v729, %v978
  %v981 = vtanh.pop %v979
  %v982 = vtanh.pop %v980
  %v983 = vsub.f32 1.0, %v974
  %v984 = vsub.f32 1.0, %v976
  %v985 = vmul.f32 %v983, %v981
  %v986 = vmul.f32 %v984, %v982
  %v987 = vmul.f32 %v974, %v69
  %v988 = vmul.f32 %v976, %v70
  %v989 = vadd.f32 %v985, %v987
  %v990 = vadd.f32 %v986, %v988
  %991 = vst [vmem:[%s14] sm:$0xff] %v989
  %992 = vst [vmem:[%s14 + $0x8] sm:$0xff] %v990
  // Predicated region
  $region58: #{pointgat_forward.10} parent=0 // pred_check
    _
  $region59: #{pointgat_forward.10} parent=0 // pred_check_branch
    %994 = sbr.rel (0) target = $region61
  $region60: #{pointgat_forward.10} parent=0 // pred_region
    _
  $region61: #{pointgat_forward.10} parent=0 // pred_fallthru
    _
  // Predicated region
  $region62: #{pointgat_forward.10} parent=0 // pred_check
    _
  $region63: #{pointgat_forward.10} parent=0 // pred_check_branch
    %996 = sbr.rel (0) target = $region65
  $region64: #{pointgat_forward.10} parent=0 // pred_region
    _
  $region65: #{pointgat_forward.10} parent=0 // pred_fallthru
    _

// kernel: pointgat_forward.11
$region0: #{pointgat_forward.11}
  #allocation0 [shape = 'u32[]', space=smem, size = 0x4, offset = 0x4, fixed_abs, tag = 'smem constant byte address 0x4 - core index']
  #allocation1 [shape = 'u32[144,128]{1,0:T(1,128)}', space=vmem, size = 0x12000, scoped, tag = 'internal scratch']
  #allocation2 [shape = 'f32[1,1]{1,0:T(1,128)S(1)}', space=vmem, size = 0x200, scoped, tag = 'scoped memory for pointgat_forward.11']
  %s0 = inlined_call_operand.vmem [shape: f32[2,8,128], index: 0, kind: input, shape index: {}]
  %s1 = inlined_call_operand.vmem [shape: f32[2,8], index: 1, kind: input, shape index: {}]
  %s2 = inlined_call_operand.vmem [shape: f32[1,128], index: 2, kind: input, shape index: {}]
  %s3 = inlined_call_operand.vmem [shape: f32[1,128], index: 3, kind: input, shape index: {}]
  %s4 = inlined_call_operand.<no memory space> [shape: f32[1,1], index: 4, kind: input, shape index: {}]
  %s5 = inlined_call_operand.vmem [shape: f32[128,128], index: 5, kind: input, shape index: {}]
  %s6 = inlined_call_operand.vmem [shape: f32[1,128], index: 6, kind: input, shape index: {}]
  %s7 = inlined_call_operand.vmem [shape: f32[128,384], index: 7, kind: input, shape index: {}]
  %s8 = inlined_call_operand.vmem [shape: f32[128,384], index: 8, kind: input, shape index: {}]
  %s9 = inlined_call_operand.vmem [shape: f32[1,384], index: 9, kind: input, shape index: {}]
  %s10 = inlined_call_operand.vmem [shape: f32[1,384], index: 10, kind: input, shape index: {}]
  %s11 = inlined_call_operand.vmem [shape: f32[1,128], index: 11, kind: input, shape index: {}]
  %s12 = inlined_call_operand.vmem [shape: f32[1,128], index: 12, kind: input, shape index: {}]
  %s13 = inlined_call_operand.vmem [shape: f32[2,128], index: 13, kind: output, shape index: {}]
  %s14 = sld [smem:[#allocation0]]
  $region89: #{pointgat_forward.11} parent=0
    _
  %s16 = ssub.s32 1, %s14
  %s17 = scalar_select 0, %s16, %s14
  %v18 = vstv %s4
  %19 = vst [vmem:[#allocation2] sm:$0x1] %v18
  loop: start=0, step=1, limit=4
  $region2: #{pointgat_forward.11} parent=0 // loop_pre_header
    _
  $region3: #{pointgat_forward.11} parent=0 // loop_header
    %s21 = sphi 0, %s25
    %p22 = scmp.ge.s32.totalorder %s21, 4
    %s29 = sphi 0, %s29
    %s31 = sphi 0, %s29
    %s32 = sphi 0, %s31
    %s46 = sphi 0, %s32
    %s50 = sphi 0, %s50
    %s52 = sphi 0, %s50
    %s53 = sphi 0, %s52
    %s67 = sphi 0, %s53
    %s71 = sphi 0, %s71
    %s73 = sphi 0, %s71
    %s74 = sphi 0, %s73
    %s88 = sphi 0, %s74
    %s92 = sphi 0, %s92
    %s94 = sphi 0, %s92
    %s95 = sphi 0, %s94
    %s109 = sphi 0, %s95
    %s113 = sphi 0, %s113
    %s115 = sphi 0, %s113
    %s116 = sphi 0, %s115
    %s130 = sphi 0, %s116
    %s134 = sphi 0, %s134
    %s136 = sphi 0, %s134
    %s137 = sphi 0, %s136
    %s151 = sphi 0, %s137
    %s155 = sphi 0, %s155
    %s157 = sphi 0, %s155
    %s158 = sphi 0, %s157
    %s172 = sphi 0, %s158
    %s176 = sphi 0, %s176
    %s178 = sphi 0, %s176
    %s179 = sphi 0, %s178
    %s193 = sphi 0, %s179
    %s197 = sphi 0, %s197
    %s199 = sphi 0, %s197
    %s200 = sphi 0, %s199
    %s214 = sphi 0, %s200
    %s218 = sphi 0, %s218
    %s220 = sphi 0, %s218
    %s221 = sphi 0, %s220
    %s235 = sphi 0, %s221
    %s239 = sphi 0, %s239
    %s241 = sphi 0, %s239
    %s242 = sphi 0, %s241
    %s256 = sphi 0, %s242
    %s260 = sphi 0, %s260
    %s262 = sphi 0, %s260
    %s263 = sphi 0, %s262
    %s277 = sphi 0, %s263
    %s281 = sphi 0, %s281
    %s283 = sphi 0, %s281
    %s284 = sphi 0, %s283
    %s298 = sphi 0, %s284
    %s302 = sphi 0, %s302
    %s304 = sphi 0, %s302
    %s305 = sphi 0, %s304
    %s319 = sphi 0, %s305
  $region4: #{pointgat_forward.11} parent=0 // loop_header_branch
    %24 = sbr.rel (%p22) target = $region8
  $region5: #{pointgat_forward.11} parent=0 // loop_body
    %s26 = ssub.s32 %s21, 1
    %s27 = ssub.s32 %s21, 2
    %s28 = sadd.s32 %s21, 1
    %s30 = sadd.s32 %s29, 1
    %p33 = scmp.eq.s32.totalorder %s21, 1
    %p34 = scmp.ne.s32.totalorder %s29, %s31
    %p35 = scmp.eq.s32.totalorder %s21, 0
    %p36 = por %p34, %p35
    %p37 = scmp.ne.s32.totalorder %s29, %s31
    %p38 = scmp.eq.s32.totalorder %s26, 1
    %p39 = por %p37, %p38
    %p40 = scmp.ne.s32.totalorder %s31, %s32
    %p41 = scmp.eq.s32.totalorder %s26, 0
    %p42 = por %p40, %p41
    %p43 = scmp.ne.s32.totalorder %s31, %s32
    %p44 = scmp.eq.s32.totalorder %s27, 1
    %p45 = por %p43, %p44
    %p47 = scmp.ne.s32.totalorder %s32, %s46
    %p48 = scmp.eq.s32.totalorder %s27, 0
    %p49 = por %p47, %p48
    %s51 = sadd.s32 %s50, 1
    %p54 = scmp.eq.s32.totalorder %s21, 1
    %p55 = scmp.ne.s32.totalorder %s50, %s52
    %p56 = scmp.eq.s32.totalorder %s21, 0
    %p57 = por %p55, %p56
    %p58 = scmp.ne.s32.totalorder %s50, %s52
    %p59 = scmp.eq.s32.totalorder %s26, 1
    %p60 = por %p58, %p59
    %p61 = scmp.ne.s32.totalorder %s52, %s53
    %p62 = scmp.eq.s32.totalorder %s26, 0
    %p63 = por %p61, %p62
    %p64 = scmp.ne.s32.totalorder %s52, %s53
    %p65 = scmp.eq.s32.totalorder %s27, 1
    %p66 = por %p64, %p65
    %p68 = scmp.ne.s32.totalorder %s53, %s67
    %p69 = scmp.eq.s32.totalorder %s27, 0
    %p70 = por %p68, %p69
    %s72 = sadd.s32 %s71, 1
    %p75 = scmp.eq.s32.totalorder %s21, 1
    %p76 = scmp.ne.s32.totalorder %s71, %s73
    %p77 = scmp.eq.s32.totalorder %s21, 0
    %p78 = por %p76, %p77
    %p79 = scmp.ne.s32.totalorder %s71, %s73
    %p80 = scmp.eq.s32.totalorder %s26, 1
    %p81 = por %p79, %p80
    %p82 = scmp.ne.s32.totalorder %s73, %s74
    %p83 = scmp.eq.s32.totalorder %s26, 0
    %p84 = por %p82, %p83
    %p85 = scmp.ne.s32.totalorder %s73, %s74
    %p86 = scmp.eq.s32.totalorder %s27, 1
    %p87 = por %p85, %p86
    %p89 = scmp.ne.s32.totalorder %s74, %s88
    %p90 = scmp.eq.s32.totalorder %s27, 0
    %p91 = por %p89, %p90
    %s93 = sadd.s32 %s92, 1
    %p96 = scmp.eq.s32.totalorder %s21, 1
    %p97 = scmp.ne.s32.totalorder %s92, %s94
    %p98 = scmp.eq.s32.totalorder %s21, 0
    %p99 = por %p97, %p98
    %p100 = scmp.ne.s32.totalorder %s92, %s94
    %p101 = scmp.eq.s32.totalorder %s26, 1
    %p102 = por %p100, %p101
    %p103 = scmp.ne.s32.totalorder %s94, %s95
    %p104 = scmp.eq.s32.totalorder %s26, 0
    %p105 = por %p103, %p104
    %p106 = scmp.ne.s32.totalorder %s94, %s95
    %p107 = scmp.eq.s32.totalorder %s27, 1
    %p108 = por %p106, %p107
    %p110 = scmp.ne.s32.totalorder %s95, %s109
    %p111 = scmp.eq.s32.totalorder %s27, 0
    %p112 = por %p110, %p111
    %s114 = sadd.s32 %s113, 1
    %p117 = scmp.eq.s32.totalorder %s21, 1
    %p118 = scmp.ne.s32.totalorder %s113, %s115
    %p119 = scmp.eq.s32.totalorder %s21, 0
    %p120 = por %p118, %p119
    %p121 = scmp.ne.s32.totalorder %s113, %s115
    %p122 = scmp.eq.s32.totalorder %s26, 1
    %p123 = por %p121, %p122
    %p124 = scmp.ne.s32.totalorder %s115, %s116
    %p125 = scmp.eq.s32.totalorder %s26, 0
    %p126 = por %p124, %p125
    %p127 = scmp.ne.s32.totalorder %s115, %s116
    %p128 = scmp.eq.s32.totalorder %s27, 1
    %p129 = por %p127, %p128
    %p131 = scmp.ne.s32.totalorder %s116, %s130
    %p132 = scmp.eq.s32.totalorder %s27, 0
    %p133 = por %p131, %p132
    %s135 = sadd.s32 %s134, 1
    %p138 = scmp.eq.s32.totalorder %s21, 1
    %p139 = scmp.ne.s32.totalorder %s134, %s136
    %p140 = scmp.eq.s32.totalorder %s21, 0
    %p141 = por %p139, %p140
    %p142 = scmp.ne.s32.totalorder %s134, %s136
    %p143 = scmp.eq.s32.totalorder %s26, 1
    %p144 = por %p142, %p143
    %p145 = scmp.ne.s32.totalorder %s136, %s137
    %p146 = scmp.eq.s32.totalorder %s26, 0
    %p147 = por %p145, %p146
    %p148 = scmp.ne.s32.totalorder %s136, %s137
    %p149 = scmp.eq.s32.totalorder %s27, 1
    %p150 = por %p148, %p149
    %p152 = scmp.ne.s32.totalorder %s137, %s151
    %p153 = scmp.eq.s32.totalorder %s27, 0
    %p154 = por %p152, %p153
    %s156 = sadd.s32 %s155, 1
    %p159 = scmp.eq.s32.totalorder %s21, 1
    %p160 = scmp.ne.s32.totalorder %s155, %s157
    %p161 = scmp.eq.s32.totalorder %s21, 0
    %p162 = por %p160, %p161
    %p163 = scmp.ne.s32.totalorder %s155, %s157
    %p164 = scmp.eq.s32.totalorder %s26, 1
    %p165 = por %p163, %p164
    %p166 = scmp.ne.s32.totalorder %s157, %s158
    %p167 = scmp.eq.s32.totalorder %s26, 0
    %p168 = por %p166, %p167
    %p169 = scmp.ne.s32.totalorder %s157, %s158
    %p170 = scmp.eq.s32.totalorder %s27, 1
    %p171 = por %p169, %p170
    %p173 = scmp.ne.s32.totalorder %s158, %s172
    %p174 = scmp.eq.s32.totalorder %s27, 0
    %p175 = por %p173, %p174
    %s177 = sadd.s32 %s176, 1
    %p180 = scmp.eq.s32.totalorder %s21, 1
    %p181 = scmp.ne.s32.totalorder %s176, %s178
    %p182 = scmp.eq.s32.totalorder %s21, 0
    %p183 = por %p181, %p182
    %p184 = scmp.ne.s32.totalorder %s176, %s178
    %p185 = scmp.eq.s32.totalorder %s26, 1
    %p186 = por %p184, %p185
    %p187 = scmp.ne.s32.totalorder %s178, %s179
    %p188 = scmp.eq.s32.totalorder %s26, 0
    %p189 = por %p187, %p188
    %p190 = scmp.ne.s32.totalorder %s178, %s179
    %p191 = scmp.eq.s32.totalorder %s27, 1
    %p192 = por %p190, %p191
    %p194 = scmp.ne.s32.totalorder %s179, %s193
    %p195 = scmp.eq.s32.totalorder %s27, 0
    %p196 = por %p194, %p195
    %s198 = sadd.s32 %s197, 1
    %p201 = scmp.eq.s32.totalorder %s21, 1
    %p202 = scmp.ne.s32.totalorder %s197, %s199
    %p203 = scmp.eq.s32.totalorder %s21, 0
    %p204 = por %p202, %p203
    %p205 = scmp.ne.s32.totalorder %s197, %s199
    %p206 = scmp.eq.s32.totalorder %s26, 1
    %p207 = por %p205, %p206
    %p208 = scmp.ne.s32.totalorder %s199, %s200
    %p209 = scmp.eq.s32.totalorder %s26, 0
    %p210 = por %p208, %p209
    %p211 = scmp.ne.s32.totalorder %s199, %s200
    %p212 = scmp.eq.s32.totalorder %s27, 1
    %p213 = por %p211, %p212
    %p215 = scmp.ne.s32.totalorder %s200, %s214
    %p216 = scmp.eq.s32.totalorder %s27, 0
    %p217 = por %p215, %p216
    %s219 = sadd.s32 %s218, 1
    %p222 = scmp.eq.s32.totalorder %s21, 1
    %p223 = scmp.ne.s32.totalorder %s218, %s220
    %p224 = scmp.eq.s32.totalorder %s21, 0
    %p225 = por %p223, %p224
    %p226 = scmp.ne.s32.totalorder %s218, %s220
    %p227 = scmp.eq.s32.totalorder %s26, 1
    %p228 = por %p226, %p227
    %p229 = scmp.ne.s32.totalorder %s220, %s221
    %p230 = scmp.eq.s32.totalorder %s26, 0
    %p231 = por %p229, %p230
    %p232 = scmp.ne.s32.totalorder %s220, %s221
    %p233 = scmp.eq.s32.totalorder %s27, 1
    %p234 = por %p232, %p233
    %p236 = scmp.ne.s32.totalorder %s221, %s235
    %p237 = scmp.eq.s32.totalorder %s27, 0
    %p238 = por %p236, %p237
    %s240 = sadd.s32 %s239, 1
    %p243 = scmp.eq.s32.totalorder %s21, 1
    %p244 = scmp.ne.s32.totalorder %s239, %s241
    %p245 = scmp.eq.s32.totalorder %s21, 0
    %p246 = por %p244, %p245
    %p247 = scmp.ne.s32.totalorder %s239, %s241
    %p248 = scmp.eq.s32.totalorder %s26, 1
    %p249 = por %p247, %p248
    %p250 = scmp.ne.s32.totalorder %s241, %s242
    %p251 = scmp.eq.s32.totalorder %s26, 0
    %p252 = por %p250, %p251
    %p253 = scmp.ne.s32.totalorder %s241, %s242
    %p254 = scmp.eq.s32.totalorder %s27, 1
    %p255 = por %p253, %p254
    %p257 = scmp.ne.s32.totalorder %s242, %s256
    %p258 = scmp.eq.s32.totalorder %s27, 0
    %p259 = por %p257, %p258
    %s261 = sadd.s32 %s260, 1
    %p264 = scmp.eq.s32.totalorder %s21, 1
    %p265 = scmp.ne.s32.totalorder %s260, %s262
    %p266 = scmp.eq.s32.totalorder %s21, 0
    %p267 = por %p265, %p266
    %p268 = scmp.ne.s32.totalorder %s260, %s262
    %p269 = scmp.eq.s32.totalorder %s26, 1
    %p270 = por %p268, %p269
    %p271 = scmp.ne.s32.totalorder %s262, %s263
    %p272 = scmp.eq.s32.totalorder %s26, 0
    %p273 = por %p271, %p272
    %p274 = scmp.ne.s32.totalorder %s262, %s263
    %p275 = scmp.eq.s32.totalorder %s27, 1
    %p276 = por %p274, %p275
    %p278 = scmp.ne.s32.totalorder %s263, %s277
    %p279 = scmp.eq.s32.totalorder %s27, 0
    %p280 = por %p278, %p279
    %s282 = sadd.s32 %s281, 1
    %p285 = scmp.eq.s32.totalorder %s21, 1
    %p286 = scmp.ne.s32.totalorder %s281, %s283
    %p287 = scmp.eq.s32.totalorder %s21, 0
    %p288 = por %p286, %p287
    %p289 = scmp.ne.s32.totalorder %s281, %s283
    %p290 = scmp.eq.s32.totalorder %s26, 1
    %p291 = por %p289, %p290
    %p292 = scmp.ne.s32.totalorder %s283, %s284
    %p293 = scmp.eq.s32.totalorder %s26, 0
    %p294 = por %p292, %p293
    %p295 = scmp.ne.s32.totalorder %s283, %s284
    %p296 = scmp.eq.s32.totalorder %s27, 1
    %p297 = por %p295, %p296
    %p299 = scmp.ne.s32.totalorder %s284, %s298
    %p300 = scmp.eq.s32.totalorder %s27, 0
    %p301 = por %p299, %p300
    %s303 = sadd.s32 %s302, 1
    %p306 = scmp.eq.s32.totalorder %s21, 1
    %p307 = scmp.ne.s32.totalorder %s302, %s304
    %p308 = scmp.eq.s32.totalorder %s21, 0
    %p309 = por %p307, %p308
    %p310 = scmp.ne.s32.totalorder %s302, %s304
    %p311 = scmp.eq.s32.totalorder %s26, 1
    %p312 = por %p310, %p311
    %p313 = scmp.ne.s32.totalorder %s304, %s305
    %p314 = scmp.eq.s32.totalorder %s26, 0
    %p315 = por %p313, %p314
    %p316 = scmp.ne.s32.totalorder %s304, %s305
    %p317 = scmp.eq.s32.totalorder %s27, 1
    %p318 = por %p316, %p317
    %p320 = scmp.ne.s32.totalorder %s305, %s319
    %p321 = scmp.eq.s32.totalorder %s27, 0
    %p322 = por %p320, %p321
    %p323 = scmp.le.s32.totalorder 1, %s21
    %p324 = scmp.lt.s32.totalorder %s21, 3
    %p325 = pnand %p323, %p324
    %p326 = pneg %p325
    // Predicated region
    $region9: #{pointgat_forward.11} parent=5 // pred_check
      _
    $region10: #{pointgat_forward.11} parent=5 // pred_check_branch
      %328 = sbr.rel (%p325) target = $region12
    $region11: #{pointgat_forward.11} parent=5 // pred_region
      %s329 = ssub.s32 %s21, 1
      // Predicated region
      $region13: #{pointgat_forward.11} parent=11 // pred_check
        %p330 = pneg %p42
      $region14: #{pointgat_forward.11} parent=11 // pred_check_branch
        %332 = sbr.rel (%p330) target = $region16
      $region15: #{pointgat_forward.11} parent=11 // pred_region
        _
      $region16: #{pointgat_forward.11} parent=11 // pred_fallthru
        _
      // Predicated region
      $region17: #{pointgat_forward.11} parent=11 // pred_check
        %p333 = pneg %p63
      $region18: #{pointgat_forward.11} parent=11 // pred_check_branch
        %335 = sbr.rel (%p333) target = $region20
      $region19: #{pointgat_forward.11} parent=11 // pred_region
        _
      $region20: #{pointgat_forward.11} parent=11 // pred_fallthru
        _
      // Predicated region
      $region21: #{pointgat_forward.11} parent=11 // pred_check
        %p336 = pneg %p84
      $region22: #{pointgat_forward.11} parent=11 // pred_check_branch
        %338 = sbr.rel (%p336) target = $region24
      $region23: #{pointgat_forward.11} parent=11 // pred_region
        _
      $region24: #{pointgat_forward.11} parent=11 // pred_fallthru
        _
      // Predicated region
      $region25: #{pointgat_forward.11} parent=11 // pred_check
        %p339 = pneg %p105
      $region26: #{pointgat_forward.11} parent=11 // pred_check_branch
        %341 = sbr.rel (%p339) target = $region28
      $region27: #{pointgat_forward.11} parent=11 // pred_region
        _
      $region28: #{pointgat_forward.11} parent=11 // pred_fallthru
        _
      // Predicated region
      $region29: #{pointgat_forward.11} parent=11 // pred_check
        %p342 = pneg %p126
      $region30: #{pointgat_forward.11} parent=11 // pred_check_branch
        %344 = sbr.rel (%p342) target = $region32
      $region31: #{pointgat_forward.11} parent=11 // pred_region
        _
      $region32: #{pointgat_forward.11} parent=11 // pred_fallthru
        _
      // Predicated region
      $region33: #{pointgat_forward.11} parent=11 // pred_check
        %p345 = pneg %p147
      $region34: #{pointgat_forward.11} parent=11 // pred_check_branch
        %347 = sbr.rel (%p345) target = $region36
      $region35: #{pointgat_forward.11} parent=11 // pred_region
        _
      $region36: #{pointgat_forward.11} parent=11 // pred_fallthru
        _
      // Predicated region
      $region37: #{pointgat_forward.11} parent=11 // pred_check
        %p348 = pneg %p168
      $region38: #{pointgat_forward.11} parent=11 // pred_check_branch
        %350 = sbr.rel (%p348) target = $region40
      $region39: #{pointgat_forward.11} parent=11 // pred_region
        _
      $region40: #{pointgat_forward.11} parent=11 // pred_fallthru
        _
      // Predicated region
      $region41: #{pointgat_forward.11} parent=11 // pred_check
        %p351 = pneg %p189
      $region42: #{pointgat_forward.11} parent=11 // pred_check_branch
        %353 = sbr.rel (%p351) target = $region44
      $region43: #{pointgat_forward.11} parent=11 // pred_region
        _
      $region44: #{pointgat_forward.11} parent=11 // pred_fallthru
        _
      // Predicated region
      $region45: #{pointgat_forward.11} parent=11 // pred_check
        %p354 = pneg %p210
      $region46: #{pointgat_forward.11} parent=11 // pred_check_branch
        %356 = sbr.rel (%p354) target = $region48
      $region47: #{pointgat_forward.11} parent=11 // pred_region
        _
      $region48: #{pointgat_forward.11} parent=11 // pred_fallthru
        _
      // Predicated region
      $region49: #{pointgat_forward.11} parent=11 // pred_check
        %p357 = pneg %p231
      $region50: #{pointgat_forward.11} parent=11 // pred_check_branch
        %359 = sbr.rel (%p357) target = $region52
      $region51: #{pointgat_forward.11} parent=11 // pred_region
        _
      $region52: #{pointgat_forward.11} parent=11 // pred_fallthru
        _
      // Predicated region
      $region53: #{pointgat_forward.11} parent=11 // pred_check
        %p360 = pneg %p252
      $region54: #{pointgat_forward.11} parent=11 // pred_check_branch
        %362 = sbr.rel (%p360) target = $region56
      $region55: #{pointgat_forward.11} parent=11 // pred_region
        _
      $region56: #{pointgat_forward.11} parent=11 // pred_fallthru
        _
      // Predicated region
      $region57: #{pointgat_forward.11} parent=11 // pred_check
        %p363 = pneg %p273
      $region58: #{pointgat_forward.11} parent=11 // pred_check_branch
        %365 = sbr.rel (%p363) target = $region60
      $region59: #{pointgat_forward.11} parent=11 // pred_region
        _
      $region60: #{pointgat_forward.11} parent=11 // pred_fallthru
        _
      // Predicated region
      $region61: #{pointgat_forward.11} parent=11 // pred_check
        %p366 = pneg %p294
      $region62: #{pointgat_forward.11} parent=11 // pred_check_branch
        %368 = sbr.rel (%p366) target = $region64
      $region63: #{pointgat_forward.11} parent=11 // pred_region
        _
      $region64: #{pointgat_forward.11} parent=11 // pred_fallthru
        _
    $region12: #{pointgat_forward.11} parent=5 // pred_fallthru
      _
    %p369 = scmp.lt.s32.totalorder %s21, 2
    // Predicated region
    $region65: #{pointgat_forward.11} parent=5 // pred_check
      %p370 = pneg %p369
    $region66: #{pointgat_forward.11} parent=5 // pred_check_branch
      %372 = sbr.rel (%p370) target = $region68
    $region67: #{pointgat_forward.11} parent=5 // pred_region
      _
    $region68: #{pointgat_forward.11} parent=5 // pred_fallthru
      _
    %p373 = scmp.le.s32.totalorder 1, %s21
    %p374 = scmp.lt.s32.totalorder %s21, 3
    %p375 = pnand %p373, %p374
    %p376 = pneg %p375
    // Predicated region
    $region69: #{pointgat_forward.11} parent=5 // pred_check
      _
    $region70: #{pointgat_forward.11} parent=5 // pred_check_branch
      %378 = sbr.rel (%p375) target = $region72
    $region71: #{pointgat_forward.11} parent=5 // pred_region
      %s379 = ssub.s32 %s21, 1
      %p380 = pneg %p42
      %p381 = pneg %p39
      %p382 = pneg %p63
      %p383 = pneg %p60
      %p384 = pneg %p84
      %p385 = pneg %p81
      %p386 = pneg %p105
      %p387 = pneg %p102
      %p388 = pneg %p126
      %p389 = pneg %p123
      %p390 = pneg %p147
      %p391 = pneg %p144
      %p392 = pneg %p168
      %p393 = pneg %p165
      %p394 = pneg %p189
      %p395 = pneg %p186
      %p396 = pneg %p210
      %p397 = pneg %p207
      %p398 = pneg %p231
      %p399 = pneg %p228
      %p400 = pneg %p252
      %p401 = pneg %p249
      %p402 = pneg %p273
      %p403 = pneg %p270
      %p404 = pneg %p294
      %p405 = pneg %p291
      %p406 = pneg %p315
      %p407 = pneg %p312
      %v408 = vld [vmem:[%s0] sm:$0xff]
      %v409 = vld [vmem:[%s0 + $0x8] sm:$0xff]
      %v410 = vmax.f32 %v408, 0.0
      %v411 = vmax.f32 %v409, 0.0
      %v412 = vld [vmem:[%s1] sm:$0x3]
      %v413 = vlaneseq
      %v414 = vshrl.u32 %v413, 7
      %v415 = vsub.s32 0, %v414
      %v416 = vrot.slane %v412, %v415
      %418 = vbcast.lane.b32.xlu0 %v416, 256
      %v419 = vpop.permute.xlu0 %418
      %v420 = vlaneseq
      %v421 = vshrl.u32 %v420, 7
      %v422 = vsub.s32 1, %v421
      %v423 = vrot.slane %v412, %v422
      %425 = vbcast.lane.b32.xlu0 %v423, 256
      %v426 = vpop.permute.xlu0 %425
      %p427 = scmp.eq.s32.totalorder %s26, 0
      // Predicated region
      $region73: #{pointgat_forward.11} parent=71 // pred_check
        %p428 = pneg %p427
      $region74: #{pointgat_forward.11} parent=71 // pred_check_branch
        %430 = sbr.rel (%p428) target = $region76
      $region75: #{pointgat_forward.11} parent=71 // pred_region
        %v431 = vmul.f32 %v410, %v419
        %v432 = vmul.f32 %v411, %v426
        %v433 = vrot.slane %v431, 4
        %v434 = vadd.f32 %v431, %v433
        %v435 = vrot.slane %v434, 2
        %v436 = vadd.f32 %v434, %v435
        %v437 = vrot.slane %v436, 1
        %v438 = vadd.f32 %v436, %v437
        %v439 = vrot.slane %v432, 4
        %v440 = vadd.f32 %v432, %v439
        %v441 = vrot.slane %v440, 2
        %v442 = vadd.f32 %v440, %v441
        %v443 = vrot.slane %v442, 1
        %v444 = vadd.f32 %v442, %v443
        %vm447 = vcmask 1041409
        %v448 = vsel %vm447, %v444, %v438
        %450 = vst [vmem:[%s13] sm:$0x3] %v448
      $region76: #{pointgat_forward.11} parent=71 // pred_fallthru
        _
      %v451 = vld [vmem:[%s13] sm:$0x3]
      %v452 = vmax.f32 %v451, 0.0
      %v453 = vld [vmem:[%s2] sm:$0x1]
      %v455 = vlaneseq
      %v456 = vshrl.u32 %v455, 7
      %v457 = vsub.s32 0, %v456
      %v458 = vrot.slane %v453, %v457
      %v460 = vmul.f32 %v452, %v458
      %vm461 = vcmask 1041408
      %v462 = vsel %vm461, %v460, 0.0
      %463 = vadd.xlane.f32.xlu0 %v462
      %v464 = vpop.xlane.xlu0 %463
      %v465 = vld [vmem:[%s3] sm:$0x1]
      %v467 = vlaneseq
      %v468 = vshrl.u32 %v467, 7
      %v469 = vsub.s32 0, %v468
      %v470 = vrot.slane %v465, %v469
      %v472 = vmul.f32 %v410, %v470
      %v473 = vmul.f32 %v411, %v470
      %474 = vadd.xlane.f32.xlu0 %v472
      %v475 = vpop.xlane.xlu0 %474
      %476 = vadd.xlane.f32.xlu0 %v473
      %v477 = vpop.xlane.xlu0 %476
      %vm478 = vcmp.eq.f32.partialorder %v412, 0.0
      %v479 = vsel %vm478, -9e+08, 0.0
      %v481 = vlaneseq
      %v482 = vshrl.u32 %v481, 7
      %v483 = vsub.s32 0, %v482
      %v484 = vrot.slane %v464, %v483
      %v485 = vlaneseq
      %v486 = vshrl.u32 %v485, 7
      %v487 = vsub.s32 1, %v486
      %v488 = vrot.slane %v464, %v487
      %v491 = vadd.f32 %v475, %v484
      %v492 = vadd.f32 %v477, %v488
      %v493 = vld [vmem:[#allocation2] sm:$0x1]
      %v495 = vlaneseq
      %v496 = vshrl.u32 %v495, 7
      %v497 = vsub.s32 0, %v496
      %v498 = vrot.slane %v493, %v497
      %499 = vset.pattern.permute.xlu0 0
      %500 = vperm.xlu0 %499, %v498
      %v501 = vpop.permute.xlu0 %500
      %v503 = vadd.f32 %v491, %v501
      %v504 = vadd.f32 %v492, %v501
      %vm505 = vcmp.ge.f32.partialorder %v503, 0.0
      %vm506 = vcmp.ge.f32.partialorder %v504, 0.0
      %v507 = vmul.f32 %v503, 0.01
      %v508 = vmul.f32 %v504, 0.01
      %v509 = vsel %vm505, %v503, %v507
      %v510 = vsel %vm506, %v504, %v508
      %v512 = vlaneseq
      %v513 = vshrl.u32 %v512, 7
      %v514 = vsub.s32 0, %v513
      %v515 = vrot.slane %v479, %v514
      %517 = vbcast.lane.b32.xlu0 %v515, 256
      %v518 = vpop.permute.xlu0 %517
      %v519 = vlaneseq
      %v520 = vshrl.u32 %v519, 7
      %v521 = vsub.s32 1, %v520
      %v522 = vrot.slane %v479, %v521
      %524 = vbcast.lane.b32.xlu0 %v522, 256
      %v525 = vpop.permute.xlu0 %524
      %v528 = vadd.f32 %v509, %v518
      %v529 = vadd.f32 %v510, %v525
      %532 = vset.pattern.permute.xlu0 0
      %533 = vperm.xlu0 %532, %v528
      %v534 = vpop.permute.xlu0 %533
      %535 = vset.pattern.permute.xlu0 0
      %536 = vperm.xlu0 %535, %v529
      %v537 = vpop.permute.xlu0 %536
      %v538 = vlaneseq
      %v539 = vand.u32 %v538, 127
      %v540 = vlaneseq
      %v541 = vshrl.u32 %v540, 7
      %v542 = vsub.s32 %v539, %v541
      %v543 = vrot.slane %v534, %v542
      %v544 = vlaneseq
      %v545 = vshrl.u32 %v544, 7
      %v546 = vsub.s32 %v539, %v545
      %v547 = vrot.slane %v537, %v546
      %vm548 = vcmask 1041409
      %v549 = vsel %vm548, %v547, %v543
      %vm551 = vcmask 58368
      %v552 = vsel %vm551, %v549, -inf
      %553 = vmax.xlane.f32.xlu0 %v552
      %v554 = vpop.xlane.xlu0 %553
      %v556 = vlaneseq
      %v557 = vshrl.u32 %v556, 7
      %v558 = vsub.s32 0, %v557
      %v559 = vrot.slane %v554, %v558
      %v560 = vlaneseq
      %v561 = vshrl.u32 %v560, 7
      %v562 = vsub.s32 1, %v561
      %v563 = vrot.slane %v554, %v562
      %v566 = vsub.f32 %v528, %v559
      %v567 = vsub.f32 %v529, %v563
      %v568 = vmul.f32 %v566, 1.442695
      %v569 = vpow.pop %v568
      %v570 = vmul.f32 %v567, 1.442695
      %v571 = vpow.pop %v570
      %574 = vset.pattern.permute.xlu0 0
      %575 = vperm.xlu0 %574, %v569
      %v576 = vpop.permute.xlu0 %575
      %577 = vset.pattern.permute.xlu0 0
      %578 = vperm.xlu0 %577, %v571
      %v579 = vpop.permute.xlu0 %578
      %v580 = vlaneseq
      %v581 = vshrl.u32 %v580, 7
      %v582 = vsub.s32 %v539, %v581
      %v583 = vrot.slane %v576, %v582
      %v584 = vlaneseq
      %v585 = vshrl.u32 %v584, 7
      %v586 = vsub.s32 %v539, %v585
      %v587 = vrot.slane %v579, %v586
      %v588 = vsel %vm548, %v587, %v583
      %v590 = vsel %vm551, %v588, 0.0
      %591 = vadd.xlane.f32.xlu0 %v590
      %v592 = vpop.xlane.xlu0 %591
      %v594 = vlaneseq
      %v595 = vshrl.u32 %v594, 7
      %v596 = vsub.s32 0, %v595
      %v597 = vrot.slane %v592, %v596
      %v598 = vlaneseq
      %v599 = vshrl.u32 %v598, 7
      %v600 = vsub.s32 1, %v599
      %v601 = vrot.slane %v592, %v600
      %v604 = vrcp.pop %v597
      %v605 = vmul.f32 %v569, %v604
      %v606 = vrcp.pop %v601
      %v607 = vmul.f32 %v571, %v606
      %v609 = vlaneseq
      %v610 = vshrl.u32 %v609, 7
      %v611 = vsub.s32 0, %v610
      %v612 = vrot.slane %v412, %v611
      %614 = vbcast.lane.b32.xlu0 %v612, 256
      %v615 = vpop.permute.xlu0 %614
      %v616 = vlaneseq
      %v617 = vshrl.u32 %v616, 7
      %v618 = vsub.s32 1, %v617
      %v619 = vrot.slane %v412, %v618
      %621 = vbcast.lane.b32.xlu0 %v619, 256
      %v622 = vpop.permute.xlu0 %621
      %v625 = vmul.f32 %v605, %v615
      %v626 = vmul.f32 %v607, %v622
      %628 = vset.pattern.permute.xlu0 0
      %629 = vperm.xlu0 %628, %v625
      %v630 = vpop.permute.xlu0 %629
      %633 = vset.pattern.permute.xlu0 0
      %634 = vperm.xlu0 %633, %v626
      %v635 = vpop.permute.xlu0 %634
      %v637 = vmul.f32 %v630, %v410
      %v638 = vmul.f32 %v635, %v411
      %v639 = vrot.slane %v637, 4
      %v640 = vadd.f32 %v637, %v639
      %v641 = vrot.slane %v640, 2
      %v642 = vadd.f32 %v640, %v641
      %v643 = vrot.slane %v642, 1
      %v644 = vadd.f32 %v642, %v643
      %v645 = vrot.slane %v638, 4
      %v646 = vadd.f32 %v638, %v645
      %v647 = vrot.slane %v646, 2
      %v648 = vadd.f32 %v646, %v647
      %v649 = vrot.slane %v648, 1
      %v650 = vadd.f32 %v648, %v649
      %v651 = vlaneseq
      %v652 = vshrl.u32 %v651, 7
      %v653 = vsub.s32 %v539, %v652
      %v654 = vrot.slane %v630, %v653
      %v655 = vlaneseq
      %v656 = vshrl.u32 %v655, 7
      %v657 = vsub.s32 %v539, %v656
      %v658 = vrot.slane %v635, %v657
      %v659 = vsel %vm548, %v658, %v654
      %v661 = vsel %vm551, %v659, 0.0
      %662 = vadd.xlane.f32.xlu0 %v661
      %v663 = vpop.xlane.xlu0 %662
      %v664 = vld [vmem:[%s5] sm:$0xff]
      %v665 = vld [vmem:[%s5 + $0x8] sm:$0xff]
      %v666 = vld [vmem:[%s5 + $0x10] sm:$0xff]
      %v667 = vld [vmem:[%s5 + $0x18] sm:$0xff]
      %v668 = vld [vmem:[%s5 + $0x20] sm:$0xff]
      %v669 = vld [vmem:[%s5 + $0x28] sm:$0xff]
      %v670 = vld [vmem:[%s5 + $0x30] sm:$0xff]
      %v671 = vld [vmem:[%s5 + $0x38] sm:$0xff]
      %v672 = vld [vmem:[%s5 + $0x40] sm:$0xff]
      %v673 = vld [vmem:[%s5 + $0x48] sm:$0xff]
      %v674 = vld [vmem:[%s5 + $0x50] sm:$0xff]
      %v675 = vld [vmem:[%s5 + $0x58] sm:$0xff]
      %v676 = vld [vmem:[%s5 + $0x60] sm:$0xff]
      %v677 = vld [vmem:[%s5 + $0x68] sm:$0xff]
      %v678 = vld [vmem:[%s5 + $0x70] sm:$0xff]
      %v679 = vld [vmem:[%s5 + $0x78] sm:$0xff]
      %v680 = vld [vmem:[%s6] sm:$0x1]
      %v682 = vlaneseq
      %v683 = vshrl.u32 %v682, 7
      %v684 = vsub.s32 0, %v683
      %v685 = vrot.slane %v680, %v684
      %v687 = vmul.f32 %v663, %v685
      %v690 = vsel %vm548, %v650, %v644
      %692 = vmatprep.subr.mxu0 0.0
      %693 = vmatpush1.msra.mxu0 %v664
      %694 = vmatprep.subr.mxu0 0.0
      %695 = vmatpush1.msra.mxu0 %v665
      %696 = vmatprep.subr.mxu0 0.0
      %697 = vmatpush1.msra.mxu0 %v666
      %698 = vmatprep.subr.mxu0 0.0
      %699 = vmatpush1.msra.mxu0 %v667
      %700 = vmatprep.subr.mxu0 0.0
      %701 = vmatpush1.msra.mxu0 %v668
      %702 = vmatprep.subr.mxu0 0.0
      %703 = vmatpush1.msra.mxu0 %v669
      %704 = vmatprep.subr.mxu0 0.0
      %705 = vmatpush1.msra.mxu0 %v670
      %706 = vmatprep.subr.mxu0 0.0
      %707 = vmatpush1.msra.mxu0 %v671
      %708 = vmatprep.subr.mxu0 0.0
      %709 = vmatpush1.msra.mxu0 %v672
      %710 = vmatprep.subr.mxu0 0.0
      %711 = vmatpush1.msra.mxu0 %v673
      %712 = vmatprep.subr.mxu0 0.0
      %713 = vmatpush1.msra.mxu0 %v674
      %714 = vmatprep.subr.mxu0 0.0
      %715 = vmatpush1.msra.mxu0 %v675
      %716 = vmatprep.subr.mxu0 0.0
      %717 = vmatpush1.msra.mxu0 %v676
      %718 = vmatprep.subr.mxu0 0.0
      %719 = vmatpush1.msra.mxu0 %v677
      %720 = vmatprep.subr.mxu0 0.0
      %721 = vmatpush1.msra.mxu0 %v678
      %722 = vmatprep.subr.mxu0 0.0
      %723 = vmatpush1.msra.mxu0 %v679
      %724 = vmatprep.subr.mxu0 0.0
      %725 = vmatpush1.msra.mxu0 0.0
      %726 = vmatprep.subr.mxu0 0.0
      %727 = vmatpush1.msra.mxu0 0.0
      %728 = vmatprep.subr.mxu0 0.0
      %729 = vmatpush1.msra.mxu0 0.0
      %730 = vmatprep.subr.mxu0 0.0
      %731 = vmatpush1.msra.mxu0 0.0
      %732 = vmatprep.subr.mxu0 0.0
      %733 = vmatpush1.msra.mxu0 0.0
      %734 = vmatprep.subr.mxu0 0.0
      %735 = vmatpush1.msra.mxu0 0.0
      %736 = vmatprep.subr.mxu0 0.0
      %737 = vmatpush1.msra.mxu0 0.0
      %738 = vmatprep.subr.mxu0 0.0
      %739 = vmatpush1.msra.mxu0 0.0
      %740 = vmatprep.subr.mxu0 0.0
      %741 = vmatpush1.msra.mxu0 0.0
      %742 = vmatprep.subr.mxu0 0.0
      %743 = vmatpush1.msra.mxu0 0.0
      %744 = vmatprep.subr.mxu0 0.0
      %745 = vmatpush1.msra.mxu0 0.0
      %746 = vmatprep.subr.mxu0 0.0
      %747 = vmatpush1.msra.mxu0 0.0
      %748 = vmatprep.subr.mxu0 0.0
      %749 = vmatpush1.msra.mxu0 0.0
      %750 = vmatprep.subr.mxu0 0.0
      %751 = vmatpush1.msra.mxu0 0.0
      %752 = vmatprep.subr.mxu0 0.0
      %753 = vmatpush1.msra.mxu0 0.0
      %754 = vmatprep.subr.mxu0 0.0
      %755 = vmatpush1.msra.mxu0 0.0
      %756 = vmatprep.mubr.f32.mxu0 0.0
      %757 = vmatmul.mubr.f32.gmra.mrb[0].mxu0 %v690
      %v758 = vpop.f32.mrb[0].mxu0
      %v759 = vadd.f32 %v687, %v758
      %v760 = vpop.f32.mrb[0].mxu0
      %761 = vdwg.mxu0
      %vm762 = vcmp.gt.f32.partialorder %v759, 0.0
      %v763 = vmin.f32 %v759, 0.0
      %v764 = vmul.f32 %v763, 1.442695
      %v765 = vpow.pop %v764
      %v766 = vsub.f32 %v765, 1.0
      %v767 = vsel %vm762, %v759, %v766
      %v768 = vld [vmem:[%s7] sm:$0xff]
      %v769 = vld [vmem:[%s7 + $0x8] sm:$0xff]
      %v770 = vld [vmem:[%s7 + $0x10] sm:$0xff]
      %v771 = vld [vmem:[%s7 + $0x18] sm:$0xff]
      %v772 = vld [vmem:[%s7 + $0x20] sm:$0xff]
      %v773 = vld [vmem:[%s7 + $0x28] sm:$0xff]
      %v774 = vld [vmem:[%s7 + $0x30] sm:$0xff]
      %v775 = vld [vmem:[%s7 + $0x38] sm:$0xff]
      %v776 = vld [vmem:[%s7 + $0x40] sm:$0xff]
      %v777 = vld [vmem:[%s7 + $0x48] sm:$0xff]
      %v778 = vld [vmem:[%s7 + $0x50] sm:$0xff]
      %v779 = vld [vmem:[%s7 + $0x58] sm:$0xff]
      %v780 = vld [vmem:[%s7 + $0x60] sm:$0xff]
      %v781 = vld [vmem:[%s7 + $0x68] sm:$0xff]
      %v782 = vld [vmem:[%s7 + $0x70] sm:$0xff]
      %v783 = vld [vmem:[%s7 + $0x78] sm:$0xff]
      %v784 = vld [vmem:[%s7 + $0x80] sm:$0xff]
      %v785 = vld [vmem:[%s7 + $0x88] sm:$0xff]
      %v786 = vld [vmem:[%s7 + $0x90] sm:$0xff]
      %v787 = vld [vmem:[%s7 + $0x98] sm:$0xff]
      %v788 = vld [vmem:[%s7 + $0xa0] sm:$0xff]
      %v789 = vld [vmem:[%s7 + $0xa8] sm:$0xff]
      %v790 = vld [vmem:[%s7 + $0xb0] sm:$0xff]
      %v791 = vld [vmem:[%s7 + $0xb8] sm:$0xff]
      %v792 = vld [vmem:[%s7 + $0xc0] sm:$0xff]
      %v793 = vld [vmem:[%s7 + $0xc8] sm:$0xff]
      %v794 = vld [vmem:[%s7 + $0xd0] sm:$0xff]
      %v795 = vld [vmem:[%s7 + $0xd8] sm:$0xff]
      %v796 = vld [vmem:[%s7 + $0xe0] sm:$0xff]
      %v797 = vld [vmem:[%s7 + $0xe8] sm:$0xff]
      %v798 = vld [vmem:[%s7 + $0xf0] sm:$0xff]
      %v799 = vld [vmem:[%s7 + $0xf8] sm:$0xff]
      %v800 = vld [vmem:[%s7 + $0x100] sm:$0xff]
      %v801 = vld [vmem:[%s7 + $0x108] sm:$0xff]
      %v802 = vld [vmem:[%s7 + $0x110] sm:$0xff]
      %v803 = vld [vmem:[%s7 + $0x118] sm:$0xff]
      %v804 = vld [vmem:[%s7 + $0x120] sm:$0xff]
      %v805 = vld [vmem:[%s7 + $0x128] sm:$0xff]
      %v806 = vld [vmem:[%s7 + $0x130] sm:$0xff]
      %v807 = vld [vmem:[%s7 + $0x138] sm:$0xff]
      %v808 = vld [vmem:[%s7 + $0x140] sm:$0xff]
      %v809 = vld [vmem:[%s7 + $0x148] sm:$0xff]
      %v810 = vld [vmem:[%s7 + $0x150] sm:$0xff]
      %v811 = vld [vmem:[%s7 + $0x158] sm:$0xff]
      %v812 = vld [vmem:[%s7 + $0x160] sm:$0xff]
      %v813 = vld [vmem:[%s7 + $0x168] sm:$0xff]
      %v814 = vld [vmem:[%s7 + $0x170] sm:$0xff]
      %v815 = vld [vmem:[%s7 + $0x178] sm:$0xff]
      %v816 = vld [vmem:[%s9] sm:$0x7]
      %v818 = vlaneseq
      %v819 = vshrl.u32 %v818, 7
      %v820 = vsub.s32 0, %v819
      %v821 = vrot.slane %v816, %v820
      %v822 = vlaneseq
      %v823 = vshrl.u32 %v822, 7
      %v824 = vsub.s32 1, %v823
      %v825 = vrot.slane %v816, %v824
      %v826 = vlaneseq
      %v827 = vshrl.u32 %v826, 7
      %v828 = vsub.s32 2, %v827
      %v829 = vrot.slane %v816, %v828
      %833 = vmatprep.subr.mxu0 %v769
      %834 = vmatpush1.msra.mxu0 %v768
      %835 = vmatprep.subr.mxu0 %v772
      %836 = vmatpush1.msra.mxu0 %v771
      %837 = vmatprep.subr.mxu0 %v775
      %838 = vmatpush1.msra.mxu0 %v774
      %839 = vmatprep.subr.mxu0 %v778
      %840 = vmatpush1.msra.mxu0 %v777
      %841 = vmatprep.subr.mxu0 %v781
      %842 = vmatpush1.msra.mxu0 %v780
      %843 = vmatprep.subr.mxu0 %v784
      %844 = vmatpush1.msra.mxu0 %v783
      %845 = vmatprep.subr.mxu0 %v787
      %846 = vmatpush1.msra.mxu0 %v786
      %847 = vmatprep.subr.mxu0 %v790
      %848 = vmatpush1.msra.mxu0 %v789
      %849 = vmatprep.subr.mxu0 %v793
      %850 = vmatpush1.msra.mxu0 %v792
      %851 = vmatprep.subr.mxu0 %v796
      %852 = vmatpush1.msra.mxu0 %v795
      %853 = vmatprep.subr.mxu0 %v799
      %854 = vmatpush1.msra.mxu0 %v798
      %855 = vmatprep.subr.mxu0 %v802
      %856 = vmatpush1.msra.mxu0 %v801
      %857 = vmatprep.subr.mxu0 %v805
      %858 = vmatpush1.msra.mxu0 %v804
      %859 = vmatprep.subr.mxu0 %v808
      %860 = vmatpush1.msra.mxu0 %v807
      %861 = vmatprep.subr.mxu0 %v811
      %862 = vmatpush1.msra.mxu0 %v810
      %863 = vmatprep.subr.mxu0 %v814
      %864 = vmatpush1.msra.mxu0 %v813
      %865 = vmatprep.subr.mxu0 0.0
      %866 = vmatpush1.msra.mxu0 0.0
      %867 = vmatprep.subr.mxu0 0.0
      %868 = vmatpush1.msra.mxu0 0.0
      %869 = vmatprep.subr.mxu0 0.0
      %870 = vmatpush1.msra.mxu0 0.0
      %871 = vmatprep.subr.mxu0 0.0
      %872 = vmatpush1.msra.mxu0 0.0
      %873 = vmatprep.subr.mxu0 0.0
      %874 = vmatpush1.msra.mxu0 0.0
      %875 = vmatprep.subr.mxu0 0.0
      %876 = vmatpush1.msra.mxu0 0.0
      %877 = vmatprep.subr.mxu0 0.0
      %878 = vmatpush1.msra.mxu0 0.0
      %879 = vmatprep.subr.mxu0 0.0
      %880 = vmatpush1.msra.mxu0 0.0
      %881 = vmatprep.subr.mxu0 0.0
      %882 = vmatpush1.msra.mxu0 0.0
      %883 = vmatprep.subr.mxu0 0.0
      %884 = vmatpush1.msra.mxu0 0.0
      %885 = vmatprep.subr.mxu0 0.0
      %886 = vmatpush1.msra.mxu0 0.0
      %887 = vmatprep.subr.mxu0 0.0
      %888 = vmatpush1.msra.mxu0 0.0
      %889 = vmatprep.subr.mxu0 0.0
      %890 = vmatpush1.msra.mxu0 0.0
      %891 = vmatprep.subr.mxu0 0.0
      %892 = vmatpush1.msra.mxu0 0.0
      %893 = vmatprep.subr.mxu0 0.0
      %894 = vmatpush1.msra.mxu0 0.0
      %895 = vmatprep.subr.mxu0 0.0
      %896 = vmatpush1.msra.mxu0 0.0
      %897 = vmatprep.mubr.f32.mxu0 0.0
      %898 = vmatmul.mubr.f32.gmra.mrb[0].mxu0 %v767
      %v899 = vpop.f32.mrb[0].mxu0
      %v900 = vadd.f32 %v821, %v899
      %v901 = vpop.f32.mrb[0].mxu0
      %v902 = vadd.f32 %v825, %v901
      %903 = vdwg.mxu0
      %904 = vmatprep.subr.mxu0 0.0
      %905 = vmatpush1.msra.mxu0 %v770
      %906 = vmatprep.subr.mxu0 0.0
      %907 = vmatpush1.msra.mxu0 %v773
      %908 = vmatprep.subr.mxu0 0.0
      %909 = vmatpush1.msra.mxu0 %v776
      %910 = vmatprep.subr.mxu0 0.0
      %911 = vmatpush1.msra.mxu0 %v779
      %912 = vmatprep.subr.mxu0 0.0
      %913 = vmatpush1.msra.mxu0 %v782
      %914 = vmatprep.subr.mxu0 0.0
      %915 = vmatpush1.msra.mxu0 %v785
      %916 = vmatprep.subr.mxu0 0.0
      %917 = vmatpush1.msra.mxu0 %v788
      %918 = vmatprep.subr.mxu0 0.0
      %919 = vmatpush1.msra.mxu0 %v791
      %920 = vmatprep.subr.mxu0 0.0
      %921 = vmatpush1.msra.mxu0 %v794
      %922 = vmatprep.subr.mxu0 0.0
      %923 = vmatpush1.msra.mxu0 %v797
      %924 = vmatprep.subr.mxu0 0.0
      %925 = vmatpush1.msra.mxu0 %v800
      %926 = vmatprep.subr.mxu0 0.0
      %927 = vmatpush1.msra.mxu0 %v803
      %928 = vmatprep.subr.mxu0 0.0
      %929 = vmatpush1.msra.mxu0 %v806
      %930 = vmatprep.subr.mxu0 0.0
      %931 = vmatpush1.msra.mxu0 %v809
      %932 = vmatprep.subr.mxu0 0.0
      %933 = vmatpush1.msra.mxu0 %v812
      %934 = vmatprep.subr.mxu0 0.0
      %935 = vmatpush1.msra.mxu0 %v815
      %936 = vmatprep.subr.mxu0 0.0
      %937 = vmatpush1.msra.mxu0 0.0
      %938 = vmatprep.subr.mxu0 0.0
      %939 = vmatpush1.msra.mxu0 0.0
      %940 = vmatprep.subr.mxu0 0.0
      %941 = vmatpush1.msra.mxu0 0.0
      %942 = vmatprep.subr.mxu0 0.0
      %943 = vmatpush1.msra.mxu0 0.0
      %944 = vmatprep.subr.mxu0 0.0
      %945 = vmatpush1.msra.mxu0 0.0
      %946 = vmatprep.subr.mxu0 0.0
      %947 = vmatpush1.msra.mxu0 0.0
      %948 = vmatprep.subr.mxu0 0.0
      %949 = vmatpush1.msra.mxu0 0.0
      %950 = vmatprep.subr.mxu0 0.0
      %951 = vmatpush1.msra.mxu0 0.0
      %952 = vmatprep.subr.mxu0 0.0
      %953 = vmatpush1.msra.mxu0 0.0
      %954 = vmatprep.subr.mxu0 0.0
      %955 = vmatpush1.msra.mxu0 0.0
      %956 = vmatprep.subr.mxu0 0.0
      %957 = vmatpush1.msra.mxu0 0.0
      %958 = vmatprep.subr.mxu0 0.0
      %959 = vmatpush1.msra.mxu0 0.0
      %960 = vmatprep.subr.mxu0 0.0
      %961 = vmatpush1.msra.mxu0 0.0
      %962 = vmatprep.subr.mxu0 0.0
      %963 = vmatpush1.msra.mxu0 0.0
      %964 = vmatprep.subr.mxu0 0.0
      %965 = vmatpush1.msra.mxu0 0.0
      %966 = vmatprep.subr.mxu0 0.0
      %967 = vmatpush1.msra.mxu0 0.0
      %968 = vmatprep.mubr.f32.mxu0 0.0
      %969 = vmatmul.mubr.f32.gmra.mrb[0].mxu0 %v767
      %v970 = vpop.f32.mrb[0].mxu0
      %v971 = vadd.f32 %v829, %v970
      %v972 = vpop.f32.mrb[0].mxu0
      %973 = vdwg.mxu0
      %v974 = vld [vmem:[%s8] sm:$0xff]
      %v975 = vld [vmem:[%s8 + $0x8] sm:$0xff]
      %v976 = vld [vmem:[%s8 + $0x10] sm:$0xff]
      %v977 = vld [vmem:[%s8 + $0x18] sm:$0xff]
      %v978 = vld [vmem:[%s8 + $0x20] sm:$0xff]
      %v979 = vld [vmem:[%s8 + $0x28] sm:$0xff]
      %v980 = vld [vmem:[%s8 + $0x30] sm:$0xff]
      %v981 = vld [vmem:[%s8 + $0x38] sm:$0xff]
      %v982 = vld [vmem:[%s8 + $0x40] sm:$0xff]
      %v983 = vld [vmem:[%s8 + $0x48] sm:$0xff]
      %v984 = vld [vmem:[%s8 + $0x50] sm:$0xff]
      %v985 = vld [vmem:[%s8 + $0x58] sm:$0xff]
      %v986 = vld [vmem:[%s8 + $0x60] sm:$0xff]
      %v987 = vld [vmem:[%s8 + $0x68] sm:$0xff]
      %v988 = vld [vmem:[%s8 + $0x70] sm:$0xff]
      %v989 = vld [vmem:[%s8 + $0x78] sm:$0xff]
      %v990 = vld [vmem:[%s8 + $0x80] sm:$0xff]
      %v991 = vld [vmem:[%s8 + $0x88] sm:$0xff]
      %v992 = vld [vmem:[%s8 + $0x90] sm:$0xff]
      %v993 = vld [vmem:[%s8 + $0x98] sm:$0xff]
      %v994 = vld [vmem:[%s8 + $0xa0] sm:$0xff]
      %v995 = vld [vmem:[%s8 + $0xa8] sm:$0xff]
      %v996 = vld [vmem:[%s8 + $0xb0] sm:$0xff]
      %v997 = vld [vmem:[%s8 + $0xb8] sm:$0xff]
      %v998 = vld [vmem:[%s8 + $0xc0] sm:$0xff]
      %v999 = vld [vmem:[%s8 + $0xc8] sm:$0xff]
      %v1000 = vld [vmem:[%s8 + $0xd0] sm:$0xff]
      %v1001 = vld [vmem:[%s8 + $0xd8] sm:$0xff]
      %v1002 = vld [vmem:[%s8 + $0xe0] sm:$0xff]
      %v1003 = vld [vmem:[%s8 + $0xe8] sm:$0xff]
      %v1004 = vld [vmem:[%s8 + $0xf0] sm:$0xff]
      %v1005 = vld [vmem:[%s8 + $0xf8] sm:$0xff]
      %v1006 = vld [vmem:[%s8 + $0x100] sm:$0xff]
      %v1007 = vld [vmem:[%s8 + $0x108] sm:$0xff]
      %v1008 = vld [vmem:[%s8 + $0x110] sm:$0xff]
      %v1009 = vld [vmem:[%s8 + $0x118] sm:$0xff]
      %v1010 = vld [vmem:[%s8 + $0x120] sm:$0xff]
      %v1011 = vld [vmem:[%s8 + $0x128] sm:$0xff]
      %v1012 = vld [vmem:[%s8 + $0x130] sm:$0xff]
      %v1013 = vld [vmem:[%s8 + $0x138] sm:$0xff]
      %v1014 = vld [vmem:[%s8 + $0x140] sm:$0xff]
      %v1015 = vld [vmem:[%s8 + $0x148] sm:$0xff]
      %v1016 = vld [vmem:[%s8 + $0x150] sm:$0xff]
      %v1017 = vld [vmem:[%s8 + $0x158] sm:$0xff]
      %v1018 = vld [vmem:[%s8 + $0x160] sm:$0xff]
      %v1019 = vld [vmem:[%s8 + $0x168] sm:$0xff]
      %v1020 = vld [vmem:[%s8 + $0x170] sm:$0xff]
      %v1021 = vld [vmem:[%s8 + $0x178] sm:$0xff]
      %v1022 = vld [vmem:[%s10] sm:$0x7]
      %v1024 = vlaneseq
      %v1025 = vshrl.u32 %v1024, 7
      %v1026 = vsub.s32 0, %v1025
      %v1027 = vrot.slane %v1022, %v1026
      %v1028 = vlaneseq
      %v1029 = vshrl.u32 %v1028, 7
      %v1030 = vsub.s32 1, %v1029
      %v1031 = vrot.slane %v1022, %v1030
      %v1032 = vlaneseq
      %v1033 = vshrl.u32 %v1032, 7
      %v1034 = vsub.s32 2, %v1033
      %v1035 = vrot.slane %v1022, %v1034
      %1039 = vmatprep.subr.mxu0 %v975
      %1040 = vmatpush1.msra.mxu0 %v974
      %1041 = vmatprep.subr.mxu0 %v978
      %1042 = vmatpush1.msra.mxu0 %v977
      %1043 = vmatprep.subr.mxu0 %v981
      %1044 = vmatpush1.msra.mxu0 %v980
      %1045 = vmatprep.subr.mxu0 %v984
      %1046 = vmatpush1.msra.mxu0 %v983
      %1047 = vmatprep.subr.mxu0 %v987
      %1048 = vmatpush1.msra.mxu0 %v986
      %1049 = vmatprep.subr.mxu0 %v990
      %1050 = vmatpush1.msra.mxu0 %v989
      %1051 = vmatprep.subr.mxu0 %v993
      %1052 = vmatpush1.msra.mxu0 %v992
      %1053 = vmatprep.subr.mxu0 %v996
      %1054 = vmatpush1.msra.mxu0 %v995
      %1055 = vmatprep.subr.mxu0 %v999
      %1056 = vmatpush1.msra.mxu0 %v998
      %1057 = vmatprep.subr.mxu0 %v1002
      %1058 = vmatpush1.msra.mxu0 %v1001
      %1059 = vmatprep.subr.mxu0 %v1005
      %1060 = vmatpush1.msra.mxu0 %v1004
      %1061 = vmatprep.subr.mxu0 %v1008
      %1062 = vmatpush1.msra.mxu0 %v1007
      %1063 = vmatprep.subr.mxu0 %v1011
      %1064 = vmatpush1.msra.mxu0 %v1010
      %1065 = vmatprep.subr.mxu0 %v1014
      %1066 = vmatpush1.msra.mxu0 %v1013
      %1067 = vmatprep.subr.mxu0 %v1017
      %1068 = vmatpush1.msra.mxu0 %v1016
      %1069 = vmatprep.subr.mxu0 %v1020
      %1070 = vmatpush1.msra.mxu0 %v1019
      %1071 = vmatprep.subr.mxu0 0.0
      %1072 = vmatpush1.msra.mxu0 0.0
      %1073 = vmatprep.subr.mxu0 0.0
      %1074 = vmatpush1.msra.mxu0 0.0
      %1075 = vmatprep.subr.mxu0 0.0
      %1076 = vmatpush1.msra.mxu0 0.0
      %1077 = vmatprep.subr.mxu0 0.0
      %1078 = vmatpush1.msra.mxu0 0.0
      %1079 = vmatprep.subr.mxu0 0.0
      %1080 = vmatpush1.msra.mxu0 0.0
      %1081 = vmatprep.subr.mxu0 0.0
      %1082 = vmatpush1.msra.mxu0 0.0
      %1083 = vmatprep.subr.mxu0 0.0
      %1084 = vmatpush1.msra.mxu0 0.0
      %1085 = vmatprep.subr.mxu0 0.0
      %1086 = vmatpush1.msra.mxu0 0.0
      %1087 = vmatprep.subr.mxu0 0.0
      %1088 = vmatpush1.msra.mxu0 0.0
      %1089 = vmatprep.subr.mxu0 0.0
      %1090 = vmatpush1.msra.mxu0 0.0
      %1091 = vmatprep.subr.mxu0 0.0
      %1092 = vmatpush1.msra.mxu0 0.0
      %1093 = vmatprep.subr.mxu0 0.0
      %1094 = vmatpush1.msra.mxu0 0.0
      %1095 = vmatprep.subr.mxu0 0.0
      %1096 = vmatpush1.msra.mxu0 0.0
      %1097 = vmatprep.subr.mxu0 0.0
      %1098 = vmatpush1.msra.mxu0 0.0
      %1099 = vmatprep.subr.mxu0 0.0
      %1100 = vmatpush1.msra.mxu0 0.0
      %1101 = vmatprep.subr.mxu0 0.0
      %1102 = vmatpush1.msra.mxu0 0.0
      %1103 = vmatprep.mubr.f32.mxu0 0.0
      %1104 = vmatmul.mubr.f32.gmra.mrb[0].mxu0 %v451
      %v1105 = vpop.f32.mrb[0].mxu0
      %v1106 = vadd.f32 %v1027, %v1105
      %v1107 = vpop.f32.mrb[0].mxu0
      %v1108 = vadd.f32 %v1031, %v1107
      %1109 = vdwg.mxu0
      %1110 = vmatprep.subr.mxu0 0.0
      %1111 = vmatpush1.msra.mxu0 %v976
      %1112 = vmatprep.subr.mxu0 0.0
      %1113 = vmatpush1.msra.mxu0 %v979
      %1114 = vmatprep.subr.mxu0 0.0
      %1115 = vmatpush1.msra.mxu0 %v982
      %1116 = vmatprep.subr.mxu0 0.0
      %1117 = vmatpush1.msra.mxu0 %v985
      %1118 = vmatprep.subr.mxu0 0.0
      %1119 = vmatpush1.msra.mxu0 %v988
      %1120 = vmatprep.subr.mxu0 0.0
      %1121 = vmatpush1.msra.mxu0 %v991
      %1122 = vmatprep.subr.mxu0 0.0
      %1123 = vmatpush1.msra.mxu0 %v994
      %1124 = vmatprep.subr.mxu0 0.0
      %1125 = vmatpush1.msra.mxu0 %v997
      %1126 = vmatprep.subr.mxu0 0.0
      %1127 = vmatpush1.msra.mxu0 %v1000
      %1128 = vmatprep.subr.mxu0 0.0
      %1129 = vmatpush1.msra.mxu0 %v1003
      %1130 = vmatprep.subr.mxu0 0.0
      %1131 = vmatpush1.msra.mxu0 %v1006
      %1132 = vmatprep.subr.mxu0 0.0
      %1133 = vmatpush1.msra.mxu0 %v1009
      %1134 = vmatprep.subr.mxu0 0.0
      %1135 = vmatpush1.msra.mxu0 %v1012
      %1136 = vmatprep.subr.mxu0 0.0
      %1137 = vmatpush1.msra.mxu0 %v1015
      %1138 = vmatprep.subr.mxu0 0.0
      %1139 = vmatpush1.msra.mxu0 %v1018
      %1140 = vmatprep.subr.mxu0 0.0
      %1141 = vmatpush1.msra.mxu0 %v1021
      %1142 = vmatprep.subr.mxu0 0.0
      %1143 = vmatpush1.msra.mxu0 0.0
      %1144 = vmatprep.subr.mxu0 0.0
      %1145 = vmatpush1.msra.mxu0 0.0
      %1146 = vmatprep.subr.mxu0 0.0
      %1147 = vmatpush1.msra.mxu0 0.0
      %1148 = vmatprep.subr.mxu0 0.0
      %1149 = vmatpush1.msra.mxu0 0.0
      %1150 = vmatprep.subr.mxu0 0.0
      %1151 = vmatpush1.msra.mxu0 0.0
      %1152 = vmatprep.subr.mxu0 0.0
      %1153 = vmatpush1.msra.mxu0 0.0
      %1154 = vmatprep.subr.mxu0 0.0
      %1155 = vmatpush1.msra.mxu0 0.0
      %1156 = vmatprep.subr.mxu0 0.0
      %1157 = vmatpush1.msra.mxu0 0.0
      %1158 = vmatprep.subr.mxu0 0.0
      %1159 = vmatpush1.msra.mxu0 0.0
      %1160 = vmatprep.subr.mxu0 0.0
      %1161 = vmatpush1.msra.mxu0 0.0
      %1162 = vmatprep.subr.mxu0 0.0
      %1163 = vmatpush1.msra.mxu0 0.0
      %1164 = vmatprep.subr.mxu0 0.0
      %1165 = vmatpush1.msra.mxu0 0.0
      %1166 = vmatprep.subr.mxu0 0.0
      %1167 = vmatpush1.msra.mxu0 0.0
      %1168 = vmatprep.subr.mxu0 0.0
      %1169 = vmatpush1.msra.mxu0 0.0
      %1170 = vmatprep.subr.mxu0 0.0
      %1171 = vmatpush1.msra.mxu0 0.0
      %1172 = vmatprep.subr.mxu0 0.0
      %1173 = vmatpush1.msra.mxu0 0.0
      %1174 = vmatprep.mubr.f32.mxu0 0.0
      %1175 = vmatmul.mubr.f32.gmra.mrb[0].mxu0 %v451
      %v1176 = vpop.f32.mrb[0].mxu0
      %v1177 = vadd.f32 %v1035, %v1176
      %v1178 = vpop.f32.mrb[0].mxu0
      %1179 = vdwg.mxu0
      %v1180 = vadd.f32 %v900, %v1106
      %v1181 = vsub.f32 0.0, %v1180
      %v1182 = vmul.f32 %v1181, 1.442695
      %v1183 = vpow.pop %v1182
      %v1184 = vadd.f32 %v1183, 1.0
      %v1185 = vrcp.pop %v1184
      %v1186 = vmul.f32 1.0, %v1185
      %v1187 = vadd.f32 %v902, %v1108
      %v1188 = vsub.f32 0.0, %v1187
      %v1189 = vmul.f32 %v1188, 1.442695
      %v1190 = vpow.pop %v1189
      %v1191 = vadd.f32 %v1190, 1.0
      %v1192 = vrcp.pop %v1191
      %v1193 = vmul.f32 1.0, %v1192
      %v1194 = vmul.f32 %v1186, %v1177
      %v1195 = vadd.f32 %v971, %v1194
      %v1196 = vtanh.pop %v1195
      %v1197 = vsub.f32 1.0, %v1193
      %v1198 = vmul.f32 %v1197, %v1196
      %v1199 = vmul.f32 %v1193, %v451
      %v1200 = vadd.f32 %v1198, %v1199
      %vm1201 = vcmp.lt.s32.totalorder %v539, 32
      %v1202 = vsel %vm1201, 1, 0
      %v1203 = vcvt.s32.f32 %v1202
      %v1204 = vsel %vm461, %v1200, 0.0
      %1205 = vadd.xlane.f32.xlu0 %v1204
      %v1206 = vpop.xlane.xlu0 %1205
      %v1207 = vrcp.pop 32.0
      %v1208 = vmul.f32 %v1206, %v1207
      %v1209 = vsub.f32 %v1200, %v1208
      %v1210 = vmul.f32 %v1209, %v1203
      %v1211 = vmul.f32 %v1210, %v1210
      %v1212 = vsel %vm461, %v1211, 0.0
      %1213 = vadd.xlane.f32.xlu0 %v1212
      %v1214 = vpop.xlane.xlu0 %1213
      %v1215 = vmul.f32 %v1214, %v1207
      %v1216 = vadd.f32 %v1215, 1e-05
      %v1217 = vrsqrt.pop %v1216
      %v1218 = vmul.f32 %v1209, %v1217
      %v1219 = vld [vmem:[%s11] sm:$0x1]
      %v1221 = vlaneseq
      %v1222 = vshrl.u32 %v1221, 7
      %v1223 = vsub.s32 0, %v1222
      %v1224 = vrot.slane %v1219, %v1223
      %v1226 = vmul.f32 %v1218, %v1224
      %v1227 = vld [vmem:[%s12] sm:$0x1]
      %v1229 = vlaneseq
      %v1230 = vshrl.u32 %v1229, 7
      %v1231 = vsub.s32 0, %v1230
      %v1232 = vrot.slane %v1227, %v1231
      %v1234 = vadd.f32 %v1226, %v1232
      %v1235 = vadd.f32 %v1234, %v1200
      %1236 = vst [vmem:[%s13] sm:$0x3] %v1235
      // Predicated region
      $region77: #{pointgat_forward.11} parent=71 // pred_check
        %p1237 = pneg %p312
      $region78: #{pointgat_forward.11} parent=71 // pred_check_branch
        %1239 = sbr.rel (%p1237) target = $region80
      $region79: #{pointgat_forward.11} parent=71 // pred_region
        _
      $region80: #{pointgat_forward.11} parent=71 // pred_fallthru
        _
      // Predicated region
      $region81: #{pointgat_forward.11} parent=71 // pred_check
        %p1240 = pneg %p312
      $region82: #{pointgat_forward.11} parent=71 // pred_check_branch
        %1242 = sbr.rel (%p1240) target = $region84
      $region83: #{pointgat_forward.11} parent=71 // pred_region
        _
      $region84: #{pointgat_forward.11} parent=71 // pred_fallthru
        _
    $region72: #{pointgat_forward.11} parent=5 // pred_fallthru
      _
    %p1243 = scmp.le.s32.totalorder 2, %s21
    // Predicated region
    $region85: #{pointgat_forward.11} parent=5 // pred_check
      %p1244 = pneg %p1243
    $region86: #{pointgat_forward.11} parent=5 // pred_check_branch
      %1246 = sbr.rel (%p1244) target = $region88
    $region87: #{pointgat_forward.11} parent=5 // pred_region
      %s1247 = ssub.s32 %s21, 2
    $region88: #{pointgat_forward.11} parent=5 // pred_fallthru
      _
  $region6: #{pointgat_forward.11} parent=0 // loop_footer
    %s25 = sadd.s32 1, %s21
  $region7: #{pointgat_forward.11} parent=0 // loop_footer_branch
    %20 = sbr.rel target = $region3
  $region8: #{pointgat_forward.11} parent=0 // loop_exit
    _

// kernel: pointgat_forward.12
$region0: #{pointgat_forward.12}
  #allocation0 [shape = 'u32[]', space=smem, size = 0x4, offset = 0x4, fixed_abs, tag = 'smem constant byte address 0x4 - core index']
  #allocation1 [shape = 'u32[144,128]{1,0:T(1,128)}', space=vmem, size = 0x12000, scoped, tag = 'internal scratch']
  %s0 = inlined_call_operand.vmem [shape: f32[2,16,6], index: 0, kind: input, shape index: {}]
  %s1 = inlined_call_operand.vmem [shape: f32[6,64], index: 1, kind: input, shape index: {}]
  %s2 = inlined_call_operand.vmem [shape: f32[1,64], index: 2, kind: input, shape index: {}]
  %s3 = inlined_call_operand.vmem [shape: f32[64,128], index: 3, kind: input, shape index: {}]
  %s4 = inlined_call_operand.vmem [shape: f32[1,128], index: 4, kind: input, shape index: {}]
  %s5 = inlined_call_operand.vmem [shape: f32[128,1024], index: 5, kind: input, shape index: {}]
  %s6 = inlined_call_operand.vmem [shape: f32[1,1024], index: 6, kind: input, shape index: {}]
  %s7 = inlined_call_operand.vmem [shape: f32[2,1,1024], index: 7, kind: output, shape index: {}]
  %s8 = sld [smem:[#allocation0]]
  $region69: #{pointgat_forward.12} parent=0
    _
  %s10 = ssub.s32 1, %s8
  %s11 = scalar_select 0, %s10, %s8
  loop: start=0, step=1, limit=4
  $region2: #{pointgat_forward.12} parent=0 // loop_pre_header
    _
  $region3: #{pointgat_forward.12} parent=0 // loop_header
    %s13 = sphi 0, %s17
    %p14 = scmp.ge.s32.totalorder %s13, 4
    %s20 = sphi 0, %s32
    %s21 = sphi 0, %s28
    %s22 = sphi 0, %s20
    %s23 = sphi 0, %s21
    %s24 = sphi 0, %s22
    %s25 = sphi 0, %s23
    %s37 = sphi 0, %s39
    %s40 = sphi 0, %s37
    %s41 = sphi 0, %s40
    %s57 = sphi 0, %s41
    %s61 = sphi 0, %s61
    %s63 = sphi 0, %s61
    %s64 = sphi 0, %s63
    %s78 = sphi 0, %s64
    %s82 = sphi 0, %s82
    %s84 = sphi 0, %s82
    %s85 = sphi 0, %s84
    %s99 = sphi 0, %s85
    %s103 = sphi 0, %s103
    %s105 = sphi 0, %s103
    %s106 = sphi 0, %s105
    %s120 = sphi 0, %s106
    %s124 = sphi 0, %s124
    %s126 = sphi 0, %s124
    %s127 = sphi 0, %s126
    %s141 = sphi 0, %s127
    %s145 = sphi 0, %s145
    %s147 = sphi 0, %s145
    %s148 = sphi 0, %s147
    %s162 = sphi 0, %s148
    %s166 = sphi 0, %s166
    %s168 = sphi 0, %s166
    %s169 = sphi 0, %s168
    %s183 = sphi 0, %s169
    %s189 = sphi 0, %s191
    %s192 = sphi 0, %s189
    %s193 = sphi 0, %s192
    %s209 = sphi 0, %s193
  $region4: #{pointgat_forward.12} parent=0 // loop_header_branch
    %16 = sbr.rel (%p14) target = $region8
  $region5: #{pointgat_forward.12} parent=0 // loop_body
    %s18 = ssub.s32 %s13, 1
    %s19 = ssub.s32 %s13, 2
    %s26 = sadd.s32 1, %s21
    %p27 = scmp.ge.s32.totalorder %s26, 1
    %s28 = scalar_select %p27, 0, %s26
    %s29 = sadd.s32 1, %s20
    %s30 = scalar_select %p27, %s29, %s20
    %p31 = scmp.ge.s32.totalorder %s30, 2
    %s32 = scalar_select %p31, 0, %s30
    %s33 = ssub.s32 %s20, %s32
    %s34 = ssub.s32 %s21, %s28
    %s35 = sor.u32 %s33, %s34
    %p36 = scmp.eq.s32.totalorder %s35, 0
    %s38 = sadd.s32 %s37, 1
    %s39 = scalar_select %p36, %s37, %s38
    %p42 = pneg %p36
    %p43 = scmp.eq.s32.totalorder %s13, 1
    %p44 = por %p42, %p43
    %p45 = scmp.ne.s32.totalorder %s37, %s40
    %p46 = scmp.eq.s32.totalorder %s13, 0
    %p47 = por %p45, %p46
    %p48 = scmp.ne.s32.totalorder %s37, %s40
    %p49 = scmp.eq.s32.totalorder %s18, 1
    %p50 = por %p48, %p49
    %p51 = scmp.ne.s32.totalorder %s40, %s41
    %p52 = scmp.eq.s32.totalorder %s18, 0
    %p53 = por %p51, %p52
    %p54 = scmp.ne.s32.totalorder %s40, %s41
    %p55 = scmp.eq.s32.totalorder %s19, 1
    %p56 = por %p54, %p55
    %p58 = scmp.ne.s32.totalorder %s41, %s57
    %p59 = scmp.eq.s32.totalorder %s19, 0
    %p60 = por %p58, %p59
    %s62 = sadd.s32 %s61, 1
    %p65 = scmp.eq.s32.totalorder %s13, 1
    %p66 = scmp.ne.s32.totalorder %s61, %s63
    %p67 = scmp.eq.s32.totalorder %s13, 0
    %p68 = por %p66, %p67
    %p69 = scmp.ne.s32.totalorder %s61, %s63
    %p70 = scmp.eq.s32.totalorder %s18, 1
    %p71 = por %p69, %p70
    %p72 = scmp.ne.s32.totalorder %s63, %s64
    %p73 = scmp.eq.s32.totalorder %s18, 0
    %p74 = por %p72, %p73
    %p75 = scmp.ne.s32.totalorder %s63, %s64
    %p76 = scmp.eq.s32.totalorder %s19, 1
    %p77 = por %p75, %p76
    %p79 = scmp.ne.s32.totalorder %s64, %s78
    %p80 = scmp.eq.s32.totalorder %s19, 0
    %p81 = por %p79, %p80
    %s83 = sadd.s32 %s82, 1
    %p86 = scmp.eq.s32.totalorder %s13, 1
    %p87 = scmp.ne.s32.totalorder %s82, %s84
    %p88 = scmp.eq.s32.totalorder %s13, 0
    %p89 = por %p87, %p88
    %p90 = scmp.ne.s32.totalorder %s82, %s84
    %p91 = scmp.eq.s32.totalorder %s18, 1
    %p92 = por %p90, %p91
    %p93 = scmp.ne.s32.totalorder %s84, %s85
    %p94 = scmp.eq.s32.totalorder %s18, 0
    %p95 = por %p93, %p94
    %p96 = scmp.ne.s32.totalorder %s84, %s85
    %p97 = scmp.eq.s32.totalorder %s19, 1
    %p98 = por %p96, %p97
    %p100 = scmp.ne.s32.totalorder %s85, %s99
    %p101 = scmp.eq.s32.totalorder %s19, 0
    %p102 = por %p100, %p101
    %s104 = sadd.s32 %s103, 1
    %p107 = scmp.eq.s32.totalorder %s13, 1
    %p108 = scmp.ne.s32.totalorder %s103, %s105
    %p109 = scmp.eq.s32.totalorder %s13, 0
    %p110 = por %p108, %p109
    %p111 = scmp.ne.s32.totalorder %s103, %s105
    %p112 = scmp.eq.s32.totalorder %s18, 1
    %p113 = por %p111, %p112
    %p114 = scmp.ne.s32.totalorder %s105, %s106
    %p115 = scmp.eq.s32.totalorder %s18, 0
    %p116 = por %p114, %p115
    %p117 = scmp.ne.s32.totalorder %s105, %s106
    %p118 = scmp.eq.s32.totalorder %s19, 1
    %p119 = por %p117, %p118
    %p121 = scmp.ne.s32.totalorder %s106, %s120
    %p122 = scmp.eq.s32.totalorder %s19, 0
    %p123 = por %p121, %p122
    %s125 = sadd.s32 %s124, 1
    %p128 = scmp.eq.s32.totalorder %s13, 1
    %p129 = scmp.ne.s32.totalorder %s124, %s126
    %p130 = scmp.eq.s32.totalorder %s13, 0
    %p131 = por %p129, %p130
    %p132 = scmp.ne.s32.totalorder %s124, %s126
    %p133 = scmp.eq.s32.totalorder %s18, 1
    %p134 = por %p132, %p133
    %p135 = scmp.ne.s32.totalorder %s126, %s127
    %p136 = scmp.eq.s32.totalorder %s18, 0
    %p137 = por %p135, %p136
    %p138 = scmp.ne.s32.totalorder %s126, %s127
    %p139 = scmp.eq.s32.totalorder %s19, 1
    %p140 = por %p138, %p139
    %p142 = scmp.ne.s32.totalorder %s127, %s141
    %p143 = scmp.eq.s32.totalorder %s19, 0
    %p144 = por %p142, %p143
    %s146 = sadd.s32 %s145, 1
    %p149 = scmp.eq.s32.totalorder %s13, 1
    %p150 = scmp.ne.s32.totalorder %s145, %s147
    %p151 = scmp.eq.s32.totalorder %s13, 0
    %p152 = por %p150, %p151
    %p153 = scmp.ne.s32.totalorder %s145, %s147
    %p154 = scmp.eq.s32.totalorder %s18, 1
    %p155 = por %p153, %p154
    %p156 = scmp.ne.s32.totalorder %s147, %s148
    %p157 = scmp.eq.s32.totalorder %s18, 0
    %p158 = por %p156, %p157
    %p159 = scmp.ne.s32.totalorder %s147, %s148
    %p160 = scmp.eq.s32.totalorder %s19, 1
    %p161 = por %p159, %p160
    %p163 = scmp.ne.s32.totalorder %s148, %s162
    %p164 = scmp.eq.s32.totalorder %s19, 0
    %p165 = por %p163, %p164
    %s167 = sadd.s32 %s166, 1
    %p170 = scmp.eq.s32.totalorder %s13, 1
    %p171 = scmp.ne.s32.totalorder %s166, %s168
    %p172 = scmp.eq.s32.totalorder %s13, 0
    %p173 = por %p171, %p172
    %p174 = scmp.ne.s32.totalorder %s166, %s168
    %p175 = scmp.eq.s32.totalorder %s18, 1
    %p176 = por %p174, %p175
    %p177 = scmp.ne.s32.totalorder %s168, %s169
    %p178 = scmp.eq.s32.totalorder %s18, 0
    %p179 = por %p177, %p178
    %p180 = scmp.ne.s32.totalorder %s168, %s169
    %p181 = scmp.eq.s32.totalorder %s19, 1
    %p182 = por %p180, %p181
    %p184 = scmp.ne.s32.totalorder %s169, %s183
    %p185 = scmp.eq.s32.totalorder %s19, 0
    %p186 = por %p184, %p185
    %s187 = ssub.s32 %s20, %s32
    %p188 = scmp.eq.s32.totalorder %s187, 0
    %s190 = sadd.s32 %s189, 1
    %s191 = scalar_select %p188, %s189, %s190
    %p194 = pneg %p188
    %p195 = scmp.eq.s32.totalorder %s13, 1
    %p196 = por %p194, %p195
    %p197 = scmp.ne.s32.totalorder %s189, %s192
    %p198 = scmp.eq.s32.totalorder %s13, 0
    %p199 = por %p197, %p198
    %p200 = scmp.ne.s32.totalorder %s189, %s192
    %p201 = scmp.eq.s32.totalorder %s18, 1
    %p202 = por %p200, %p201
    %p203 = scmp.ne.s32.totalorder %s192, %s193
    %p204 = scmp.eq.s32.totalorder %s18, 0
    %p205 = por %p203, %p204
    %p206 = scmp.ne.s32.totalorder %s192, %s193
    %p207 = scmp.eq.s32.totalorder %s19, 1
    %p208 = por %p206, %p207
    %p210 = scmp.ne.s32.totalorder %s193, %s209
    %p211 = scmp.eq.s32.totalorder %s19, 0
    %p212 = por %p210, %p211
    %p213 = scmp.le.s32.totalorder 1, %s13
    %p214 = scmp.lt.s32.totalorder %s13, 3
    %p215 = pnand %p213, %p214
    %p216 = pneg %p215
    // Predicated region
    $region9: #{pointgat_forward.12} parent=5 // pred_check
      _
    $region10: #{pointgat_forward.12} parent=5 // pred_check_branch
      %218 = sbr.rel (%p215) target = $region12
    $region11: #{pointgat_forward.12} parent=5 // pred_region
      %s219 = ssub.s32 %s13, 1
      // Predicated region
      $region13: #{pointgat_forward.12} parent=11 // pred_check
        %p220 = pneg %p74
      $region14: #{pointgat_forward.12} parent=11 // pred_check_branch
        %222 = sbr.rel (%p220) target = $region16
      $region15: #{pointgat_forward.12} parent=11 // pred_region
        _
      $region16: #{pointgat_forward.12} parent=11 // pred_fallthru
        _
      // Predicated region
      $region17: #{pointgat_forward.12} parent=11 // pred_check
        %p223 = pneg %p95
      $region18: #{pointgat_forward.12} parent=11 // pred_check_branch
        %225 = sbr.rel (%p223) target = $region20
      $region19: #{pointgat_forward.12} parent=11 // pred_region
        _
      $region20: #{pointgat_forward.12} parent=11 // pred_fallthru
        _
      // Predicated region
      $region21: #{pointgat_forward.12} parent=11 // pred_check
        %p226 = pneg %p116
      $region22: #{pointgat_forward.12} parent=11 // pred_check_branch
        %228 = sbr.rel (%p226) target = $region24
      $region23: #{pointgat_forward.12} parent=11 // pred_region
        _
      $region24: #{pointgat_forward.12} parent=11 // pred_fallthru
        _
      // Predicated region
      $region25: #{pointgat_forward.12} parent=11 // pred_check
        %p229 = pneg %p137
      $region26: #{pointgat_forward.12} parent=11 // pred_check_branch
        %231 = sbr.rel (%p229) target = $region28
      $region27: #{pointgat_forward.12} parent=11 // pred_region
        _
      $region28: #{pointgat_forward.12} parent=11 // pred_fallthru
        _
      // Predicated region
      $region29: #{pointgat_forward.12} parent=11 // pred_check
        %p232 = pneg %p158
      $region30: #{pointgat_forward.12} parent=11 // pred_check_branch
        %234 = sbr.rel (%p232) target = $region32
      $region31: #{pointgat_forward.12} parent=11 // pred_region
        _
      $region32: #{pointgat_forward.12} parent=11 // pred_fallthru
        _
      // Predicated region
      $region33: #{pointgat_forward.12} parent=11 // pred_check
        %p235 = pneg %p179
      $region34: #{pointgat_forward.12} parent=11 // pred_check_branch
        %237 = sbr.rel (%p235) target = $region36
      $region35: #{pointgat_forward.12} parent=11 // pred_region
        _
      $region36: #{pointgat_forward.12} parent=11 // pred_fallthru
        _
    $region12: #{pointgat_forward.12} parent=5 // pred_fallthru
      _
    %p238 = scmp.lt.s32.totalorder %s13, 2
    // Predicated region
    $region37: #{pointgat_forward.12} parent=5 // pred_check
      %p239 = pneg %p238
    $region38: #{pointgat_forward.12} parent=5 // pred_check_branch
      %241 = sbr.rel (%p239) target = $region40
    $region39: #{pointgat_forward.12} parent=5 // pred_region
      // Predicated region
      $region41: #{pointgat_forward.12} parent=39 // pred_check
        %p242 = pneg %p47
      $region42: #{pointgat_forward.12} parent=39 // pred_check_branch
        %244 = sbr.rel (%p242) target = $region44
      $region43: #{pointgat_forward.12} parent=39 // pred_region
        %s245 = smul.u32 2, %s21
        %p246 = scmp.lt.s32.totalorder %s20, 1
        %s247 = scalar_select %p246, %s20, 1
        %p248 = scmp.lt.s32.totalorder %s245, 1
        %s249 = scalar_select %p248, %s245, 1
        %s250 = smul.addr %s247, 2
        %s251 = sadd.s32 %s249, %s250
        %s252 = smul.addr %s251, 8
        %s253 = scalar_lea.vmem %s0, %s252
        %s254 = smul.u32 2, %s21
      $region44: #{pointgat_forward.12} parent=39 // pred_fallthru
        _
    $region40: #{pointgat_forward.12} parent=5 // pred_fallthru
      _
    %p255 = scmp.le.s32.totalorder 1, %s13
    %p256 = scmp.lt.s32.totalorder %s13, 3
    %p257 = pnand %p255, %p256
    %p258 = pneg %p257
    // Predicated region
    $region45: #{pointgat_forward.12} parent=5 // pred_check
      _
    $region46: #{pointgat_forward.12} parent=5 // pred_check_branch
      %260 = sbr.rel (%p257) target = $region48
    $region47: #{pointgat_forward.12} parent=5 // pred_region
      %s261 = ssub.s32 %s13, 1
      %s262 = smul.u32 2, %s23
      %p263 = scmp.lt.s32.totalorder %s22, 1
      %s264 = scalar_select %p263, %s22, 1
      %p265 = scmp.lt.s32.totalorder %s262, 1
      %s266 = scalar_select %p265, %s262, 1
      %s267 = smul.addr %s264, 2
      %s268 = sadd.s32 %s266, %s267
      %s269 = smul.addr %s268, 8
      %s270 = scalar_lea.vmem %s0, %s269
      %p271 = pneg %p53
      %p272 = pneg %p50
      %p273 = pneg %p74
      %p274 = pneg %p71
      %p275 = pneg %p95
      %p276 = pneg %p92
      %p277 = pneg %p116
      %p278 = pneg %p113
      %p279 = pneg %p137
      %p280 = pneg %p134
      %p281 = pneg %p158
      %p282 = pneg %p155
      %p283 = pneg %p179
      %p284 = pneg %p176
      %p285 = pneg %p205
      %p286 = pneg %p202
      %p287 = scmp.lt.s32.totalorder %s22, 1
      %s288 = scalar_select %p287, %s22, 1
      %s289 = smul.addr %s288, 8
      %s290 = scalar_lea.vmem %s7, %s289
      %s291 = smul.u32 2, %s23
      %p292 = scmp.lt.s32.totalorder %s22, 1
      %s293 = scalar_select %p292, %s22, 1
      %p294 = scmp.lt.s32.totalorder %s291, 1
      %s295 = scalar_select %p294, %s291, 1
      %s296 = smul.addr %s293, 2
      %s297 = sadd.s32 %s295, %s296
      %s298 = smul.addr %s297, 8
      %s299 = scalar_lea.vmem %s0, %s298
      %s300 = smul.u32 2, %s23
      %p301 = scmp.lt.s32.totalorder %s22, 1
      %s302 = scalar_select %p301, %s22, 1
      %s303 = smul.addr %s302, 8
      %s304 = scalar_lea.vmem %s7, %s303
      %v305 = vld [vmem:[%s299] sm:$0xff]
      %v306 = vld [vmem:[%s299 + $0x8] sm:$0xff]
      %v307 = vld [vmem:[%s1] sm:$0x3f]
      %v308 = vld [vmem:[%s2] sm:$0x1]
      %v310 = vlaneseq
      %v311 = vshrl.u32 %v310, 7
      %v312 = vsub.s32 0, %v311
      %v313 = vrot.slane %v308, %v312
      %vm315 = vcmask 48128
      %v317 = vsel %vm315, %v305, 0
      %v320 = vsel %vm315, %v306, 0
      %vm322 = vcmask 1045504
      %v324 = vsel %vm322, %v307, 0
      %326 = vmatprep.subr.mxu0 0.0
      %327 = vmatpush1.msra.mxu0 %v324
      %328 = vmatprep.subr.mxu0 0.0
      %329 = vmatpush1.msra.mxu0 0.0
      %330 = vmatprep.subr.mxu0 0.0
      %331 = vmatpush1.msra.mxu0 0.0
      %332 = vmatprep.subr.mxu0 0.0
      %333 = vmatpush1.msra.mxu0 0.0
      %334 = vmatprep.subr.mxu0 0.0
      %335 = vmatpush1.msra.mxu0 0.0
      %336 = vmatprep.subr.mxu0 0.0
      %337 = vmatpush1.msra.mxu0 0.0
      %338 = vmatprep.subr.mxu0 0.0
      %339 = vmatpush1.msra.mxu0 0.0
      %340 = vmatprep.subr.mxu0 0.0
      %341 = vmatpush1.msra.mxu0 0.0
      %342 = vmatprep.subr.mxu0 0.0
      %343 = vmatpush1.msra.mxu0 0.0
      %344 = vmatprep.subr.mxu0 0.0
      %345 = vmatpush1.msra.mxu0 0.0
      %346 = vmatprep.subr.mxu0 0.0
      %347 = vmatpush1.msra.mxu0 0.0
      %348 = vmatprep.subr.mxu0 0.0
      %349 = vmatpush1.msra.mxu0 0.0
      %350 = vmatprep.subr.mxu0 0.0
      %351 = vmatpush1.msra.mxu0 0.0
      %352 = vmatprep.subr.mxu0 0.0
      %353 = vmatpush1.msra.mxu0 0.0
      %354 = vmatprep.subr.mxu0 0.0
      %355 = vmatpush1.msra.mxu0 0.0
      %356 = vmatprep.subr.mxu0 0.0
      %357 = vmatpush1.msra.mxu0 0.0
      %358 = vmatprep.subr.mxu0 0.0
      %359 = vmatpush1.msra.mxu0 0.0
      %360 = vmatprep.subr.mxu0 0.0
      %361 = vmatpush1.msra.mxu0 0.0
      %362 = vmatprep.subr.mxu0 0.0
      %363 = vmatpush1.msra.mxu0 0.0
      %364 = vmatprep.subr.mxu0 0.0
      %365 = vmatpush1.msra.mxu0 0.0
      %366 = vmatprep.subr.mxu0 0.0
      %367 = vmatpush1.msra.mxu0 0.0
      %368 = vmatprep.subr.mxu0 0.0
      %369 = vmatpush1.msra.mxu0 0.0
      %370 = vmatprep.subr.mxu0 0.0
      %371 = vmatpush1.msra.mxu0 0.0
      %372 = vmatprep.subr.mxu0 0.0
      %373 = vmatpush1.msra.mxu0 0.0
      %374 = vmatprep.subr.mxu0 0.0
      %375 = vmatpush1.msra.mxu0 0.0
      %376 = vmatprep.subr.mxu0 0.0
      %377 = vmatpush1.msra.mxu0 0.0
      %378 = vmatprep.subr.mxu0 0.0
      %379 = vmatpush1.msra.mxu0 0.0
      %380 = vmatprep.subr.mxu0 0.0
      %381 = vmatpush1.msra.mxu0 0.0
      %382 = vmatprep.subr.mxu0 0.0
      %383 = vmatpush1.msra.mxu0 0.0
      %384 = vmatprep.subr.mxu0 0.0
      %385 = vmatpush1.msra.mxu0 0.0
      %386 = vmatprep.subr.mxu0 0.0
      %387 = vmatpush1.msra.mxu0 0.0
      %388 = vmatprep.subr.mxu0 0.0
      %389 = vmatpush1.msra.mxu0 0.0
      %390 = vmatprep.mubr.f32.mxu0 0.0
      %391 = vmatmul.mubr.f32.gmra.mrb[0].mxu0 %v317
      %v392 = vpop.f32.mrb[0].mxu0
      %v393 = vadd.f32 %v313, %v392
      %v394 = vpop.f32.mrb[0].mxu0
      %395 = vmatprep.mubr.f32.mxu0 0.0
      %396 = vmatmul.mubr.f32.gmra.mrb[0].mxu0 %v320
      %v397 = vpop.f32.mrb[0].mxu0
      %v398 = vadd.f32 %v313, %v397
      %v399 = vpop.f32.mrb[0].mxu0
      %400 = vdwg.mxu0
      %vm401 = vcmp.ge.f32.partialorder %v393, 0.0
      %vm402 = vcmp.ge.f32.partialorder %v398, 0.0
      %v403 = vmul.f32 %v393, 0.01
      %v404 = vmul.f32 %v398, 0.01
      %v405 = vsel %vm401, %v393, %v403
      %v406 = vsel %vm402, %v398, %v404
      %v407 = vld [vmem:[%s3] sm:$0xff]
      %v408 = vld [vmem:[%s3 + $0x8] sm:$0xff]
      %v409 = vld [vmem:[%s3 + $0x10] sm:$0xff]
      %v410 = vld [vmem:[%s3 + $0x18] sm:$0xff]
      %v411 = vld [vmem:[%s3 + $0x20] sm:$0xff]
      %v412 = vld [vmem:[%s3 + $0x28] sm:$0xff]
      %v413 = vld [vmem:[%s3 + $0x30] sm:$0xff]
      %v414 = vld [vmem:[%s3 + $0x38] sm:$0xff]
      %v415 = vld [vmem:[%s4] sm:$0x1]
      %v417 = vlaneseq
      %v418 = vshrl.u32 %v417, 7
      %v419 = vsub.s32 0, %v418
      %v420 = vrot.slane %v415, %v419
      %vm422 = vcmask 523264
      %v424 = vsel %vm422, %v405, 0
      %v427 = vsel %vm422, %v406, 0
      %429 = vmatprep.subr.mxu0 0.0
      %430 = vmatpush1.msra.mxu0 %v407
      %431 = vmatprep.subr.mxu0 0.0
      %432 = vmatpush1.msra.mxu0 %v408
      %433 = vmatprep.subr.mxu0 0.0
      %434 = vmatpush1.msra.mxu0 %v409
      %435 = vmatprep.subr.mxu0 0.0
      %436 = vmatpush1.msra.mxu0 %v410
      %437 = vmatprep.subr.mxu0 0.0
      %438 = vmatpush1.msra.mxu0 %v411
      %439 = vmatprep.subr.mxu0 0.0
      %440 = vmatpush1.msra.mxu0 %v412
      %441 = vmatprep.subr.mxu0 0.0
      %442 = vmatpush1.msra.mxu0 %v413
      %443 = vmatprep.subr.mxu0 0.0
      %444 = vmatpush1.msra.mxu0 %v414
      %445 = vmatprep.subr.mxu0 0.0
      %446 = vmatpush1.msra.mxu0 0.0
      %447 = vmatprep.subr.mxu0 0.0
      %448 = vmatpush1.msra.mxu0 0.0
      %449 = vmatprep.subr.mxu0 0.0
      %450 = vmatpush1.msra.mxu0 0.0
      %451 = vmatprep.subr.mxu0 0.0
      %452 = vmatpush1.msra.mxu0 0.0
      %453 = vmatprep.subr.mxu0 0.0
      %454 = vmatpush1.msra.mxu0 0.0
      %455 = vmatprep.subr.mxu0 0.0
      %456 = vmatpush1.msra.mxu0 0.0
      %457 = vmatprep.subr.mxu0 0.0
      %458 = vmatpush1.msra.mxu0 0.0
      %459 = vmatprep.subr.mxu0 0.0
      %460 = vmatpush1.msra.mxu0 0.0
      %461 = vmatprep.subr.mxu0 0.0
      %462 = vmatpush1.msra.mxu0 0.0
      %463 = vmatprep.subr.mxu0 0.0
      %464 = vmatpush1.msra.mxu0 0.0
      %465 = vmatprep.subr.mxu0 0.0
      %466 = vmatpush1.msra.mxu0 0.0
      %467 = vmatprep.subr.mxu0 0.0
      %468 = vmatpush1.msra.mxu0 0.0
      %469 = vmatprep.subr.mxu0 0.0
      %470 = vmatpush1.msra.mxu0 0.0
      %471 = vmatprep.subr.mxu0 0.0
      %472 = vmatpush1.msra.mxu0 0.0
      %473 = vmatprep.subr.mxu0 0.0
      %474 = vmatpush1.msra.mxu0 0.0
      %475 = vmatprep.subr.mxu0 0.0
      %476 = vmatpush1.msra.mxu0 0.0
      %477 = vmatprep.subr.mxu0 0.0
      %478 = vmatpush1.msra.mxu0 0.0
      %479 = vmatprep.subr.mxu0 0.0
      %480 = vmatpush1.msra.mxu0 0.0
      %481 = vmatprep.subr.mxu0 0.0
      %482 = vmatpush1.msra.mxu0 0.0
      %483 = vmatprep.subr.mxu0 0.0
      %484 = vmatpush1.msra.mxu0 0.0
      %485 = vmatprep.subr.mxu0 0.0
      %486 = vmatpush1.msra.mxu0 0.0
      %487 = vmatprep.subr.mxu0 0.0
      %488 = vmatpush1.msra.mxu0 0.0
      %489 = vmatprep.subr.mxu0 0.0
      %490 = vmatpush1.msra.mxu0 0.0
      %491 = vmatprep.subr.mxu0 0.0
      %492 = vmatpush1.msra.mxu0 0.0
      %493 = vmatprep.mubr.f32.mxu0 0.0
      %494 = vmatmul.mubr.f32.gmra.mrb[0].mxu0 %v424
      %v495 = vpop.f32.mrb[0].mxu0
      %v496 = vadd.f32 %v420, %v495
      %v497 = vpop.f32.mrb[0].mxu0
      %498 = vmatprep.mubr.f32.mxu0 0.0
      %499 = vmatmul.mubr.f32.gmra.mrb[0].mxu0 %v427
      %v500 = vpop.f32.mrb[0].mxu0
      %v501 = vadd.f32 %v420, %v500
      %v502 = vpop.f32.mrb[0].mxu0
      %503 = vdwg.mxu0
      %vm504 = vcmp.ge.f32.partialorder %v496, 0.0
      %vm505 = vcmp.ge.f32.partialorder %v501, 0.0
      %v506 = vmul.f32 %v496, 0.01
      %v507 = vmul.f32 %v501, 0.01
      %v508 = vsel %vm504, %v496, %v506
      %v509 = vsel %vm505, %v501, %v507
      %v510 = vld [vmem:[%s5] sm:$0xff]
      %v511 = vld [vmem:[%s5 + $0x8] sm:$0xff]
      %v512 = vld [vmem:[%s5 + $0x10] sm:$0xff]
      %v513 = vld [vmem:[%s5 + $0x18] sm:$0xff]
      %v514 = vld [vmem:[%s5 + $0x20] sm:$0xff]
      %v515 = vld [vmem:[%s5 + $0x28] sm:$0xff]
      %v516 = vld [vmem:[%s5 + $0x30] sm:$0xff]
      %v517 = vld [vmem:[%s5 + $0x38] sm:$0xff]
      %v518 = vld [vmem:[%s5 + $0x40] sm:$0xff]
      %v519 = vld [vmem:[%s5 + $0x48] sm:$0xff]
      %v520 = vld [vmem:[%s5 + $0x50] sm:$0xff]
      %v521 = vld [vmem:[%s5 + $0x58] sm:$0xff]
      %v522 = vld [vmem:[%s5 + $0x60] sm:$0xff]
      %v523 = vld [vmem:[%s5 + $0x68] sm:$0xff]
      %v524 = vld [vmem:[%s5 + $0x70] sm:$0xff]
      %v525 = vld [vmem:[%s5 + $0x78] sm:$0xff]
      %v526 = vld [vmem:[%s5 + $0x80] sm:$0xff]
      %v527 = vld [vmem:[%s5 + $0x88] sm:$0xff]
      %v528 = vld [vmem:[%s5 + $0x90] sm:$0xff]
      %v529 = vld [vmem:[%s5 + $0x98] sm:$0xff]
      %v530 = vld [vmem:[%s5 + $0xa0] sm:$0xff]
      %v531 = vld [vmem:[%s5 + $0xa8] sm:$0xff]
      %v532 = vld [vmem:[%s5 + $0xb0] sm:$0xff]
      %v533 = vld [vmem:[%s5 + $0xb8] sm:$0xff]
      %v534 = vld [vmem:[%s5 + $0xc0] sm:$0xff]
      %v535 = vld [vmem:[%s5 + $0xc8] sm:$0xff]
      %v536 = vld [vmem:[%s5 + $0xd0] sm:$0xff]
      %v537 = vld [vmem:[%s5 + $0xd8] sm:$0xff]
      %v538 = vld [vmem:[%s5 + $0xe0] sm:$0xff]
      %v539 = vld [vmem:[%s5 + $0xe8] sm:$0xff]
      %v540 = vld [vmem:[%s5 + $0xf0] sm:$0xff]
      %v541 = vld [vmem:[%s5 + $0xf8] sm:$0xff]
      %v542 = vld [vmem:[%s5 + $0x100] sm:$0xff]
      %v543 = vld [vmem:[%s5 + $0x108] sm:$0xff]
      %v544 = vld [vmem:[%s5 + $0x110] sm:$0xff]
      %v545 = vld [vmem:[%s5 + $0x118] sm:$0xff]
      %v546 = vld [vmem:[%s5 + $0x120] sm:$0xff]
      %v547 = vld [vmem:[%s5 + $0x128] sm:$0xff]
      %v548 = vld [vmem:[%s5 + $0x130] sm:$0xff]
      %v549 = vld [vmem:[%s5 + $0x138] sm:$0xff]
      %v550 = vld [vmem:[%s5 + $0x140] sm:$0xff]
      %v551 = vld [vmem:[%s5 + $0x148] sm:$0xff]
      %v552 = vld [vmem:[%s5 + $0x150] sm:$0xff]
      %v553 = vld [vmem:[%s5 + $0x158] sm:$0xff]
      %v554 = vld [vmem:[%s5 + $0x160] sm:$0xff]
      %v555 = vld [vmem:[%s5 + $0x168] sm:$0xff]
      %v556 = vld [vmem:[%s5 + $0x170] sm:$0xff]
      %v557 = vld [vmem:[%s5 + $0x178] sm:$0xff]
      %v558 = vld [vmem:[%s5 + $0x180] sm:$0xff]
      %v559 = vld [vmem:[%s5 + $0x188] sm:$0xff]
      %v560 = vld [vmem:[%s5 + $0x190] sm:$0xff]
      %v561 = vld [vmem:[%s5 + $0x198] sm:$0xff]
      %v562 = vld [vmem:[%s5 + $0x1a0] sm:$0xff]
      %v563 = vld [vmem:[%s5 + $0x1a8] sm:$0xff]
      %v564 = vld [vmem:[%s5 + $0x1b0] sm:$0xff]
      %v565 = vld [vmem:[%s5 + $0x1b8] sm:$0xff]
      %v566 = vld [vmem:[%s5 + $0x1c0] sm:$0xff]
      %v567 = vld [vmem:[%s5 + $0x1c8] sm:$0xff]
      %v568 = vld [vmem:[%s5 + $0x1d0] sm:$0xff]
      %v569 = vld [vmem:[%s5 + $0x1d8] sm:$0xff]
      %v570 = vld [vmem:[%s5 + $0x1e0] sm:$0xff]
      %v571 = vld [vmem:[%s5 + $0x1e8] sm:$0xff]
      %v572 = vld [vmem:[%s5 + $0x1f0] sm:$0xff]
      %v573 = vld [vmem:[%s5 + $0x1f8] sm:$0xff]
      %v574 = vld [vmem:[%s5 + $0x200] sm:$0xff]
      %v575 = vld [vmem:[%s5 + $0x208] sm:$0xff]
      %v576 = vld [vmem:[%s5 + $0x210] sm:$0xff]
      %v577 = vld [vmem:[%s5 + $0x218] sm:$0xff]
      %v578 = vld [vmem:[%s5 + $0x220] sm:$0xff]
      %v579 = vld [vmem:[%s5 + $0x228] sm:$0xff]
      %v580 = vld [vmem:[%s5 + $0x230] sm:$0xff]
      %v581 = vld [vmem:[%s5 + $0x238] sm:$0xff]
      %v582 = vld [vmem:[%s5 + $0x240] sm:$0xff]
      %v583 = vld [vmem:[%s5 + $0x248] sm:$0xff]
      %v584 = vld [vmem:[%s5 + $0x250] sm:$0xff]
      %v585 = vld [vmem:[%s5 + $0x258] sm:$0xff]
      %v586 = vld [vmem:[%s5 + $0x260] sm:$0xff]
      %v587 = vld [vmem:[%s5 + $0x268] sm:$0xff]
      %v588 = vld [vmem:[%s5 + $0x270] sm:$0xff]
      %v589 = vld [vmem:[%s5 + $0x278] sm:$0xff]
      %v590 = vld [vmem:[%s5 + $0x280] sm:$0xff]
      %v591 = vld [vmem:[%s5 + $0x288] sm:$0xff]
      %v592 = vld [vmem:[%s5 + $0x290] sm:$0xff]
      %v593 = vld [vmem:[%s5 + $0x298] sm:$0xff]
      %v594 = vld [vmem:[%s5 + $0x2a0] sm:$0xff]
      %v595 = vld [vmem:[%s5 + $0x2a8] sm:$0xff]
      %v596 = vld [vmem:[%s5 + $0x2b0] sm:$0xff]
      %v597 = vld [vmem:[%s5 + $0x2b8] sm:$0xff]
      %v598 = vld [vmem:[%s5 + $0x2c0] sm:$0xff]
      %v599 = vld [vmem:[%s5 + $0x2c8] sm:$0xff]
      %v600 = vld [vmem:[%s5 + $0x2d0] sm:$0xff]
      %v601 = vld [vmem:[%s5 + $0x2d8] sm:$0xff]
      %v602 = vld [vmem:[%s5 + $0x2e0] sm:$0xff]
      %v603 = vld [vmem:[%s5 + $0x2e8] sm:$0xff]
      %v604 = vld [vmem:[%s5 + $0x2f0] sm:$0xff]
      %v605 = vld [vmem:[%s5 + $0x2f8] sm:$0xff]
      %v606 = vld [vmem:[%s5 + $0x300] sm:$0xff]
      %v607 = vld [vmem:[%s5 + $0x308] sm:$0xff]
      %v608 = vld [vmem:[%s5 + $0x310] sm:$0xff]
      %v609 = vld [vmem:[%s5 + $0x318] sm:$0xff]
      %v610 = vld [vmem:[%s5 + $0x320] sm:$0xff]
      %v611 = vld [vmem:[%s5 + $0x328] sm:$0xff]
      %v612 = vld [vmem:[%s5 + $0x330] sm:$0xff]
      %v613 = vld [vmem:[%s5 + $0x338] sm:$0xff]
      %v614 = vld [vmem:[%s5 + $0x340] sm:$0xff]
      %v615 = vld [vmem:[%s5 + $0x348] sm:$0xff]
      %v616 = vld [vmem:[%s5 + $0x350] sm:$0xff]
      %v617 = vld [vmem:[%s5 + $0x358] sm:$0xff]
      %v618 = vld [vmem:[%s5 + $0x360] sm:$0xff]
      %v619 = vld [vmem:[%s5 + $0x368] sm:$0xff]
      %v620 = vld [vmem:[%s5 + $0x370] sm:$0xff]
      %v621 = vld [vmem:[%s5 + $0x378] sm:$0xff]
      %v622 = vld [vmem:[%s5 + $0x380] sm:$0xff]
      %v623 = vld [vmem:[%s5 + $0x388] sm:$0xff]
      %v624 = vld [vmem:[%s5 + $0x390] sm:$0xff]
      %v625 = vld [vmem:[%s5 + $0x398] sm:$0xff]
      %v626 = vld [vmem:[%s5 + $0x3a0] sm:$0xff]
      %v627 = vld [vmem:[%s5 + $0x3a8] sm:$0xff]
      %v628 = vld [vmem:[%s5 + $0x3b0] sm:$0xff]
      %v629 = vld [vmem:[%s5 + $0x3b8] sm:$0xff]
      %v630 = vld [vmem:[%s5 + $0x3c0] sm:$0xff]
      %v631 = vld [vmem:[%s5 + $0x3c8] sm:$0xff]
      %v632 = vld [vmem:[%s5 + $0x3d0] sm:$0xff]
      %v633 = vld [vmem:[%s5 + $0x3d8] sm:$0xff]
      %v634 = vld [vmem:[%s5 + $0x3e0] sm:$0xff]
      %v635 = vld [vmem:[%s5 + $0x3e8] sm:$0xff]
      %v636 = vld [vmem:[%s5 + $0x3f0] sm:$0xff]
      %v637 = vld [vmem:[%s5 + $0x3f8] sm:$0xff]
      %v638 = vld [vmem:[%s6] sm:$0xff]
      %v640 = vlaneseq
      %v641 = vshrl.u32 %v640, 7
      %v642 = vsub.s32 0, %v641
      %v643 = vrot.slane %v638, %v642
      %v644 = vlaneseq
      %v645 = vshrl.u32 %v644, 7
      %v646 = vsub.s32 1, %v645
      %v647 = vrot.slane %v638, %v646
      %v648 = vlaneseq
      %v649 = vshrl.u32 %v648, 7
      %v650 = vsub.s32 2, %v649
      %v651 = vrot.slane %v638, %v650
      %v652 = vlaneseq
      %v653 = vshrl.u32 %v652, 7
      %v654 = vsub.s32 3, %v653
      %v655 = vrot.slane %v638, %v654
      %v656 = vlaneseq
      %v657 = vshrl.u32 %v656, 7
      %v658 = vsub.s32 4, %v657
      %v659 = vrot.slane %v638, %v658
      %v660 = vlaneseq
      %v661 = vshrl.u32 %v660, 7
      %v662 = vsub.s32 5, %v661
      %v663 = vrot.slane %v638, %v662
      %v664 = vlaneseq
      %v665 = vshrl.u32 %v664, 7
      %v666 = vsub.s32 6, %v665
      %v667 = vrot.slane %v638, %v666
      %v668 = vlaneseq
      %v669 = vshrl.u32 %v668, 7
      %v670 = vsub.s32 7, %v669
      %v671 = vrot.slane %v638, %v670
      %680 = vmatprep.subr.mxu0 %v511
      %681 = vmatpush1.msra.mxu0 %v510
      %682 = vmatprep.subr.mxu0 %v519
      %683 = vmatpush1.msra.mxu0 %v518
      %684 = vmatprep.subr.mxu0 %v527
      %685 = vmatpush1.msra.mxu0 %v526
      %686 = vmatprep.subr.mxu0 %v535
      %687 = vmatpush1.msra.mxu0 %v534
      %688 = vmatprep.subr.mxu0 %v543
      %689 = vmatpush1.msra.mxu0 %v542
      %690 = vmatprep.subr.mxu0 %v551
      %691 = vmatpush1.msra.mxu0 %v550
      %692 = vmatprep.subr.mxu0 %v559
      %693 = vmatpush1.msra.mxu0 %v558
      %694 = vmatprep.subr.mxu0 %v567
      %695 = vmatpush1.msra.mxu0 %v566
      %696 = vmatprep.subr.mxu0 %v575
      %697 = vmatpush1.msra.mxu0 %v574
      %698 = vmatprep.subr.mxu0 %v583
      %699 = vmatpush1.msra.mxu0 %v582
      %700 = vmatprep.subr.mxu0 %v591
      %701 = vmatpush1.msra.mxu0 %v590
      %702 = vmatprep.subr.mxu0 %v599
      %703 = vmatpush1.msra.mxu0 %v598
      %704 = vmatprep.subr.mxu0 %v607
      %705 = vmatpush1.msra.mxu0 %v606
      %706 = vmatprep.subr.mxu0 %v615
      %707 = vmatpush1.msra.mxu0 %v614
      %708 = vmatprep.subr.mxu0 %v623
      %709 = vmatpush1.msra.mxu0 %v622
      %710 = vmatprep.subr.mxu0 %v631
      %711 = vmatpush1.msra.mxu0 %v630
      %712 = vmatprep.subr.mxu0 0.0
      %713 = vmatpush1.msra.mxu0 0.0
      %714 = vmatprep.subr.mxu0 0.0
      %715 = vmatpush1.msra.mxu0 0.0
      %716 = vmatprep.subr.mxu0 0.0
      %717 = vmatpush1.msra.mxu0 0.0
      %718 = vmatprep.subr.mxu0 0.0
      %719 = vmatpush1.msra.mxu0 0.0
      %720 = vmatprep.subr.mxu0 0.0
      %721 = vmatpush1.msra.mxu0 0.0
      %722 = vmatprep.subr.mxu0 0.0
      %723 = vmatpush1.msra.mxu0 0.0
      %724 = vmatprep.subr.mxu0 0.0
      %725 = vmatpush1.msra.mxu0 0.0
      %726 = vmatprep.subr.mxu0 0.0
      %727 = vmatpush1.msra.mxu0 0.0
      %728 = vmatprep.subr.mxu0 0.0
      %729 = vmatpush1.msra.mxu0 0.0
      %730 = vmatprep.subr.mxu0 0.0
      %731 = vmatpush1.msra.mxu0 0.0
      %732 = vmatprep.subr.mxu0 0.0
      %733 = vmatpush1.msra.mxu0 0.0
      %734 = vmatprep.subr.mxu0 0.0
      %735 = vmatpush1.msra.mxu0 0.0
      %736 = vmatprep.subr.mxu0 0.0
      %737 = vmatpush1.msra.mxu0 0.0
      %738 = vmatprep.subr.mxu0 0.0
      %739 = vmatpush1.msra.mxu0 0.0
      %740 = vmatprep.subr.mxu0 0.0
      %741 = vmatpush1.msra.mxu0 0.0
      %742 = vmatprep.subr.mxu0 0.0
      %743 = vmatpush1.msra.mxu0 0.0
      %744 = vmatprep.mubr.f32.mxu0 0.0
      %745 = vmatmul.mubr.f32.gmra.mrb[0].mxu0 %v508
      %v746 = vpop.f32.mrb[0].mxu0
      %v747 = vadd.f32 %v643, %v746
      %v748 = vpop.f32.mrb[0].mxu0
      %v749 = vadd.f32 %v647, %v748
      %750 = vmatprep.mubr.f32.mxu0 0.0
      %751 = vmatmul.mubr.f32.gmra.mrb[0].mxu0 %v509
      %v752 = vpop.f32.mrb[0].mxu0
      %v753 = vadd.f32 %v643, %v752
      %v754 = vpop.f32.mrb[0].mxu0
      %v755 = vadd.f32 %v647, %v754
      %756 = vdwg.mxu0
      %757 = vmatprep.subr.mxu0 %v513
      %758 = vmatpush1.msra.mxu0 %v512
      %759 = vmatprep.subr.mxu0 %v521
      %760 = vmatpush1.msra.mxu0 %v520
      %761 = vmatprep.subr.mxu0 %v529
      %762 = vmatpush1.msra.mxu0 %v528
      %763 = vmatprep.subr.mxu0 %v537
      %764 = vmatpush1.msra.mxu0 %v536
      %765 = vmatprep.subr.mxu0 %v545
      %766 = vmatpush1.msra.mxu0 %v544
      %767 = vmatprep.subr.mxu0 %v553
      %768 = vmatpush1.msra.mxu0 %v552
      %769 = vmatprep.subr.mxu0 %v561
      %770 = vmatpush1.msra.mxu0 %v560
      %771 = vmatprep.subr.mxu0 %v569
      %772 = vmatpush1.msra.mxu0 %v568
      %773 = vmatprep.subr.mxu0 %v577
      %774 = vmatpush1.msra.mxu0 %v576
      %775 = vmatprep.subr.mxu0 %v585
      %776 = vmatpush1.msra.mxu0 %v584
      %777 = vmatprep.subr.mxu0 %v593
      %778 = vmatpush1.msra.mxu0 %v592
      %779 = vmatprep.subr.mxu0 %v601
      %780 = vmatpush1.msra.mxu0 %v600
      %781 = vmatprep.subr.mxu0 %v609
      %782 = vmatpush1.msra.mxu0 %v608
      %783 = vmatprep.subr.mxu0 %v617
      %784 = vmatpush1.msra.mxu0 %v616
      %785 = vmatprep.subr.mxu0 %v625
      %786 = vmatpush1.msra.mxu0 %v624
      %787 = vmatprep.subr.mxu0 %v633
      %788 = vmatpush1.msra.mxu0 %v632
      %789 = vmatprep.subr.mxu0 0.0
      %790 = vmatpush1.msra.mxu0 0.0
      %791 = vmatprep.subr.mxu0 0.0
      %792 = vmatpush1.msra.mxu0 0.0
      %793 = vmatprep.subr.mxu0 0.0
      %794 = vmatpush1.msra.mxu0 0.0
      %795 = vmatprep.subr.mxu0 0.0
      %796 = vmatpush1.msra.mxu0 0.0
      %797 = vmatprep.subr.mxu0 0.0
      %798 = vmatpush1.msra.mxu0 0.0
      %799 = vmatprep.subr.mxu0 0.0
      %800 = vmatpush1.msra.mxu0 0.0
      %801 = vmatprep.subr.mxu0 0.0
      %802 = vmatpush1.msra.mxu0 0.0
      %803 = vmatprep.subr.mxu0 0.0
      %804 = vmatpush1.msra.mxu0 0.0
      %805 = vmatprep.subr.mxu0 0.0
      %806 = vmatpush1.msra.mxu0 0.0
      %807 = vmatprep.subr.mxu0 0.0
      %808 = vmatpush1.msra.mxu0 0.0
      %809 = vmatprep.subr.mxu0 0.0
      %810 = vmatpush1.msra.mxu0 0.0
      %811 = vmatprep.subr.mxu0 0.0
      %812 = vmatpush1.msra.mxu0 0.0
      %813 = vmatprep.subr.mxu0 0.0
      %814 = vmatpush1.msra.mxu0 0.0
      %815 = vmatprep.subr.mxu0 0.0
      %816 = vmatpush1.msra.mxu0 0.0
      %817 = vmatprep.subr.mxu0 0.0
      %818 = vmatpush1.msra.mxu0 0.0
      %819 = vmatprep.subr.mxu0 0.0
      %820 = vmatpush1.msra.mxu0 0.0
      %821 = vmatprep.mubr.f32.mxu0 0.0
      %822 = vmatmul.mubr.f32.gmra.mrb[0].mxu0 %v508
      %v823 = vpop.f32.mrb[0].mxu0
      %v824 = vadd.f32 %v651, %v823
      %v825 = vpop.f32.mrb[0].mxu0
      %v826 = vadd.f32 %v655, %v825
      %827 = vmatprep.mubr.f32.mxu0 0.0
      %828 = vmatmul.mubr.f32.gmra.mrb[0].mxu0 %v509
      %v829 = vpop.f32.mrb[0].mxu0
      %v830 = vadd.f32 %v651, %v829
      %v831 = vpop.f32.mrb[0].mxu0
      %v832 = vadd.f32 %v655, %v831
      %833 = vdwg.mxu0
      %834 = vmatprep.subr.mxu0 %v515
      %835 = vmatpush1.msra.mxu0 %v514
      %836 = vmatprep.subr.mxu0 %v523
      %837 = vmatpush1.msra.mxu0 %v522
      %838 = vmatprep.subr.mxu0 %v531
      %839 = vmatpush1.msra.mxu0 %v530
      %840 = vmatprep.subr.mxu0 %v539
      %841 = vmatpush1.msra.mxu0 %v538
      %842 = vmatprep.subr.mxu0 %v547
      %843 = vmatpush1.msra.mxu0 %v546
      %844 = vmatprep.subr.mxu0 %v555
      %845 = vmatpush1.msra.mxu0 %v554
      %846 = vmatprep.subr.mxu0 %v563
      %847 = vmatpush1.msra.mxu0 %v562
      %848 = vmatprep.subr.mxu0 %v571
      %849 = vmatpush1.msra.mxu0 %v570
      %850 = vmatprep.subr.mxu0 %v579
      %851 = vmatpush1.msra.mxu0 %v578
      %852 = vmatprep.subr.mxu0 %v587
      %853 = vmatpush1.msra.mxu0 %v586
      %854 = vmatprep.subr.mxu0 %v595
      %855 = vmatpush1.msra.mxu0 %v594
      %856 = vmatprep.subr.mxu0 %v603
      %857 = vmatpush1.msra.mxu0 %v602
      %858 = vmatprep.subr.mxu0 %v611
      %859 = vmatpush1.msra.mxu0 %v610
      %860 = vmatprep.subr.mxu0 %v619
      %861 = vmatpush1.msra.mxu0 %v618
      %862 = vmatprep.subr.mxu0 %v627
      %863 = vmatpush1.msra.mxu0 %v626
      %864 = vmatprep.subr.mxu0 %v635
      %865 = vmatpush1.msra.mxu0 %v634
      %866 = vmatprep.subr.mxu0 0.0
      %867 = vmatpush1.msra.mxu0 0.0
      %868 = vmatprep.subr.mxu0 0.0
      %869 = vmatpush1.msra.mxu0 0.0
      %870 = vmatprep.subr.mxu0 0.0
      %871 = vmatpush1.msra.mxu0 0.0
      %872 = vmatprep.subr.mxu0 0.0
      %873 = vmatpush1.msra.mxu0 0.0
      %874 = vmatprep.subr.mxu0 0.0
      %875 = vmatpush1.msra.mxu0 0.0
      %876 = vmatprep.subr.mxu0 0.0
      %877 = vmatpush1.msra.mxu0 0.0
      %878 = vmatprep.subr.mxu0 0.0
      %879 = vmatpush1.msra.mxu0 0.0
      %880 = vmatprep.subr.mxu0 0.0
      %881 = vmatpush1.msra.mxu0 0.0
      %882 = vmatprep.subr.mxu0 0.0
      %883 = vmatpush1.msra.mxu0 0.0
      %884 = vmatprep.subr.mxu0 0.0
      %885 = vmatpush1.msra.mxu0 0.0
      %886 = vmatprep.subr.mxu0 0.0
      %887 = vmatpush1.msra.mxu0 0.0
      %888 = vmatprep.subr.mxu0 0.0
      %889 = vmatpush1.msra.mxu0 0.0
      %890 = vmatprep.subr.mxu0 0.0
      %891 = vmatpush1.msra.mxu0 0.0
      %892 = vmatprep.subr.mxu0 0.0
      %893 = vmatpush1.msra.mxu0 0.0
      %894 = vmatprep.subr.mxu0 0.0
      %895 = vmatpush1.msra.mxu0 0.0
      %896 = vmatprep.subr.mxu0 0.0
      %897 = vmatpush1.msra.mxu0 0.0
      %898 = vmatprep.mubr.f32.mxu0 0.0
      %899 = vmatmul.mubr.f32.gmra.mrb[0].mxu0 %v508
      %v900 = vpop.f32.mrb[0].mxu0
      %v901 = vadd.f32 %v659, %v900
      %v902 = vpop.f32.mrb[0].mxu0
      %v903 = vadd.f32 %v663, %v902
      %904 = vmatprep.mubr.f32.mxu0 0.0
      %905 = vmatmul.mubr.f32.gmra.mrb[0].mxu0 %v509
      %v906 = vpop.f32.mrb[0].mxu0
      %v907 = vadd.f32 %v659, %v906
      %v908 = vpop.f32.mrb[0].mxu0
      %v909 = vadd.f32 %v663, %v908
      %910 = vdwg.mxu0
      %911 = vmatprep.subr.mxu0 %v517
      %912 = vmatpush1.msra.mxu0 %v516
      %913 = vmatprep.subr.mxu0 %v525
      %914 = vmatpush1.msra.mxu0 %v524
      %915 = vmatprep.subr.mxu0 %v533
      %916 = vmatpush1.msra.mxu0 %v532
      %917 = vmatprep.subr.mxu0 %v541
      %918 = vmatpush1.msra.mxu0 %v540
      %919 = vmatprep.subr.mxu0 %v549
      %920 = vmatpush1.msra.mxu0 %v548
      %921 = vmatprep.subr.mxu0 %v557
      %922 = vmatpush1.msra.mxu0 %v556
      %923 = vmatprep.subr.mxu0 %v565
      %924 = vmatpush1.msra.mxu0 %v564
      %925 = vmatprep.subr.mxu0 %v573
      %926 = vmatpush1.msra.mxu0 %v572
      %927 = vmatprep.subr.mxu0 %v581
      %928 = vmatpush1.msra.mxu0 %v580
      %929 = vmatprep.subr.mxu0 %v589
      %930 = vmatpush1.msra.mxu0 %v588
      %931 = vmatprep.subr.mxu0 %v597
      %932 = vmatpush1.msra.mxu0 %v596
      %933 = vmatprep.subr.mxu0 %v605
      %934 = vmatpush1.msra.mxu0 %v604
      %935 = vmatprep.subr.mxu0 %v613
      %936 = vmatpush1.msra.mxu0 %v612
      %937 = vmatprep.subr.mxu0 %v621
      %938 = vmatpush1.msra.mxu0 %v620
      %939 = vmatprep.subr.mxu0 %v629
      %940 = vmatpush1.msra.mxu0 %v628
      %941 = vmatprep.subr.mxu0 %v637
      %942 = vmatpush1.msra.mxu0 %v636
      %943 = vmatprep.subr.mxu0 0.0
      %944 = vmatpush1.msra.mxu0 0.0
      %945 = vmatprep.subr.mxu0 0.0
      %946 = vmatpush1.msra.mxu0 0.0
      %947 = vmatprep.subr.mxu0 0.0
      %948 = vmatpush1.msra.mxu0 0.0
      %949 = vmatprep.subr.mxu0 0.0
      %950 = vmatpush1.msra.mxu0 0.0
      %951 = vmatprep.subr.mxu0 0.0
      %952 = vmatpush1.msra.mxu0 0.0
      %953 = vmatprep.subr.mxu0 0.0
      %954 = vmatpush1.msra.mxu0 0.0
      %955 = vmatprep.subr.mxu0 0.0
      %956 = vmatpush1.msra.mxu0 0.0
      %957 = vmatprep.subr.mxu0 0.0
      %958 = vmatpush1.msra.mxu0 0.0
      %959 = vmatprep.subr.mxu0 0.0
      %960 = vmatpush1.msra.mxu0 0.0
      %961 = vmatprep.subr.mxu0 0.0
      %962 = vmatpush1.msra.mxu0 0.0
      %963 = vmatprep.subr.mxu0 0.0
      %964 = vmatpush1.msra.mxu0 0.0
      %965 = vmatprep.subr.mxu0 0.0
      %966 = vmatpush1.msra.mxu0 0.0
      %967 = vmatprep.subr.mxu0 0.0
      %968 = vmatpush1.msra.mxu0 0.0
      %969 = vmatprep.subr.mxu0 0.0
      %970 = vmatpush1.msra.mxu0 0.0
      %971 = vmatprep.subr.mxu0 0.0
      %972 = vmatpush1.msra.mxu0 0.0
      %973 = vmatprep.subr.mxu0 0.0
      %974 = vmatpush1.msra.mxu0 0.0
      %975 = vmatprep.mubr.f32.mxu0 0.0
      %976 = vmatmul.mubr.f32.gmra.mrb[0].mxu0 %v508
      %v977 = vpop.f32.mrb[0].mxu0
      %v978 = vadd.f32 %v667, %v977
      %v979 = vpop.f32.mrb[0].mxu0
      %v980 = vadd.f32 %v671, %v979
      %981 = vmatprep.mubr.f32.mxu0 0.0
      %982 = vmatmul.mubr.f32.gmra.mrb[0].mxu0 %v509
      %v983 = vpop.f32.mrb[0].mxu0
      %v984 = vadd.f32 %v667, %v983
      %v985 = vpop.f32.mrb[0].mxu0
      %v986 = vadd.f32 %v671, %v985
      %987 = vdwg.mxu0
      %vm988 = vcmp.ge.f32.partialorder %v747, 0.0
      %vm989 = vcmp.ge.f32.partialorder %v749, 0.0
      %vm990 = vcmp.ge.f32.partialorder %v824, 0.0
      %vm991 = vcmp.ge.f32.partialorder %v826, 0.0
      %vm992 = vcmp.ge.f32.partialorder %v901, 0.0
      %vm993 = vcmp.ge.f32.partialorder %v903, 0.0
      %vm994 = vcmp.ge.f32.partialorder %v978, 0.0
      %vm995 = vcmp.ge.f32.partialorder %v980, 0.0
      %vm996 = vcmp.ge.f32.partialorder %v753, 0.0
      %vm997 = vcmp.ge.f32.partialorder %v755, 0.0
      %vm998 = vcmp.ge.f32.partialorder %v830, 0.0
      %vm999 = vcmp.ge.f32.partialorder %v832, 0.0
      %vm1000 = vcmp.ge.f32.partialorder %v907, 0.0
      %vm1001 = vcmp.ge.f32.partialorder %v909, 0.0
      %vm1002 = vcmp.ge.f32.partialorder %v984, 0.0
      %vm1003 = vcmp.ge.f32.partialorder %v986, 0.0
      %v1004 = vmul.f32 %v747, 0.01
      %v1005 = vmul.f32 %v749, 0.01
      %v1006 = vmul.f32 %v824, 0.01
      %v1007 = vmul.f32 %v826, 0.01
      %v1008 = vmul.f32 %v901, 0.01
      %v1009 = vmul.f32 %v903, 0.01
      %v1010 = vmul.f32 %v978, 0.01
      %v1011 = vmul.f32 %v980, 0.01
      %v1012 = vmul.f32 %v753, 0.01
      %v1013 = vmul.f32 %v755, 0.01
      %v1014 = vmul.f32 %v830, 0.01
      %v1015 = vmul.f32 %v832, 0.01
      %v1016 = vmul.f32 %v907, 0.01
      %v1017 = vmul.f32 %v909, 0.01
      %v1018 = vmul.f32 %v984, 0.01
      %v1019 = vmul.f32 %v986, 0.01
      %v1020 = vsel %vm988, %v747, %v1004
      %v1021 = vsel %vm989, %v749, %v1005
      %v1022 = vsel %vm990, %v824, %v1006
      %v1023 = vsel %vm991, %v826, %v1007
      %v1024 = vsel %vm992, %v901, %v1008
      %v1025 = vsel %vm993, %v903, %v1009
      %v1026 = vsel %vm994, %v978, %v1010
      %v1027 = vsel %vm995, %v980, %v1011
      %v1028 = vsel %vm996, %v753, %v1012
      %v1029 = vsel %vm997, %v755, %v1013
      %v1030 = vsel %vm998, %v830, %v1014
      %v1031 = vsel %vm999, %v832, %v1015
      %v1032 = vsel %vm1000, %v907, %v1016
      %v1033 = vsel %vm1001, %v909, %v1017
      %v1034 = vsel %vm1002, %v984, %v1018
      %v1035 = vsel %vm1003, %v986, %v1019
      %s1036 = smul.u32 %s23, 16
      %v1037 = vlaneseq
      %v1038 = vshrl.u32 %v1037, 7
      %v1039 = vadd.s32 %v1038, 8
      %v1040 = vstv %s1036
      %v1041 = vadd.s32 %v1040, %v1038
      %v1042 = vadd.s32 %v1040, %v1039
      %vm1043 = vcmp.lt.s32.totalorder %v1041, 16
      %vm1044 = vcmp.lt.s32.totalorder %v1042, 16
      %v1045 = vsel %vm1043, 1, 0
      %v1046 = vsel %vm1044, 1, 0
      %vm1047 = vcmp.eq.s32.totalorder %v1045, 1
      %vm1048 = vcmp.eq.s32.totalorder %v1046, 1
      %v1049 = vsel %vm1047, %v1020, -inf
      %v1050 = vsel %vm1047, %v1021, -inf
      %v1051 = vsel %vm1047, %v1022, -inf
      %v1052 = vsel %vm1047, %v1023, -inf
      %v1053 = vsel %vm1047, %v1024, -inf
      %v1054 = vsel %vm1047, %v1025, -inf
      %v1055 = vsel %vm1047, %v1026, -inf
      %v1056 = vsel %vm1047, %v1027, -inf
      %v1057 = vsel %vm1048, %v1028, -inf
      %v1058 = vsel %vm1048, %v1029, -inf
      %v1059 = vsel %vm1048, %v1030, -inf
      %v1060 = vsel %vm1048, %v1031, -inf
      %v1061 = vsel %vm1048, %v1032, -inf
      %v1062 = vsel %vm1048, %v1033, -inf
      %v1063 = vsel %vm1048, %v1034, -inf
      %v1064 = vsel %vm1048, %v1035, -inf
      %v1065 = vmax.f32 %v1049, %v1057
      %v1066 = vrot.slane %v1065, 4
      %v1067 = vmax.f32 %v1065, %v1066
      %v1068 = vrot.slane %v1067, 2
      %v1069 = vmax.f32 %v1067, %v1068
      %v1070 = vrot.slane %v1069, 1
      %v1071 = vmax.f32 %v1069, %v1070
      %v1072 = vmax.f32 %v1050, %v1058
      %v1073 = vrot.slane %v1072, 4
      %v1074 = vmax.f32 %v1072, %v1073
      %v1075 = vrot.slane %v1074, 2
      %v1076 = vmax.f32 %v1074, %v1075
      %v1077 = vrot.slane %v1076, 1
      %v1078 = vmax.f32 %v1076, %v1077
      %v1079 = vmax.f32 %v1051, %v1059
      %v1080 = vrot.slane %v1079, 4
      %v1081 = vmax.f32 %v1079, %v1080
      %v1082 = vrot.slane %v1081, 2
      %v1083 = vmax.f32 %v1081, %v1082
      %v1084 = vrot.slane %v1083, 1
      %v1085 = vmax.f32 %v1083, %v1084
      %v1086 = vmax.f32 %v1052, %v1060
      %v1087 = vrot.slane %v1086, 4
      %v1088 = vmax.f32 %v1086, %v1087
      %v1089 = vrot.slane %v1088, 2
      %v1090 = vmax.f32 %v1088, %v1089
      %v1091 = vrot.slane %v1090, 1
      %v1092 = vmax.f32 %v1090, %v1091
      %v1093 = vmax.f32 %v1053, %v1061
      %v1094 = vrot.slane %v1093, 4
      %v1095 = vmax.f32 %v1093, %v1094
      %v1096 = vrot.slane %v1095, 2
      %v1097 = vmax.f32 %v1095, %v1096
      %v1098 = vrot.slane %v1097, 1
      %v1099 = vmax.f32 %v1097, %v1098
      %v1100 = vmax.f32 %v1054, %v1062
      %v1101 = vrot.slane %v1100, 4
      %v1102 = vmax.f32 %v1100, %v1101
      %v1103 = vrot.slane %v1102, 2
      %v1104 = vmax.f32 %v1102, %v1103
      %v1105 = vrot.slane %v1104, 1
      %v1106 = vmax.f32 %v1104, %v1105
      %v1107 = vmax.f32 %v1055, %v1063
      %v1108 = vrot.slane %v1107, 4
      %v1109 = vmax.f32 %v1107, %v1108
      %v1110 = vrot.slane %v1109, 2
      %v1111 = vmax.f32 %v1109, %v1110
      %v1112 = vrot.slane %v1111, 1
      %v1113 = vmax.f32 %v1111, %v1112
      %v1114 = vmax.f32 %v1056, %v1064
      %v1115 = vrot.slane %v1114, 4
      %v1116 = vmax.f32 %v1114, %v1115
      %v1117 = vrot.slane %v1116, 2
      %v1118 = vmax.f32 %v1116, %v1117
      %v1119 = vrot.slane %v1118, 1
      %v1120 = vmax.f32 %v1118, %v1119
      %p1121 = scmp.eq.s32.totalorder %s23, 0
      // Predicated region
      $region49: #{pointgat_forward.12} parent=47 // pred_check
        %p1122 = pneg %p1121
      $region50: #{pointgat_forward.12} parent=47 // pred_check_branch
        %1124 = sbr.rel (%p1122) target = $region52
      $region51: #{pointgat_forward.12} parent=47 // pred_region
        %v1133 = vcombine.low %v1071, %v1078
        %v1134 = vcombine.low %v1085, %v1092
        %v1135 = vcombine.low %v1099, %v1106
        %v1136 = vcombine.low %v1113, %v1120
        %v1138 = vunpack.c.l.s4 1966171168
        %v1139 = vunpack.c.0.s8 %v1138
        %v1140 = vlaneseq
        %v1141 = vshrl.u32 %v1140, 7
        %v1142 = vsub.s32 %v1139, %v1141
        %v1143 = vrot.slane %v1133, %v1142
        %v1145 = vunpack.c.l.s4 1966171168
        %v1146 = vunpack.c.0.s8 %v1145
        %v1147 = vlaneseq
        %v1148 = vshrl.u32 %v1147, 7
        %v1149 = vsub.s32 %v1146, %v1148
        %v1150 = vrot.slane %v1134, %v1149
        %v1152 = vunpack.c.l.s4 1966171168
        %v1153 = vunpack.c.0.s8 %v1152
        %v1154 = vlaneseq
        %v1155 = vshrl.u32 %v1154, 7
        %v1156 = vsub.s32 %v1153, %v1155
        %v1157 = vrot.slane %v1135, %v1156
        %v1159 = vunpack.c.l.s4 1966171168
        %v1160 = vunpack.c.0.s8 %v1159
        %v1161 = vlaneseq
        %v1162 = vshrl.u32 %v1161, 7
        %v1163 = vsub.s32 %v1160, %v1162
        %v1164 = vrot.slane %v1136, %v1163
        %v1165 = vcombine.low %v1143, %v1150
        %v1166 = vcombine.low %v1157, %v1164
        %v1168 = vunpack.c.l.s4 1966171168
        %v1169 = vunpack.c.0.s8 %v1168
        %v1170 = vlaneseq
        %v1171 = vshrl.u32 %v1170, 7
        %v1172 = vsub.s32 %v1169, %v1171
        %v1173 = vrot.slane %v1165, %v1172
        %v1175 = vunpack.c.l.s4 1966171168
        %v1176 = vunpack.c.0.s8 %v1175
        %v1177 = vlaneseq
        %v1178 = vshrl.u32 %v1177, 7
        %v1179 = vsub.s32 %v1176, %v1178
        %v1180 = vrot.slane %v1166, %v1179
        %v1181 = vcombine.low %v1173, %v1180
        %1183 = vst [vmem:[%s304] sm:$0xff] %v1181
      $region52: #{pointgat_forward.12} parent=47 // pred_fallthru
        _
      %p1184 = scmp.gt.s32.totalorder %s23, 0
      // Predicated region
      $region53: #{pointgat_forward.12} parent=47 // pred_check
        %p1185 = pneg %p1184
      $region54: #{pointgat_forward.12} parent=47 // pred_check_branch
        %1187 = sbr.rel (%p1185) target = $region56
      $region55: #{pointgat_forward.12} parent=47 // pred_region
        %v1188 = vld [vmem:[%s304] sm:$0xff]
        %v1197 = vcombine.low %v1071, %v1078
        %v1198 = vcombine.low %v1085, %v1092
        %v1199 = vcombine.low %v1099, %v1106
        %v1200 = vcombine.low %v1113, %v1120
        %v1202 = vunpack.c.l.s4 1966171168
        %v1203 = vunpack.c.0.s8 %v1202
        %v1204 = vlaneseq
        %v1205 = vshrl.u32 %v1204, 7
        %v1206 = vsub.s32 %v1203, %v1205
        %v1207 = vrot.slane %v1197, %v1206
        %v1209 = vunpack.c.l.s4 1966171168
        %v1210 = vunpack.c.0.s8 %v1209
        %v1211 = vlaneseq
        %v1212 = vshrl.u32 %v1211, 7
        %v1213 = vsub.s32 %v1210, %v1212
        %v1214 = vrot.slane %v1198, %v1213
        %v1216 = vunpack.c.l.s4 1966171168
        %v1217 = vunpack.c.0.s8 %v1216
        %v1218 = vlaneseq
        %v1219 = vshrl.u32 %v1218, 7
        %v1220 = vsub.s32 %v1217, %v1219
        %v1221 = vrot.slane %v1199, %v1220
        %v1223 = vunpack.c.l.s4 1966171168
        %v1224 = vunpack.c.0.s8 %v1223
        %v1225 = vlaneseq
        %v1226 = vshrl.u32 %v1225, 7
        %v1227 = vsub.s32 %v1224, %v1226
        %v1228 = vrot.slane %v1200, %v1227
        %v1229 = vcombine.low %v1207, %v1214
        %v1230 = vcombine.low %v1221, %v1228
        %v1232 = vunpack.c.l.s4 1966171168
        %v1233 = vunpack.c.0.s8 %v1232
        %v1234 = vlaneseq
        %v1235 = vshrl.u32 %v1234, 7
        %v1236 = vsub.s32 %v1233, %v1235
        %v1237 = vrot.slane %v1229, %v1236
        %v1239 = vunpack.c.l.s4 1966171168
        %v1240 = vunpack.c.0.s8 %v1239
        %v1241 = vlaneseq
        %v1242 = vshrl.u32 %v1241, 7
        %v1243 = vsub.s32 %v1240, %v1242
        %v1244 = vrot.slane %v1230, %v1243
        %v1245 = vcombine.low %v1237, %v1244
        %v1247 = vmax.f32 %v1188, %v1245
        %1248 = vst [vmem:[%s304] sm:$0xff] %v1247
      $region56: #{pointgat_forward.12} parent=47 // pred_fallthru
        _
      %p1249 = scmp.lt.s32.totalorder %s22, 1
      %s1250 = scalar_select %p1249, %s22, 1
      %s1251 = smul.addr %s1250, 8
      %s1252 = scalar_lea.vmem %s7, %s1251
      // Predicated region
      $region57: #{pointgat_forward.12} parent=47 // pred_check
        %p1253 = pneg %p202
      $region58: #{pointgat_forward.12} parent=47 // pred_check_branch
        %1255 = sbr.rel (%p1253) target = $region60
      $region59: #{pointgat_forward.12} parent=47 // pred_region
        _
      $region60: #{pointgat_forward.12} parent=47 // pred_fallthru
        _
    $region48: #{pointgat_forward.12} parent=5 // pred_fallthru
      _
    %p1256 = scmp.le.s32.totalorder 2, %s13
    // Predicated region
    $region61: #{pointgat_forward.12} parent=5 // pred_check
      %p1257 = pneg %p1256
    $region62: #{pointgat_forward.12} parent=5 // pred_check_branch
      %1259 = sbr.rel (%p1257) target = $region64
    $region63: #{pointgat_forward.12} parent=5 // pred_region
      %s1260 = ssub.s32 %s13, 2
      // Predicated region
      $region65: #{pointgat_forward.12} parent=63 // pred_check
        %p1261 = pneg %p208
      $region66: #{pointgat_forward.12} parent=63 // pred_check_branch
        %1263 = sbr.rel (%p1261) target = $region68
      $region67: #{pointgat_forward.12} parent=63 // pred_region
        %p1264 = scmp.lt.s32.totalorder %s24, 1
        %s1265 = scalar_select %p1264, %s24, 1
        %s1266 = smul.addr %s1265, 8
        %s1267 = scalar_lea.vmem %s7, %s1266
      $region68: #{pointgat_forward.12} parent=63 // pred_fallthru
        _
    $region64: #{pointgat_forward.12} parent=5 // pred_fallthru
      _
  $region6: #{pointgat_forward.12} parent=0 // loop_footer
    %s17 = sadd.s32 1, %s13
  $region7: #{pointgat_forward.12} parent=0 // loop_footer_branch
    %12 = sbr.rel target = $region3
  $region8: #{pointgat_forward.12} parent=0 // loop_exit
    _

// kernel: pointgat_forward.13
$region0: #{pointgat_forward.13}
  #allocation0 [shape = 'u32[]', space=smem, size = 0x4, offset = 0x4, fixed_abs, tag = 'smem constant byte address 0x4 - core index']
  #allocation1 [shape = 'u32[144,128]{1,0:T(1,128)}', space=vmem, size = 0x12000, scoped, tag = 'internal scratch']
  %s0 = inlined_call_operand.vmem [shape: f32[2,128], index: 0, kind: input, shape index: {}]
  %s1 = inlined_call_operand.vmem [shape: f32[2,1024], index: 1, kind: input, shape index: {}]
  %s2 = inlined_call_operand.vmem [shape: f32[1024,512], index: 2, kind: input, shape index: {}]
  %s3 = inlined_call_operand.vmem [shape: f32[1,512], index: 3, kind: input, shape index: {}]
  %s4 = inlined_call_operand.vmem [shape: f32[512,32], index: 4, kind: input, shape index: {}]
  %s5 = inlined_call_operand.vmem [shape: f32[1,32], index: 5, kind: input, shape index: {}]
  %s6 = inlined_call_operand.vmem [shape: f32[128,32], index: 6, kind: input, shape index: {}]
  %s7 = inlined_call_operand.vmem [shape: f32[32,32], index: 7, kind: input, shape index: {}]
  %s8 = inlined_call_operand.vmem [shape: f32[1,32], index: 8, kind: input, shape index: {}]
  %s9 = inlined_call_operand.vmem [shape: f32[32,3], index: 9, kind: input, shape index: {}]
  %s10 = inlined_call_operand.vmem [shape: f32[1,3], index: 10, kind: input, shape index: {}]
  %s11 = inlined_call_operand.hbm [shape: f32[2,3], index: 11, kind: output, shape index: {}]
  %s12 = sld [smem:[#allocation0]]
  $region54: #{pointgat_forward.13} parent=0
    _
  %s14 = ssub.s32 1, %s12
  %s15 = scalar_select 0, %s14, %s12
  $region1: #{pointgat_forward.13} parent=0
    #allocation2 [shape = 'u8[1024]{0}', space=vmem, size = 0x400, scoped, tag = 'output window, operand 0, single buffered']
    #allocation3 [shape = 's32[1]{0}', space=sflag, size = 0x4, scoped, tag = 'scoped memory for pointgat_forward.13']
    %16 = vsyncpa [#allocation3], 0
    // Predicated region
    $region2: #{pointgat_forward.13} parent=1 // pred_check
      _
    $region3: #{pointgat_forward.13} parent=1 // pred_check_branch
      %18 = sbr.rel (0) target = $region5
    $region4: #{pointgat_forward.13} parent=1 // pred_region
      _
    $region5: #{pointgat_forward.13} parent=1 // pred_fallthru
      _
    // Predicated region
    $region6: #{pointgat_forward.13} parent=1 // pred_check
      _
    $region7: #{pointgat_forward.13} parent=1 // pred_check_branch
      %20 = sbr.rel (0) target = $region9
    $region8: #{pointgat_forward.13} parent=1 // pred_region
      _
    $region9: #{pointgat_forward.13} parent=1 // pred_fallthru
      _
    // Predicated region
    $region10: #{pointgat_forward.13} parent=1 // pred_check
      _
    $region11: #{pointgat_forward.13} parent=1 // pred_check_branch
      %22 = sbr.rel (0) target = $region13
    $region12: #{pointgat_forward.13} parent=1 // pred_region
      _
    $region13: #{pointgat_forward.13} parent=1 // pred_fallthru
      _
    // Predicated region
    $region14: #{pointgat_forward.13} parent=1 // pred_check
      _
    $region15: #{pointgat_forward.13} parent=1 // pred_check_branch
      %24 = sbr.rel (0) target = $region17
    $region16: #{pointgat_forward.13} parent=1 // pred_region
      _
    $region17: #{pointgat_forward.13} parent=1 // pred_fallthru
      _
    // Predicated region
    $region18: #{pointgat_forward.13} parent=1 // pred_check
      _
    $region19: #{pointgat_forward.13} parent=1 // pred_check_branch
      %26 = sbr.rel (0) target = $region21
    $region20: #{pointgat_forward.13} parent=1 // pred_region
      _
    $region21: #{pointgat_forward.13} parent=1 // pred_fallthru
      _
    // Predicated region
    $region22: #{pointgat_forward.13} parent=1 // pred_check
      _
    $region23: #{pointgat_forward.13} parent=1 // pred_check_branch
      %28 = sbr.rel (0) target = $region25
    $region24: #{pointgat_forward.13} parent=1 // pred_region
      _
    $region25: #{pointgat_forward.13} parent=1 // pred_fallthru
      _
    // Predicated region
    $region26: #{pointgat_forward.13} parent=1 // pred_check
      _
    $region27: #{pointgat_forward.13} parent=1 // pred_check_branch
      %30 = sbr.rel (0) target = $region29
    $region28: #{pointgat_forward.13} parent=1 // pred_region
      _
    $region29: #{pointgat_forward.13} parent=1 // pred_fallthru
      _
    // Predicated region
    $region30: #{pointgat_forward.13} parent=1 // pred_check
      _
    $region31: #{pointgat_forward.13} parent=1 // pred_check_branch
      %32 = sbr.rel (0) target = $region33
    $region32: #{pointgat_forward.13} parent=1 // pred_region
      _
    $region33: #{pointgat_forward.13} parent=1 // pred_fallthru
      _
    // Predicated region
    $region34: #{pointgat_forward.13} parent=1 // pred_check
      _
    $region35: #{pointgat_forward.13} parent=1 // pred_check_branch
      %34 = sbr.rel (0) target = $region37
    $region36: #{pointgat_forward.13} parent=1 // pred_region
      _
    $region37: #{pointgat_forward.13} parent=1 // pred_fallthru
      _
    // Predicated region
    $region38: #{pointgat_forward.13} parent=1 // pred_check
      _
    $region39: #{pointgat_forward.13} parent=1 // pred_check_branch
      %36 = sbr.rel (0) target = $region41
    $region40: #{pointgat_forward.13} parent=1 // pred_region
      _
    $region41: #{pointgat_forward.13} parent=1 // pred_fallthru
      _
    // Predicated region
    $region42: #{pointgat_forward.13} parent=1 // pred_check
      _
    $region43: #{pointgat_forward.13} parent=1 // pred_check_branch
      %38 = sbr.rel (0) target = $region45
    $region44: #{pointgat_forward.13} parent=1 // pred_region
      _
    $region45: #{pointgat_forward.13} parent=1 // pred_fallthru
      _
    %v39 = vld [vmem:[%s1] sm:$0xff]
    %v40 = vld [vmem:[%s1 + $0x8] sm:$0xff]
    %v41 = vld [vmem:[%s2] sm:$0xff]
    %v42 = vld [vmem:[%s2 + $0x8] sm:$0xff]
    %v43 = vld [vmem:[%s2 + $0x10] sm:$0xff]
    %v44 = vld [vmem:[%s2 + $0x18] sm:$0xff]
    %v45 = vld [vmem:[%s2 + $0x20] sm:$0xff]
    %v46 = vld [vmem:[%s2 + $0x28] sm:$0xff]
    %v47 = vld [vmem:[%s2 + $0x30] sm:$0xff]
    %v48 = vld [vmem:[%s2 + $0x38] sm:$0xff]
    %v49 = vld [vmem:[%s2 + $0x40] sm:$0xff]
    %v50 = vld [vmem:[%s2 + $0x48] sm:$0xff]
    %v51 = vld [vmem:[%s2 + $0x50] sm:$0xff]
    %v52 = vld [vmem:[%s2 + $0x58] sm:$0xff]
    %v53 = vld [vmem:[%s2 + $0x60] sm:$0xff]
    %v54 = vld [vmem:[%s2 + $0x68] sm:$0xff]
    %v55 = vld [vmem:[%s2 + $0x70] sm:$0xff]
    %v56 = vld [vmem:[%s2 + $0x78] sm:$0xff]
    %v57 = vld [vmem:[%s2 + $0x80] sm:$0xff]
    %v58 = vld [vmem:[%s2 + $0x88] sm:$0xff]
    %v59 = vld [vmem:[%s2 + $0x90] sm:$0xff]
    %v60 = vld [vmem:[%s2 + $0x98] sm:$0xff]
    %v61 = vld [vmem:[%s2 + $0xa0] sm:$0xff]
    %v62 = vld [vmem:[%s2 + $0xa8] sm:$0xff]
    %v63 = vld [vmem:[%s2 + $0xb0] sm:$0xff]
    %v64 = vld [vmem:[%s2 + $0xb8] sm:$0xff]
    %v65 = vld [vmem:[%s2 + $0xc0] sm:$0xff]
    %v66 = vld [vmem:[%s2 + $0xc8] sm:$0xff]
    %v67 = vld [vmem:[%s2 + $0xd0] sm:$0xff]
    %v68 = vld [vmem:[%s2 + $0xd8] sm:$0xff]
    %v69 = vld [vmem:[%s2 + $0xe0] sm:$0xff]
    %v70 = vld [vmem:[%s2 + $0xe8] sm:$0xff]
    %v71 = vld [vmem:[%s2 + $0xf0] sm:$0xff]
    %v72 = vld [vmem:[%s2 + $0xf8] sm:$0xff]
    %v73 = vld [vmem:[%s2 + $0x100] sm:$0xff]
    %v74 = vld [vmem:[%s2 + $0x108] sm:$0xff]
    %v75 = vld [vmem:[%s2 + $0x110] sm:$0xff]
    %v76 = vld [vmem:[%s2 + $0x118] sm:$0xff]
    %v77 = vld [vmem:[%s2 + $0x120] sm:$0xff]
    %v78 = vld [vmem:[%s2 + $0x128] sm:$0xff]
    %v79 = vld [vmem:[%s2 + $0x130] sm:$0xff]
    %v80 = vld [vmem:[%s2 + $0x138] sm:$0xff]
    %v81 = vld [vmem:[%s2 + $0x140] sm:$0xff]
    %v82 = vld [vmem:[%s2 + $0x148] sm:$0xff]
    %v83 = vld [vmem:[%s2 + $0x150] sm:$0xff]
    %v84 = vld [vmem:[%s2 + $0x158] sm:$0xff]
    %v85 = vld [vmem:[%s2 + $0x160] sm:$0xff]
    %v86 = vld [vmem:[%s2 + $0x168] sm:$0xff]
    %v87 = vld [vmem:[%s2 + $0x170] sm:$0xff]
    %v88 = vld [vmem:[%s2 + $0x178] sm:$0xff]
    %v89 = vld [vmem:[%s2 + $0x180] sm:$0xff]
    %v90 = vld [vmem:[%s2 + $0x188] sm:$0xff]
    %v91 = vld [vmem:[%s2 + $0x190] sm:$0xff]
    %v92 = vld [vmem:[%s2 + $0x198] sm:$0xff]
    %v93 = vld [vmem:[%s2 + $0x1a0] sm:$0xff]
    %v94 = vld [vmem:[%s2 + $0x1a8] sm:$0xff]
    %v95 = vld [vmem:[%s2 + $0x1b0] sm:$0xff]
    %v96 = vld [vmem:[%s2 + $0x1b8] sm:$0xff]
    %v97 = vld [vmem:[%s2 + $0x1c0] sm:$0xff]
    %v98 = vld [vmem:[%s2 + $0x1c8] sm:$0xff]
    %v99 = vld [vmem:[%s2 + $0x1d0] sm:$0xff]
    %v100 = vld [vmem:[%s2 + $0x1d8] sm:$0xff]
    %v101 = vld [vmem:[%s2 + $0x1e0] sm:$0xff]
    %v102 = vld [vmem:[%s2 + $0x1e8] sm:$0xff]
    %v103 = vld [vmem:[%s2 + $0x1f0] sm:$0xff]
    %v104 = vld [vmem:[%s2 + $0x1f8] sm:$0xff]
    %v105 = vld [vmem:[%s2 + $0x200] sm:$0xff]
    %v106 = vld [vmem:[%s2 + $0x208] sm:$0xff]
    %v107 = vld [vmem:[%s2 + $0x210] sm:$0xff]
    %v108 = vld [vmem:[%s2 + $0x218] sm:$0xff]
    %v109 = vld [vmem:[%s2 + $0x220] sm:$0xff]
    %v110 = vld [vmem:[%s2 + $0x228] sm:$0xff]
    %v111 = vld [vmem:[%s2 + $0x230] sm:$0xff]
    %v112 = vld [vmem:[%s2 + $0x238] sm:$0xff]
    %v113 = vld [vmem:[%s2 + $0x240] sm:$0xff]
    %v114 = vld [vmem:[%s2 + $0x248] sm:$0xff]
    %v115 = vld [vmem:[%s2 + $0x250] sm:$0xff]
    %v116 = vld [vmem:[%s2 + $0x258] sm:$0xff]
    %v117 = vld [vmem:[%s2 + $0x260] sm:$0xff]
    %v118 = vld [vmem:[%s2 + $0x268] sm:$0xff]
    %v119 = vld [vmem:[%s2 + $0x270] sm:$0xff]
    %v120 = vld [vmem:[%s2 + $0x278] sm:$0xff]
    %v121 = vld [vmem:[%s2 + $0x280] sm:$0xff]
    %v122 = vld [vmem:[%s2 + $0x288] sm:$0xff]
    %v123 = vld [vmem:[%s2 + $0x290] sm:$0xff]
    %v124 = vld [vmem:[%s2 + $0x298] sm:$0xff]
    %v125 = vld [vmem:[%s2 + $0x2a0] sm:$0xff]
    %v126 = vld [vmem:[%s2 + $0x2a8] sm:$0xff]
    %v127 = vld [vmem:[%s2 + $0x2b0] sm:$0xff]
    %v128 = vld [vmem:[%s2 + $0x2b8] sm:$0xff]
    %v129 = vld [vmem:[%s2 + $0x2c0] sm:$0xff]
    %v130 = vld [vmem:[%s2 + $0x2c8] sm:$0xff]
    %v131 = vld [vmem:[%s2 + $0x2d0] sm:$0xff]
    %v132 = vld [vmem:[%s2 + $0x2d8] sm:$0xff]
    %v133 = vld [vmem:[%s2 + $0x2e0] sm:$0xff]
    %v134 = vld [vmem:[%s2 + $0x2e8] sm:$0xff]
    %v135 = vld [vmem:[%s2 + $0x2f0] sm:$0xff]
    %v136 = vld [vmem:[%s2 + $0x2f8] sm:$0xff]
    %v137 = vld [vmem:[%s2 + $0x300] sm:$0xff]
    %v138 = vld [vmem:[%s2 + $0x308] sm:$0xff]
    %v139 = vld [vmem:[%s2 + $0x310] sm:$0xff]
    %v140 = vld [vmem:[%s2 + $0x318] sm:$0xff]
    %v141 = vld [vmem:[%s2 + $0x320] sm:$0xff]
    %v142 = vld [vmem:[%s2 + $0x328] sm:$0xff]
    %v143 = vld [vmem:[%s2 + $0x330] sm:$0xff]
    %v144 = vld [vmem:[%s2 + $0x338] sm:$0xff]
    %v145 = vld [vmem:[%s2 + $0x340] sm:$0xff]
    %v146 = vld [vmem:[%s2 + $0x348] sm:$0xff]
    %v147 = vld [vmem:[%s2 + $0x350] sm:$0xff]
    %v148 = vld [vmem:[%s2 + $0x358] sm:$0xff]
    %v149 = vld [vmem:[%s2 + $0x360] sm:$0xff]
    %v150 = vld [vmem:[%s2 + $0x368] sm:$0xff]
    %v151 = vld [vmem:[%s2 + $0x370] sm:$0xff]
    %v152 = vld [vmem:[%s2 + $0x378] sm:$0xff]
    %v153 = vld [vmem:[%s2 + $0x380] sm:$0xff]
    %v154 = vld [vmem:[%s2 + $0x388] sm:$0xff]
    %v155 = vld [vmem:[%s2 + $0x390] sm:$0xff]
    %v156 = vld [vmem:[%s2 + $0x398] sm:$0xff]
    %v157 = vld [vmem:[%s2 + $0x3a0] sm:$0xff]
    %v158 = vld [vmem:[%s2 + $0x3a8] sm:$0xff]
    %v159 = vld [vmem:[%s2 + $0x3b0] sm:$0xff]
    %v160 = vld [vmem:[%s2 + $0x3b8] sm:$0xff]
    %v161 = vld [vmem:[%s2 + $0x3c0] sm:$0xff]
    %v162 = vld [vmem:[%s2 + $0x3c8] sm:$0xff]
    %v163 = vld [vmem:[%s2 + $0x3d0] sm:$0xff]
    %v164 = vld [vmem:[%s2 + $0x3d8] sm:$0xff]
    %v165 = vld [vmem:[%s2 + $0x3e0] sm:$0xff]
    %v166 = vld [vmem:[%s2 + $0x3e8] sm:$0xff]
    %v167 = vld [vmem:[%s2 + $0x3f0] sm:$0xff]
    %v168 = vld [vmem:[%s2 + $0x3f8] sm:$0xff]
    %v169 = vld [vmem:[%s2 + $0x400] sm:$0xff]
    %v170 = vld [vmem:[%s2 + $0x408] sm:$0xff]
    %v171 = vld [vmem:[%s2 + $0x410] sm:$0xff]
    %v172 = vld [vmem:[%s2 + $0x418] sm:$0xff]
    %v173 = vld [vmem:[%s2 + $0x420] sm:$0xff]
    %v174 = vld [vmem:[%s2 + $0x428] sm:$0xff]
    %v175 = vld [vmem:[%s2 + $0x430] sm:$0xff]
    %v176 = vld [vmem:[%s2 + $0x438] sm:$0xff]
    %v177 = vld [vmem:[%s2 + $0x440] sm:$0xff]
    %v178 = vld [vmem:[%s2 + $0x448] sm:$0xff]
    %v179 = vld [vmem:[%s2 + $0x450] sm:$0xff]
    %v180 = vld [vmem:[%s2 + $0x458] sm:$0xff]
    %v181 = vld [vmem:[%s2 + $0x460] sm:$0xff]
    %v182 = vld [vmem:[%s2 + $0x468] sm:$0xff]
    %v183 = vld [vmem:[%s2 + $0x470] sm:$0xff]
    %v184 = vld [vmem:[%s2 + $0x478] sm:$0xff]
    %v185 = vld [vmem:[%s2 + $0x480] sm:$0xff]
    %v186 = vld [vmem:[%s2 + $0x488] sm:$0xff]
    %v187 = vld [vmem:[%s2 + $0x490] sm:$0xff]
    %v188 = vld [vmem:[%s2 + $0x498] sm:$0xff]
    %v189 = vld [vmem:[%s2 + $0x4a0] sm:$0xff]
    %v190 = vld [vmem:[%s2 + $0x4a8] sm:$0xff]
    %v191 = vld [vmem:[%s2 + $0x4b0] sm:$0xff]
    %v192 = vld [vmem:[%s2 + $0x4b8] sm:$0xff]
    %v193 = vld [vmem:[%s2 + $0x4c0] sm:$0xff]
    %v194 = vld [vmem:[%s2 + $0x4c8] sm:$0xff]
    %v195 = vld [vmem:[%s2 + $0x4d0] sm:$0xff]
    %v196 = vld [vmem:[%s2 + $0x4d8] sm:$0xff]
    %v197 = vld [vmem:[%s2 + $0x4e0] sm:$0xff]
    %v198 = vld [vmem:[%s2 + $0x4e8] sm:$0xff]
    %v199 = vld [vmem:[%s2 + $0x4f0] sm:$0xff]
    %v200 = vld [vmem:[%s2 + $0x4f8] sm:$0xff]
    %v201 = vld [vmem:[%s2 + $0x500] sm:$0xff]
    %v202 = vld [vmem:[%s2 + $0x508] sm:$0xff]
    %v203 = vld [vmem:[%s2 + $0x510] sm:$0xff]
    %v204 = vld [vmem:[%s2 + $0x518] sm:$0xff]
    %v205 = vld [vmem:[%s2 + $0x520] sm:$0xff]
    %v206 = vld [vmem:[%s2 + $0x528] sm:$0xff]
    %v207 = vld [vmem:[%s2 + $0x530] sm:$0xff]
    %v208 = vld [vmem:[%s2 + $0x538] sm:$0xff]
    %v209 = vld [vmem:[%s2 + $0x540] sm:$0xff]
    %v210 = vld [vmem:[%s2 + $0x548] sm:$0xff]
    %v211 = vld [vmem:[%s2 + $0x550] sm:$0xff]
    %v212 = vld [vmem:[%s2 + $0x558] sm:$0xff]
    %v213 = vld [vmem:[%s2 + $0x560] sm:$0xff]
    %v214 = vld [vmem:[%s2 + $0x568] sm:$0xff]
    %v215 = vld [vmem:[%s2 + $0x570] sm:$0xff]
    %v216 = vld [vmem:[%s2 + $0x578] sm:$0xff]
    %v217 = vld [vmem:[%s2 + $0x580] sm:$0xff]
    %v218 = vld [vmem:[%s2 + $0x588] sm:$0xff]
    %v219 = vld [vmem:[%s2 + $0x590] sm:$0xff]
    %v220 = vld [vmem:[%s2 + $0x598] sm:$0xff]
    %v221 = vld [vmem:[%s2 + $0x5a0] sm:$0xff]
    %v222 = vld [vmem:[%s2 + $0x5a8] sm:$0xff]
    %v223 = vld [vmem:[%s2 + $0x5b0] sm:$0xff]
    %v224 = vld [vmem:[%s2 + $0x5b8] sm:$0xff]
    %v225 = vld [vmem:[%s2 + $0x5c0] sm:$0xff]
    %v226 = vld [vmem:[%s2 + $0x5c8] sm:$0xff]
    %v227 = vld [vmem:[%s2 + $0x5d0] sm:$0xff]
    %v228 = vld [vmem:[%s2 + $0x5d8] sm:$0xff]
    %v229 = vld [vmem:[%s2 + $0x5e0] sm:$0xff]
    %v230 = vld [vmem:[%s2 + $0x5e8] sm:$0xff]
    %v231 = vld [vmem:[%s2 + $0x5f0] sm:$0xff]
    %v232 = vld [vmem:[%s2 + $0x5f8] sm:$0xff]
    %v233 = vld [vmem:[%s2 + $0x600] sm:$0xff]
    %v234 = vld [vmem:[%s2 + $0x608] sm:$0xff]
    %v235 = vld [vmem:[%s2 + $0x610] sm:$0xff]
    %v236 = vld [vmem:[%s2 + $0x618] sm:$0xff]
    %v237 = vld [vmem:[%s2 + $0x620] sm:$0xff]
    %v238 = vld [vmem:[%s2 + $0x628] sm:$0xff]
    %v239 = vld [vmem:[%s2 + $0x630] sm:$0xff]
    %v240 = vld [vmem:[%s2 + $0x638] sm:$0xff]
    %v241 = vld [vmem:[%s2 + $0x640] sm:$0xff]
    %v242 = vld [vmem:[%s2 + $0x648] sm:$0xff]
    %v243 = vld [vmem:[%s2 + $0x650] sm:$0xff]
    %v244 = vld [vmem:[%s2 + $0x658] sm:$0xff]
    %v245 = vld [vmem:[%s2 + $0x660] sm:$0xff]
    %v246 = vld [vmem:[%s2 + $0x668] sm:$0xff]
    %v247 = vld [vmem:[%s2 + $0x670] sm:$0xff]
    %v248 = vld [vmem:[%s2 + $0x678] sm:$0xff]
    %v249 = vld [vmem:[%s2 + $0x680] sm:$0xff]
    %v250 = vld [vmem:[%s2 + $0x688] sm:$0xff]
    %v251 = vld [vmem:[%s2 + $0x690] sm:$0xff]
    %v252 = vld [vmem:[%s2 + $0x698] sm:$0xff]
    %v253 = vld [vmem:[%s2 + $0x6a0] sm:$0xff]
    %v254 = vld [vmem:[%s2 + $0x6a8] sm:$0xff]
    %v255 = vld [vmem:[%s2 + $0x6b0] sm:$0xff]
    %v256 = vld [vmem:[%s2 + $0x6b8] sm:$0xff]
    %v257 = vld [vmem:[%s2 + $0x6c0] sm:$0xff]
    %v258 = vld [vmem:[%s2 + $0x6c8] sm:$0xff]
    %v259 = vld [vmem:[%s2 + $0x6d0] sm:$0xff]
    %v260 = vld [vmem:[%s2 + $0x6d8] sm:$0xff]
    %v261 = vld [vmem:[%s2 + $0x6e0] sm:$0xff]
    %v262 = vld [vmem:[%s2 + $0x6e8] sm:$0xff]
    %v263 = vld [vmem:[%s2 + $0x6f0] sm:$0xff]
    %v264 = vld [vmem:[%s2 + $0x6f8] sm:$0xff]
    %v265 = vld [vmem:[%s2 + $0x700] sm:$0xff]
    %v266 = vld [vmem:[%s2 + $0x708] sm:$0xff]
    %v267 = vld [vmem:[%s2 + $0x710] sm:$0xff]
    %v268 = vld [vmem:[%s2 + $0x718] sm:$0xff]
    %v269 = vld [vmem:[%s2 + $0x720] sm:$0xff]
    %v270 = vld [vmem:[%s2 + $0x728] sm:$0xff]
    %v271 = vld [vmem:[%s2 + $0x730] sm:$0xff]
    %v272 = vld [vmem:[%s2 + $0x738] sm:$0xff]
    %v273 = vld [vmem:[%s2 + $0x740] sm:$0xff]
    %v274 = vld [vmem:[%s2 + $0x748] sm:$0xff]
    %v275 = vld [vmem:[%s2 + $0x750] sm:$0xff]
    %v276 = vld [vmem:[%s2 + $0x758] sm:$0xff]
    %v277 = vld [vmem:[%s2 + $0x760] sm:$0xff]
    %v278 = vld [vmem:[%s2 + $0x768] sm:$0xff]
    %v279 = vld [vmem:[%s2 + $0x770] sm:$0xff]
    %v280 = vld [vmem:[%s2 + $0x778] sm:$0xff]
    %v281 = vld [vmem:[%s2 + $0x780] sm:$0xff]
    %v282 = vld [vmem:[%s2 + $0x788] sm:$0xff]
    %v283 = vld [vmem:[%s2 + $0x790] sm:$0xff]
    %v284 = vld [vmem:[%s2 + $0x798] sm:$0xff]
    %v285 = vld [vmem:[%s2 + $0x7a0] sm:$0xff]
    %v286 = vld [vmem:[%s2 + $0x7a8] sm:$0xff]
    %v287 = vld [vmem:[%s2 + $0x7b0] sm:$0xff]
    %v288 = vld [vmem:[%s2 + $0x7b8] sm:$0xff]
    %v289 = vld [vmem:[%s2 + $0x7c0] sm:$0xff]
    %v290 = vld [vmem:[%s2 + $0x7c8] sm:$0xff]
    %v291 = vld [vmem:[%s2 + $0x7d0] sm:$0xff]
    %v292 = vld [vmem:[%s2 + $0x7d8] sm:$0xff]
    %v293 = vld [vmem:[%s2 + $0x7e0] sm:$0xff]
    %v294 = vld [vmem:[%s2 + $0x7e8] sm:$0xff]
    %v295 = vld [vmem:[%s2 + $0x7f0] sm:$0xff]
    %v296 = vld [vmem:[%s2 + $0x7f8] sm:$0xff]
    %v297 = vld [vmem:[%s2 + $0x800] sm:$0xff]
    %v298 = vld [vmem:[%s2 + $0x808] sm:$0xff]
    %v299 = vld [vmem:[%s2 + $0x810] sm:$0xff]
    %v300 = vld [vmem:[%s2 + $0x818] sm:$0xff]
    %v301 = vld [vmem:[%s2 + $0x820] sm:$0xff]
    %v302 = vld [vmem:[%s2 + $0x828] sm:$0xff]
    %v303 = vld [vmem:[%s2 + $0x830] sm:$0xff]
    %v304 = vld [vmem:[%s2 + $0x838] sm:$0xff]
    %v305 = vld [vmem:[%s2 + $0x840] sm:$0xff]
    %v306 = vld [vmem:[%s2 + $0x848] sm:$0xff]
    %v307 = vld [vmem:[%s2 + $0x850] sm:$0xff]
    %v308 = vld [vmem:[%s2 + $0x858] sm:$0xff]
    %v309 = vld [vmem:[%s2 + $0x860] sm:$0xff]
    %v310 = vld [vmem:[%s2 + $0x868] sm:$0xff]
    %v311 = vld [vmem:[%s2 + $0x870] sm:$0xff]
    %v312 = vld [vmem:[%s2 + $0x878] sm:$0xff]
    %v313 = vld [vmem:[%s2 + $0x880] sm:$0xff]
    %v314 = vld [vmem:[%s2 + $0x888] sm:$0xff]
    %v315 = vld [vmem:[%s2 + $0x890] sm:$0xff]
    %v316 = vld [vmem:[%s2 + $0x898] sm:$0xff]
    %v317 = vld [vmem:[%s2 + $0x8a0] sm:$0xff]
    %v318 = vld [vmem:[%s2 + $0x8a8] sm:$0xff]
    %v319 = vld [vmem:[%s2 + $0x8b0] sm:$0xff]
    %v320 = vld [vmem:[%s2 + $0x8b8] sm:$0xff]
    %v321 = vld [vmem:[%s2 + $0x8c0] sm:$0xff]
    %v322 = vld [vmem:[%s2 + $0x8c8] sm:$0xff]
    %v323 = vld [vmem:[%s2 + $0x8d0] sm:$0xff]
    %v324 = vld [vmem:[%s2 + $0x8d8] sm:$0xff]
    %v325 = vld [vmem:[%s2 + $0x8e0] sm:$0xff]
    %v326 = vld [vmem:[%s2 + $0x8e8] sm:$0xff]
    %v327 = vld [vmem:[%s2 + $0x8f0] sm:$0xff]
    %v328 = vld [vmem:[%s2 + $0x8f8] sm:$0xff]
    %v329 = vld [vmem:[%s2 + $0x900] sm:$0xff]
    %v330 = vld [vmem:[%s2 + $0x908] sm:$0xff]
    %v331 = vld [vmem:[%s2 + $0x910] sm:$0xff]
    %v332 = vld [vmem:[%s2 + $0x918] sm:$0xff]
    %v333 = vld [vmem:[%s2 + $0x920] sm:$0xff]
    %v334 = vld [vmem:[%s2 + $0x928] sm:$0xff]
    %v335 = vld [vmem:[%s2 + $0x930] sm:$0xff]
    %v336 = vld [vmem:[%s2 + $0x938] sm:$0xff]
    %v337 = vld [vmem:[%s2 + $0x940] sm:$0xff]
    %v338 = vld [vmem:[%s2 + $0x948] sm:$0xff]
    %v339 = vld [vmem:[%s2 + $0x950] sm:$0xff]
    %v340 = vld [vmem:[%s2 + $0x958] sm:$0xff]
    %v341 = vld [vmem:[%s2 + $0x960] sm:$0xff]
    %v342 = vld [vmem:[%s2 + $0x968] sm:$0xff]
    %v343 = vld [vmem:[%s2 + $0x970] sm:$0xff]
    %v344 = vld [vmem:[%s2 + $0x978] sm:$0xff]
    %v345 = vld [vmem:[%s2 + $0x980] sm:$0xff]
    %v346 = vld [vmem:[%s2 + $0x988] sm:$0xff]
    %v347 = vld [vmem:[%s2 + $0x990] sm:$0xff]
    %v348 = vld [vmem:[%s2 + $0x998] sm:$0xff]
    %v349 = vld [vmem:[%s2 + $0x9a0] sm:$0xff]
    %v350 = vld [vmem:[%s2 + $0x9a8] sm:$0xff]
    %v351 = vld [vmem:[%s2 + $0x9b0] sm:$0xff]
    %v352 = vld [vmem:[%s2 + $0x9b8] sm:$0xff]
    %v353 = vld [vmem:[%s2 + $0x9c0] sm:$0xff]
    %v354 = vld [vmem:[%s2 + $0x9c8] sm:$0xff]
    %v355 = vld [vmem:[%s2 + $0x9d0] sm:$0xff]
    %v356 = vld [vmem:[%s2 + $0x9d8] sm:$0xff]
    %v357 = vld [vmem:[%s2 + $0x9e0] sm:$0xff]
    %v358 = vld [vmem:[%s2 + $0x9e8] sm:$0xff]
    %v359 = vld [vmem:[%s2 + $0x9f0] sm:$0xff]
    %v360 = vld [vmem:[%s2 + $0x9f8] sm:$0xff]
    %v361 = vld [vmem:[%s2 + $0xa00] sm:$0xff]
    %v362 = vld [vmem:[%s2 + $0xa08] sm:$0xff]
    %v363 = vld [vmem:[%s2 + $0xa10] sm:$0xff]
    %v364 = vld [vmem:[%s2 + $0xa18] sm:$0xff]
    %v365 = vld [vmem:[%s2 + $0xa20] sm:$0xff]
    %v366 = vld [vmem:[%s2 + $0xa28] sm:$0xff]
    %v367 = vld [vmem:[%s2 + $0xa30] sm:$0xff]
    %v368 = vld [vmem:[%s2 + $0xa38] sm:$0xff]
    %v369 = vld [vmem:[%s2 + $0xa40] sm:$0xff]
    %v370 = vld [vmem:[%s2 + $0xa48] sm:$0xff]
    %v371 = vld [vmem:[%s2 + $0xa50] sm:$0xff]
    %v372 = vld [vmem:[%s2 + $0xa58] sm:$0xff]
    %v373 = vld [vmem:[%s2 + $0xa60] sm:$0xff]
    %v374 = vld [vmem:[%s2 + $0xa68] sm:$0xff]
    %v375 = vld [vmem:[%s2 + $0xa70] sm:$0xff]
    %v376 = vld [vmem:[%s2 + $0xa78] sm:$0xff]
    %v377 = vld [vmem:[%s2 + $0xa80] sm:$0xff]
    %v378 = vld [vmem:[%s2 + $0xa88] sm:$0xff]
    %v379 = vld [vmem:[%s2 + $0xa90] sm:$0xff]
    %v380 = vld [vmem:[%s2 + $0xa98] sm:$0xff]
    %v381 = vld [vmem:[%s2 + $0xaa0] sm:$0xff]
    %v382 = vld [vmem:[%s2 + $0xaa8] sm:$0xff]
    %v383 = vld [vmem:[%s2 + $0xab0] sm:$0xff]
    %v384 = vld [vmem:[%s2 + $0xab8] sm:$0xff]
    %v385 = vld [vmem:[%s2 + $0xac0] sm:$0xff]
    %v386 = vld [vmem:[%s2 + $0xac8] sm:$0xff]
    %v387 = vld [vmem:[%s2 + $0xad0] sm:$0xff]
    %v388 = vld [vmem:[%s2 + $0xad8] sm:$0xff]
    %v389 = vld [vmem:[%s2 + $0xae0] sm:$0xff]
    %v390 = vld [vmem:[%s2 + $0xae8] sm:$0xff]
    %v391 = vld [vmem:[%s2 + $0xaf0] sm:$0xff]
    %v392 = vld [vmem:[%s2 + $0xaf8] sm:$0xff]
    %v393 = vld [vmem:[%s2 + $0xb00] sm:$0xff]
    %v394 = vld [vmem:[%s2 + $0xb08] sm:$0xff]
    %v395 = vld [vmem:[%s2 + $0xb10] sm:$0xff]
    %v396 = vld [vmem:[%s2 + $0xb18] sm:$0xff]
    %v397 = vld [vmem:[%s2 + $0xb20] sm:$0xff]
    %v398 = vld [vmem:[%s2 + $0xb28] sm:$0xff]
    %v399 = vld [vmem:[%s2 + $0xb30] sm:$0xff]
    %v400 = vld [vmem:[%s2 + $0xb38] sm:$0xff]
    %v401 = vld [vmem:[%s2 + $0xb40] sm:$0xff]
    %v402 = vld [vmem:[%s2 + $0xb48] sm:$0xff]
    %v403 = vld [vmem:[%s2 + $0xb50] sm:$0xff]
    %v404 = vld [vmem:[%s2 + $0xb58] sm:$0xff]
    %v405 = vld [vmem:[%s2 + $0xb60] sm:$0xff]
    %v406 = vld [vmem:[%s2 + $0xb68] sm:$0xff]
    %v407 = vld [vmem:[%s2 + $0xb70] sm:$0xff]
    %v408 = vld [vmem:[%s2 + $0xb78] sm:$0xff]
    %v409 = vld [vmem:[%s2 + $0xb80] sm:$0xff]
    %v410 = vld [vmem:[%s2 + $0xb88] sm:$0xff]
    %v411 = vld [vmem:[%s2 + $0xb90] sm:$0xff]
    %v412 = vld [vmem:[%s2 + $0xb98] sm:$0xff]
    %v413 = vld [vmem:[%s2 + $0xba0] sm:$0xff]
    %v414 = vld [vmem:[%s2 + $0xba8] sm:$0xff]
    %v415 = vld [vmem:[%s2 + $0xbb0] sm:$0xff]
    %v416 = vld [vmem:[%s2 + $0xbb8] sm:$0xff]
    %v417 = vld [vmem:[%s2 + $0xbc0] sm:$0xff]
    %v418 = vld [vmem:[%s2 + $0xbc8] sm:$0xff]
    %v419 = vld [vmem:[%s2 + $0xbd0] sm:$0xff]
    %v420 = vld [vmem:[%s2 + $0xbd8] sm:$0xff]
    %v421 = vld [vmem:[%s2 + $0xbe0] sm:$0xff]
    %v422 = vld [vmem:[%s2 + $0xbe8] sm:$0xff]
    %v423 = vld [vmem:[%s2 + $0xbf0] sm:$0xff]
    %v424 = vld [vmem:[%s2 + $0xbf8] sm:$0xff]
    %v425 = vld [vmem:[%s2 + $0xc00] sm:$0xff]
    %v426 = vld [vmem:[%s2 + $0xc08] sm:$0xff]
    %v427 = vld [vmem:[%s2 + $0xc10] sm:$0xff]
    %v428 = vld [vmem:[%s2 + $0xc18] sm:$0xff]
    %v429 = vld [vmem:[%s2 + $0xc20] sm:$0xff]
    %v430 = vld [vmem:[%s2 + $0xc28] sm:$0xff]
    %v431 = vld [vmem:[%s2 + $0xc30] sm:$0xff]
    %v432 = vld [vmem:[%s2 + $0xc38] sm:$0xff]
    %v433 = vld [vmem:[%s2 + $0xc40] sm:$0xff]
    %v434 = vld [vmem:[%s2 + $0xc48] sm:$0xff]
    %v435 = vld [vmem:[%s2 + $0xc50] sm:$0xff]
    %v436 = vld [vmem:[%s2 + $0xc58] sm:$0xff]
    %v437 = vld [vmem:[%s2 + $0xc60] sm:$0xff]
    %v438 = vld [vmem:[%s2 + $0xc68] sm:$0xff]
    %v439 = vld [vmem:[%s2 + $0xc70] sm:$0xff]
    %v440 = vld [vmem:[%s2 + $0xc78] sm:$0xff]
    %v441 = vld [vmem:[%s2 + $0xc80] sm:$0xff]
    %v442 = vld [vmem:[%s2 + $0xc88] sm:$0xff]
    %v443 = vld [vmem:[%s2 + $0xc90] sm:$0xff]
    %v444 = vld [vmem:[%s2 + $0xc98] sm:$0xff]
    %v445 = vld [vmem:[%s2 + $0xca0] sm:$0xff]
    %v446 = vld [vmem:[%s2 + $0xca8] sm:$0xff]
    %v447 = vld [vmem:[%s2 + $0xcb0] sm:$0xff]
    %v448 = vld [vmem:[%s2 + $0xcb8] sm:$0xff]
    %v449 = vld [vmem:[%s2 + $0xcc0] sm:$0xff]
    %v450 = vld [vmem:[%s2 + $0xcc8] sm:$0xff]
    %v451 = vld [vmem:[%s2 + $0xcd0] sm:$0xff]
    %v452 = vld [vmem:[%s2 + $0xcd8] sm:$0xff]
    %v453 = vld [vmem:[%s2 + $0xce0] sm:$0xff]
    %v454 = vld [vmem:[%s2 + $0xce8] sm:$0xff]
    %v455 = vld [vmem:[%s2 + $0xcf0] sm:$0xff]
    %v456 = vld [vmem:[%s2 + $0xcf8] sm:$0xff]
    %v457 = vld [vmem:[%s2 + $0xd00] sm:$0xff]
    %v458 = vld [vmem:[%s2 + $0xd08] sm:$0xff]
    %v459 = vld [vmem:[%s2 + $0xd10] sm:$0xff]
    %v460 = vld [vmem:[%s2 + $0xd18] sm:$0xff]
    %v461 = vld [vmem:[%s2 + $0xd20] sm:$0xff]
    %v462 = vld [vmem:[%s2 + $0xd28] sm:$0xff]
    %v463 = vld [vmem:[%s2 + $0xd30] sm:$0xff]
    %v464 = vld [vmem:[%s2 + $0xd38] sm:$0xff]
    %v465 = vld [vmem:[%s2 + $0xd40] sm:$0xff]
    %v466 = vld [vmem:[%s2 + $0xd48] sm:$0xff]
    %v467 = vld [vmem:[%s2 + $0xd50] sm:$0xff]
    %v468 = vld [vmem:[%s2 + $0xd58] sm:$0xff]
    %v469 = vld [vmem:[%s2 + $0xd60] sm:$0xff]
    %v470 = vld [vmem:[%s2 + $0xd68] sm:$0xff]
    %v471 = vld [vmem:[%s2 + $0xd70] sm:$0xff]
    %v472 = vld [vmem:[%s2 + $0xd78] sm:$0xff]
    %v473 = vld [vmem:[%s2 + $0xd80] sm:$0xff]
    %v474 = vld [vmem:[%s2 + $0xd88] sm:$0xff]
    %v475 = vld [vmem:[%s2 + $0xd90] sm:$0xff]
    %v476 = vld [vmem:[%s2 + $0xd98] sm:$0xff]
    %v477 = vld [vmem:[%s2 + $0xda0] sm:$0xff]
    %v478 = vld [vmem:[%s2 + $0xda8] sm:$0xff]
    %v479 = vld [vmem:[%s2 + $0xdb0] sm:$0xff]
    %v480 = vld [vmem:[%s2 + $0xdb8] sm:$0xff]
    %v481 = vld [vmem:[%s2 + $0xdc0] sm:$0xff]
    %v482 = vld [vmem:[%s2 + $0xdc8] sm:$0xff]
    %v483 = vld [vmem:[%s2 + $0xdd0] sm:$0xff]
    %v484 = vld [vmem:[%s2 + $0xdd8] sm:$0xff]
    %v485 = vld [vmem:[%s2 + $0xde0] sm:$0xff]
    %v486 = vld [vmem:[%s2 + $0xde8] sm:$0xff]
    %v487 = vld [vmem:[%s2 + $0xdf0] sm:$0xff]
    %v488 = vld [vmem:[%s2 + $0xdf8] sm:$0xff]
    %v489 = vld [vmem:[%s2 + $0xe00] sm:$0xff]
    %v490 = vld [vmem:[%s2 + $0xe08] sm:$0xff]
    %v491 = vld [vmem:[%s2 + $0xe10] sm:$0xff]
    %v492 = vld [vmem:[%s2 + $0xe18] sm:$0xff]
    %v493 = vld [vmem:[%s2 + $0xe20] sm:$0xff]
    %v494 = vld [vmem:[%s2 + $0xe28] sm:$0xff]
    %v495 = vld [vmem:[%s2 + $0xe30] sm:$0xff]
    %v496 = vld [vmem:[%s2 + $0xe38] sm:$0xff]
    %v497 = vld [vmem:[%s2 + $0xe40] sm:$0xff]
    %v498 = vld [vmem:[%s2 + $0xe48] sm:$0xff]
    %v499 = vld [vmem:[%s2 + $0xe50] sm:$0xff]
    %v500 = vld [vmem:[%s2 + $0xe58] sm:$0xff]
    %v501 = vld [vmem:[%s2 + $0xe60] sm:$0xff]
    %v502 = vld [vmem:[%s2 + $0xe68] sm:$0xff]
    %v503 = vld [vmem:[%s2 + $0xe70] sm:$0xff]
    %v504 = vld [vmem:[%s2 + $0xe78] sm:$0xff]
    %v505 = vld [vmem:[%s2 + $0xe80] sm:$0xff]
    %v506 = vld [vmem:[%s2 + $0xe88] sm:$0xff]
    %v507 = vld [vmem:[%s2 + $0xe90] sm:$0xff]
    %v508 = vld [vmem:[%s2 + $0xe98] sm:$0xff]
    %v509 = vld [vmem:[%s2 + $0xea0] sm:$0xff]
    %v510 = vld [vmem:[%s2 + $0xea8] sm:$0xff]
    %v511 = vld [vmem:[%s2 + $0xeb0] sm:$0xff]
    %v512 = vld [vmem:[%s2 + $0xeb8] sm:$0xff]
    %v513 = vld [vmem:[%s2 + $0xec0] sm:$0xff]
    %v514 = vld [vmem:[%s2 + $0xec8] sm:$0xff]
    %v515 = vld [vmem:[%s2 + $0xed0] sm:$0xff]
    %v516 = vld [vmem:[%s2 + $0xed8] sm:$0xff]
    %v517 = vld [vmem:[%s2 + $0xee0] sm:$0xff]
    %v518 = vld [vmem:[%s2 + $0xee8] sm:$0xff]
    %v519 = vld [vmem:[%s2 + $0xef0] sm:$0xff]
    %v520 = vld [vmem:[%s2 + $0xef8] sm:$0xff]
    %v521 = vld [vmem:[%s2 + $0xf00] sm:$0xff]
    %v522 = vld [vmem:[%s2 + $0xf08] sm:$0xff]
    %v523 = vld [vmem:[%s2 + $0xf10] sm:$0xff]
    %v524 = vld [vmem:[%s2 + $0xf18] sm:$0xff]
    %v525 = vld [vmem:[%s2 + $0xf20] sm:$0xff]
    %v526 = vld [vmem:[%s2 + $0xf28] sm:$0xff]
    %v527 = vld [vmem:[%s2 + $0xf30] sm:$0xff]
    %v528 = vld [vmem:[%s2 + $0xf38] sm:$0xff]
    %v529 = vld [vmem:[%s2 + $0xf40] sm:$0xff]
    %v530 = vld [vmem:[%s2 + $0xf48] sm:$0xff]
    %v531 = vld [vmem:[%s2 + $0xf50] sm:$0xff]
    %v532 = vld [vmem:[%s2 + $0xf58] sm:$0xff]
    %v533 = vld [vmem:[%s2 + $0xf60] sm:$0xff]
    %v534 = vld [vmem:[%s2 + $0xf68] sm:$0xff]
    %v535 = vld [vmem:[%s2 + $0xf70] sm:$0xff]
    %v536 = vld [vmem:[%s2 + $0xf78] sm:$0xff]
    %v537 = vld [vmem:[%s2 + $0xf80] sm:$0xff]
    %v538 = vld [vmem:[%s2 + $0xf88] sm:$0xff]
    %v539 = vld [vmem:[%s2 + $0xf90] sm:$0xff]
    %v540 = vld [vmem:[%s2 + $0xf98] sm:$0xff]
    %v541 = vld [vmem:[%s2 + $0xfa0] sm:$0xff]
    %v542 = vld [vmem:[%s2 + $0xfa8] sm:$0xff]
    %v543 = vld [vmem:[%s2 + $0xfb0] sm:$0xff]
    %v544 = vld [vmem:[%s2 + $0xfb8] sm:$0xff]
    %v545 = vld [vmem:[%s2 + $0xfc0] sm:$0xff]
    %v546 = vld [vmem:[%s2 + $0xfc8] sm:$0xff]
    %v547 = vld [vmem:[%s2 + $0xfd0] sm:$0xff]
    %v548 = vld [vmem:[%s2 + $0xfd8] sm:$0xff]
    %v549 = vld [vmem:[%s2 + $0xfe0] sm:$0xff]
    %v550 = vld [vmem:[%s2 + $0xfe8] sm:$0xff]
    %v551 = vld [vmem:[%s2 + $0xff0] sm:$0xff]
    %v552 = vld [vmem:[%s2 + $0xff8] sm:$0xff]
    %v553 = vld [vmem:[%s3] sm:$0xf]
    %v555 = vlaneseq
    %v556 = vshrl.u32 %v555, 7
    %v557 = vsub.s32 0, %v556
    %v558 = vrot.slane %v553, %v557
    %v559 = vlaneseq
    %v560 = vshrl.u32 %v559, 7
    %v561 = vsub.s32 1, %v560
    %v562 = vrot.slane %v553, %v561
    %v563 = vlaneseq
    %v564 = vshrl.u32 %v563, 7
    %v565 = vsub.s32 2, %v564
    %v566 = vrot.slane %v553, %v565
    %v567 = vlaneseq
    %v568 = vshrl.u32 %v567, 7
    %v569 = vsub.s32 3, %v568
    %v570 = vrot.slane %v553, %v569
    %v577 = vcombine.high %v39, %v39
    %v579 = vunpack.c.l.s4 1983009808
    %v580 = vunpack.c.0.s8 %v579
    %v581 = vlaneseq
    %v582 = vshrl.u32 %v581, 7
    %v583 = vsub.s32 %v580, %v582
    %v584 = vrot.slane %v39, %v583
    %v586 = vunpack.c.l.s4 1983009808
    %v587 = vunpack.c.0.s8 %v586
    %v588 = vlaneseq
    %v589 = vshrl.u32 %v588, 7
    %v590 = vsub.s32 %v587, %v589
    %v591 = vrot.slane %v577, %v590
    %v592 = vcombine.high %v584, %v584
    %v593 = vcombine.high %v591, %v591
    %v594 = vcombine.high %v40, %v40
    %v596 = vunpack.c.l.s4 1983009808
    %v597 = vunpack.c.0.s8 %v596
    %v598 = vlaneseq
    %v599 = vshrl.u32 %v598, 7
    %v600 = vsub.s32 %v597, %v599
    %v601 = vrot.slane %v40, %v600
    %v603 = vunpack.c.l.s4 1983009808
    %v604 = vunpack.c.0.s8 %v603
    %v605 = vlaneseq
    %v606 = vshrl.u32 %v605, 7
    %v607 = vsub.s32 %v604, %v606
    %v608 = vrot.slane %v594, %v607
    %v609 = vcombine.high %v601, %v601
    %v610 = vcombine.high %v608, %v608
    %619 = vmatprep.subr.mxu0 %v42
    %620 = vmatpush1.msra.mxu0 %v41
    %621 = vmatprep.subr.mxu0 %v46
    %622 = vmatpush1.msra.mxu0 %v45
    %623 = vmatprep.subr.mxu0 %v50
    %624 = vmatpush1.msra.mxu0 %v49
    %625 = vmatprep.subr.mxu0 %v54
    %626 = vmatpush1.msra.mxu0 %v53
    %627 = vmatprep.subr.mxu0 %v58
    %628 = vmatpush1.msra.mxu0 %v57
    %629 = vmatprep.subr.mxu0 %v62
    %630 = vmatpush1.msra.mxu0 %v61
    %631 = vmatprep.subr.mxu0 %v66
    %632 = vmatpush1.msra.mxu0 %v65
    %633 = vmatprep.subr.mxu0 %v70
    %634 = vmatpush1.msra.mxu0 %v69
    %635 = vmatprep.subr.mxu0 %v74
    %636 = vmatpush1.msra.mxu0 %v73
    %637 = vmatprep.subr.mxu0 %v78
    %638 = vmatpush1.msra.mxu0 %v77
    %639 = vmatprep.subr.mxu0 %v82
    %640 = vmatpush1.msra.mxu0 %v81
    %641 = vmatprep.subr.mxu0 %v86
    %642 = vmatpush1.msra.mxu0 %v85
    %643 = vmatprep.subr.mxu0 %v90
    %644 = vmatpush1.msra.mxu0 %v89
    %645 = vmatprep.subr.mxu0 %v94
    %646 = vmatpush1.msra.mxu0 %v93
    %647 = vmatprep.subr.mxu0 %v98
    %648 = vmatpush1.msra.mxu0 %v97
    %649 = vmatprep.subr.mxu0 %v102
    %650 = vmatpush1.msra.mxu0 %v101
    %651 = vmatprep.subr.mxu0 %v106
    %652 = vmatpush1.msra.mxu0 %v105
    %653 = vmatprep.subr.mxu0 %v110
    %654 = vmatpush1.msra.mxu0 %v109
    %655 = vmatprep.subr.mxu0 %v114
    %656 = vmatpush1.msra.mxu0 %v113
    %657 = vmatprep.subr.mxu0 %v118
    %658 = vmatpush1.msra.mxu0 %v117
    %659 = vmatprep.subr.mxu0 %v122
    %660 = vmatpush1.msra.mxu0 %v121
    %661 = vmatprep.subr.mxu0 %v126
    %662 = vmatpush1.msra.mxu0 %v125
    %663 = vmatprep.subr.mxu0 %v130
    %664 = vmatpush1.msra.mxu0 %v129
    %665 = vmatprep.subr.mxu0 %v134
    %666 = vmatpush1.msra.mxu0 %v133
    %667 = vmatprep.subr.mxu0 %v138
    %668 = vmatpush1.msra.mxu0 %v137
    %669 = vmatprep.subr.mxu0 %v142
    %670 = vmatpush1.msra.mxu0 %v141
    %671 = vmatprep.subr.mxu0 %v146
    %672 = vmatpush1.msra.mxu0 %v145
    %673 = vmatprep.subr.mxu0 %v150
    %674 = vmatpush1.msra.mxu0 %v149
    %675 = vmatprep.subr.mxu0 %v154
    %676 = vmatpush1.msra.mxu0 %v153
    %677 = vmatprep.subr.mxu0 %v158
    %678 = vmatpush1.msra.mxu0 %v157
    %679 = vmatprep.subr.mxu0 %v162
    %680 = vmatpush1.msra.mxu0 %v161
    %681 = vmatprep.subr.mxu0 %v166
    %682 = vmatpush1.msra.mxu0 %v165
    %683 = vmatprep.mubr.f32.mxu0 %v592
    %684 = vmatmul.mubr.f32.gmra.mrb[0].mxu0 %v584
    %v685 = vpop.f32.mrb[0].mxu0
    %v686 = vadd.f32 %v558, %v685
    %v687 = vpop.f32.mrb[0].mxu0
    %v688 = vadd.f32 %v562, %v687
    %689 = vdwg.mxu0
    %690 = vmatprep.subr.mxu0 %v170
    %691 = vmatpush1.msra.mxu0 %v169
    %692 = vmatprep.subr.mxu0 %v174
    %693 = vmatpush1.msra.mxu0 %v173
    %694 = vmatprep.subr.mxu0 %v178
    %695 = vmatpush1.msra.mxu0 %v177
    %696 = vmatprep.subr.mxu0 %v182
    %697 = vmatpush1.msra.mxu0 %v181
    %698 = vmatprep.subr.mxu0 %v186
    %699 = vmatpush1.msra.mxu0 %v185
    %700 = vmatprep.subr.mxu0 %v190
    %701 = vmatpush1.msra.mxu0 %v189
    %702 = vmatprep.subr.mxu0 %v194
    %703 = vmatpush1.msra.mxu0 %v193
    %704 = vmatprep.subr.mxu0 %v198
    %705 = vmatpush1.msra.mxu0 %v197
    %706 = vmatprep.subr.mxu0 %v202
    %707 = vmatpush1.msra.mxu0 %v201
    %708 = vmatprep.subr.mxu0 %v206
    %709 = vmatpush1.msra.mxu0 %v205
    %710 = vmatprep.subr.mxu0 %v210
    %711 = vmatpush1.msra.mxu0 %v209
    %712 = vmatprep.subr.mxu0 %v214
    %713 = vmatpush1.msra.mxu0 %v213
    %714 = vmatprep.subr.mxu0 %v218
    %715 = vmatpush1.msra.mxu0 %v217
    %716 = vmatprep.subr.mxu0 %v222
    %717 = vmatpush1.msra.mxu0 %v221
    %718 = vmatprep.subr.mxu0 %v226
    %719 = vmatpush1.msra.mxu0 %v225
    %720 = vmatprep.subr.mxu0 %v230
    %721 = vmatpush1.msra.mxu0 %v229
    %722 = vmatprep.subr.mxu0 %v234
    %723 = vmatpush1.msra.mxu0 %v233
    %724 = vmatprep.subr.mxu0 %v238
    %725 = vmatpush1.msra.mxu0 %v237
    %726 = vmatprep.subr.mxu0 %v242
    %727 = vmatpush1.msra.mxu0 %v241
    %728 = vmatprep.subr.mxu0 %v246
    %729 = vmatpush1.msra.mxu0 %v245
    %730 = vmatprep.subr.mxu0 %v250
    %731 = vmatpush1.msra.mxu0 %v249
    %732 = vmatprep.subr.mxu0 %v254
    %733 = vmatpush1.msra.mxu0 %v253
    %734 = vmatprep.subr.mxu0 %v258
    %735 = vmatpush1.msra.mxu0 %v257
    %736 = vmatprep.subr.mxu0 %v262
    %737 = vmatpush1.msra.mxu0 %v261
    %738 = vmatprep.subr.mxu0 %v266
    %739 = vmatpush1.msra.mxu0 %v265
    %740 = vmatprep.subr.mxu0 %v270
    %741 = vmatpush1.msra.mxu0 %v269
    %742 = vmatprep.subr.mxu0 %v274
    %743 = vmatpush1.msra.mxu0 %v273
    %744 = vmatprep.subr.mxu0 %v278
    %745 = vmatpush1.msra.mxu0 %v277
    %746 = vmatprep.subr.mxu0 %v282
    %747 = vmatpush1.msra.mxu0 %v281
    %748 = vmatprep.subr.mxu0 %v286
    %749 = vmatpush1.msra.mxu0 %v285
    %750 = vmatprep.subr.mxu0 %v290
    %751 = vmatpush1.msra.mxu0 %v289
    %752 = vmatprep.subr.mxu0 %v294
    %753 = vmatpush1.msra.mxu0 %v293
    %754 = vmatprep.mubr.f32.mxu0 %v593
    %755 = vmatmul.mubr.f32.gmra.mrb[0].mxu0 %v591
    %v756 = vpop.f32.mrb[0].mxu0
    %v757 = vadd.f32 %v686, %v756
    %v758 = vpop.f32.mrb[0].mxu0
    %v759 = vadd.f32 %v688, %v758
    %760 = vdwg.mxu0
    %761 = vmatprep.subr.mxu0 %v298
    %762 = vmatpush1.msra.mxu0 %v297
    %763 = vmatprep.subr.mxu0 %v302
    %764 = vmatpush1.msra.mxu0 %v301
    %765 = vmatprep.subr.mxu0 %v306
    %766 = vmatpush1.msra.mxu0 %v305
    %767 = vmatprep.subr.mxu0 %v310
    %768 = vmatpush1.msra.mxu0 %v309
    %769 = vmatprep.subr.mxu0 %v314
    %770 = vmatpush1.msra.mxu0 %v313
    %771 = vmatprep.subr.mxu0 %v318
    %772 = vmatpush1.msra.mxu0 %v317
    %773 = vmatprep.subr.mxu0 %v322
    %774 = vmatpush1.msra.mxu0 %v321
    %775 = vmatprep.subr.mxu0 %v326
    %776 = vmatpush1.msra.mxu0 %v325
    %777 = vmatprep.subr.mxu0 %v330
    %778 = vmatpush1.msra.mxu0 %v329
    %779 = vmatprep.subr.mxu0 %v334
    %780 = vmatpush1.msra.mxu0 %v333
    %781 = vmatprep.subr.mxu0 %v338
    %782 = vmatpush1.msra.mxu0 %v337
    %783 = vmatprep.subr.mxu0 %v342
    %784 = vmatpush1.msra.mxu0 %v341
    %785 = vmatprep.subr.mxu0 %v346
    %786 = vmatpush1.msra.mxu0 %v345
    %787 = vmatprep.subr.mxu0 %v350
    %788 = vmatpush1.msra.mxu0 %v349
    %789 = vmatprep.subr.mxu0 %v354
    %790 = vmatpush1.msra.mxu0 %v353
    %791 = vmatprep.subr.mxu0 %v358
    %792 = vmatpush1.msra.mxu0 %v357
    %793 = vmatprep.subr.mxu0 %v362
    %794 = vmatpush1.msra.mxu0 %v361
    %795 = vmatprep.subr.mxu0 %v366
    %796 = vmatpush1.msra.mxu0 %v365
    %797 = vmatprep.subr.mxu0 %v370
    %798 = vmatpush1.msra.mxu0 %v369
    %799 = vmatprep.subr.mxu0 %v374
    %800 = vmatpush1.msra.mxu0 %v373
    %801 = vmatprep.subr.mxu0 %v378
    %802 = vmatpush1.msra.mxu0 %v377
    %803 = vmatprep.subr.mxu0 %v382
    %804 = vmatpush1.msra.mxu0 %v381
    %805 = vmatprep.subr.mxu0 %v386
    %806 = vmatpush1.msra.mxu0 %v385
    %807 = vmatprep.subr.mxu0 %v390
    %808 = vmatpush1.msra.mxu0 %v389
    %809 = vmatprep.subr.mxu0 %v394
    %810 = vmatpush1.msra.mxu0 %v393
    %811 = vmatprep.subr.mxu0 %v398
    %812 = vmatpush1.msra.mxu0 %v397
    %813 = vmatprep.subr.mxu0 %v402
    %814 = vmatpush1.msra.mxu0 %v401
    %815 = vmatprep.subr.mxu0 %v406
    %816 = vmatpush1.msra.mxu0 %v405
    %817 = vmatprep.subr.mxu0 %v410
    %818 = vmatpush1.msra.mxu0 %v409
    %819 = vmatprep.subr.mxu0 %v414
    %820 = vmatpush1.msra.mxu0 %v413
    %821 = vmatprep.subr.mxu0 %v418
    %822 = vmatpush1.msra.mxu0 %v417
    %823 = vmatprep.subr.mxu0 %v422
    %824 = vmatpush1.msra.mxu0 %v421
    %825 = vmatprep.mubr.f32.mxu0 %v609
    %826 = vmatmul.mubr.f32.gmra.mrb[0].mxu0 %v601
    %v827 = vpop.f32.mrb[0].mxu0
    %v828 = vadd.f32 %v757, %v827
    %v829 = vpop.f32.mrb[0].mxu0
    %v830 = vadd.f32 %v759, %v829
    %831 = vdwg.mxu0
    %832 = vmatprep.subr.mxu0 %v426
    %833 = vmatpush1.msra.mxu0 %v425
    %834 = vmatprep.subr.mxu0 %v430
    %835 = vmatpush1.msra.mxu0 %v429
    %836 = vmatprep.subr.mxu0 %v434
    %837 = vmatpush1.msra.mxu0 %v433
    %838 = vmatprep.subr.mxu0 %v438
    %839 = vmatpush1.msra.mxu0 %v437
    %840 = vmatprep.subr.mxu0 %v442
    %841 = vmatpush1.msra.mxu0 %v441
    %842 = vmatprep.subr.mxu0 %v446
    %843 = vmatpush1.msra.mxu0 %v445
    %844 = vmatprep.subr.mxu0 %v450
    %845 = vmatpush1.msra.mxu0 %v449
    %846 = vmatprep.subr.mxu0 %v454
    %847 = vmatpush1.msra.mxu0 %v453
    %848 = vmatprep.subr.mxu0 %v458
    %849 = vmatpush1.msra.mxu0 %v457
    %850 = vmatprep.subr.mxu0 %v462
    %851 = vmatpush1.msra.mxu0 %v461
    %852 = vmatprep.subr.mxu0 %v466
    %853 = vmatpush1.msra.mxu0 %v465
    %854 = vmatprep.subr.mxu0 %v470
    %855 = vmatpush1.msra.mxu0 %v469
    %856 = vmatprep.subr.mxu0 %v474
    %857 = vmatpush1.msra.mxu0 %v473
    %858 = vmatprep.subr.mxu0 %v478
    %859 = vmatpush1.msra.mxu0 %v477
    %860 = vmatprep.subr.mxu0 %v482
    %861 = vmatpush1.msra.mxu0 %v481
    %862 = vmatprep.subr.mxu0 %v486
    %863 = vmatpush1.msra.mxu0 %v485
    %864 = vmatprep.subr.mxu0 %v490
    %865 = vmatpush1.msra.mxu0 %v489
    %866 = vmatprep.subr.mxu0 %v494
    %867 = vmatpush1.msra.mxu0 %v493
    %868 = vmatprep.subr.mxu0 %v498
    %869 = vmatpush1.msra.mxu0 %v497
    %870 = vmatprep.subr.mxu0 %v502
    %871 = vmatpush1.msra.mxu0 %v501
    %872 = vmatprep.subr.mxu0 %v506
    %873 = vmatpush1.msra.mxu0 %v505
    %874 = vmatprep.subr.mxu0 %v510
    %875 = vmatpush1.msra.mxu0 %v509
    %876 = vmatprep.subr.mxu0 %v514
    %877 = vmatpush1.msra.mxu0 %v513
    %878 = vmatprep.subr.mxu0 %v518
    %879 = vmatpush1.msra.mxu0 %v517
    %880 = vmatprep.subr.mxu0 %v522
    %881 = vmatpush1.msra.mxu0 %v521
    %882 = vmatprep.subr.mxu0 %v526
    %883 = vmatpush1.msra.mxu0 %v525
    %884 = vmatprep.subr.mxu0 %v530
    %885 = vmatpush1.msra.mxu0 %v529
    %886 = vmatprep.subr.mxu0 %v534
    %887 = vmatpush1.msra.mxu0 %v533
    %888 = vmatprep.subr.mxu0 %v538
    %889 = vmatpush1.msra.mxu0 %v537
    %890 = vmatprep.subr.mxu0 %v542
    %891 = vmatpush1.msra.mxu0 %v541
    %892 = vmatprep.subr.mxu0 %v546
    %893 = vmatpush1.msra.mxu0 %v545
    %894 = vmatprep.subr.mxu0 %v550
    %895 = vmatpush1.msra.mxu0 %v549
    %896 = vmatprep.mubr.f32.mxu0 %v610
    %897 = vmatmul.mubr.f32.gmra.mrb[0].mxu0 %v608
    %v898 = vpop.f32.mrb[0].mxu0
    %v899 = vadd.f32 %v828, %v898
    %v900 = vpop.f32.mrb[0].mxu0
    %v901 = vadd.f32 %v830, %v900
    %902 = vdwg.mxu0
    %903 = vmatprep.subr.mxu0 %v44
    %904 = vmatpush1.msra.mxu0 %v43
    %905 = vmatprep.subr.mxu0 %v48
    %906 = vmatpush1.msra.mxu0 %v47
    %907 = vmatprep.subr.mxu0 %v52
    %908 = vmatpush1.msra.mxu0 %v51
    %909 = vmatprep.subr.mxu0 %v56
    %910 = vmatpush1.msra.mxu0 %v55
    %911 = vmatprep.subr.mxu0 %v60
    %912 = vmatpush1.msra.mxu0 %v59
    %913 = vmatprep.subr.mxu0 %v64
    %914 = vmatpush1.msra.mxu0 %v63
    %915 = vmatprep.subr.mxu0 %v68
    %916 = vmatpush1.msra.mxu0 %v67
    %917 = vmatprep.subr.mxu0 %v72
    %918 = vmatpush1.msra.mxu0 %v71
    %919 = vmatprep.subr.mxu0 %v76
    %920 = vmatpush1.msra.mxu0 %v75
    %921 = vmatprep.subr.mxu0 %v80
    %922 = vmatpush1.msra.mxu0 %v79
    %923 = vmatprep.subr.mxu0 %v84
    %924 = vmatpush1.msra.mxu0 %v83
    %925 = vmatprep.subr.mxu0 %v88
    %926 = vmatpush1.msra.mxu0 %v87
    %927 = vmatprep.subr.mxu0 %v92
    %928 = vmatpush1.msra.mxu0 %v91
    %929 = vmatprep.subr.mxu0 %v96
    %930 = vmatpush1.msra.mxu0 %v95
    %931 = vmatprep.subr.mxu0 %v100
    %932 = vmatpush1.msra.mxu0 %v99
    %933 = vmatprep.subr.mxu0 %v104
    %934 = vmatpush1.msra.mxu0 %v103
    %935 = vmatprep.subr.mxu0 %v108
    %936 = vmatpush1.msra.mxu0 %v107
    %937 = vmatprep.subr.mxu0 %v112
    %938 = vmatpush1.msra.mxu0 %v111
    %939 = vmatprep.subr.mxu0 %v116
    %940 = vmatpush1.msra.mxu0 %v115
    %941 = vmatprep.subr.mxu0 %v120
    %942 = vmatpush1.msra.mxu0 %v119
    %943 = vmatprep.subr.mxu0 %v124
    %944 = vmatpush1.msra.mxu0 %v123
    %945 = vmatprep.subr.mxu0 %v128
    %946 = vmatpush1.msra.mxu0 %v127
    %947 = vmatprep.subr.mxu0 %v132
    %948 = vmatpush1.msra.mxu0 %v131
    %949 = vmatprep.subr.mxu0 %v136
    %950 = vmatpush1.msra.mxu0 %v135
    %951 = vmatprep.subr.mxu0 %v140
    %952 = vmatpush1.msra.mxu0 %v139
    %953 = vmatprep.subr.mxu0 %v144
    %954 = vmatpush1.msra.mxu0 %v143
    %955 = vmatprep.subr.mxu0 %v148
    %956 = vmatpush1.msra.mxu0 %v147
    %957 = vmatprep.subr.mxu0 %v152
    %958 = vmatpush1.msra.mxu0 %v151
    %959 = vmatprep.subr.mxu0 %v156
    %960 = vmatpush1.msra.mxu0 %v155
    %961 = vmatprep.subr.mxu0 %v160
    %962 = vmatpush1.msra.mxu0 %v159
    %963 = vmatprep.subr.mxu0 %v164
    %964 = vmatpush1.msra.mxu0 %v163
    %965 = vmatprep.subr.mxu0 %v168
    %966 = vmatpush1.msra.mxu0 %v167
    %967 = vmatprep.mubr.f32.mxu0 %v592
    %968 = vmatmul.mubr.f32.gmra.mrb[0].mxu0 %v584
    %v969 = vpop.f32.mrb[0].mxu0
    %v970 = vadd.f32 %v566, %v969
    %v971 = vpop.f32.mrb[0].mxu0
    %v972 = vadd.f32 %v570, %v971
    %973 = vdwg.mxu0
    %974 = vmatprep.subr.mxu0 %v172
    %975 = vmatpush1.msra.mxu0 %v171
    %976 = vmatprep.subr.mxu0 %v176
    %977 = vmatpush1.msra.mxu0 %v175
    %978 = vmatprep.subr.mxu0 %v180
    %979 = vmatpush1.msra.mxu0 %v179
    %980 = vmatprep.subr.mxu0 %v184
    %981 = vmatpush1.msra.mxu0 %v183
    %982 = vmatprep.subr.mxu0 %v188
    %983 = vmatpush1.msra.mxu0 %v187
    %984 = vmatprep.subr.mxu0 %v192
    %985 = vmatpush1.msra.mxu0 %v191
    %986 = vmatprep.subr.mxu0 %v196
    %987 = vmatpush1.msra.mxu0 %v195
    %988 = vmatprep.subr.mxu0 %v200
    %989 = vmatpush1.msra.mxu0 %v199
    %990 = vmatprep.subr.mxu0 %v204
    %991 = vmatpush1.msra.mxu0 %v203
    %992 = vmatprep.subr.mxu0 %v208
    %993 = vmatpush1.msra.mxu0 %v207
    %994 = vmatprep.subr.mxu0 %v212
    %995 = vmatpush1.msra.mxu0 %v211
    %996 = vmatprep.subr.mxu0 %v216
    %997 = vmatpush1.msra.mxu0 %v215
    %998 = vmatprep.subr.mxu0 %v220
    %999 = vmatpush1.msra.mxu0 %v219
    %1000 = vmatprep.subr.mxu0 %v224
    %1001 = vmatpush1.msra.mxu0 %v223
    %1002 = vmatprep.subr.mxu0 %v228
    %1003 = vmatpush1.msra.mxu0 %v227
    %1004 = vmatprep.subr.mxu0 %v232
    %1005 = vmatpush1.msra.mxu0 %v231
    %1006 = vmatprep.subr.mxu0 %v236
    %1007 = vmatpush1.msra.mxu0 %v235
    %1008 = vmatprep.subr.mxu0 %v240
    %1009 = vmatpush1.msra.mxu0 %v239
    %1010 = vmatprep.subr.mxu0 %v244
    %1011 = vmatpush1.msra.mxu0 %v243
    %1012 = vmatprep.subr.mxu0 %v248
    %1013 = vmatpush1.msra.mxu0 %v247
    %1014 = vmatprep.subr.mxu0 %v252
    %1015 = vmatpush1.msra.mxu0 %v251
    %1016 = vmatprep.subr.mxu0 %v256
    %1017 = vmatpush1.msra.mxu0 %v255
    %1018 = vmatprep.subr.mxu0 %v260
    %1019 = vmatpush1.msra.mxu0 %v259
    %1020 = vmatprep.subr.mxu0 %v264
    %1021 = vmatpush1.msra.mxu0 %v263
    %1022 = vmatprep.subr.mxu0 %v268
    %1023 = vmatpush1.msra.mxu0 %v267
    %1024 = vmatprep.subr.mxu0 %v272
    %1025 = vmatpush1.msra.mxu0 %v271
    %1026 = vmatprep.subr.mxu0 %v276
    %1027 = vmatpush1.msra.mxu0 %v275
    %1028 = vmatprep.subr.mxu0 %v280
    %1029 = vmatpush1.msra.mxu0 %v279
    %1030 = vmatprep.subr.mxu0 %v284
    %1031 = vmatpush1.msra.mxu0 %v283
    %1032 = vmatprep.subr.mxu0 %v288
    %1033 = vmatpush1.msra.mxu0 %v287
    %1034 = vmatprep.subr.mxu0 %v292
    %1035 = vmatpush1.msra.mxu0 %v291
    %1036 = vmatprep.subr.mxu0 %v296
    %1037 = vmatpush1.msra.mxu0 %v295
    %1038 = vmatprep.mubr.f32.mxu0 %v593
    %1039 = vmatmul.mubr.f32.gmra.mrb[0].mxu0 %v591
    %v1040 = vpop.f32.mrb[0].mxu0
    %v1041 = vadd.f32 %v970, %v1040
    %v1042 = vpop.f32.mrb[0].mxu0
    %v1043 = vadd.f32 %v972, %v1042
    %1044 = vdwg.mxu0
    %1045 = vmatprep.subr.mxu0 %v300
    %1046 = vmatpush1.msra.mxu0 %v299
    %1047 = vmatprep.subr.mxu0 %v304
    %1048 = vmatpush1.msra.mxu0 %v303
    %1049 = vmatprep.subr.mxu0 %v308
    %1050 = vmatpush1.msra.mxu0 %v307
    %1051 = vmatprep.subr.mxu0 %v312
    %1052 = vmatpush1.msra.mxu0 %v311
    %1053 = vmatprep.subr.mxu0 %v316
    %1054 = vmatpush1.msra.mxu0 %v315
    %1055 = vmatprep.subr.mxu0 %v320
    %1056 = vmatpush1.msra.mxu0 %v319
    %1057 = vmatprep.subr.mxu0 %v324
    %1058 = vmatpush1.msra.mxu0 %v323
    %1059 = vmatprep.subr.mxu0 %v328
    %1060 = vmatpush1.msra.mxu0 %v327
    %1061 = vmatprep.subr.mxu0 %v332
    %1062 = vmatpush1.msra.mxu0 %v331
    %1063 = vmatprep.subr.mxu0 %v336
    %1064 = vmatpush1.msra.mxu0 %v335
    %1065 = vmatprep.subr.mxu0 %v340
    %1066 = vmatpush1.msra.mxu0 %v339
    %1067 = vmatprep.subr.mxu0 %v344
    %1068 = vmatpush1.msra.mxu0 %v343
    %1069 = vmatprep.subr.mxu0 %v348
    %1070 = vmatpush1.msra.mxu0 %v347
    %1071 = vmatprep.subr.mxu0 %v352
    %1072 = vmatpush1.msra.mxu0 %v351
    %1073 = vmatprep.subr.mxu0 %v356
    %1074 = vmatpush1.msra.mxu0 %v355
    %1075 = vmatprep.subr.mxu0 %v360
    %1076 = vmatpush1.msra.mxu0 %v359
    %1077 = vmatprep.subr.mxu0 %v364
    %1078 = vmatpush1.msra.mxu0 %v363
    %1079 = vmatprep.subr.mxu0 %v368
    %1080 = vmatpush1.msra.mxu0 %v367
    %1081 = vmatprep.subr.mxu0 %v372
    %1082 = vmatpush1.msra.mxu0 %v371
    %1083 = vmatprep.subr.mxu0 %v376
    %1084 = vmatpush1.msra.mxu0 %v375
    %1085 = vmatprep.subr.mxu0 %v380
    %1086 = vmatpush1.msra.mxu0 %v379
    %1087 = vmatprep.subr.mxu0 %v384
    %1088 = vmatpush1.msra.mxu0 %v383
    %1089 = vmatprep.subr.mxu0 %v388
    %1090 = vmatpush1.msra.mxu0 %v387
    %1091 = vmatprep.subr.mxu0 %v392
    %1092 = vmatpush1.msra.mxu0 %v391
    %1093 = vmatprep.subr.mxu0 %v396
    %1094 = vmatpush1.msra.mxu0 %v395
    %1095 = vmatprep.subr.mxu0 %v400
    %1096 = vmatpush1.msra.mxu0 %v399
    %1097 = vmatprep.subr.mxu0 %v404
    %1098 = vmatpush1.msra.mxu0 %v403
    %1099 = vmatprep.subr.mxu0 %v408
    %1100 = vmatpush1.msra.mxu0 %v407
    %1101 = vmatprep.subr.mxu0 %v412
    %1102 = vmatpush1.msra.mxu0 %v411
    %1103 = vmatprep.subr.mxu0 %v416
    %1104 = vmatpush1.msra.mxu0 %v415
    %1105 = vmatprep.subr.mxu0 %v420
    %1106 = vmatpush1.msra.mxu0 %v419
    %1107 = vmatprep.subr.mxu0 %v424
    %1108 = vmatpush1.msra.mxu0 %v423
    %1109 = vmatprep.mubr.f32.mxu0 %v609
    %1110 = vmatmul.mubr.f32.gmra.mrb[0].mxu0 %v601
    %v1111 = vpop.f32.mrb[0].mxu0
    %v1112 = vadd.f32 %v1041, %v1111
    %v1113 = vpop.f32.mrb[0].mxu0
    %v1114 = vadd.f32 %v1043, %v1113
    %1115 = vdwg.mxu0
    %1116 = vmatprep.subr.mxu0 %v428
    %1117 = vmatpush1.msra.mxu0 %v427
    %1118 = vmatprep.subr.mxu0 %v432
    %1119 = vmatpush1.msra.mxu0 %v431
    %1120 = vmatprep.subr.mxu0 %v436
    %1121 = vmatpush1.msra.mxu0 %v435
    %1122 = vmatprep.subr.mxu0 %v440
    %1123 = vmatpush1.msra.mxu0 %v439
    %1124 = vmatprep.subr.mxu0 %v444
    %1125 = vmatpush1.msra.mxu0 %v443
    %1126 = vmatprep.subr.mxu0 %v448
    %1127 = vmatpush1.msra.mxu0 %v447
    %1128 = vmatprep.subr.mxu0 %v452
    %1129 = vmatpush1.msra.mxu0 %v451
    %1130 = vmatprep.subr.mxu0 %v456
    %1131 = vmatpush1.msra.mxu0 %v455
    %1132 = vmatprep.subr.mxu0 %v460
    %1133 = vmatpush1.msra.mxu0 %v459
    %1134 = vmatprep.subr.mxu0 %v464
    %1135 = vmatpush1.msra.mxu0 %v463
    %1136 = vmatprep.subr.mxu0 %v468
    %1137 = vmatpush1.msra.mxu0 %v467
    %1138 = vmatprep.subr.mxu0 %v472
    %1139 = vmatpush1.msra.mxu0 %v471
    %1140 = vmatprep.subr.mxu0 %v476
    %1141 = vmatpush1.msra.mxu0 %v475
    %1142 = vmatprep.subr.mxu0 %v480
    %1143 = vmatpush1.msra.mxu0 %v479
    %1144 = vmatprep.subr.mxu0 %v484
    %1145 = vmatpush1.msra.mxu0 %v483
    %1146 = vmatprep.subr.mxu0 %v488
    %1147 = vmatpush1.msra.mxu0 %v487
    %1148 = vmatprep.subr.mxu0 %v492
    %1149 = vmatpush1.msra.mxu0 %v491
    %1150 = vmatprep.subr.mxu0 %v496
    %1151 = vmatpush1.msra.mxu0 %v495
    %1152 = vmatprep.subr.mxu0 %v500
    %1153 = vmatpush1.msra.mxu0 %v499
    %1154 = vmatprep.subr.mxu0 %v504
    %1155 = vmatpush1.msra.mxu0 %v503
    %1156 = vmatprep.subr.mxu0 %v508
    %1157 = vmatpush1.msra.mxu0 %v507
    %1158 = vmatprep.subr.mxu0 %v512
    %1159 = vmatpush1.msra.mxu0 %v511
    %1160 = vmatprep.subr.mxu0 %v516
    %1161 = vmatpush1.msra.mxu0 %v515
    %1162 = vmatprep.subr.mxu0 %v520
    %1163 = vmatpush1.msra.mxu0 %v519
    %1164 = vmatprep.subr.mxu0 %v524
    %1165 = vmatpush1.msra.mxu0 %v523
    %1166 = vmatprep.subr.mxu0 %v528
    %1167 = vmatpush1.msra.mxu0 %v527
    %1168 = vmatprep.subr.mxu0 %v532
    %1169 = vmatpush1.msra.mxu0 %v531
    %1170 = vmatprep.subr.mxu0 %v536
    %1171 = vmatpush1.msra.mxu0 %v535
    %1172 = vmatprep.subr.mxu0 %v540
    %1173 = vmatpush1.msra.mxu0 %v539
    %1174 = vmatprep.subr.mxu0 %v544
    %1175 = vmatpush1.msra.mxu0 %v543
    %1176 = vmatprep.subr.mxu0 %v548
    %1177 = vmatpush1.msra.mxu0 %v547
    %1178 = vmatprep.subr.mxu0 %v552
    %1179 = vmatpush1.msra.mxu0 %v551
    %1180 = vmatprep.mubr.f32.mxu0 %v610
    %1181 = vmatmul.mubr.f32.gmra.mrb[0].mxu0 %v608
    %v1182 = vpop.f32.mrb[0].mxu0
    %v1183 = vadd.f32 %v1112, %v1182
    %v1184 = vpop.f32.mrb[0].mxu0
    %v1185 = vadd.f32 %v1114, %v1184
    %1186 = vdwg.mxu0
    %v1187 = vmax.f32 %v899, 0.0
    %v1188 = vmax.f32 %v901, 0.0
    %v1189 = vmax.f32 %v1183, 0.0
    %v1190 = vmax.f32 %v1185, 0.0
    %v1191 = vld [vmem:[%s4] sm:$0xff]
    %v1192 = vld [vmem:[%s4 + $0x8] sm:$0xff]
    %v1193 = vld [vmem:[%s4 + $0x10] sm:$0xff]
    %v1194 = vld [vmem:[%s4 + $0x18] sm:$0xff]
    %v1195 = vld [vmem:[%s4 + $0x20] sm:$0xff]
    %v1196 = vld [vmem:[%s4 + $0x28] sm:$0xff]
    %v1197 = vld [vmem:[%s4 + $0x30] sm:$0xff]
    %v1198 = vld [vmem:[%s4 + $0x38] sm:$0xff]
    %v1199 = vld [vmem:[%s4 + $0x40] sm:$0xff]
    %v1200 = vld [vmem:[%s4 + $0x48] sm:$0xff]
    %v1201 = vld [vmem:[%s4 + $0x50] sm:$0xff]
    %v1202 = vld [vmem:[%s4 + $0x58] sm:$0xff]
    %v1203 = vld [vmem:[%s4 + $0x60] sm:$0xff]
    %v1204 = vld [vmem:[%s4 + $0x68] sm:$0xff]
    %v1205 = vld [vmem:[%s4 + $0x70] sm:$0xff]
    %v1206 = vld [vmem:[%s4 + $0x78] sm:$0xff]
    %v1207 = vld [vmem:[%s4 + $0x80] sm:$0xff]
    %v1208 = vld [vmem:[%s4 + $0x88] sm:$0xff]
    %v1209 = vld [vmem:[%s4 + $0x90] sm:$0xff]
    %v1210 = vld [vmem:[%s4 + $0x98] sm:$0xff]
    %v1211 = vld [vmem:[%s4 + $0xa0] sm:$0xff]
    %v1212 = vld [vmem:[%s4 + $0xa8] sm:$0xff]
    %v1213 = vld [vmem:[%s4 + $0xb0] sm:$0xff]
    %v1214 = vld [vmem:[%s4 + $0xb8] sm:$0xff]
    %v1215 = vld [vmem:[%s4 + $0xc0] sm:$0xff]
    %v1216 = vld [vmem:[%s4 + $0xc8] sm:$0xff]
    %v1217 = vld [vmem:[%s4 + $0xd0] sm:$0xff]
    %v1218 = vld [vmem:[%s4 + $0xd8] sm:$0xff]
    %v1219 = vld [vmem:[%s4 + $0xe0] sm:$0xff]
    %v1220 = vld [vmem:[%s4 + $0xe8] sm:$0xff]
    %v1221 = vld [vmem:[%s4 + $0xf0] sm:$0xff]
    %v1222 = vld [vmem:[%s4 + $0xf8] sm:$0xff]
    %v1223 = vld [vmem:[%s4 + $0x100] sm:$0xff]
    %v1224 = vld [vmem:[%s4 + $0x108] sm:$0xff]
    %v1225 = vld [vmem:[%s4 + $0x110] sm:$0xff]
    %v1226 = vld [vmem:[%s4 + $0x118] sm:$0xff]
    %v1227 = vld [vmem:[%s4 + $0x120] sm:$0xff]
    %v1228 = vld [vmem:[%s4 + $0x128] sm:$0xff]
    %v1229 = vld [vmem:[%s4 + $0x130] sm:$0xff]
    %v1230 = vld [vmem:[%s4 + $0x138] sm:$0xff]
    %v1231 = vld [vmem:[%s4 + $0x140] sm:$0xff]
    %v1232 = vld [vmem:[%s4 + $0x148] sm:$0xff]
    %v1233 = vld [vmem:[%s4 + $0x150] sm:$0xff]
    %v1234 = vld [vmem:[%s4 + $0x158] sm:$0xff]
    %v1235 = vld [vmem:[%s4 + $0x160] sm:$0xff]
    %v1236 = vld [vmem:[%s4 + $0x168] sm:$0xff]
    %v1237 = vld [vmem:[%s4 + $0x170] sm:$0xff]
    %v1238 = vld [vmem:[%s4 + $0x178] sm:$0xff]
    %v1239 = vld [vmem:[%s4 + $0x180] sm:$0xff]
    %v1240 = vld [vmem:[%s4 + $0x188] sm:$0xff]
    %v1241 = vld [vmem:[%s4 + $0x190] sm:$0xff]
    %v1242 = vld [vmem:[%s4 + $0x198] sm:$0xff]
    %v1243 = vld [vmem:[%s4 + $0x1a0] sm:$0xff]
    %v1244 = vld [vmem:[%s4 + $0x1a8] sm:$0xff]
    %v1245 = vld [vmem:[%s4 + $0x1b0] sm:$0xff]
    %v1246 = vld [vmem:[%s4 + $0x1b8] sm:$0xff]
    %v1247 = vld [vmem:[%s4 + $0x1c0] sm:$0xff]
    %v1248 = vld [vmem:[%s4 + $0x1c8] sm:$0xff]
    %v1249 = vld [vmem:[%s4 + $0x1d0] sm:$0xff]
    %v1250 = vld [vmem:[%s4 + $0x1d8] sm:$0xff]
    %v1251 = vld [vmem:[%s4 + $0x1e0] sm:$0xff]
    %v1252 = vld [vmem:[%s4 + $0x1e8] sm:$0xff]
    %v1253 = vld [vmem:[%s4 + $0x1f0] sm:$0xff]
    %v1254 = vld [vmem:[%s4 + $0x1f8] sm:$0xff]
    %v1255 = vld [vmem:[%s5] sm:$0x1]
    %v1257 = vlaneseq
    %v1258 = vshrl.u32 %v1257, 7
    %v1259 = vsub.s32 0, %v1258
    %v1260 = vrot.slane %v1255, %v1259
    %1262 = vmatprep.subr.mxu0 0.0
    %1263 = vmatpush1.msra.mxu0 %v1191
    %1264 = vmatprep.subr.mxu0 0.0
    %1265 = vmatpush1.msra.mxu0 %v1192
    %1266 = vmatprep.subr.mxu0 0.0
    %1267 = vmatpush1.msra.mxu0 %v1193
    %1268 = vmatprep.subr.mxu0 0.0
    %1269 = vmatpush1.msra.mxu0 %v1194
    %1270 = vmatprep.subr.mxu0 0.0
    %1271 = vmatpush1.msra.mxu0 %v1195
    %1272 = vmatprep.subr.mxu0 0.0
    %1273 = vmatpush1.msra.mxu0 %v1196
    %1274 = vmatprep.subr.mxu0 0.0
    %1275 = vmatpush1.msra.mxu0 %v1197
    %1276 = vmatprep.subr.mxu0 0.0
    %1277 = vmatpush1.msra.mxu0 %v1198
    %1278 = vmatprep.subr.mxu0 0.0
    %1279 = vmatpush1.msra.mxu0 %v1199
    %1280 = vmatprep.subr.mxu0 0.0
    %1281 = vmatpush1.msra.mxu0 %v1200
    %1282 = vmatprep.subr.mxu0 0.0
    %1283 = vmatpush1.msra.mxu0 %v1201
    %1284 = vmatprep.subr.mxu0 0.0
    %1285 = vmatpush1.msra.mxu0 %v1202
    %1286 = vmatprep.subr.mxu0 0.0
    %1287 = vmatpush1.msra.mxu0 %v1203
    %1288 = vmatprep.subr.mxu0 0.0
    %1289 = vmatpush1.msra.mxu0 %v1204
    %1290 = vmatprep.subr.mxu0 0.0
    %1291 = vmatpush1.msra.mxu0 %v1205
    %1292 = vmatprep.subr.mxu0 0.0
    %1293 = vmatpush1.msra.mxu0 %v1206
    %1294 = vmatprep.subr.mxu0 0.0
    %1295 = vmatpush1.msra.mxu0 %v1207
    %1296 = vmatprep.subr.mxu0 0.0
    %1297 = vmatpush1.msra.mxu0 %v1208
    %1298 = vmatprep.subr.mxu0 0.0
    %1299 = vmatpush1.msra.mxu0 %v1209
    %1300 = vmatprep.subr.mxu0 0.0
    %1301 = vmatpush1.msra.mxu0 %v1210
    %1302 = vmatprep.subr.mxu0 0.0
    %1303 = vmatpush1.msra.mxu0 %v1211
    %1304 = vmatprep.subr.mxu0 0.0
    %1305 = vmatpush1.msra.mxu0 %v1212
    %1306 = vmatprep.subr.mxu0 0.0
    %1307 = vmatpush1.msra.mxu0 %v1213
    %1308 = vmatprep.subr.mxu0 0.0
    %1309 = vmatpush1.msra.mxu0 %v1214
    %1310 = vmatprep.subr.mxu0 0.0
    %1311 = vmatpush1.msra.mxu0 %v1215
    %1312 = vmatprep.subr.mxu0 0.0
    %1313 = vmatpush1.msra.mxu0 %v1216
    %1314 = vmatprep.subr.mxu0 0.0
    %1315 = vmatpush1.msra.mxu0 %v1217
    %1316 = vmatprep.subr.mxu0 0.0
    %1317 = vmatpush1.msra.mxu0 %v1218
    %1318 = vmatprep.subr.mxu0 0.0
    %1319 = vmatpush1.msra.mxu0 %v1219
    %1320 = vmatprep.subr.mxu0 0.0
    %1321 = vmatpush1.msra.mxu0 %v1220
    %1322 = vmatprep.subr.mxu0 0.0
    %1323 = vmatpush1.msra.mxu0 %v1221
    %1324 = vmatprep.subr.mxu0 0.0
    %1325 = vmatpush1.msra.mxu0 %v1222
    %1326 = vmatprep.mubr.f32.mxu0 %v1188
    %1327 = vmatmul.mubr.f32.gmra.mrb[0].mxu0 %v1187
    %v1328 = vpop.f32.mrb[0].mxu0
    %v1329 = vadd.f32 %v1260, %v1328
    %v1330 = vpop.f32.mrb[0].mxu0
    %1331 = vdwg.mxu0
    %1332 = vmatprep.subr.mxu0 0.0
    %1333 = vmatpush1.msra.mxu0 %v1223
    %1334 = vmatprep.subr.mxu0 0.0
    %1335 = vmatpush1.msra.mxu0 %v1224
    %1336 = vmatprep.subr.mxu0 0.0
    %1337 = vmatpush1.msra.mxu0 %v1225
    %1338 = vmatprep.subr.mxu0 0.0
    %1339 = vmatpush1.msra.mxu0 %v1226
    %1340 = vmatprep.subr.mxu0 0.0
    %1341 = vmatpush1.msra.mxu0 %v1227
    %1342 = vmatprep.subr.mxu0 0.0
    %1343 = vmatpush1.msra.mxu0 %v1228
    %1344 = vmatprep.subr.mxu0 0.0
    %1345 = vmatpush1.msra.mxu0 %v1229
    %1346 = vmatprep.subr.mxu0 0.0
    %1347 = vmatpush1.msra.mxu0 %v1230
    %1348 = vmatprep.subr.mxu0 0.0
    %1349 = vmatpush1.msra.mxu0 %v1231
    %1350 = vmatprep.subr.mxu0 0.0
    %1351 = vmatpush1.msra.mxu0 %v1232
    %1352 = vmatprep.subr.mxu0 0.0
    %1353 = vmatpush1.msra.mxu0 %v1233
    %1354 = vmatprep.subr.mxu0 0.0
    %1355 = vmatpush1.msra.mxu0 %v1234
    %1356 = vmatprep.subr.mxu0 0.0
    %1357 = vmatpush1.msra.mxu0 %v1235
    %1358 = vmatprep.subr.mxu0 0.0
    %1359 = vmatpush1.msra.mxu0 %v1236
    %1360 = vmatprep.subr.mxu0 0.0
    %1361 = vmatpush1.msra.mxu0 %v1237
    %1362 = vmatprep.subr.mxu0 0.0
    %1363 = vmatpush1.msra.mxu0 %v1238
    %1364 = vmatprep.subr.mxu0 0.0
    %1365 = vmatpush1.msra.mxu0 %v1239
    %1366 = vmatprep.subr.mxu0 0.0
    %1367 = vmatpush1.msra.mxu0 %v1240
    %1368 = vmatprep.subr.mxu0 0.0
    %1369 = vmatpush1.msra.mxu0 %v1241
    %1370 = vmatprep.subr.mxu0 0.0
    %1371 = vmatpush1.msra.mxu0 %v1242
    %1372 = vmatprep.subr.mxu0 0.0
    %1373 = vmatpush1.msra.mxu0 %v1243
    %1374 = vmatprep.subr.mxu0 0.0
    %1375 = vmatpush1.msra.mxu0 %v1244
    %1376 = vmatprep.subr.mxu0 0.0
    %1377 = vmatpush1.msra.mxu0 %v1245
    %1378 = vmatprep.subr.mxu0 0.0
    %1379 = vmatpush1.msra.mxu0 %v1246
    %1380 = vmatprep.subr.mxu0 0.0
    %1381 = vmatpush1.msra.mxu0 %v1247
    %1382 = vmatprep.subr.mxu0 0.0
    %1383 = vmatpush1.msra.mxu0 %v1248
    %1384 = vmatprep.subr.mxu0 0.0
    %1385 = vmatpush1.msra.mxu0 %v1249
    %1386 = vmatprep.subr.mxu0 0.0
    %1387 = vmatpush1.msra.mxu0 %v1250
    %1388 = vmatprep.subr.mxu0 0.0
    %1389 = vmatpush1.msra.mxu0 %v1251
    %1390 = vmatprep.subr.mxu0 0.0
    %1391 = vmatpush1.msra.mxu0 %v1252
    %1392 = vmatprep.subr.mxu0 0.0
    %1393 = vmatpush1.msra.mxu0 %v1253
    %1394 = vmatprep.subr.mxu0 0.0
    %1395 = vmatpush1.msra.mxu0 %v1254
    %1396 = vmatprep.mubr.f32.mxu0 %v1190
    %1397 = vmatmul.mubr.f32.gmra.mrb[0].mxu0 %v1189
    %v1398 = vpop.f32.mrb[0].mxu0
    %v1399 = vadd.f32 %v1329, %v1398
    %v1400 = vpop.f32.mrb[0].mxu0
    %1401 = vdwg.mxu0
    %v1402 = vmax.f32 %v1399, 0.0
    %v1403 = vld [vmem:[%s0] sm:$0x3]
    %v1404 = vld [vmem:[%s6] sm:$0xff]
    %v1405 = vld [vmem:[%s6 + $0x8] sm:$0xff]
    %v1406 = vld [vmem:[%s6 + $0x10] sm:$0xff]
    %v1407 = vld [vmem:[%s6 + $0x18] sm:$0xff]
    %v1408 = vld [vmem:[%s6 + $0x20] sm:$0xff]
    %v1409 = vld [vmem:[%s6 + $0x28] sm:$0xff]
    %v1410 = vld [vmem:[%s6 + $0x30] sm:$0xff]
    %v1411 = vld [vmem:[%s6 + $0x38] sm:$0xff]
    %v1412 = vld [vmem:[%s6 + $0x40] sm:$0xff]
    %v1413 = vld [vmem:[%s6 + $0x48] sm:$0xff]
    %v1414 = vld [vmem:[%s6 + $0x50] sm:$0xff]
    %v1415 = vld [vmem:[%s6 + $0x58] sm:$0xff]
    %v1416 = vld [vmem:[%s6 + $0x60] sm:$0xff]
    %v1417 = vld [vmem:[%s6 + $0x68] sm:$0xff]
    %v1418 = vld [vmem:[%s6 + $0x70] sm:$0xff]
    %v1419 = vld [vmem:[%s6 + $0x78] sm:$0xff]
    %v1420 = vld [vmem:[%s7] sm:$0xff]
    %v1421 = vld [vmem:[%s7 + $0x8] sm:$0xff]
    %v1422 = vld [vmem:[%s7 + $0x10] sm:$0xff]
    %v1423 = vld [vmem:[%s7 + $0x18] sm:$0xff]
    %vm1424 = vcmask 261120
    %v1426 = vsel %vm1424, %v1402, 0
    %1428 = vmatprep.subr.mxu0 0.0
    %1429 = vmatpush1.msra.mxu0 %v1420
    %1430 = vmatprep.subr.mxu0 0.0
    %1431 = vmatpush1.msra.mxu0 %v1421
    %1432 = vmatprep.subr.mxu0 0.0
    %1433 = vmatpush1.msra.mxu0 %v1422
    %1434 = vmatprep.subr.mxu0 0.0
    %1435 = vmatpush1.msra.mxu0 %v1423
    %1436 = vmatprep.subr.mxu0 0.0
    %1437 = vmatpush1.msra.mxu0 0.0
    %1438 = vmatprep.subr.mxu0 0.0
    %1439 = vmatpush1.msra.mxu0 0.0
    %1440 = vmatprep.subr.mxu0 0.0
    %1441 = vmatpush1.msra.mxu0 0.0
    %1442 = vmatprep.subr.mxu0 0.0
    %1443 = vmatpush1.msra.mxu0 0.0
    %1444 = vmatprep.subr.mxu0 0.0
    %1445 = vmatpush1.msra.mxu0 0.0
    %1446 = vmatprep.subr.mxu0 0.0
    %1447 = vmatpush1.msra.mxu0 0.0
    %1448 = vmatprep.subr.mxu0 0.0
    %1449 = vmatpush1.msra.mxu0 0.0
    %1450 = vmatprep.subr.mxu0 0.0
    %1451 = vmatpush1.msra.mxu0 0.0
    %1452 = vmatprep.subr.mxu0 0.0
    %1453 = vmatpush1.msra.mxu0 0.0
    %1454 = vmatprep.subr.mxu0 0.0
    %1455 = vmatpush1.msra.mxu0 0.0
    %1456 = vmatprep.subr.mxu0 0.0
    %1457 = vmatpush1.msra.mxu0 0.0
    %1458 = vmatprep.subr.mxu0 0.0
    %1459 = vmatpush1.msra.mxu0 0.0
    %1460 = vmatprep.subr.mxu0 0.0
    %1461 = vmatpush1.msra.mxu0 0.0
    %1462 = vmatprep.subr.mxu0 0.0
    %1463 = vmatpush1.msra.mxu0 0.0
    %1464 = vmatprep.subr.mxu0 0.0
    %1465 = vmatpush1.msra.mxu0 0.0
    %1466 = vmatprep.subr.mxu0 0.0
    %1467 = vmatpush1.msra.mxu0 0.0
    %1468 = vmatprep.subr.mxu0 0.0
    %1469 = vmatpush1.msra.mxu0 0.0
    %1470 = vmatprep.subr.mxu0 0.0
    %1471 = vmatpush1.msra.mxu0 0.0
    %1472 = vmatprep.subr.mxu0 0.0
    %1473 = vmatpush1.msra.mxu0 0.0
    %1474 = vmatprep.subr.mxu0 0.0
    %1475 = vmatpush1.msra.mxu0 0.0
    %1476 = vmatprep.subr.mxu0 0.0
    %1477 = vmatpush1.msra.mxu0 0.0
    %1478 = vmatprep.subr.mxu0 0.0
    %1479 = vmatpush1.msra.mxu0 0.0
    %1480 = vmatprep.subr.mxu0 0.0
    %1481 = vmatpush1.msra.mxu0 0.0
    %1482 = vmatprep.subr.mxu0 0.0
    %1483 = vmatpush1.msra.mxu0 0.0
    %1484 = vmatprep.subr.mxu0 0.0
    %1485 = vmatpush1.msra.mxu0 0.0
    %1486 = vmatprep.subr.mxu0 0.0
    %1487 = vmatpush1.msra.mxu0 0.0
    %1488 = vmatprep.subr.mxu0 0.0
    %1489 = vmatpush1.msra.mxu0 0.0
    %1490 = vmatprep.subr.mxu0 0.0
    %1491 = vmatpush1.msra.mxu0 0.0
    %1492 = vmatprep.mubr.f32.mxu0 0.0
    %1493 = vmatmul.mubr.f32.gmra.mrb[0].mxu0 %v1426
    %v1494 = vpop.f32.mrb[0].mxu0
    %v1495 = vadd.f32 0.0, %v1494
    %v1496 = vpop.f32.mrb[0].mxu0
    %1497 = vdwg.mxu0
    %1498 = vmatprep.subr.mxu0 0.0
    %1499 = vmatpush1.msra.mxu0 %v1404
    %1500 = vmatprep.subr.mxu0 0.0
    %1501 = vmatpush1.msra.mxu0 %v1405
    %1502 = vmatprep.subr.mxu0 0.0
    %1503 = vmatpush1.msra.mxu0 %v1406
    %1504 = vmatprep.subr.mxu0 0.0
    %1505 = vmatpush1.msra.mxu0 %v1407
    %1506 = vmatprep.subr.mxu0 0.0
    %1507 = vmatpush1.msra.mxu0 %v1408
    %1508 = vmatprep.subr.mxu0 0.0
    %1509 = vmatpush1.msra.mxu0 %v1409
    %1510 = vmatprep.subr.mxu0 0.0
    %1511 = vmatpush1.msra.mxu0 %v1410
    %1512 = vmatprep.subr.mxu0 0.0
    %1513 = vmatpush1.msra.mxu0 %v1411
    %1514 = vmatprep.subr.mxu0 0.0
    %1515 = vmatpush1.msra.mxu0 %v1412
    %1516 = vmatprep.subr.mxu0 0.0
    %1517 = vmatpush1.msra.mxu0 %v1413
    %1518 = vmatprep.subr.mxu0 0.0
    %1519 = vmatpush1.msra.mxu0 %v1414
    %1520 = vmatprep.subr.mxu0 0.0
    %1521 = vmatpush1.msra.mxu0 %v1415
    %1522 = vmatprep.subr.mxu0 0.0
    %1523 = vmatpush1.msra.mxu0 %v1416
    %1524 = vmatprep.subr.mxu0 0.0
    %1525 = vmatpush1.msra.mxu0 %v1417
    %1526 = vmatprep.subr.mxu0 0.0
    %1527 = vmatpush1.msra.mxu0 %v1418
    %1528 = vmatprep.subr.mxu0 0.0
    %1529 = vmatpush1.msra.mxu0 %v1419
    %1530 = vmatprep.subr.mxu0 0.0
    %1531 = vmatpush1.msra.mxu0 0.0
    %1532 = vmatprep.subr.mxu0 0.0
    %1533 = vmatpush1.msra.mxu0 0.0
    %1534 = vmatprep.subr.mxu0 0.0
    %1535 = vmatpush1.msra.mxu0 0.0
    %1536 = vmatprep.subr.mxu0 0.0
    %1537 = vmatpush1.msra.mxu0 0.0
    %1538 = vmatprep.subr.mxu0 0.0
    %1539 = vmatpush1.msra.mxu0 0.0
    %1540 = vmatprep.subr.mxu0 0.0
    %1541 = vmatpush1.msra.mxu0 0.0
    %1542 = vmatprep.subr.mxu0 0.0
    %1543 = vmatpush1.msra.mxu0 0.0
    %1544 = vmatprep.subr.mxu0 0.0
    %1545 = vmatpush1.msra.mxu0 0.0
    %1546 = vmatprep.subr.mxu0 0.0
    %1547 = vmatpush1.msra.mxu0 0.0
    %1548 = vmatprep.subr.mxu0 0.0
    %1549 = vmatpush1.msra.mxu0 0.0
    %1550 = vmatprep.subr.mxu0 0.0
    %1551 = vmatpush1.msra.mxu0 0.0
    %1552 = vmatprep.subr.mxu0 0.0
    %1553 = vmatpush1.msra.mxu0 0.0
    %1554 = vmatprep.subr.mxu0 0.0
    %1555 = vmatpush1.msra.mxu0 0.0
    %1556 = vmatprep.subr.mxu0 0.0
    %1557 = vmatpush1.msra.mxu0 0.0
    %1558 = vmatprep.subr.mxu0 0.0
    %1559 = vmatpush1.msra.mxu0 0.0
    %1560 = vmatprep.subr.mxu0 0.0
    %1561 = vmatpush1.msra.mxu0 0.0
    %1562 = vmatprep.mubr.f32.mxu0 0.0
    %1563 = vmatmul.mubr.f32.gmra.mrb[0].mxu0 %v1403
    %v1564 = vpop.f32.mrb[0].mxu0
    %v1565 = vadd.f32 %v1495, %v1564
    %v1566 = vpop.f32.mrb[0].mxu0
    %1567 = vdwg.mxu0
    %v1568 = vld [vmem:[%s8] sm:$0x1]
    %v1570 = vlaneseq
    %v1571 = vshrl.u32 %v1570, 7
    %v1572 = vsub.s32 0, %v1571
    %v1573 = vrot.slane %v1568, %v1572
    %v1575 = vadd.f32 %v1565, %v1573
    %v1576 = vmax.f32 %v1575, 0.0
    %v1577 = vld [vmem:[%s9] sm:$0xff]
    %v1578 = vld [vmem:[%s9 + $0x8] sm:$0xff]
    %v1579 = vld [vmem:[%s9 + $0x10] sm:$0xff]
    %v1580 = vld [vmem:[%s9 + $0x18] sm:$0xff]
    %v1581 = vld [vmem:[%s10] sm:$0x1]
    %v1583 = vlaneseq
    %v1584 = vshrl.u32 %v1583, 7
    %v1585 = vsub.s32 0, %v1584
    %v1586 = vrot.slane %v1581, %v1585
    %v1589 = vsel %vm1424, %v1576, 0
    %1591 = vmatprep.subr.mxu0 0.0
    %1592 = vmatpush1.msra.mxu0 %v1577
    %1593 = vmatprep.subr.mxu0 0.0
    %1594 = vmatpush1.msra.mxu0 %v1578
    %1595 = vmatprep.subr.mxu0 0.0
    %1596 = vmatpush1.msra.mxu0 %v1579
    %1597 = vmatprep.subr.mxu0 0.0
    %1598 = vmatpush1.msra.mxu0 %v1580
    %1599 = vmatprep.subr.mxu0 0.0
    %1600 = vmatpush1.msra.mxu0 0.0
    %1601 = vmatprep.subr.mxu0 0.0
    %1602 = vmatpush1.msra.mxu0 0.0
    %1603 = vmatprep.subr.mxu0 0.0
    %1604 = vmatpush1.msra.mxu0 0.0
    %1605 = vmatprep.subr.mxu0 0.0
    %1606 = vmatpush1.msra.mxu0 0.0
    %1607 = vmatprep.subr.mxu0 0.0
    %1608 = vmatpush1.msra.mxu0 0.0
    %1609 = vmatprep.subr.mxu0 0.0
    %1610 = vmatpush1.msra.mxu0 0.0
    %1611 = vmatprep.subr.mxu0 0.0
    %1612 = vmatpush1.msra.mxu0 0.0
    %1613 = vmatprep.subr.mxu0 0.0
    %1614 = vmatpush1.msra.mxu0 0.0
    %1615 = vmatprep.subr.mxu0 0.0
    %1616 = vmatpush1.msra.mxu0 0.0
    %1617 = vmatprep.subr.mxu0 0.0
    %1618 = vmatpush1.msra.mxu0 0.0
    %1619 = vmatprep.subr.mxu0 0.0
    %1620 = vmatpush1.msra.mxu0 0.0
    %1621 = vmatprep.subr.mxu0 0.0
    %1622 = vmatpush1.msra.mxu0 0.0
    %1623 = vmatprep.subr.mxu0 0.0
    %1624 = vmatpush1.msra.mxu0 0.0
    %1625 = vmatprep.subr.mxu0 0.0
    %1626 = vmatpush1.msra.mxu0 0.0
    %1627 = vmatprep.subr.mxu0 0.0
    %1628 = vmatpush1.msra.mxu0 0.0
    %1629 = vmatprep.subr.mxu0 0.0
    %1630 = vmatpush1.msra.mxu0 0.0
    %1631 = vmatprep.subr.mxu0 0.0
    %1632 = vmatpush1.msra.mxu0 0.0
    %1633 = vmatprep.subr.mxu0 0.0
    %1634 = vmatpush1.msra.mxu0 0.0
    %1635 = vmatprep.subr.mxu0 0.0
    %1636 = vmatpush1.msra.mxu0 0.0
    %1637 = vmatprep.subr.mxu0 0.0
    %1638 = vmatpush1.msra.mxu0 0.0
    %1639 = vmatprep.subr.mxu0 0.0
    %1640 = vmatpush1.msra.mxu0 0.0
    %1641 = vmatprep.subr.mxu0 0.0
    %1642 = vmatpush1.msra.mxu0 0.0
    %1643 = vmatprep.subr.mxu0 0.0
    %1644 = vmatpush1.msra.mxu0 0.0
    %1645 = vmatprep.subr.mxu0 0.0
    %1646 = vmatpush1.msra.mxu0 0.0
    %1647 = vmatprep.subr.mxu0 0.0
    %1648 = vmatpush1.msra.mxu0 0.0
    %1649 = vmatprep.subr.mxu0 0.0
    %1650 = vmatpush1.msra.mxu0 0.0
    %1651 = vmatprep.subr.mxu0 0.0
    %1652 = vmatpush1.msra.mxu0 0.0
    %1653 = vmatprep.subr.mxu0 0.0
    %1654 = vmatpush1.msra.mxu0 0.0
    %1655 = vmatprep.mubr.f32.mxu0 0.0
    %1656 = vmatmul.mubr.f32.gmra.mrb[0].mxu0 %v1589
    %v1657 = vpop.f32.mrb[0].mxu0
    %v1658 = vadd.f32 %v1586, %v1657
    %v1659 = vpop.f32.mrb[0].mxu0
    %1660 = vdwg.mxu0
    %vm1661 = vcmask 17408
    %v1662 = vsel %vm1661, %v1658, -inf
    %1663 = vmax.xlane.f32.xlu0 %v1662
    %v1664 = vpop.xlane.xlu0 %1663
    %v1665 = vsub.f32 %v1658, %v1664
    %v1666 = vmul.f32 %v1665, 1.442695
    %v1667 = vpow.pop %v1666
    %v1668 = vsel %vm1661, %v1667, 0.0
    %1669 = vadd.xlane.f32.xlu0 %v1668
    %v1670 = vpop.xlane.xlu0 %1669
    %v1671 = vrcp.pop %v1670
    %v1672 = vmul.f32 %v1667, %v1671
    %1673 = vst.msk [vmem:[#allocation2] sm:$0x3] %vm1661, %v1672
    // Predicated region
    $region46: #{pointgat_forward.13} parent=1 // pred_check
      _
    $region47: #{pointgat_forward.13} parent=1 // pred_check_branch
      %1675 = sbr.rel (0) target = $region49
    $region48: #{pointgat_forward.13} parent=1 // pred_region
      %s1677 = ssub.s32 32, 32
      %1678 = vsyncadd [#allocation3], %s1677
      %s1680 = sshll.u32 [#allocation2], 4
      %s1681 = int_to_ptr.vmem [resolvable:$true] %s1680
      %1683 = dma.vmem_to_hbm [thread:$0]  %s1681, 32, %s11, [#allocation3]
    $region49: #{pointgat_forward.13} parent=1 // pred_fallthru
      _
    // Predicated region
    $region50: #{pointgat_forward.13} parent=1 // pred_check
      _
    $region51: #{pointgat_forward.13} parent=1 // pred_check_branch
      %1685 = sbr.rel (0) target = $region53
    $region52: #{pointgat_forward.13} parent=1 // pred_region
      %1686 = dma.done [#allocation3], 32
    $region53: #{pointgat_forward.13} parent=1 // pred_fallthru
      _
    %1687 = vsyncpa [#allocation3], 1

</llo_original>
